<compile_context>
chip_gen: v6e
topology: v6e:2x2x1
jax: 0.10.0
libtpu: 0.0.40
codegen_flags: <defaults>
</compile_context>

<pallas_src>
import numpy as np
import jax
import jax.numpy as jnp
from jax import lax
from jax.experimental import pallas as pl
from jax.experimental.pallas import tpu as pltpu

_F32 = jnp.float32
_BF16 = jnp.bfloat16
_MIN_CH = 8  # pad degenerate channel dims (Cin=1 / Cout=1) up to 8 for clean MXU shapes


def _round_up(x, m):
    return (x + m - 1) // m * m


# ---------------------------------------------------------------------------
# In-kernel building blocks (traced inline; everything stays in VMEM / vregs)
# ---------------------------------------------------------------------------
def _conv3x3_relu_pool(xb, H, W, w_ref, b_ref, p_ref, xs_ref):
    """Conv2d(3x3, stride 1, 'same') + bias + ReLU + MaxPool2d(2, 2).

    xb:     [H*W, Cin]  bf16 flattened feature map (channels on lanes)
    w_ref:  [9, Cin, Cout] bf16, w_ref[kh*3+kw] = W_torch[:, :, kh, kw].T
    b_ref:  [1, Cout]   f32
    p_ref:  [4, H*W/4, H*W] bf16 0/1 max-pool selection matrices
    xs_ref: [head + H*W + W + 1, Cin] f32 VMEM scratch (zero halo)
    returns [H*W/4, Cout] bf16
    """
    S = H * W
    head = _round_up(W + 1, 8)

    # zero-padded flat copy of the input; vertical out-of-range taps read the zero halo
    xs_ref[...] = jnp.zeros(xs_ref.shape, xs_ref.dtype)
    xs_ref[pl.ds(head, S), :] = xb.astype(_F32)

    # column-edge masks: the flattened +-1 shifts wrap across rows; the wrapped outputs are
    # exactly the w==0 / w==W-1 columns, so zero those tap contributions (W is a power of 2)
    wcol = lax.broadcasted_iota(jnp.int32, (S, 1), 0) & (W - 1)
    mask_l = jnp.where(wcol != 0, 1.0, 0.0)          # applied to kw == 0 taps
    mask_r = jnp.where(wcol != W - 1, 1.0, 0.0)      # applied to kw == 2 taps

    acc = None
    for kw in range(3):
        part = None
        for kh in range(3):
            d = (kh - 1) * W + (kw - 1)
            xt = xs_ref[pl.ds(head + d, S), :].astype(_BF16)          # shifted tap [S, Cin]
            t = jnp.dot(xt, w_ref[kh * 3 + kw], preferred_element_type=_F32)
            part = t if part is None else part + t
        if kw == 0:
            part = part * mask_l
        elif kw == 2:
            part = part * mask_r
        acc = part if acc is None else acc + part
    acc = acc + b_ref[...]                            # single bias broadcast per layer
    yb = jnp.maximum(acc, 0.0).astype(_BF16)          # ReLU (f32) -> bf16

    # MaxPool2x2 = max over four exact 0/1 selection matmuls (bf16 operands)
    pooled = jnp.dot(p_ref[0], yb, preferred_element_type=_F32)
    for k in range(1, 4):
        pooled = jnp.maximum(pooled, jnp.dot(p_ref[k], yb, preferred_element_type=_F32))
    return pooled.astype(_BF16)


def _deconv3x3_s2(xb, Hi, Wi, w_ref, b_ref, e_ref, ds_ref, activation):
    """ConvTranspose2d(3x3, stride 2, padding 1, output_padding 1) + bias + activation,
    via sub-pixel decomposition (no zero-dilation / scatter).

    xb:     [Hi*Wi, Cin] bf16
    w_ref:  [9, Cin, Cout] bf16, w_ref[kh*3+kw] = W_torch[:, :, kh, kw]
    b_ref:  [1, Cout] f32
    e_ref:  [4, 4*Hi*Wi, Hi*Wi] bf16 0/1 sub-pixel interleave matrices (ee, eo, oe, oo)
    ds_ref: [Hi*Wi + Wi + 1, Cin] f32 VMEM scratch (zero tail)
    returns [4*Hi*Wi, Cout] f32
    """
    Si = Hi * Wi
    ds_ref[...] = jnp.zeros(ds_ref.shape, ds_ref.dtype)
    ds_ref[pl.ds(0, Si), :] = xb.astype(_F32)

    wcol = lax.broadcasted_iota(jnp.int32, (Si, 1), 0) & (Wi - 1)
    m_r = jnp.where(wcol != Wi - 1, 1.0, 0.0).astype(_BF16)   # zero the wrapped last column

    x00 = xb                                                   # x[a, b]
    x01 = ds_ref[pl.ds(1, Si), :].astype(_BF16) * m_r          # x[a, b+1]
    x10 = ds_ref[pl.ds(Wi, Si), :].astype(_BF16)               # x[a+1, b]  (zero tail = edge)
    x11 = ds_ref[pl.ds(Wi + 1, Si), :].astype(_BF16) * m_r     # x[a+1, b+1]

    def dt(u, k):
        return jnp.dot(u, w_ref[k], preferred_element_type=_F32)

    bias = b_ref[...]
    # out[2a  , 2b  ] = x[a,b] W(1,1)
    # out[2a  , 2b+1] = x[a,b] W(1,2) + x[a,b+1] W(1,0)
    # out[2a+1, 2b  ] = x[a,b] W(2,1) + x[a+1,b] W(0,1)
    # out[2a+1, 2b+1] = x[a,b] W(2,2) + x[a,b+1] W(2,0) + x[a+1,b] W(0,2) + x[a+1,b+1] W(0,0)
    y_ee = bias + dt(x00, 4)
    y_eo = bias + dt(x00, 5) + dt(x01, 3)
    y_oe = bias + dt(x00, 7) + dt(x10, 1)
    y_oo = bias + dt(x00, 8) + dt(x01, 6) + dt(x10, 2) + dt(x11, 0)

    if activation == "relu":
        ys = [jnp.maximum(v, 0.0) for v in (y_ee, y_eo, y_oe, y_oo)]
    else:  # sigmoid: exp + approximate reciprocal on the EUP; upper guard for the approx
        ys = [jnp.minimum(pl.reciprocal(1.0 + jnp.exp(-v), approx=True), 1.0)
              for v in (y_ee, y_eo, y_oe, y_oo)]

    out = None  # interleave the four sub-pixel planes into the [2Hi * 2Wi, Cout] output
    for k in range(4):
        t = jnp.dot(e_ref[k], ys[k].astype(_BF16), preferred_element_type=_F32)
        out = t if out is None else out + t
    return out


def _autoencoder_kernel(x_ref,
                        w1_ref, b1_ref, p1_ref,
                        w2_ref, b2_ref, p2_ref,
                        w3_ref, b3_ref, p3_ref,
                        wd1_ref, bd1_ref, e1_ref,
                        wd2_ref, bd2_ref, e2_ref,
                        wd3_ref, bd3_ref, e3_ref,
                        o_ref,
                        xs1, xs2, xs3, ds1, ds2, ds3):
    h = x_ref[0]                                                                   # [256, 8]
    # encoder (fused Conv3x3 + ReLU + MaxPool2x2 per layer)
    h = _conv3x3_relu_pool(h, 16, 16, w1_ref, b1_ref, p1_ref, xs1)                 # [64, 16]
    h = _conv3x3_relu_pool(h, 8, 8, w2_ref, b2_ref, p2_ref, xs2)                   # [16, 32]
    h = _conv3x3_relu_pool(h, 4, 4, w3_ref, b3_ref, p3_ref, xs3)                   # [4, 64]
    # decoder (fused sub-pixel ConvTranspose + activation per layer)
    h = _deconv3x3_s2(h, 2, 2, wd1_ref, bd1_ref, e1_ref, ds1, "relu").astype(_BF16)   # [16, 32]
    h = _deconv3x3_s2(h, 4, 4, wd2_ref, bd2_ref, e2_ref, ds2, "relu").astype(_BF16)   # [64, 16]
    h = _deconv3x3_s2(h, 8, 8, wd3_ref, bd3_ref, e3_ref, ds3, "sigmoid")              # [256, 8]
    o_ref[0] = h


# ---------------------------------------------------------------------------
# Forward pass wrapper (single pallas_call for the whole network)
# ---------------------------------------------------------------------------
def denoising_autoencoder_forward(x_nchw, packed):
    n, cin, hgt, wid = x_nchw.shape
    assert (cin, hgt, wid) == (1, 16, 16), (cin, hgt, wid)
    s0 = hgt * wid

    # NCHW (C=1) -> flattened [N, H*W, 1] bf16, channel dim zero-padded to 8 (weights padded
    # with matching zero rows, so the result is unchanged)
    xb = x_nchw.reshape(n, s0, 1).astype(_BF16)
    xb = jnp.pad(xb, ((0, 0), (0, 0), (0, _MIN_CH - 1)))

    consts = (packed["enc1"][0], packed["enc1"][1], packed["pool1"],
              packed["enc2"][0], packed["enc2"][1], packed["pool2"],
              packed["enc3"][0], packed["enc3"][1], packed["pool3"],
              packed["dec1"][0], packed["dec1"][1], packed["ilv1"],
              packed["dec2"][0], packed["dec2"][1], packed["ilv2"],
              packed["dec3"][0], packed["dec3"][1], packed["ilv3"])

    def const_spec(a):
        nd = a.ndim

        def imap(i):
            return (0,) * nd

        return pl.BlockSpec(a.shape, imap)

    in_specs = [pl.BlockSpec((1, s0, _MIN_CH), lambda i: (i, 0, 0))]
    in_specs += [const_spec(a) for a in consts]

    def enc_scratch(h, w, c):
        head = _round_up(w + 1, 8)
        return pltpu.VMEM((head + h * w + w + 1, c), _F32)

    def dec_scratch(h, w, c):
        return pltpu.VMEM((h * w + w + 1, c), _F32)

    out = pl.pallas_call(
        _autoencoder_kernel,
        out_shape=jax.ShapeDtypeStruct((n, s0, _MIN_CH), _F32),
        grid=(n,),
        in_specs=in_specs,
        out_specs=pl.BlockSpec((1, s0, _MIN_CH), lambda i: (i, 0, 0)),
        scratch_shapes=[
            enc_scratch(16, 16, _MIN_CH),   # enc1 padded input copy
            enc_scratch(8, 8, 16),          # enc2
            enc_scratch(4, 4, 32),          # enc3
            dec_scratch(2, 2, 64),          # dec1
            dec_scratch(4, 4, 32),          # dec2
            dec_scratch(8, 8, 16),          # dec3
        ],
        compiler_params=pltpu.CompilerParams(dimension_semantics=("parallel",)),
    )(xb, *consts)

    # channel 0 is the real output; flat -> NCHW is a free reshape because C == 1
    return out[:, :, 0].reshape(n, 1, hgt, wid)


# ---------------------------------------------------------------------------
# Parameters (PyTorch layout) + one-time packing into kernel layout
# ---------------------------------------------------------------------------
def init_params(key):
    def conv_init(key, cout, cin):
        kw, kb = jax.random.split(key)
        bound = 1.0 / float(np.sqrt(cin * 9.0))
        w = jax.random.uniform(kw, (cout, cin, 3, 3), _F32, -bound, bound)
        b = jax.random.uniform(kb, (cout,), _F32, -bound, bound)
        return w, b

    def convT_init(key, cin, cout):
        kw, kb = jax.random.split(key)
        bound = 1.0 / float(np.sqrt(cout * 9.0))
        w = jax.random.uniform(kw, (cin, cout, 3, 3), _F32, -bound, bound)
        b = jax.random.uniform(kb, (cout,), _F32, -bound, bound)
        return w, b

    keys = jax.random.split(key, 6)
    p = {}
    p["w1"], p["b1"] = conv_init(keys[0], 16, 1)
    p["w2"], p["b2"] = conv_init(keys[1], 32, 16)
    p["w3"], p["b3"] = conv_init(keys[2], 64, 32)
    p["wd1"], p["bd1"] = convT_init(keys[3], 64, 32)
    p["wd2"], p["bd2"] = convT_init(keys[4], 32, 16)
    p["wd3"], p["bd3"] = convT_init(keys[5], 16, 1)
    return p


def _pool_select(h, w):
    """0/1 MaxPool2x2 selection matrices, shape [4, h*w/4, h*w], bf16 (exact)."""
    s, q = h * w, (h // 2) * (w // 2)
    m = np.zeros((4, q, s), np.float32)
    for k, (dr, dc) in enumerate(((0, 0), (0, 1), (1, 0), (1, 1))):
        for i in range(h // 2):
            for j in range(w // 2):
                m[k, i * (w // 2) + j, (2 * i + dr) * w + (2 * j + dc)] = 1.0
    return jnp.asarray(m, dtype=_BF16)


def _interleave_select(hi, wi):
    """0/1 sub-pixel interleave matrices (ee, eo, oe, oo), shape [4, 4*hi*wi, hi*wi], bf16."""
    si = hi * wi
    m = np.zeros((4, 4 * si, si), np.float32)
    for k, (ra, rb) in enumerate(((0, 0), (0, 1), (1, 0), (1, 1))):
        for a in range(hi):
            for b in range(wi):
                m[k, (2 * a + ra) * (2 * wi) + (2 * b + rb), a * wi + b] = 1.0
    return jnp.asarray(m, dtype=_BF16)


def pack_params(p):
    """One-time repack: w -> [9, Cin, Cout] bf16, b -> [1, Cout] f32, + selection matrices."""
    def _finish(w9, b):
        _, cin, cout = w9.shape
        cin_p, cout_p = max(cin, _MIN_CH), max(cout, _MIN_CH)
        w9 = jnp.pad(w9, ((0, 0), (0, cin_p - cin), (0, cout_p - cout)))
        b = jnp.pad(b, (0, cout_p - cout))
        return w9.astype(_BF16), b.reshape(1, cout_p).astype(_F32)

    def pack_conv(w, b):      # torch Conv2d weight [Cout, Cin, 3, 3]
        cout, cin = w.shape[0], w.shape[1]
        return _finish(jnp.transpose(w, (2, 3, 1, 0)).reshape(9, cin, cout), b)

    def pack_convT(w, b):     # torch ConvTranspose2d weight [Cin, Cout, 3, 3]
        cin, cout = w.shape[0], w.shape[1]
        return _finish(jnp.transpose(w, (2, 3, 0, 1)).reshape(9, cin, cout), b)

    return {
        "enc1": pack_conv(p["w1"], p["b1"]), "pool1": _pool_select(16, 16),
        "enc2": pack_conv(p["w2"], p["b2"]), "pool2": _pool_select(8, 8),
        "enc3": pack_conv(p["w3"], p["b3"]), "pool3": _pool_select(4, 4),
        "dec1": pack_convT(p["wd1"], p["bd1"]), "ilv1": _interleave_select(2, 2),
        "dec2": pack_convT(p["wd2"], p["bd2"]), "ilv2": _interleave_select(4, 4),
        "dec3": pack_convT(p["wd3"], p["bd3"]), "ilv3": _interleave_select(8, 8),
    }


# ---------------------------------------------------------------------------
# Pure-JAX reference (f32) for correctness checking
# ---------------------------------------------------------------------------
def reference_forward(x, p):
    def conv(x, w, b):
        y = lax.conv_general_dilated(x, w, (1, 1), [(1, 1), (1, 1)],
                                     dimension_numbers=("NCHW", "OIHW", "NCHW"))
        return y + b.reshape(1, -1, 1, 1)

    def pool(x):
        return lax.reduce_window(x, -jnp.inf, lax.max, (1, 1, 2, 2), (1, 1, 2, 2), "VALID")

    def convT(x, w, b):
        w_eq = jnp.flip(w, (2, 3)).transpose(1, 0, 2, 3)
        y = lax.conv_general_dilated(x, w_eq, (1, 1), [(1, 2), (1, 2)],
                                     lhs_dilation=(2, 2),
                                     dimension_numbers=("NCHW", "OIHW", "NCHW"))
        return y + b.reshape(1, -1, 1, 1)

    h = pool(jnp.maximum(conv(x, p["w1"], p["b1"]), 0.0))
    h = pool(jnp.maximum(conv(h, p["w2"], p["b2"]), 0.0))
    h = pool(jnp.maximum(conv(h, p["w3"], p["b3"]), 0.0))
    h = jnp.maximum(convT(h, p["wd1"], p["bd1"]), 0.0)
    h = jnp.maximum(convT(h, p["wd2"], p["bd2"]), 0.0)
    return jax.nn.sigmoid(convT(h, p["wd3"], p["bd3"]))


if __name__ == "__main__":
    key = jax.random.PRNGKey(0)
    k_param, k_x = jax.random.split(key)
    params = init_params(k_param)
    packed = pack_params(params)   # one-time weight / selection-matrix packing

    x = jax.random.uniform(k_x, (2, 1, 16, 16), _F32)

    fwd = jax.jit(denoising_autoencoder_forward)
    y = jax.block_until_ready(fwd(x, packed))

    assert y.shape == (2, 1, 16, 16), y.shape
    assert bool(jnp.all(jnp.isfinite(y)))
    assert bool(jnp.all((y >= 0.0) & (y <= 1.0)))  # sigmoid output range

    # numerical check vs. f32 XLA reference (bf16 weights/activations -> loose tolerance)
    y_ref = jax.block_until_ready(jax.jit(reference_forward)(x, params))
    max_err = float(jnp.max(jnp.abs(y - y_ref)))
    assert max_err < 4e-2, max_err

    print("KERNEL_OK")
</pallas_src>

<mosaic_0001>
module attributes {stable_mosaic.version = 11 : i64} {
  func.func @_autoencoder_kernel(%arg0: i32, %arg1: memref<1x256x8xbf16, #tpu.memory_space<vmem>>, %arg2: memref<9x8x16xbf16, #tpu.memory_space<vmem>>, %arg3: memref<1x16xf32, #tpu.memory_space<vmem>>, %arg4: memref<4x64x256xbf16, #tpu.memory_space<vmem>>, %arg5: memref<9x16x32xbf16, #tpu.memory_space<vmem>>, %arg6: memref<1x32xf32, #tpu.memory_space<vmem>>, %arg7: memref<4x16x64xbf16, #tpu.memory_space<vmem>>, %arg8: memref<9x32x64xbf16, #tpu.memory_space<vmem>>, %arg9: memref<1x64xf32, #tpu.memory_space<vmem>>, %arg10: memref<4x4x16xbf16, #tpu.memory_space<vmem>>, %arg11: memref<9x64x32xbf16, #tpu.memory_space<vmem>>, %arg12: memref<1x32xf32, #tpu.memory_space<vmem>>, %arg13: memref<4x16x4xbf16, #tpu.memory_space<vmem>>, %arg14: memref<9x32x16xbf16, #tpu.memory_space<vmem>>, %arg15: memref<1x16xf32, #tpu.memory_space<vmem>>, %arg16: memref<4x64x16xbf16, #tpu.memory_space<vmem>>, %arg17: memref<9x16x8xbf16, #tpu.memory_space<vmem>>, %arg18: memref<1x8xf32, #tpu.memory_space<vmem>>, %arg19: memref<4x256x64xbf16, #tpu.memory_space<vmem>>, %arg20: memref<1x256x8xf32, #tpu.memory_space<vmem>>, %arg21: memref<297x8xf32, #tpu.memory_space<vmem>>, %arg22: memref<89x16xf32, #tpu.memory_space<vmem>>, %arg23: memref<29x32xf32, #tpu.memory_space<vmem>>, %arg24: memref<7x64xf32, #tpu.memory_space<vmem>>, %arg25: memref<21x32xf32, #tpu.memory_space<vmem>>, %arg26: memref<73x16xf32, #tpu.memory_space<vmem>>) attributes {dimension_semantics = [#tpu.dimension_semantics<parallel>], iteration_bounds = array<i64: 2>, scalar_prefetch = 0 : i64, scratch_operands = 6 : i64, tpu.core_type = #tpu.core_type<tc>, window_params = [{transform_indices = @transform_0, window_bounds = array<i64: 1, 256, 8>}, {pipeline_mode = #tpu.pipeline_mode<synchronous>, transform_indices = @transform_1, window_bounds = array<i64: 9, 8, 16>}, {pipeline_mode = #tpu.pipeline_mode<synchronous>, transform_indices = @transform_2, window_bounds = array<i64: 1, 16>}, {pipeline_mode = #tpu.pipeline_mode<synchronous>, transform_indices = @transform_3, window_bounds = array<i64: 4, 64, 256>}, {pipeline_mode = #tpu.pipeline_mode<synchronous>, transform_indices = @transform_4, window_bounds = array<i64: 9, 16, 32>}, {pipeline_mode = #tpu.pipeline_mode<synchronous>, transform_indices = @transform_5, window_bounds = array<i64: 1, 32>}, {pipeline_mode = #tpu.pipeline_mode<synchronous>, transform_indices = @transform_6, window_bounds = array<i64: 4, 16, 64>}, {pipeline_mode = #tpu.pipeline_mode<synchronous>, transform_indices = @transform_7, window_bounds = array<i64: 9, 32, 64>}, {pipeline_mode = #tpu.pipeline_mode<synchronous>, transform_indices = @transform_8, window_bounds = array<i64: 1, 64>}, {pipeline_mode = #tpu.pipeline_mode<synchronous>, transform_indices = @transform_9, window_bounds = array<i64: 4, 4, 16>}, {pipeline_mode = #tpu.pipeline_mode<synchronous>, transform_indices = @transform_10, window_bounds = array<i64: 9, 64, 32>}, {pipeline_mode = #tpu.pipeline_mode<synchronous>, transform_indices = @transform_11, window_bounds = array<i64: 1, 32>}, {pipeline_mode = #tpu.pipeline_mode<synchronous>, transform_indices = @transform_12, window_bounds = array<i64: 4, 16, 4>}, {pipeline_mode = #tpu.pipeline_mode<synchronous>, transform_indices = @transform_13, window_bounds = array<i64: 9, 32, 16>}, {pipeline_mode = #tpu.pipeline_mode<synchronous>, transform_indices = @transform_14, window_bounds = array<i64: 1, 16>}, {pipeline_mode = #tpu.pipeline_mode<synchronous>, transform_indices = @transform_15, window_bounds = array<i64: 4, 64, 16>}, {pipeline_mode = #tpu.pipeline_mode<synchronous>, transform_indices = @transform_16, window_bounds = array<i64: 9, 16, 8>}, {pipeline_mode = #tpu.pipeline_mode<synchronous>, transform_indices = @transform_17, window_bounds = array<i64: 1, 8>}, {pipeline_mode = #tpu.pipeline_mode<synchronous>, transform_indices = @transform_18, window_bounds = array<i64: 4, 256, 64>}, {transform_indices = @transform_19, window_bounds = array<i64: 1, 256, 8>}]} {
    %c0 = arith.constant 0 : index
    %c0_0 = arith.constant 0 : index
    %c0_1 = arith.constant 0 : index
    %0 = vector.load %arg1[%c0, %c0_0, %c0_1] : memref<1x256x8xbf16, #tpu.memory_space<vmem>>, vector<1x256x8xbf16>
    %1 = vector.shape_cast %0 : vector<1x256x8xbf16> to vector<256x8xbf16>
    %cst = arith.constant 0.000000e+00 : f32
    %2 = vector.broadcast %cst : f32 to vector<297x8xf32>
    %c0_2 = arith.constant 0 : index
    %c0_3 = arith.constant 0 : index
    %3 = vector.load %arg21[%c0_2, %c0_3] : memref<297x8xf32, #tpu.memory_space<vmem>>, vector<297x8xf32>
    tpu.vector_store %arg21[%c0_2, %c0_3], %2 {strides = array<i32>} : memref<297x8xf32, #tpu.memory_space<vmem>>, vector<297x8xf32>,
    %4 = arith.extf %1 : vector<256x8xbf16> to vector<256x8xf32>
    %c24 = arith.constant 24 : index
    %c0_4 = arith.constant 0 : index
    %5 = vector.load %arg21[%c24, %c0_4] : memref<297x8xf32, #tpu.memory_space<vmem>>, vector<256x8xf32>
    tpu.vector_store %arg21[%c24, %c0_4], %4 {strides = array<i32>} : memref<297x8xf32, #tpu.memory_space<vmem>>, vector<256x8xf32>,
    %6 = tpu.iota {dimensions = array<i32: 0>} : vector<256x1xi32>
    %c15_i32 = arith.constant 15 : i32
    %7 = vector.broadcast %c15_i32 : i32 to vector<256x1xi32>
    %8 = arith.andi %6, %7 : vector<256x1xi32>
    %c0_i32 = arith.constant 0 : i32
    %9 = vector.broadcast %c0_i32 : i32 to vector<256x1xi32>
    %10 = arith.cmpi ne, %8, %9 : vector<256x1xi32>
    %cst_5 = arith.constant 1.000000e+00 : f32
    %cst_6 = arith.constant 0.000000e+00 : f32
    %11 = vector.broadcast %cst_5 : f32 to vector<256x1xf32>
    %12 = vector.broadcast %cst_6 : f32 to vector<256x1xf32>
    %13 = arith.select %10, %11, %12 : vector<256x1xi1>, vector<256x1xf32>
    %c15_i32_7 = arith.constant 15 : i32
    %14 = vector.broadcast %c15_i32_7 : i32 to vector<256x1xi32>
    %15 = arith.cmpi ne, %8, %14 : vector<256x1xi32>
    %cst_8 = arith.constant 1.000000e+00 : f32
    %cst_9 = arith.constant 0.000000e+00 : f32
    %16 = vector.broadcast %cst_8 : f32 to vector<256x1xf32>
    %17 = vector.broadcast %cst_9 : f32 to vector<256x1xf32>
    %18 = arith.select %15, %16, %17 : vector<256x1xi1>, vector<256x1xf32>
    %c7 = arith.constant 7 : index
    %c0_10 = arith.constant 0 : index
    %19 = vector.load %arg21[%c7, %c0_10] : memref<297x8xf32, #tpu.memory_space<vmem>>, vector<256x8xf32>
    %20 = arith.truncf %19 : vector<256x8xf32> to vector<256x8xbf16>
    %c0_11 = arith.constant 0 : index
    %c0_12 = arith.constant 0 : index
    %c0_13 = arith.constant 0 : index
    %21 = vector.load %arg2[%c0_11, %c0_12, %c0_13] : memref<9x8x16xbf16, #tpu.memory_space<vmem>>, vector<1x8x16xbf16>
    %22 = vector.shape_cast %21 : vector<1x8x16xbf16> to vector<8x16xbf16>
    %cst_14 = arith.constant dense<0.000000e+00> : vector<256x16xf32>
    %23 = tpu.matmul %20, %22, %cst_14 {dimension_numbers = #tpu.dot_dimension_numbers<[1], [0], [0], [1], [0, 0, 1, 1], [], []>} : vector<256x8xbf16>, vector<8x16xbf16>, vector<256x16xf32> -> vector<256x16xf32>
    %c23 = arith.constant 23 : index
    %c0_15 = arith.constant 0 : index
    %24 = vector.load %arg21[%c23, %c0_15] : memref<297x8xf32, #tpu.memory_space<vmem>>, vector<256x8xf32>
    %25 = arith.truncf %24 : vector<256x8xf32> to vector<256x8xbf16>
    %c3 = arith.constant 3 : index
    %c0_16 = arith.constant 0 : index
    %c0_17 = arith.constant 0 : index
    %26 = vector.load %arg2[%c3, %c0_16, %c0_17] : memref<9x8x16xbf16, #tpu.memory_space<vmem>>, vector<1x8x16xbf16>
    %27 = vector.shape_cast %26 : vector<1x8x16xbf16> to vector<8x16xbf16>
    %cst_18 = arith.constant dense<0.000000e+00> : vector<256x16xf32>
    %28 = tpu.matmul %25, %27, %cst_18 {dimension_numbers = #tpu.dot_dimension_numbers<[1], [0], [0], [1], [0, 0, 1, 1], [], []>} : vector<256x8xbf16>, vector<8x16xbf16>, vector<256x16xf32> -> vector<256x16xf32>
    %29 = arith.addf %23, %28 : vector<256x16xf32>
    %c39 = arith.constant 39 : index
    %c0_19 = arith.constant 0 : index
    %30 = vector.load %arg21[%c39, %c0_19] : memref<297x8xf32, #tpu.memory_space<vmem>>, vector<256x8xf32>
    %31 = arith.truncf %30 : vector<256x8xf32> to vector<256x8xbf16>
    %c6 = arith.constant 6 : index
    %c0_20 = arith.constant 0 : index
    %c0_21 = arith.constant 0 : index
    %32 = vector.load %arg2[%c6, %c0_20, %c0_21] : memref<9x8x16xbf16, #tpu.memory_space<vmem>>, vector<1x8x16xbf16>
    %33 = vector.shape_cast %32 : vector<1x8x16xbf16> to vector<8x16xbf16>
    %cst_22 = arith.constant dense<0.000000e+00> : vector<256x16xf32>
    %34 = tpu.matmul %31, %33, %cst_22 {dimension_numbers = #tpu.dot_dimension_numbers<[1], [0], [0], [1], [0, 0, 1, 1], [], []>} : vector<256x8xbf16>, vector<8x16xbf16>, vector<256x16xf32> -> vector<256x16xf32>
    %35 = arith.addf %29, %34 : vector<256x16xf32>
    %36 = vector.broadcast %13 : vector<256x1xf32> to vector<256x16xf32>
    %37 = arith.mulf %35, %36 : vector<256x16xf32>
    %c8 = arith.constant 8 : index
    %c0_23 = arith.constant 0 : index
    %38 = vector.load %arg21[%c8, %c0_23] : memref<297x8xf32, #tpu.memory_space<vmem>>, vector<256x8xf32>
    %39 = arith.truncf %38 : vector<256x8xf32> to vector<256x8xbf16>
    %c1 = arith.constant 1 : index
    %c0_24 = arith.constant 0 : index
    %c0_25 = arith.constant 0 : index
    %40 = vector.load %arg2[%c1, %c0_24, %c0_25] : memref<9x8x16xbf16, #tpu.memory_space<vmem>>, vector<1x8x16xbf16>
    %41 = vector.shape_cast %40 : vector<1x8x16xbf16> to vector<8x16xbf16>
    %cst_26 = arith.constant dense<0.000000e+00> : vector<256x16xf32>
    %42 = tpu.matmul %39, %41, %cst_26 {dimension_numbers = #tpu.dot_dimension_numbers<[1], [0], [0], [1], [0, 0, 1, 1], [], []>} : vector<256x8xbf16>, vector<8x16xbf16>, vector<256x16xf32> -> vector<256x16xf32>
    %c24_27 = arith.constant 24 : index
    %c0_28 = arith.constant 0 : index
    %43 = vector.load %arg21[%c24_27, %c0_28] : memref<297x8xf32, #tpu.memory_space<vmem>>, vector<256x8xf32>
    %44 = arith.truncf %43 : vector<256x8xf32> to vector<256x8xbf16>
    %c4 = arith.constant 4 : index
    %c0_29 = arith.constant 0 : index
    %c0_30 = arith.constant 0 : index
    %45 = vector.load %arg2[%c4, %c0_29, %c0_30] : memref<9x8x16xbf16, #tpu.memory_space<vmem>>, vector<1x8x16xbf16>
    %46 = vector.shape_cast %45 : vector<1x8x16xbf16> to vector<8x16xbf16>
    %cst_31 = arith.constant dense<0.000000e+00> : vector<256x16xf32>
    %47 = tpu.matmul %44, %46, %cst_31 {dimension_numbers = #tpu.dot_dimension_numbers<[1], [0], [0], [1], [0, 0, 1, 1], [], []>} : vector<256x8xbf16>, vector<8x16xbf16>, vector<256x16xf32> -> vector<256x16xf32>
    %48 = arith.addf %42, %47 : vector<256x16xf32>
    %c40 = arith.constant 40 : index
    %c0_32 = arith.constant 0 : index
    %49 = vector.load %arg21[%c40, %c0_32] : memref<297x8xf32, #tpu.memory_space<vmem>>, vector<256x8xf32>
    %50 = arith.truncf %49 : vector<256x8xf32> to vector<256x8xbf16>
    %c7_33 = arith.constant 7 : index
    %c0_34 = arith.constant 0 : index
    %c0_35 = arith.constant 0 : index
    %51 = vector.load %arg2[%c7_33, %c0_34, %c0_35] : memref<9x8x16xbf16, #tpu.memory_space<vmem>>, vector<1x8x16xbf16>
    %52 = vector.shape_cast %51 : vector<1x8x16xbf16> to vector<8x16xbf16>
    %cst_36 = arith.constant dense<0.000000e+00> : vector<256x16xf32>
    %53 = tpu.matmul %50, %52, %cst_36 {dimension_numbers = #tpu.dot_dimension_numbers<[1], [0], [0], [1], [0, 0, 1, 1], [], []>} : vector<256x8xbf16>, vector<8x16xbf16>, vector<256x16xf32> -> vector<256x16xf32>
    %54 = arith.addf %48, %53 : vector<256x16xf32>
    %55 = arith.addf %37, %54 : vector<256x16xf32>
    %c9 = arith.constant 9 : index
    %c0_37 = arith.constant 0 : index
    %56 = vector.load %arg21[%c9, %c0_37] : memref<297x8xf32, #tpu.memory_space<vmem>>, vector<256x8xf32>
    %57 = arith.truncf %56 : vector<256x8xf32> to vector<256x8xbf16>
    %c2 = arith.constant 2 : index
    %c0_38 = arith.constant 0 : index
    %c0_39 = arith.constant 0 : index
    %58 = vector.load %arg2[%c2, %c0_38, %c0_39] : memref<9x8x16xbf16, #tpu.memory_space<vmem>>, vector<1x8x16xbf16>
    %59 = vector.shape_cast %58 : vector<1x8x16xbf16> to vector<8x16xbf16>
    %cst_40 = arith.constant dense<0.000000e+00> : vector<256x16xf32>
    %60 = tpu.matmul %57, %59, %cst_40 {dimension_numbers = #tpu.dot_dimension_numbers<[1], [0], [0], [1], [0, 0, 1, 1], [], []>} : vector<256x8xbf16>, vector<8x16xbf16>, vector<256x16xf32> -> vector<256x16xf32>
    %c25 = arith.constant 25 : index
    %c0_41 = arith.constant 0 : index
    %61 = vector.load %arg21[%c25, %c0_41] : memref<297x8xf32, #tpu.memory_space<vmem>>, vector<256x8xf32>
    %62 = arith.truncf %61 : vector<256x8xf32> to vector<256x8xbf16>
    %c5 = arith.constant 5 : index
    %c0_42 = arith.constant 0 : index
    %c0_43 = arith.constant 0 : index
    %63 = vector.load %arg2[%c5, %c0_42, %c0_43] : memref<9x8x16xbf16, #tpu.memory_space<vmem>>, vector<1x8x16xbf16>
    %64 = vector.shape_cast %63 : vector<1x8x16xbf16> to vector<8x16xbf16>
    %cst_44 = arith.constant dense<0.000000e+00> : vector<256x16xf32>
    %65 = tpu.matmul %62, %64, %cst_44 {dimension_numbers = #tpu.dot_dimension_numbers<[1], [0], [0], [1], [0, 0, 1, 1], [], []>} : vector<256x8xbf16>, vector<8x16xbf16>, vector<256x16xf32> -> vector<256x16xf32>
    %66 = arith.addf %60, %65 : vector<256x16xf32>
    %c41 = arith.constant 41 : index
    %c0_45 = arith.constant 0 : index
    %67 = vector.load %arg21[%c41, %c0_45] : memref<297x8xf32, #tpu.memory_space<vmem>>, vector<256x8xf32>
    %68 = arith.truncf %67 : vector<256x8xf32> to vector<256x8xbf16>
    %c8_46 = arith.constant 8 : index
    %c0_47 = arith.constant 0 : index
    %c0_48 = arith.constant 0 : index
    %69 = vector.load %arg2[%c8_46, %c0_47, %c0_48] : memref<9x8x16xbf16, #tpu.memory_space<vmem>>, vector<1x8x16xbf16>
    %70 = vector.shape_cast %69 : vector<1x8x16xbf16> to vector<8x16xbf16>
    %cst_49 = arith.constant dense<0.000000e+00> : vector<256x16xf32>
    %71 = tpu.matmul %68, %70, %cst_49 {dimension_numbers = #tpu.dot_dimension_numbers<[1], [0], [0], [1], [0, 0, 1, 1], [], []>} : vector<256x8xbf16>, vector<8x16xbf16>, vector<256x16xf32> -> vector<256x16xf32>
    %72 = arith.addf %66, %71 : vector<256x16xf32>
    %73 = vector.broadcast %18 : vector<256x1xf32> to vector<256x16xf32>
    %74 = arith.mulf %72, %73 : vector<256x16xf32>
    %75 = arith.addf %55, %74 : vector<256x16xf32>
    %c0_50 = arith.constant 0 : index
    %c0_51 = arith.constant 0 : index
    %76 = vector.load %arg3[%c0_50, %c0_51] : memref<1x16xf32, #tpu.memory_space<vmem>>, vector<1x16xf32>
    %77 = vector.broadcast %76 : vector<1x16xf32> to vector<256x16xf32>
    %78 = arith.addf %75, %77 : vector<256x16xf32>
    %cst_52 = arith.constant 0.000000e+00 : f32
    %79 = vector.broadcast %cst_52 : f32 to vector<256x16xf32>
    %80 = arith.maximumf %78, %79 : vector<256x16xf32>
    %81 = arith.truncf %80 : vector<256x16xf32> to vector<256x16xbf16>
    %c0_53 = arith.constant 0 : index
    %c0_54 = arith.constant 0 : index
    %c0_55 = arith.constant 0 : index
    %82 = vector.load %arg4[%c0_53, %c0_54, %c0_55] : memref<4x64x256xbf16, #tpu.memory_space<vmem>>, vector<1x64x256xbf16>
    %83 = vector.shape_cast %82 : vector<1x64x256xbf16> to vector<64x256xbf16>
    %cst_56 = arith.constant dense<0.000000e+00> : vector<64x16xf32>
    %84 = tpu.matmul %83, %81, %cst_56 {dimension_numbers = #tpu.dot_dimension_numbers<[1], [0], [0], [1], [0, 0, 1, 1], [], []>} : vector<64x256xbf16>, vector<256x16xbf16>, vector<64x16xf32> -> vector<64x16xf32>
    %c1_57 = arith.constant 1 : index
    %c0_58 = arith.constant 0 : index
    %c0_59 = arith.constant 0 : index
    %85 = vector.load %arg4[%c1_57, %c0_58, %c0_59] : memref<4x64x256xbf16, #tpu.memory_space<vmem>>, vector<1x64x256xbf16>
    %86 = vector.shape_cast %85 : vector<1x64x256xbf16> to vector<64x256xbf16>
    %cst_60 = arith.constant dense<0.000000e+00> : vector<64x16xf32>
    %87 = tpu.matmul %86, %81, %cst_60 {dimension_numbers = #tpu.dot_dimension_numbers<[1], [0], [0], [1], [0, 0, 1, 1], [], []>} : vector<64x256xbf16>, vector<256x16xbf16>, vector<64x16xf32> -> vector<64x16xf32>
    %88 = arith.maximumf %84, %87 : vector<64x16xf32>
    %c2_61 = arith.constant 2 : index
    %c0_62 = arith.constant 0 : index
    %c0_63 = arith.constant 0 : index
    %89 = vector.load %arg4[%c2_61, %c0_62, %c0_63] : memref<4x64x256xbf16, #tpu.memory_space<vmem>>, vector<1x64x256xbf16>
    %90 = vector.shape_cast %89 : vector<1x64x256xbf16> to vector<64x256xbf16>
    %cst_64 = arith.constant dense<0.000000e+00> : vector<64x16xf32>
    %91 = tpu.matmul %90, %81, %cst_64 {dimension_numbers = #tpu.dot_dimension_numbers<[1], [0], [0], [1], [0, 0, 1, 1], [], []>} : vector<64x256xbf16>, vector<256x16xbf16>, vector<64x16xf32> -> vector<64x16xf32>
    %92 = arith.maximumf %88, %91 : vector<64x16xf32>
    %c3_65 = arith.constant 3 : index
    %c0_66 = arith.constant 0 : index
    %c0_67 = arith.constant 0 : index
    %93 = vector.load %arg4[%c3_65, %c0_66, %c0_67] : memref<4x64x256xbf16, #tpu.memory_space<vmem>>, vector<1x64x256xbf16>
    %94 = vector.shape_cast %93 : vector<1x64x256xbf16> to vector<64x256xbf16>
    %cst_68 = arith.constant dense<0.000000e+00> : vector<64x16xf32>
    %95 = tpu.matmul %94, %81, %cst_68 {dimension_numbers = #tpu.dot_dimension_numbers<[1], [0], [0], [1], [0, 0, 1, 1], [], []>} : vector<64x256xbf16>, vector<256x16xbf16>, vector<64x16xf32> -> vector<64x16xf32>
    %96 = arith.maximumf %92, %95 : vector<64x16xf32>
    %97 = arith.truncf %96 : vector<64x16xf32> to vector<64x16xbf16>
    %cst_69 = arith.constant 0.000000e+00 : f32
    %98 = vector.broadcast %cst_69 : f32 to vector<89x16xf32>
    %c0_70 = arith.constant 0 : index
    %c0_71 = arith.constant 0 : index
    %99 = vector.load %arg22[%c0_70, %c0_71] : memref<89x16xf32, #tpu.memory_space<vmem>>, vector<89x16xf32>
    tpu.vector_store %arg22[%c0_70, %c0_71], %98 {strides = array<i32>} : memref<89x16xf32, #tpu.memory_space<vmem>>, vector<89x16xf32>,
    %100 = arith.extf %97 : vector<64x16xbf16> to vector<64x16xf32>
    %c16 = arith.constant 16 : index
    %c0_72 = arith.constant 0 : index
    %101 = vector.load %arg22[%c16, %c0_72] : memref<89x16xf32, #tpu.memory_space<vmem>>, vector<64x16xf32>
    tpu.vector_store %arg22[%c16, %c0_72], %100 {strides = array<i32>} : memref<89x16xf32, #tpu.memory_space<vmem>>, vector<64x16xf32>,
    %102 = tpu.iota {dimensions = array<i32: 0>} : vector<64x1xi32>
    %c7_i32 = arith.constant 7 : i32
    %103 = vector.broadcast %c7_i32 : i32 to vector<64x1xi32>
    %104 = arith.andi %102, %103 : vector<64x1xi32>
    %c0_i32_73 = arith.constant 0 : i32
    %105 = vector.broadcast %c0_i32_73 : i32 to vector<64x1xi32>
    %106 = arith.cmpi ne, %104, %105 : vector<64x1xi32>
    %cst_74 = arith.constant 1.000000e+00 : f32
    %cst_75 = arith.constant 0.000000e+00 : f32
    %107 = vector.broadcast %cst_74 : f32 to vector<64x1xf32>
    %108 = vector.broadcast %cst_75 : f32 to vector<64x1xf32>
    %109 = arith.select %106, %107, %108 : vector<64x1xi1>, vector<64x1xf32>
    %c7_i32_76 = arith.constant 7 : i32
    %110 = vector.broadcast %c7_i32_76 : i32 to vector<64x1xi32>
    %111 = arith.cmpi ne, %104, %110 : vector<64x1xi32>
    %cst_77 = arith.constant 1.000000e+00 : f32
    %cst_78 = arith.constant 0.000000e+00 : f32
    %112 = vector.broadcast %cst_77 : f32 to vector<64x1xf32>
    %113 = vector.broadcast %cst_78 : f32 to vector<64x1xf32>
    %114 = arith.select %111, %112, %113 : vector<64x1xi1>, vector<64x1xf32>
    %c7_79 = arith.constant 7 : index
    %c0_80 = arith.constant 0 : index
    %115 = vector.load %arg22[%c7_79, %c0_80] : memref<89x16xf32, #tpu.memory_space<vmem>>, vector<64x16xf32>
    %116 = arith.truncf %115 : vector<64x16xf32> to vector<64x16xbf16>
    %c0_81 = arith.constant 0 : index
    %c0_82 = arith.constant 0 : index
    %c0_83 = arith.constant 0 : index
    %117 = vector.load %arg5[%c0_81, %c0_82, %c0_83] : memref<9x16x32xbf16, #tpu.memory_space<vmem>>, vector<1x16x32xbf16>
    %118 = vector.shape_cast %117 : vector<1x16x32xbf16> to vector<16x32xbf16>
    %cst_84 = arith.constant dense<0.000000e+00> : vector<64x32xf32>
    %119 = tpu.matmul %116, %118, %cst_84 {dimension_numbers = #tpu.dot_dimension_numbers<[1], [0], [0], [1], [0, 0, 1, 1], [], []>} : vector<64x16xbf16>, vector<16x32xbf16>, vector<64x32xf32> -> vector<64x32xf32>
    %c15 = arith.constant 15 : index
    %c0_85 = arith.constant 0 : index
    %120 = vector.load %arg22[%c15, %c0_85] : memref<89x16xf32, #tpu.memory_space<vmem>>, vector<64x16xf32>
    %121 = arith.truncf %120 : vector<64x16xf32> to vector<64x16xbf16>
    %c3_86 = arith.constant 3 : index
    %c0_87 = arith.constant 0 : index
    %c0_88 = arith.constant 0 : index
    %122 = vector.load %arg5[%c3_86, %c0_87, %c0_88] : memref<9x16x32xbf16, #tpu.memory_space<vmem>>, vector<1x16x32xbf16>
    %123 = vector.shape_cast %122 : vector<1x16x32xbf16> to vector<16x32xbf16>
    %cst_89 = arith.constant dense<0.000000e+00> : vector<64x32xf32>
    %124 = tpu.matmul %121, %123, %cst_89 {dimension_numbers = #tpu.dot_dimension_numbers<[1], [0], [0], [1], [0, 0, 1, 1], [], []>} : vector<64x16xbf16>, vector<16x32xbf16>, vector<64x32xf32> -> vector<64x32xf32>
    %125 = arith.addf %119, %124 : vector<64x32xf32>
    %c23_90 = arith.constant 23 : index
    %c0_91 = arith.constant 0 : index
    %126 = vector.load %arg22[%c23_90, %c0_91] : memref<89x16xf32, #tpu.memory_space<vmem>>, vector<64x16xf32>
    %127 = arith.truncf %126 : vector<64x16xf32> to vector<64x16xbf16>
    %c6_92 = arith.constant 6 : index
    %c0_93 = arith.constant 0 : index
    %c0_94 = arith.constant 0 : index
    %128 = vector.load %arg5[%c6_92, %c0_93, %c0_94] : memref<9x16x32xbf16, #tpu.memory_space<vmem>>, vector<1x16x32xbf16>
    %129 = vector.shape_cast %128 : vector<1x16x32xbf16> to vector<16x32xbf16>
    %cst_95 = arith.constant dense<0.000000e+00> : vector<64x32xf32>
    %130 = tpu.matmul %127, %129, %cst_95 {dimension_numbers = #tpu.dot_dimension_numbers<[1], [0], [0], [1], [0, 0, 1, 1], [], []>} : vector<64x16xbf16>, vector<16x32xbf16>, vector<64x32xf32> -> vector<64x32xf32>
    %131 = arith.addf %125, %130 : vector<64x32xf32>
    %132 = vector.broadcast %109 : vector<64x1xf32> to vector<64x32xf32>
    %133 = arith.mulf %131, %132 : vector<64x32xf32>
    %c8_96 = arith.constant 8 : index
    %c0_97 = arith.constant 0 : index
    %134 = vector.load %arg22[%c8_96, %c0_97] : memref<89x16xf32, #tpu.memory_space<vmem>>, vector<64x16xf32>
    %135 = arith.truncf %134 : vector<64x16xf32> to vector<64x16xbf16>
    %c1_98 = arith.constant 1 : index
    %c0_99 = arith.constant 0 : index
    %c0_100 = arith.constant 0 : index
    %136 = vector.load %arg5[%c1_98, %c0_99, %c0_100] : memref<9x16x32xbf16, #tpu.memory_space<vmem>>, vector<1x16x32xbf16>
    %137 = vector.shape_cast %136 : vector<1x16x32xbf16> to vector<16x32xbf16>
    %cst_101 = arith.constant dense<0.000000e+00> : vector<64x32xf32>
    %138 = tpu.matmul %135, %137, %cst_101 {dimension_numbers = #tpu.dot_dimension_numbers<[1], [0], [0], [1], [0, 0, 1, 1], [], []>} : vector<64x16xbf16>, vector<16x32xbf16>, vector<64x32xf32> -> vector<64x32xf32>
    %c16_102 = arith.constant 16 : index
    %c0_103 = arith.constant 0 : index
    %139 = vector.load %arg22[%c16_102, %c0_103] : memref<89x16xf32, #tpu.memory_space<vmem>>, vector<64x16xf32>
    %140 = arith.truncf %139 : vector<64x16xf32> to vector<64x16xbf16>
    %c4_104 = arith.constant 4 : index
    %c0_105 = arith.constant 0 : index
    %c0_106 = arith.constant 0 : index
    %141 = vector.load %arg5[%c4_104, %c0_105, %c0_106] : memref<9x16x32xbf16, #tpu.memory_space<vmem>>, vector<1x16x32xbf16>
    %142 = vector.shape_cast %141 : vector<1x16x32xbf16> to vector<16x32xbf16>
    %cst_107 = arith.constant dense<0.000000e+00> : vector<64x32xf32>
    %143 = tpu.matmul %140, %142, %cst_107 {dimension_numbers = #tpu.dot_dimension_numbers<[1], [0], [0], [1], [0, 0, 1, 1], [], []>} : vector<64x16xbf16>, vector<16x32xbf16>, vector<64x32xf32> -> vector<64x32xf32>
    %144 = arith.addf %138, %143 : vector<64x32xf32>
    %c24_108 = arith.constant 24 : index
    %c0_109 = arith.constant 0 : index
    %145 = vector.load %arg22[%c24_108, %c0_109] : memref<89x16xf32, #tpu.memory_space<vmem>>, vector<64x16xf32>
    %146 = arith.truncf %145 : vector<64x16xf32> to vector<64x16xbf16>
    %c7_110 = arith.constant 7 : index
    %c0_111 = arith.constant 0 : index
    %c0_112 = arith.constant 0 : index
    %147 = vector.load %arg5[%c7_110, %c0_111, %c0_112] : memref<9x16x32xbf16, #tpu.memory_space<vmem>>, vector<1x16x32xbf16>
    %148 = vector.shape_cast %147 : vector<1x16x32xbf16> to vector<16x32xbf16>
    %cst_113 = arith.constant dense<0.000000e+00> : vector<64x32xf32>
    %149 = tpu.matmul %146, %148, %cst_113 {dimension_numbers = #tpu.dot_dimension_numbers<[1], [0], [0], [1], [0, 0, 1, 1], [], []>} : vector<64x16xbf16>, vector<16x32xbf16>, vector<64x32xf32> -> vector<64x32xf32>
    %150 = arith.addf %144, %149 : vector<64x32xf32>
    %151 = arith.addf %133, %150 : vector<64x32xf32>
    %c9_114 = arith.constant 9 : index
    %c0_115 = arith.constant 0 : index
    %152 = vector.load %arg22[%c9_114, %c0_115] : memref<89x16xf32, #tpu.memory_space<vmem>>, vector<64x16xf32>
    %153 = arith.truncf %152 : vector<64x16xf32> to vector<64x16xbf16>
    %c2_116 = arith.constant 2 : index
    %c0_117 = arith.constant 0 : index
    %c0_118 = arith.constant 0 : index
    %154 = vector.load %arg5[%c2_116, %c0_117, %c0_118] : memref<9x16x32xbf16, #tpu.memory_space<vmem>>, vector<1x16x32xbf16>
    %155 = vector.shape_cast %154 : vector<1x16x32xbf16> to vector<16x32xbf16>
    %cst_119 = arith.constant dense<0.000000e+00> : vector<64x32xf32>
    %156 = tpu.matmul %153, %155, %cst_119 {dimension_numbers = #tpu.dot_dimension_numbers<[1], [0], [0], [1], [0, 0, 1, 1], [], []>} : vector<64x16xbf16>, vector<16x32xbf16>, vector<64x32xf32> -> vector<64x32xf32>
    %c17 = arith.constant 17 : index
    %c0_120 = arith.constant 0 : index
    %157 = vector.load %arg22[%c17, %c0_120] : memref<89x16xf32, #tpu.memory_space<vmem>>, vector<64x16xf32>
    %158 = arith.truncf %157 : vector<64x16xf32> to vector<64x16xbf16>
    %c5_121 = arith.constant 5 : index
    %c0_122 = arith.constant 0 : index
    %c0_123 = arith.constant 0 : index
    %159 = vector.load %arg5[%c5_121, %c0_122, %c0_123] : memref<9x16x32xbf16, #tpu.memory_space<vmem>>, vector<1x16x32xbf16>
    %160 = vector.shape_cast %159 : vector<1x16x32xbf16> to vector<16x32xbf16>
    %cst_124 = arith.constant dense<0.000000e+00> : vector<64x32xf32>
    %161 = tpu.matmul %158, %160, %cst_124 {dimension_numbers = #tpu.dot_dimension_numbers<[1], [0], [0], [1], [0, 0, 1, 1], [], []>} : vector<64x16xbf16>, vector<16x32xbf16>, vector<64x32xf32> -> vector<64x32xf32>
    %162 = arith.addf %156, %161 : vector<64x32xf32>
    %c25_125 = arith.constant 25 : index
    %c0_126 = arith.constant 0 : index
    %163 = vector.load %arg22[%c25_125, %c0_126] : memref<89x16xf32, #tpu.memory_space<vmem>>, vector<64x16xf32>
    %164 = arith.truncf %163 : vector<64x16xf32> to vector<64x16xbf16>
    %c8_127 = arith.constant 8 : index
    %c0_128 = arith.constant 0 : index
    %c0_129 = arith.constant 0 : index
    %165 = vector.load %arg5[%c8_127, %c0_128, %c0_129] : memref<9x16x32xbf16, #tpu.memory_space<vmem>>, vector<1x16x32xbf16>
    %166 = vector.shape_cast %165 : vector<1x16x32xbf16> to vector<16x32xbf16>
    %cst_130 = arith.constant dense<0.000000e+00> : vector<64x32xf32>
    %167 = tpu.matmul %164, %166, %cst_130 {dimension_numbers = #tpu.dot_dimension_numbers<[1], [0], [0], [1], [0, 0, 1, 1], [], []>} : vector<64x16xbf16>, vector<16x32xbf16>, vector<64x32xf32> -> vector<64x32xf32>
    %168 = arith.addf %162, %167 : vector<64x32xf32>
    %169 = vector.broadcast %114 : vector<64x1xf32> to vector<64x32xf32>
    %170 = arith.mulf %168, %169 : vector<64x32xf32>
    %171 = arith.addf %151, %170 : vector<64x32xf32>
    %c0_131 = arith.constant 0 : index
    %c0_132 = arith.constant 0 : index
    %172 = vector.load %arg6[%c0_131, %c0_132] : memref<1x32xf32, #tpu.memory_space<vmem>>, vector<1x32xf32>
    %173 = vector.broadcast %172 : vector<1x32xf32> to vector<64x32xf32>
    %174 = arith.addf %171, %173 : vector<64x32xf32>
    %cst_133 = arith.constant 0.000000e+00 : f32
    %175 = vector.broadcast %cst_133 : f32 to vector<64x32xf32>
    %176 = arith.maximumf %174, %175 : vector<64x32xf32>
    %177 = arith.truncf %176 : vector<64x32xf32> to vector<64x32xbf16>
    %c0_134 = arith.constant 0 : index
    %c0_135 = arith.constant 0 : index
    %c0_136 = arith.constant 0 : index
    %178 = vector.load %arg7[%c0_134, %c0_135, %c0_136] : memref<4x16x64xbf16, #tpu.memory_space<vmem>>, vector<1x16x64xbf16>
    %179 = vector.shape_cast %178 : vector<1x16x64xbf16> to vector<16x64xbf16>
    %cst_137 = arith.constant dense<0.000000e+00> : vector<16x32xf32>
    %180 = tpu.matmul %179, %177, %cst_137 {dimension_numbers = #tpu.dot_dimension_numbers<[1], [0], [0], [1], [0, 0, 1, 1], [], []>} : vector<16x64xbf16>, vector<64x32xbf16>, vector<16x32xf32> -> vector<16x32xf32>
    %c1_138 = arith.constant 1 : index
    %c0_139 = arith.constant 0 : index
    %c0_140 = arith.constant 0 : index
    %181 = vector.load %arg7[%c1_138, %c0_139, %c0_140] : memref<4x16x64xbf16, #tpu.memory_space<vmem>>, vector<1x16x64xbf16>
    %182 = vector.shape_cast %181 : vector<1x16x64xbf16> to vector<16x64xbf16>
    %cst_141 = arith.constant dense<0.000000e+00> : vector<16x32xf32>
    %183 = tpu.matmul %182, %177, %cst_141 {dimension_numbers = #tpu.dot_dimension_numbers<[1], [0], [0], [1], [0, 0, 1, 1], [], []>} : vector<16x64xbf16>, vector<64x32xbf16>, vector<16x32xf32> -> vector<16x32xf32>
    %184 = arith.maximumf %180, %183 : vector<16x32xf32>
    %c2_142 = arith.constant 2 : index
    %c0_143 = arith.constant 0 : index
    %c0_144 = arith.constant 0 : index
    %185 = vector.load %arg7[%c2_142, %c0_143, %c0_144] : memref<4x16x64xbf16, #tpu.memory_space<vmem>>, vector<1x16x64xbf16>
    %186 = vector.shape_cast %185 : vector<1x16x64xbf16> to vector<16x64xbf16>
    %cst_145 = arith.constant dense<0.000000e+00> : vector<16x32xf32>
    %187 = tpu.matmul %186, %177, %cst_145 {dimension_numbers = #tpu.dot_dimension_numbers<[1], [0], [0], [1], [0, 0, 1, 1], [], []>} : vector<16x64xbf16>, vector<64x32xbf16>, vector<16x32xf32> -> vector<16x32xf32>
    %188 = arith.maximumf %184, %187 : vector<16x32xf32>
    %c3_146 = arith.constant 3 : index
    %c0_147 = arith.constant 0 : index
    %c0_148 = arith.constant 0 : index
    %189 = vector.load %arg7[%c3_146, %c0_147, %c0_148] : memref<4x16x64xbf16, #tpu.memory_space<vmem>>, vector<1x16x64xbf16>
    %190 = vector.shape_cast %189 : vector<1x16x64xbf16> to vector<16x64xbf16>
    %cst_149 = arith.constant dense<0.000000e+00> : vector<16x32xf32>
    %191 = tpu.matmul %190, %177, %cst_149 {dimension_numbers = #tpu.dot_dimension_numbers<[1], [0], [0], [1], [0, 0, 1, 1], [], []>} : vector<16x64xbf16>, vector<64x32xbf16>, vector<16x32xf32> -> vector<16x32xf32>
    %192 = arith.maximumf %188, %191 : vector<16x32xf32>
    %193 = arith.truncf %192 : vector<16x32xf32> to vector<16x32xbf16>
    %cst_150 = arith.constant 0.000000e+00 : f32
    %194 = vector.broadcast %cst_150 : f32 to vector<29x32xf32>
    %c0_151 = arith.constant 0 : index
    %c0_152 = arith.constant 0 : index
    %195 = vector.load %arg23[%c0_151, %c0_152] : memref<29x32xf32, #tpu.memory_space<vmem>>, vector<29x32xf32>
    tpu.vector_store %arg23[%c0_151, %c0_152], %194 {strides = array<i32>} : memref<29x32xf32, #tpu.memory_space<vmem>>, vector<29x32xf32>,
    %196 = arith.extf %193 : vector<16x32xbf16> to vector<16x32xf32>
    %c8_153 = arith.constant 8 : index
    %c0_154 = arith.constant 0 : index
    %197 = vector.load %arg23[%c8_153, %c0_154] : memref<29x32xf32, #tpu.memory_space<vmem>>, vector<16x32xf32>
    tpu.vector_store %arg23[%c8_153, %c0_154], %196 {strides = array<i32>} : memref<29x32xf32, #tpu.memory_space<vmem>>, vector<16x32xf32>,
    %198 = tpu.iota {dimensions = array<i32: 0>} : vector<16x1xi32>
    %c3_i32 = arith.constant 3 : i32
    %199 = vector.broadcast %c3_i32 : i32 to vector<16x1xi32>
    %200 = arith.andi %198, %199 : vector<16x1xi32>
    %c0_i32_155 = arith.constant 0 : i32
    %201 = vector.broadcast %c0_i32_155 : i32 to vector<16x1xi32>
    %202 = arith.cmpi ne, %200, %201 : vector<16x1xi32>
    %cst_156 = arith.constant 1.000000e+00 : f32
    %cst_157 = arith.constant 0.000000e+00 : f32
    %203 = vector.broadcast %cst_156 : f32 to vector<16x1xf32>
    %204 = vector.broadcast %cst_157 : f32 to vector<16x1xf32>
    %205 = arith.select %202, %203, %204 : vector<16x1xi1>, vector<16x1xf32>
    %c3_i32_158 = arith.constant 3 : i32
    %206 = vector.broadcast %c3_i32_158 : i32 to vector<16x1xi32>
    %207 = arith.cmpi ne, %200, %206 : vector<16x1xi32>
    %cst_159 = arith.constant 1.000000e+00 : f32
    %cst_160 = arith.constant 0.000000e+00 : f32
    %208 = vector.broadcast %cst_159 : f32 to vector<16x1xf32>
    %209 = vector.broadcast %cst_160 : f32 to vector<16x1xf32>
    %210 = arith.select %207, %208, %209 : vector<16x1xi1>, vector<16x1xf32>
    %c3_161 = arith.constant 3 : index
    %c0_162 = arith.constant 0 : index
    %211 = vector.load %arg23[%c3_161, %c0_162] : memref<29x32xf32, #tpu.memory_space<vmem>>, vector<16x32xf32>
    %212 = arith.truncf %211 : vector<16x32xf32> to vector<16x32xbf16>
    %c0_163 = arith.constant 0 : index
    %c0_164 = arith.constant 0 : index
    %c0_165 = arith.constant 0 : index
    %213 = vector.load %arg8[%c0_163, %c0_164, %c0_165] : memref<9x32x64xbf16, #tpu.memory_space<vmem>>, vector<1x32x64xbf16>
    %214 = vector.shape_cast %213 : vector<1x32x64xbf16> to vector<32x64xbf16>
    %cst_166 = arith.constant dense<0.000000e+00> : vector<16x64xf32>
    %215 = tpu.matmul %212, %214, %cst_166 {dimension_numbers = #tpu.dot_dimension_numbers<[1], [0], [0], [1], [0, 0, 1, 1], [], []>} : vector<16x32xbf16>, vector<32x64xbf16>, vector<16x64xf32> -> vector<16x64xf32>
    %c7_167 = arith.constant 7 : index
    %c0_168 = arith.constant 0 : index
    %216 = vector.load %arg23[%c7_167, %c0_168] : memref<29x32xf32, #tpu.memory_space<vmem>>, vector<16x32xf32>
    %217 = arith.truncf %216 : vector<16x32xf32> to vector<16x32xbf16>
    %c3_169 = arith.constant 3 : index
    %c0_170 = arith.constant 0 : index
    %c0_171 = arith.constant 0 : index
    %218 = vector.load %arg8[%c3_169, %c0_170, %c0_171] : memref<9x32x64xbf16, #tpu.memory_space<vmem>>, vector<1x32x64xbf16>
    %219 = vector.shape_cast %218 : vector<1x32x64xbf16> to vector<32x64xbf16>
    %cst_172 = arith.constant dense<0.000000e+00> : vector<16x64xf32>
    %220 = tpu.matmul %217, %219, %cst_172 {dimension_numbers = #tpu.dot_dimension_numbers<[1], [0], [0], [1], [0, 0, 1, 1], [], []>} : vector<16x32xbf16>, vector<32x64xbf16>, vector<16x64xf32> -> vector<16x64xf32>
    %221 = arith.addf %215, %220 : vector<16x64xf32>
    %c11 = arith.constant 11 : index
    %c0_173 = arith.constant 0 : index
    %222 = vector.load %arg23[%c11, %c0_173] : memref<29x32xf32, #tpu.memory_space<vmem>>, vector<16x32xf32>
    %223 = arith.truncf %222 : vector<16x32xf32> to vector<16x32xbf16>
    %c6_174 = arith.constant 6 : index
    %c0_175 = arith.constant 0 : index
    %c0_176 = arith.constant 0 : index
    %224 = vector.load %arg8[%c6_174, %c0_175, %c0_176] : memref<9x32x64xbf16, #tpu.memory_space<vmem>>, vector<1x32x64xbf16>
    %225 = vector.shape_cast %224 : vector<1x32x64xbf16> to vector<32x64xbf16>
    %cst_177 = arith.constant dense<0.000000e+00> : vector<16x64xf32>
    %226 = tpu.matmul %223, %225, %cst_177 {dimension_numbers = #tpu.dot_dimension_numbers<[1], [0], [0], [1], [0, 0, 1, 1], [], []>} : vector<16x32xbf16>, vector<32x64xbf16>, vector<16x64xf32> -> vector<16x64xf32>
    %227 = arith.addf %221, %226 : vector<16x64xf32>
    %228 = vector.broadcast %205 : vector<16x1xf32> to vector<16x64xf32>
    %229 = arith.mulf %227, %228 : vector<16x64xf32>
    %c4_178 = arith.constant 4 : index
    %c0_179 = arith.constant 0 : index
    %230 = vector.load %arg23[%c4_178, %c0_179] : memref<29x32xf32, #tpu.memory_space<vmem>>, vector<16x32xf32>
    %231 = arith.truncf %230 : vector<16x32xf32> to vector<16x32xbf16>
    %c1_180 = arith.constant 1 : index
    %c0_181 = arith.constant 0 : index
    %c0_182 = arith.constant 0 : index
    %232 = vector.load %arg8[%c1_180, %c0_181, %c0_182] : memref<9x32x64xbf16, #tpu.memory_space<vmem>>, vector<1x32x64xbf16>
    %233 = vector.shape_cast %232 : vector<1x32x64xbf16> to vector<32x64xbf16>
    %cst_183 = arith.constant dense<0.000000e+00> : vector<16x64xf32>
    %234 = tpu.matmul %231, %233, %cst_183 {dimension_numbers = #tpu.dot_dimension_numbers<[1], [0], [0], [1], [0, 0, 1, 1], [], []>} : vector<16x32xbf16>, vector<32x64xbf16>, vector<16x64xf32> -> vector<16x64xf32>
    %c8_184 = arith.constant 8 : index
    %c0_185 = arith.constant 0 : index
    %235 = vector.load %arg23[%c8_184, %c0_185] : memref<29x32xf32, #tpu.memory_space<vmem>>, vector<16x32xf32>
    %236 = arith.truncf %235 : vector<16x32xf32> to vector<16x32xbf16>
    %c4_186 = arith.constant 4 : index
    %c0_187 = arith.constant 0 : index
    %c0_188 = arith.constant 0 : index
    %237 = vector.load %arg8[%c4_186, %c0_187, %c0_188] : memref<9x32x64xbf16, #tpu.memory_space<vmem>>, vector<1x32x64xbf16>
    %238 = vector.shape_cast %237 : vector<1x32x64xbf16> to vector<32x64xbf16>
    %cst_189 = arith.constant dense<0.000000e+00> : vector<16x64xf32>
    %239 = tpu.matmul %236, %238, %cst_189 {dimension_numbers = #tpu.dot_dimension_numbers<[1], [0], [0], [1], [0, 0, 1, 1], [], []>} : vector<16x32xbf16>, vector<32x64xbf16>, vector<16x64xf32> -> vector<16x64xf32>
    %240 = arith.addf %234, %239 : vector<16x64xf32>
    %c12 = arith.constant 12 : index
    %c0_190 = arith.constant 0 : index
    %241 = vector.load %arg23[%c12, %c0_190] : memref<29x32xf32, #tpu.memory_space<vmem>>, vector<16x32xf32>
    %242 = arith.truncf %241 : vector<16x32xf32> to vector<16x32xbf16>
    %c7_191 = arith.constant 7 : index
    %c0_192 = arith.constant 0 : index
    %c0_193 = arith.constant 0 : index
    %243 = vector.load %arg8[%c7_191, %c0_192, %c0_193] : memref<9x32x64xbf16, #tpu.memory_space<vmem>>, vector<1x32x64xbf16>
    %244 = vector.shape_cast %243 : vector<1x32x64xbf16> to vector<32x64xbf16>
    %cst_194 = arith.constant dense<0.000000e+00> : vector<16x64xf32>
    %245 = tpu.matmul %242, %244, %cst_194 {dimension_numbers = #tpu.dot_dimension_numbers<[1], [0], [0], [1], [0, 0, 1, 1], [], []>} : vector<16x32xbf16>, vector<32x64xbf16>, vector<16x64xf32> -> vector<16x64xf32>
    %246 = arith.addf %240, %245 : vector<16x64xf32>
    %247 = arith.addf %229, %246 : vector<16x64xf32>
    %c5_195 = arith.constant 5 : index
    %c0_196 = arith.constant 0 : index
    %248 = vector.load %arg23[%c5_195, %c0_196] : memref<29x32xf32, #tpu.memory_space<vmem>>, vector<16x32xf32>
    %249 = arith.truncf %248 : vector<16x32xf32> to vector<16x32xbf16>
    %c2_197 = arith.constant 2 : index
    %c0_198 = arith.constant 0 : index
    %c0_199 = arith.constant 0 : index
    %250 = vector.load %arg8[%c2_197, %c0_198, %c0_199] : memref<9x32x64xbf16, #tpu.memory_space<vmem>>, vector<1x32x64xbf16>
    %251 = vector.shape_cast %250 : vector<1x32x64xbf16> to vector<32x64xbf16>
    %cst_200 = arith.constant dense<0.000000e+00> : vector<16x64xf32>
    %252 = tpu.matmul %249, %251, %cst_200 {dimension_numbers = #tpu.dot_dimension_numbers<[1], [0], [0], [1], [0, 0, 1, 1], [], []>} : vector<16x32xbf16>, vector<32x64xbf16>, vector<16x64xf32> -> vector<16x64xf32>
    %c9_201 = arith.constant 9 : index
    %c0_202 = arith.constant 0 : index
    %253 = vector.load %arg23[%c9_201, %c0_202] : memref<29x32xf32, #tpu.memory_space<vmem>>, vector<16x32xf32>
    %254 = arith.truncf %253 : vector<16x32xf32> to vector<16x32xbf16>
    %c5_203 = arith.constant 5 : index
    %c0_204 = arith.constant 0 : index
    %c0_205 = arith.constant 0 : index
    %255 = vector.load %arg8[%c5_203, %c0_204, %c0_205] : memref<9x32x64xbf16, #tpu.memory_space<vmem>>, vector<1x32x64xbf16>
    %256 = vector.shape_cast %255 : vector<1x32x64xbf16> to vector<32x64xbf16>
    %cst_206 = arith.constant dense<0.000000e+00> : vector<16x64xf32>
    %257 = tpu.matmul %254, %256, %cst_206 {dimension_numbers = #tpu.dot_dimension_numbers<[1], [0], [0], [1], [0, 0, 1, 1], [], []>} : vector<16x32xbf16>, vector<32x64xbf16>, vector<16x64xf32> -> vector<16x64xf32>
    %258 = arith.addf %252, %257 : vector<16x64xf32>
    %c13 = arith.constant 13 : index
    %c0_207 = arith.constant 0 : index
    %259 = vector.load %arg23[%c13, %c0_207] : memref<29x32xf32, #tpu.memory_space<vmem>>, vector<16x32xf32>
    %260 = arith.truncf %259 : vector<16x32xf32> to vector<16x32xbf16>
    %c8_208 = arith.constant 8 : index
    %c0_209 = arith.constant 0 : index
    %c0_210 = arith.constant 0 : index
    %261 = vector.load %arg8[%c8_208, %c0_209, %c0_210] : memref<9x32x64xbf16, #tpu.memory_space<vmem>>, vector<1x32x64xbf16>
    %262 = vector.shape_cast %261 : vector<1x32x64xbf16> to vector<32x64xbf16>
    %cst_211 = arith.constant dense<0.000000e+00> : vector<16x64xf32>
    %263 = tpu.matmul %260, %262, %cst_211 {dimension_numbers = #tpu.dot_dimension_numbers<[1], [0], [0], [1], [0, 0, 1, 1], [], []>} : vector<16x32xbf16>, vector<32x64xbf16>, vector<16x64xf32> -> vector<16x64xf32>
    %264 = arith.addf %258, %263 : vector<16x64xf32>
    %265 = vector.broadcast %210 : vector<16x1xf32> to vector<16x64xf32>
    %266 = arith.mulf %264, %265 : vector<16x64xf32>
    %267 = arith.addf %247, %266 : vector<16x64xf32>
    %c0_212 = arith.constant 0 : index
    %c0_213 = arith.constant 0 : index
    %268 = vector.load %arg9[%c0_212, %c0_213] : memref<1x64xf32, #tpu.memory_space<vmem>>, vector<1x64xf32>
    %269 = vector.broadcast %268 : vector<1x64xf32> to vector<16x64xf32>
    %270 = arith.addf %267, %269 : vector<16x64xf32>
    %cst_214 = arith.constant 0.000000e+00 : f32
    %271 = vector.broadcast %cst_214 : f32 to vector<16x64xf32>
    %272 = arith.maximumf %270, %271 : vector<16x64xf32>
    %273 = arith.truncf %272 : vector<16x64xf32> to vector<16x64xbf16>
    %c0_215 = arith.constant 0 : index
    %c0_216 = arith.constant 0 : index
    %c0_217 = arith.constant 0 : index
    %274 = vector.load %arg10[%c0_215, %c0_216, %c0_217] : memref<4x4x16xbf16, #tpu.memory_space<vmem>>, vector<1x4x16xbf16>
    %275 = vector.shape_cast %274 : vector<1x4x16xbf16> to vector<4x16xbf16>
    %cst_218 = arith.constant dense<0.000000e+00> : vector<4x64xf32>
    %276 = tpu.matmul %275, %273, %cst_218 {dimension_numbers = #tpu.dot_dimension_numbers<[1], [0], [0], [1], [0, 0, 1, 1], [], []>} : vector<4x16xbf16>, vector<16x64xbf16>, vector<4x64xf32> -> vector<4x64xf32>
    %c1_219 = arith.constant 1 : index
    %c0_220 = arith.constant 0 : index
    %c0_221 = arith.constant 0 : index
    %277 = vector.load %arg10[%c1_219, %c0_220, %c0_221] : memref<4x4x16xbf16, #tpu.memory_space<vmem>>, vector<1x4x16xbf16>
    %278 = vector.shape_cast %277 : vector<1x4x16xbf16> to vector<4x16xbf16>
    %cst_222 = arith.constant dense<0.000000e+00> : vector<4x64xf32>
    %279 = tpu.matmul %278, %273, %cst_222 {dimension_numbers = #tpu.dot_dimension_numbers<[1], [0], [0], [1], [0, 0, 1, 1], [], []>} : vector<4x16xbf16>, vector<16x64xbf16>, vector<4x64xf32> -> vector<4x64xf32>
    %280 = arith.maximumf %276, %279 : vector<4x64xf32>
    %c2_223 = arith.constant 2 : index
    %c0_224 = arith.constant 0 : index
    %c0_225 = arith.constant 0 : index
    %281 = vector.load %arg10[%c2_223, %c0_224, %c0_225] : memref<4x4x16xbf16, #tpu.memory_space<vmem>>, vector<1x4x16xbf16>
    %282 = vector.shape_cast %281 : vector<1x4x16xbf16> to vector<4x16xbf16>
    %cst_226 = arith.constant dense<0.000000e+00> : vector<4x64xf32>
    %283 = tpu.matmul %282, %273, %cst_226 {dimension_numbers = #tpu.dot_dimension_numbers<[1], [0], [0], [1], [0, 0, 1, 1], [], []>} : vector<4x16xbf16>, vector<16x64xbf16>, vector<4x64xf32> -> vector<4x64xf32>
    %284 = arith.maximumf %280, %283 : vector<4x64xf32>
    %c3_227 = arith.constant 3 : index
    %c0_228 = arith.constant 0 : index
    %c0_229 = arith.constant 0 : index
    %285 = vector.load %arg10[%c3_227, %c0_228, %c0_229] : memref<4x4x16xbf16, #tpu.memory_space<vmem>>, vector<1x4x16xbf16>
    %286 = vector.shape_cast %285 : vector<1x4x16xbf16> to vector<4x16xbf16>
    %cst_230 = arith.constant dense<0.000000e+00> : vector<4x64xf32>
    %287 = tpu.matmul %286, %273, %cst_230 {dimension_numbers = #tpu.dot_dimension_numbers<[1], [0], [0], [1], [0, 0, 1, 1], [], []>} : vector<4x16xbf16>, vector<16x64xbf16>, vector<4x64xf32> -> vector<4x64xf32>
    %288 = arith.maximumf %284, %287 : vector<4x64xf32>
    %289 = arith.truncf %288 : vector<4x64xf32> to vector<4x64xbf16>
    %cst_231 = arith.constant 0.000000e+00 : f32
    %290 = vector.broadcast %cst_231 : f32 to vector<7x64xf32>
    %c0_232 = arith.constant 0 : index
    %c0_233 = arith.constant 0 : index
    %291 = vector.load %arg24[%c0_232, %c0_233] : memref<7x64xf32, #tpu.memory_space<vmem>>, vector<7x64xf32>
    tpu.vector_store %arg24[%c0_232, %c0_233], %290 {strides = array<i32>} : memref<7x64xf32, #tpu.memory_space<vmem>>, vector<7x64xf32>,
    %292 = arith.extf %289 : vector<4x64xbf16> to vector<4x64xf32>
    %c0_234 = arith.constant 0 : index
    %c0_235 = arith.constant 0 : index
    %293 = vector.load %arg24[%c0_234, %c0_235] : memref<7x64xf32, #tpu.memory_space<vmem>>, vector<4x64xf32>
    tpu.vector_store %arg24[%c0_234, %c0_235], %292 {strides = array<i32>} : memref<7x64xf32, #tpu.memory_space<vmem>>, vector<4x64xf32>,
    %294 = tpu.iota {dimensions = array<i32: 0>} : vector<4x1xi32>
    %c1_i32 = arith.constant 1 : i32
    %295 = vector.broadcast %c1_i32 : i32 to vector<4x1xi32>
    %296 = arith.andi %294, %295 : vector<4x1xi32>
    %c1_i32_236 = arith.constant 1 : i32
    %297 = vector.broadcast %c1_i32_236 : i32 to vector<4x1xi32>
    %298 = arith.cmpi ne, %296, %297 : vector<4x1xi32>
    %cst_237 = arith.constant 1.000000e+00 : f32
    %cst_238 = arith.constant 0.000000e+00 : f32
    %299 = vector.broadcast %cst_237 : f32 to vector<4x1xf32>
    %300 = vector.broadcast %cst_238 : f32 to vector<4x1xf32>
    %301 = arith.select %298, %299, %300 : vector<4x1xi1>, vector<4x1xf32>
    %302 = arith.truncf %301 : vector<4x1xf32> to vector<4x1xbf16>
    %c1_239 = arith.constant 1 : index
    %c0_240 = arith.constant 0 : index
    %303 = vector.load %arg24[%c1_239, %c0_240] : memref<7x64xf32, #tpu.memory_space<vmem>>, vector<4x64xf32>
    %304 = arith.truncf %303 : vector<4x64xf32> to vector<4x64xbf16>
    %305 = vector.broadcast %302 : vector<4x1xbf16> to vector<4x64xbf16>
    %306 = arith.mulf %304, %305 : vector<4x64xbf16>
    %c2_241 = arith.constant 2 : index
    %c0_242 = arith.constant 0 : index
    %307 = vector.load %arg24[%c2_241, %c0_242] : memref<7x64xf32, #tpu.memory_space<vmem>>, vector<4x64xf32>
    %308 = arith.truncf %307 : vector<4x64xf32> to vector<4x64xbf16>
    %c3_243 = arith.constant 3 : index
    %c0_244 = arith.constant 0 : index
    %309 = vector.load %arg24[%c3_243, %c0_244] : memref<7x64xf32, #tpu.memory_space<vmem>>, vector<4x64xf32>
    %310 = arith.truncf %309 : vector<4x64xf32> to vector<4x64xbf16>
    %311 = vector.broadcast %302 : vector<4x1xbf16> to vector<4x64xbf16>
    %312 = arith.mulf %310, %311 : vector<4x64xbf16>
    %c0_245 = arith.constant 0 : index
    %c0_246 = arith.constant 0 : index
    %313 = vector.load %arg12[%c0_245, %c0_246] : memref<1x32xf32, #tpu.memory_space<vmem>>, vector<1x32xf32>
    %c4_247 = arith.constant 4 : index
    %c0_248 = arith.constant 0 : index
    %c0_249 = arith.constant 0 : index
    %314 = vector.load %arg11[%c4_247, %c0_248, %c0_249] : memref<9x64x32xbf16, #tpu.memory_space<vmem>>, vector<1x64x32xbf16>
    %315 = vector.shape_cast %314 : vector<1x64x32xbf16> to vector<64x32xbf16>
    %cst_250 = arith.constant dense<0.000000e+00> : vector<4x32xf32>
    %316 = tpu.matmul %289, %315, %cst_250 {dimension_numbers = #tpu.dot_dimension_numbers<[1], [0], [0], [1], [0, 0, 1, 1], [], []>} : vector<4x64xbf16>, vector<64x32xbf16>, vector<4x32xf32> -> vector<4x32xf32>
    %317 = vector.broadcast %313 : vector<1x32xf32> to vector<4x32xf32>
    %318 = arith.addf %317, %316 : vector<4x32xf32>
    %c5_251 = arith.constant 5 : index
    %c0_252 = arith.constant 0 : index
    %c0_253 = arith.constant 0 : index
    %319 = vector.load %arg11[%c5_251, %c0_252, %c0_253] : memref<9x64x32xbf16, #tpu.memory_space<vmem>>, vector<1x64x32xbf16>
    %320 = vector.shape_cast %319 : vector<1x64x32xbf16> to vector<64x32xbf16>
    %cst_254 = arith.constant dense<0.000000e+00> : vector<4x32xf32>
    %321 = tpu.matmul %289, %320, %cst_254 {dimension_numbers = #tpu.dot_dimension_numbers<[1], [0], [0], [1], [0, 0, 1, 1], [], []>} : vector<4x64xbf16>, vector<64x32xbf16>, vector<4x32xf32> -> vector<4x32xf32>
    %322 = vector.broadcast %313 : vector<1x32xf32> to vector<4x32xf32>
    %323 = arith.addf %322, %321 : vector<4x32xf32>
    %c3_255 = arith.constant 3 : index
    %c0_256 = arith.constant 0 : index
    %c0_257 = arith.constant 0 : index
    %324 = vector.load %arg11[%c3_255, %c0_256, %c0_257] : memref<9x64x32xbf16, #tpu.memory_space<vmem>>, vector<1x64x32xbf16>
    %325 = vector.shape_cast %324 : vector<1x64x32xbf16> to vector<64x32xbf16>
    %cst_258 = arith.constant dense<0.000000e+00> : vector<4x32xf32>
    %326 = tpu.matmul %306, %325, %cst_258 {dimension_numbers = #tpu.dot_dimension_numbers<[1], [0], [0], [1], [0, 0, 1, 1], [], []>} : vector<4x64xbf16>, vector<64x32xbf16>, vector<4x32xf32> -> vector<4x32xf32>
    %327 = arith.addf %323, %326 : vector<4x32xf32>
    %c7_259 = arith.constant 7 : index
    %c0_260 = arith.constant 0 : index
    %c0_261 = arith.constant 0 : index
    %328 = vector.load %arg11[%c7_259, %c0_260, %c0_261] : memref<9x64x32xbf16, #tpu.memory_space<vmem>>, vector<1x64x32xbf16>
    %329 = vector.shape_cast %328 : vector<1x64x32xbf16> to vector<64x32xbf16>
    %cst_262 = arith.constant dense<0.000000e+00> : vector<4x32xf32>
    %330 = tpu.matmul %289, %329, %cst_262 {dimension_numbers = #tpu.dot_dimension_numbers<[1], [0], [0], [1], [0, 0, 1, 1], [], []>} : vector<4x64xbf16>, vector<64x32xbf16>, vector<4x32xf32> -> vector<4x32xf32>
    %331 = vector.broadcast %313 : vector<1x32xf32> to vector<4x32xf32>
    %332 = arith.addf %331, %330 : vector<4x32xf32>
    %c1_263 = arith.constant 1 : index
    %c0_264 = arith.constant 0 : index
    %c0_265 = arith.constant 0 : index
    %333 = vector.load %arg11[%c1_263, %c0_264, %c0_265] : memref<9x64x32xbf16, #tpu.memory_space<vmem>>, vector<1x64x32xbf16>
    %334 = vector.shape_cast %333 : vector<1x64x32xbf16> to vector<64x32xbf16>
    %cst_266 = arith.constant dense<0.000000e+00> : vector<4x32xf32>
    %335 = tpu.matmul %308, %334, %cst_266 {dimension_numbers = #tpu.dot_dimension_numbers<[1], [0], [0], [1], [0, 0, 1, 1], [], []>} : vector<4x64xbf16>, vector<64x32xbf16>, vector<4x32xf32> -> vector<4x32xf32>
    %336 = arith.addf %332, %335 : vector<4x32xf32>
    %c8_267 = arith.constant 8 : index
    %c0_268 = arith.constant 0 : index
    %c0_269 = arith.constant 0 : index
    %337 = vector.load %arg11[%c8_267, %c0_268, %c0_269] : memref<9x64x32xbf16, #tpu.memory_space<vmem>>, vector<1x64x32xbf16>
    %338 = vector.shape_cast %337 : vector<1x64x32xbf16> to vector<64x32xbf16>
    %cst_270 = arith.constant dense<0.000000e+00> : vector<4x32xf32>
    %339 = tpu.matmul %289, %338, %cst_270 {dimension_numbers = #tpu.dot_dimension_numbers<[1], [0], [0], [1], [0, 0, 1, 1], [], []>} : vector<4x64xbf16>, vector<64x32xbf16>, vector<4x32xf32> -> vector<4x32xf32>
    %340 = vector.broadcast %313 : vector<1x32xf32> to vector<4x32xf32>
    %341 = arith.addf %340, %339 : vector<4x32xf32>
    %c6_271 = arith.constant 6 : index
    %c0_272 = arith.constant 0 : index
    %c0_273 = arith.constant 0 : index
    %342 = vector.load %arg11[%c6_271, %c0_272, %c0_273] : memref<9x64x32xbf16, #tpu.memory_space<vmem>>, vector<1x64x32xbf16>
    %343 = vector.shape_cast %342 : vector<1x64x32xbf16> to vector<64x32xbf16>
    %cst_274 = arith.constant dense<0.000000e+00> : vector<4x32xf32>
    %344 = tpu.matmul %306, %343, %cst_274 {dimension_numbers = #tpu.dot_dimension_numbers<[1], [0], [0], [1], [0, 0, 1, 1], [], []>} : vector<4x64xbf16>, vector<64x32xbf16>, vector<4x32xf32> -> vector<4x32xf32>
    %345 = arith.addf %341, %344 : vector<4x32xf32>
    %c2_275 = arith.constant 2 : index
    %c0_276 = arith.constant 0 : index
    %c0_277 = arith.constant 0 : index
    %346 = vector.load %arg11[%c2_275, %c0_276, %c0_277] : memref<9x64x32xbf16, #tpu.memory_space<vmem>>, vector<1x64x32xbf16>
    %347 = vector.shape_cast %346 : vector<1x64x32xbf16> to vector<64x32xbf16>
    %cst_278 = arith.constant dense<0.000000e+00> : vector<4x32xf32>
    %348 = tpu.matmul %308, %347, %cst_278 {dimension_numbers = #tpu.dot_dimension_numbers<[1], [0], [0], [1], [0, 0, 1, 1], [], []>} : vector<4x64xbf16>, vector<64x32xbf16>, vector<4x32xf32> -> vector<4x32xf32>
    %349 = arith.addf %345, %348 : vector<4x32xf32>
    %c0_279 = arith.constant 0 : index
    %c0_280 = arith.constant 0 : index
    %c0_281 = arith.constant 0 : index
    %350 = vector.load %arg11[%c0_279, %c0_280, %c0_281] : memref<9x64x32xbf16, #tpu.memory_space<vmem>>, vector<1x64x32xbf16>
    %351 = vector.shape_cast %350 : vector<1x64x32xbf16> to vector<64x32xbf16>
    %cst_282 = arith.constant dense<0.000000e+00> : vector<4x32xf32>
    %352 = tpu.matmul %312, %351, %cst_282 {dimension_numbers = #tpu.dot_dimension_numbers<[1], [0], [0], [1], [0, 0, 1, 1], [], []>} : vector<4x64xbf16>, vector<64x32xbf16>, vector<4x32xf32> -> vector<4x32xf32>
    %353 = arith.addf %349, %352 : vector<4x32xf32>
    %cst_283 = arith.constant 0.000000e+00 : f32
    %354 = vector.broadcast %cst_283 : f32 to vector<4x32xf32>
    %355 = arith.maximumf %318, %354 : vector<4x32xf32>
    %cst_284 = arith.constant 0.000000e+00 : f32
    %356 = vector.broadcast %cst_284 : f32 to vector<4x32xf32>
    %357 = arith.maximumf %327, %356 : vector<4x32xf32>
    %cst_285 = arith.constant 0.000000e+00 : f32
    %358 = vector.broadcast %cst_285 : f32 to vector<4x32xf32>
    %359 = arith.maximumf %336, %358 : vector<4x32xf32>
    %cst_286 = arith.constant 0.000000e+00 : f32
    %360 = vector.broadcast %cst_286 : f32 to vector<4x32xf32>
    %361 = arith.maximumf %353, %360 : vector<4x32xf32>
    %c0_287 = arith.constant 0 : index
    %c0_288 = arith.constant 0 : index
    %c0_289 = arith.constant 0 : index
    %362 = vector.load %arg13[%c0_287, %c0_288, %c0_289] : memref<4x16x4xbf16, #tpu.memory_space<vmem>>, vector<1x16x4xbf16>
    %363 = vector.shape_cast %362 : vector<1x16x4xbf16> to vector<16x4xbf16>
    %364 = arith.truncf %355 : vector<4x32xf32> to vector<4x32xbf16>
    %cst_290 = arith.constant dense<0.000000e+00> : vector<16x32xf32>
    %365 = tpu.matmul %363, %364, %cst_290 {dimension_numbers = #tpu.dot_dimension_numbers<[1], [0], [0], [1], [0, 0, 1, 1], [], []>} : vector<16x4xbf16>, vector<4x32xbf16>, vector<16x32xf32> -> vector<16x32xf32>
    %c1_291 = arith.constant 1 : index
    %c0_292 = arith.constant 0 : index
    %c0_293 = arith.constant 0 : index
    %366 = vector.load %arg13[%c1_291, %c0_292, %c0_293] : memref<4x16x4xbf16, #tpu.memory_space<vmem>>, vector<1x16x4xbf16>
    %367 = vector.shape_cast %366 : vector<1x16x4xbf16> to vector<16x4xbf16>
    %368 = arith.truncf %357 : vector<4x32xf32> to vector<4x32xbf16>
    %cst_294 = arith.constant dense<0.000000e+00> : vector<16x32xf32>
    %369 = tpu.matmul %367, %368, %cst_294 {dimension_numbers = #tpu.dot_dimension_numbers<[1], [0], [0], [1], [0, 0, 1, 1], [], []>} : vector<16x4xbf16>, vector<4x32xbf16>, vector<16x32xf32> -> vector<16x32xf32>
    %370 = arith.addf %365, %369 : vector<16x32xf32>
    %c2_295 = arith.constant 2 : index
    %c0_296 = arith.constant 0 : index
    %c0_297 = arith.constant 0 : index
    %371 = vector.load %arg13[%c2_295, %c0_296, %c0_297] : memref<4x16x4xbf16, #tpu.memory_space<vmem>>, vector<1x16x4xbf16>
    %372 = vector.shape_cast %371 : vector<1x16x4xbf16> to vector<16x4xbf16>
    %373 = arith.truncf %359 : vector<4x32xf32> to vector<4x32xbf16>
    %cst_298 = arith.constant dense<0.000000e+00> : vector<16x32xf32>
    %374 = tpu.matmul %372, %373, %cst_298 {dimension_numbers = #tpu.dot_dimension_numbers<[1], [0], [0], [1], [0, 0, 1, 1], [], []>} : vector<16x4xbf16>, vector<4x32xbf16>, vector<16x32xf32> -> vector<16x32xf32>
    %375 = arith.addf %370, %374 : vector<16x32xf32>
    %c3_299 = arith.constant 3 : index
    %c0_300 = arith.constant 0 : index
    %c0_301 = arith.constant 0 : index
    %376 = vector.load %arg13[%c3_299, %c0_300, %c0_301] : memref<4x16x4xbf16, #tpu.memory_space<vmem>>, vector<1x16x4xbf16>
    %377 = vector.shape_cast %376 : vector<1x16x4xbf16> to vector<16x4xbf16>
    %378 = arith.truncf %361 : vector<4x32xf32> to vector<4x32xbf16>
    %cst_302 = arith.constant dense<0.000000e+00> : vector<16x32xf32>
    %379 = tpu.matmul %377, %378, %cst_302 {dimension_numbers = #tpu.dot_dimension_numbers<[1], [0], [0], [1], [0, 0, 1, 1], [], []>} : vector<16x4xbf16>, vector<4x32xbf16>, vector<16x32xf32> -> vector<16x32xf32>
    %380 = arith.addf %375, %379 : vector<16x32xf32>
    %381 = arith.truncf %380 : vector<16x32xf32> to vector<16x32xbf16>
    %cst_303 = arith.constant 0.000000e+00 : f32
    %382 = vector.broadcast %cst_303 : f32 to vector<21x32xf32>
    %c0_304 = arith.constant 0 : index
    %c0_305 = arith.constant 0 : index
    %383 = vector.load %arg25[%c0_304, %c0_305] : memref<21x32xf32, #tpu.memory_space<vmem>>, vector<21x32xf32>
    tpu.vector_store %arg25[%c0_304, %c0_305], %382 {strides = array<i32>} : memref<21x32xf32, #tpu.memory_space<vmem>>, vector<21x32xf32>,
    %384 = arith.extf %381 : vector<16x32xbf16> to vector<16x32xf32>
    %c0_306 = arith.constant 0 : index
    %c0_307 = arith.constant 0 : index
    %385 = vector.load %arg25[%c0_306, %c0_307] : memref<21x32xf32, #tpu.memory_space<vmem>>, vector<16x32xf32>
    tpu.vector_store %arg25[%c0_306, %c0_307], %384 {strides = array<i32>} : memref<21x32xf32, #tpu.memory_space<vmem>>, vector<16x32xf32>,
    %386 = tpu.iota {dimensions = array<i32: 0>} : vector<16x1xi32>
    %c3_i32_308 = arith.constant 3 : i32
    %387 = vector.broadcast %c3_i32_308 : i32 to vector<16x1xi32>
    %388 = arith.andi %386, %387 : vector<16x1xi32>
    %c3_i32_309 = arith.constant 3 : i32
    %389 = vector.broadcast %c3_i32_309 : i32 to vector<16x1xi32>
    %390 = arith.cmpi ne, %388, %389 : vector<16x1xi32>
    %cst_310 = arith.constant 1.000000e+00 : f32
    %cst_311 = arith.constant 0.000000e+00 : f32
    %391 = vector.broadcast %cst_310 : f32 to vector<16x1xf32>
    %392 = vector.broadcast %cst_311 : f32 to vector<16x1xf32>
    %393 = arith.select %390, %391, %392 : vector<16x1xi1>, vector<16x1xf32>
    %394 = arith.truncf %393 : vector<16x1xf32> to vector<16x1xbf16>
    %c1_312 = arith.constant 1 : index
    %c0_313 = arith.constant 0 : index
    %395 = vector.load %arg25[%c1_312, %c0_313] : memref<21x32xf32, #tpu.memory_space<vmem>>, vector<16x32xf32>
    %396 = arith.truncf %395 : vector<16x32xf32> to vector<16x32xbf16>
    %397 = vector.broadcast %394 : vector<16x1xbf16> to vector<16x32xbf16>
    %398 = arith.mulf %396, %397 : vector<16x32xbf16>
    %c4_314 = arith.constant 4 : index
    %c0_315 = arith.constant 0 : index
    %399 = vector.load %arg25[%c4_314, %c0_315] : memref<21x32xf32, #tpu.memory_space<vmem>>, vector<16x32xf32>
    %400 = arith.truncf %399 : vector<16x32xf32> to vector<16x32xbf16>
    %c5_316 = arith.constant 5 : index
    %c0_317 = arith.constant 0 : index
    %401 = vector.load %arg25[%c5_316, %c0_317] : memref<21x32xf32, #tpu.memory_space<vmem>>, vector<16x32xf32>
    %402 = arith.truncf %401 : vector<16x32xf32> to vector<16x32xbf16>
    %403 = vector.broadcast %394 : vector<16x1xbf16> to vector<16x32xbf16>
    %404 = arith.mulf %402, %403 : vector<16x32xbf16>
    %c0_318 = arith.constant 0 : index
    %c0_319 = arith.constant 0 : index
    %405 = vector.load %arg15[%c0_318, %c0_319] : memref<1x16xf32, #tpu.memory_space<vmem>>, vector<1x16xf32>
    %c4_320 = arith.constant 4 : index
    %c0_321 = arith.constant 0 : index
    %c0_322 = arith.constant 0 : index
    %406 = vector.load %arg14[%c4_320, %c0_321, %c0_322] : memref<9x32x16xbf16, #tpu.memory_space<vmem>>, vector<1x32x16xbf16>
    %407 = vector.shape_cast %406 : vector<1x32x16xbf16> to vector<32x16xbf16>
    %cst_323 = arith.constant dense<0.000000e+00> : vector<16x16xf32>
    %408 = tpu.matmul %381, %407, %cst_323 {dimension_numbers = #tpu.dot_dimension_numbers<[1], [0], [0], [1], [0, 0, 1, 1], [], []>} : vector<16x32xbf16>, vector<32x16xbf16>, vector<16x16xf32> -> vector<16x16xf32>
    %409 = vector.broadcast %405 : vector<1x16xf32> to vector<16x16xf32>
    %410 = arith.addf %409, %408 : vector<16x16xf32>
    %c5_324 = arith.constant 5 : index
    %c0_325 = arith.constant 0 : index
    %c0_326 = arith.constant 0 : index
    %411 = vector.load %arg14[%c5_324, %c0_325, %c0_326] : memref<9x32x16xbf16, #tpu.memory_space<vmem>>, vector<1x32x16xbf16>
    %412 = vector.shape_cast %411 : vector<1x32x16xbf16> to vector<32x16xbf16>
    %cst_327 = arith.constant dense<0.000000e+00> : vector<16x16xf32>
    %413 = tpu.matmul %381, %412, %cst_327 {dimension_numbers = #tpu.dot_dimension_numbers<[1], [0], [0], [1], [0, 0, 1, 1], [], []>} : vector<16x32xbf16>, vector<32x16xbf16>, vector<16x16xf32> -> vector<16x16xf32>
    %414 = vector.broadcast %405 : vector<1x16xf32> to vector<16x16xf32>
    %415 = arith.addf %414, %413 : vector<16x16xf32>
    %c3_328 = arith.constant 3 : index
    %c0_329 = arith.constant 0 : index
    %c0_330 = arith.constant 0 : index
    %416 = vector.load %arg14[%c3_328, %c0_329, %c0_330] : memref<9x32x16xbf16, #tpu.memory_space<vmem>>, vector<1x32x16xbf16>
    %417 = vector.shape_cast %416 : vector<1x32x16xbf16> to vector<32x16xbf16>
    %cst_331 = arith.constant dense<0.000000e+00> : vector<16x16xf32>
    %418 = tpu.matmul %398, %417, %cst_331 {dimension_numbers = #tpu.dot_dimension_numbers<[1], [0], [0], [1], [0, 0, 1, 1], [], []>} : vector<16x32xbf16>, vector<32x16xbf16>, vector<16x16xf32> -> vector<16x16xf32>
    %419 = arith.addf %415, %418 : vector<16x16xf32>
    %c7_332 = arith.constant 7 : index
    %c0_333 = arith.constant 0 : index
    %c0_334 = arith.constant 0 : index
    %420 = vector.load %arg14[%c7_332, %c0_333, %c0_334] : memref<9x32x16xbf16, #tpu.memory_space<vmem>>, vector<1x32x16xbf16>
    %421 = vector.shape_cast %420 : vector<1x32x16xbf16> to vector<32x16xbf16>
    %cst_335 = arith.constant dense<0.000000e+00> : vector<16x16xf32>
    %422 = tpu.matmul %381, %421, %cst_335 {dimension_numbers = #tpu.dot_dimension_numbers<[1], [0], [0], [1], [0, 0, 1, 1], [], []>} : vector<16x32xbf16>, vector<32x16xbf16>, vector<16x16xf32> -> vector<16x16xf32>
    %423 = vector.broadcast %405 : vector<1x16xf32> to vector<16x16xf32>
    %424 = arith.addf %423, %422 : vector<16x16xf32>
    %c1_336 = arith.constant 1 : index
    %c0_337 = arith.constant 0 : index
    %c0_338 = arith.constant 0 : index
    %425 = vector.load %arg14[%c1_336, %c0_337, %c0_338] : memref<9x32x16xbf16, #tpu.memory_space<vmem>>, vector<1x32x16xbf16>
    %426 = vector.shape_cast %425 : vector<1x32x16xbf16> to vector<32x16xbf16>
    %cst_339 = arith.constant dense<0.000000e+00> : vector<16x16xf32>
    %427 = tpu.matmul %400, %426, %cst_339 {dimension_numbers = #tpu.dot_dimension_numbers<[1], [0], [0], [1], [0, 0, 1, 1], [], []>} : vector<16x32xbf16>, vector<32x16xbf16>, vector<16x16xf32> -> vector<16x16xf32>
    %428 = arith.addf %424, %427 : vector<16x16xf32>
    %c8_340 = arith.constant 8 : index
    %c0_341 = arith.constant 0 : index
    %c0_342 = arith.constant 0 : index
    %429 = vector.load %arg14[%c8_340, %c0_341, %c0_342] : memref<9x32x16xbf16, #tpu.memory_space<vmem>>, vector<1x32x16xbf16>
    %430 = vector.shape_cast %429 : vector<1x32x16xbf16> to vector<32x16xbf16>
    %cst_343 = arith.constant dense<0.000000e+00> : vector<16x16xf32>
    %431 = tpu.matmul %381, %430, %cst_343 {dimension_numbers = #tpu.dot_dimension_numbers<[1], [0], [0], [1], [0, 0, 1, 1], [], []>} : vector<16x32xbf16>, vector<32x16xbf16>, vector<16x16xf32> -> vector<16x16xf32>
    %432 = vector.broadcast %405 : vector<1x16xf32> to vector<16x16xf32>
    %433 = arith.addf %432, %431 : vector<16x16xf32>
    %c6_344 = arith.constant 6 : index
    %c0_345 = arith.constant 0 : index
    %c0_346 = arith.constant 0 : index
    %434 = vector.load %arg14[%c6_344, %c0_345, %c0_346] : memref<9x32x16xbf16, #tpu.memory_space<vmem>>, vector<1x32x16xbf16>
    %435 = vector.shape_cast %434 : vector<1x32x16xbf16> to vector<32x16xbf16>
    %cst_347 = arith.constant dense<0.000000e+00> : vector<16x16xf32>
    %436 = tpu.matmul %398, %435, %cst_347 {dimension_numbers = #tpu.dot_dimension_numbers<[1], [0], [0], [1], [0, 0, 1, 1], [], []>} : vector<16x32xbf16>, vector<32x16xbf16>, vector<16x16xf32> -> vector<16x16xf32>
    %437 = arith.addf %433, %436 : vector<16x16xf32>
    %c2_348 = arith.constant 2 : index
    %c0_349 = arith.constant 0 : index
    %c0_350 = arith.constant 0 : index
    %438 = vector.load %arg14[%c2_348, %c0_349, %c0_350] : memref<9x32x16xbf16, #tpu.memory_space<vmem>>, vector<1x32x16xbf16>
    %439 = vector.shape_cast %438 : vector<1x32x16xbf16> to vector<32x16xbf16>
    %cst_351 = arith.constant dense<0.000000e+00> : vector<16x16xf32>
    %440 = tpu.matmul %400, %439, %cst_351 {dimension_numbers = #tpu.dot_dimension_numbers<[1], [0], [0], [1], [0, 0, 1, 1], [], []>} : vector<16x32xbf16>, vector<32x16xbf16>, vector<16x16xf32> -> vector<16x16xf32>
    %441 = arith.addf %437, %440 : vector<16x16xf32>
    %c0_352 = arith.constant 0 : index
    %c0_353 = arith.constant 0 : index
    %c0_354 = arith.constant 0 : index
    %442 = vector.load %arg14[%c0_352, %c0_353, %c0_354] : memref<9x32x16xbf16, #tpu.memory_space<vmem>>, vector<1x32x16xbf16>
    %443 = vector.shape_cast %442 : vector<1x32x16xbf16> to vector<32x16xbf16>
    %cst_355 = arith.constant dense<0.000000e+00> : vector<16x16xf32>
    %444 = tpu.matmul %404, %443, %cst_355 {dimension_numbers = #tpu.dot_dimension_numbers<[1], [0], [0], [1], [0, 0, 1, 1], [], []>} : vector<16x32xbf16>, vector<32x16xbf16>, vector<16x16xf32> -> vector<16x16xf32>
    %445 = arith.addf %441, %444 : vector<16x16xf32>
    %cst_356 = arith.constant 0.000000e+00 : f32
    %446 = vector.broadcast %cst_356 : f32 to vector<16x16xf32>
    %447 = arith.maximumf %410, %446 : vector<16x16xf32>
    %cst_357 = arith.constant 0.000000e+00 : f32
    %448 = vector.broadcast %cst_357 : f32 to vector<16x16xf32>
    %449 = arith.maximumf %419, %448 : vector<16x16xf32>
    %cst_358 = arith.constant 0.000000e+00 : f32
    %450 = vector.broadcast %cst_358 : f32 to vector<16x16xf32>
    %451 = arith.maximumf %428, %450 : vector<16x16xf32>
    %cst_359 = arith.constant 0.000000e+00 : f32
    %452 = vector.broadcast %cst_359 : f32 to vector<16x16xf32>
    %453 = arith.maximumf %445, %452 : vector<16x16xf32>
    %c0_360 = arith.constant 0 : index
    %c0_361 = arith.constant 0 : index
    %c0_362 = arith.constant 0 : index
    %454 = vector.load %arg16[%c0_360, %c0_361, %c0_362] : memref<4x64x16xbf16, #tpu.memory_space<vmem>>, vector<1x64x16xbf16>
    %455 = vector.shape_cast %454 : vector<1x64x16xbf16> to vector<64x16xbf16>
    %456 = arith.truncf %447 : vector<16x16xf32> to vector<16x16xbf16>
    %cst_363 = arith.constant dense<0.000000e+00> : vector<64x16xf32>
    %457 = tpu.matmul %455, %456, %cst_363 {dimension_numbers = #tpu.dot_dimension_numbers<[1], [0], [0], [1], [0, 0, 1, 1], [], []>} : vector<64x16xbf16>, vector<16x16xbf16>, vector<64x16xf32> -> vector<64x16xf32>
    %c1_364 = arith.constant 1 : index
    %c0_365 = arith.constant 0 : index
    %c0_366 = arith.constant 0 : index
    %458 = vector.load %arg16[%c1_364, %c0_365, %c0_366] : memref<4x64x16xbf16, #tpu.memory_space<vmem>>, vector<1x64x16xbf16>
    %459 = vector.shape_cast %458 : vector<1x64x16xbf16> to vector<64x16xbf16>
    %460 = arith.truncf %449 : vector<16x16xf32> to vector<16x16xbf16>
    %cst_367 = arith.constant dense<0.000000e+00> : vector<64x16xf32>
    %461 = tpu.matmul %459, %460, %cst_367 {dimension_numbers = #tpu.dot_dimension_numbers<[1], [0], [0], [1], [0, 0, 1, 1], [], []>} : vector<64x16xbf16>, vector<16x16xbf16>, vector<64x16xf32> -> vector<64x16xf32>
    %462 = arith.addf %457, %461 : vector<64x16xf32>
    %c2_368 = arith.constant 2 : index
    %c0_369 = arith.constant 0 : index
    %c0_370 = arith.constant 0 : index
    %463 = vector.load %arg16[%c2_368, %c0_369, %c0_370] : memref<4x64x16xbf16, #tpu.memory_space<vmem>>, vector<1x64x16xbf16>
    %464 = vector.shape_cast %463 : vector<1x64x16xbf16> to vector<64x16xbf16>
    %465 = arith.truncf %451 : vector<16x16xf32> to vector<16x16xbf16>
    %cst_371 = arith.constant dense<0.000000e+00> : vector<64x16xf32>
    %466 = tpu.matmul %464, %465, %cst_371 {dimension_numbers = #tpu.dot_dimension_numbers<[1], [0], [0], [1], [0, 0, 1, 1], [], []>} : vector<64x16xbf16>, vector<16x16xbf16>, vector<64x16xf32> -> vector<64x16xf32>
    %467 = arith.addf %462, %466 : vector<64x16xf32>
    %c3_372 = arith.constant 3 : index
    %c0_373 = arith.constant 0 : index
    %c0_374 = arith.constant 0 : index
    %468 = vector.load %arg16[%c3_372, %c0_373, %c0_374] : memref<4x64x16xbf16, #tpu.memory_space<vmem>>, vector<1x64x16xbf16>
    %469 = vector.shape_cast %468 : vector<1x64x16xbf16> to vector<64x16xbf16>
    %470 = arith.truncf %453 : vector<16x16xf32> to vector<16x16xbf16>
    %cst_375 = arith.constant dense<0.000000e+00> : vector<64x16xf32>
    %471 = tpu.matmul %469, %470, %cst_375 {dimension_numbers = #tpu.dot_dimension_numbers<[1], [0], [0], [1], [0, 0, 1, 1], [], []>} : vector<64x16xbf16>, vector<16x16xbf16>, vector<64x16xf32> -> vector<64x16xf32>
    %472 = arith.addf %467, %471 : vector<64x16xf32>
    %473 = arith.truncf %472 : vector<64x16xf32> to vector<64x16xbf16>
    %cst_376 = arith.constant 0.000000e+00 : f32
    %474 = vector.broadcast %cst_376 : f32 to vector<73x16xf32>
    %c0_377 = arith.constant 0 : index
    %c0_378 = arith.constant 0 : index
    %475 = vector.load %arg26[%c0_377, %c0_378] : memref<73x16xf32, #tpu.memory_space<vmem>>, vector<73x16xf32>
    tpu.vector_store %arg26[%c0_377, %c0_378], %474 {strides = array<i32>} : memref<73x16xf32, #tpu.memory_space<vmem>>, vector<73x16xf32>,
    %476 = arith.extf %473 : vector<64x16xbf16> to vector<64x16xf32>
    %c0_379 = arith.constant 0 : index
    %c0_380 = arith.constant 0 : index
    %477 = vector.load %arg26[%c0_379, %c0_380] : memref<73x16xf32, #tpu.memory_space<vmem>>, vector<64x16xf32>
    tpu.vector_store %arg26[%c0_379, %c0_380], %476 {strides = array<i32>} : memref<73x16xf32, #tpu.memory_space<vmem>>, vector<64x16xf32>,
    %478 = tpu.iota {dimensions = array<i32: 0>} : vector<64x1xi32>
    %c7_i32_381 = arith.constant 7 : i32
    %479 = vector.broadcast %c7_i32_381 : i32 to vector<64x1xi32>
    %480 = arith.andi %478, %479 : vector<64x1xi32>
    %c7_i32_382 = arith.constant 7 : i32
    %481 = vector.broadcast %c7_i32_382 : i32 to vector<64x1xi32>
    %482 = arith.cmpi ne, %480, %481 : vector<64x1xi32>
    %cst_383 = arith.constant 1.000000e+00 : f32
    %cst_384 = arith.constant 0.000000e+00 : f32
    %483 = vector.broadcast %cst_383 : f32 to vector<64x1xf32>
    %484 = vector.broadcast %cst_384 : f32 to vector<64x1xf32>
    %485 = arith.select %482, %483, %484 : vector<64x1xi1>, vector<64x1xf32>
    %486 = arith.truncf %485 : vector<64x1xf32> to vector<64x1xbf16>
    %c1_385 = arith.constant 1 : index
    %c0_386 = arith.constant 0 : index
    %487 = vector.load %arg26[%c1_385, %c0_386] : memref<73x16xf32, #tpu.memory_space<vmem>>, vector<64x16xf32>
    %488 = arith.truncf %487 : vector<64x16xf32> to vector<64x16xbf16>
    %489 = vector.broadcast %486 : vector<64x1xbf16> to vector<64x16xbf16>
    %490 = arith.mulf %488, %489 : vector<64x16xbf16>
    %c8_387 = arith.constant 8 : index
    %c0_388 = arith.constant 0 : index
    %491 = vector.load %arg26[%c8_387, %c0_388] : memref<73x16xf32, #tpu.memory_space<vmem>>, vector<64x16xf32>
    %492 = arith.truncf %491 : vector<64x16xf32> to vector<64x16xbf16>
    %c9_389 = arith.constant 9 : index
    %c0_390 = arith.constant 0 : index
    %493 = vector.load %arg26[%c9_389, %c0_390] : memref<73x16xf32, #tpu.memory_space<vmem>>, vector<64x16xf32>
    %494 = arith.truncf %493 : vector<64x16xf32> to vector<64x16xbf16>
    %495 = vector.broadcast %486 : vector<64x1xbf16> to vector<64x16xbf16>
    %496 = arith.mulf %494, %495 : vector<64x16xbf16>
    %c0_391 = arith.constant 0 : index
    %c0_392 = arith.constant 0 : index
    %497 = vector.load %arg18[%c0_391, %c0_392] : memref<1x8xf32, #tpu.memory_space<vmem>>, vector<1x8xf32>
    %c4_393 = arith.constant 4 : index
    %c0_394 = arith.constant 0 : index
    %c0_395 = arith.constant 0 : index
    %498 = vector.load %arg17[%c4_393, %c0_394, %c0_395] : memref<9x16x8xbf16, #tpu.memory_space<vmem>>, vector<1x16x8xbf16>
    %499 = vector.shape_cast %498 : vector<1x16x8xbf16> to vector<16x8xbf16>
    %cst_396 = arith.constant dense<0.000000e+00> : vector<64x8xf32>
    %500 = tpu.matmul %473, %499, %cst_396 {dimension_numbers = #tpu.dot_dimension_numbers<[1], [0], [0], [1], [0, 0, 1, 1], [], []>} : vector<64x16xbf16>, vector<16x8xbf16>, vector<64x8xf32> -> vector<64x8xf32>
    %501 = vector.broadcast %497 : vector<1x8xf32> to vector<64x8xf32>
    %502 = arith.addf %501, %500 : vector<64x8xf32>
    %c5_397 = arith.constant 5 : index
    %c0_398 = arith.constant 0 : index
    %c0_399 = arith.constant 0 : index
    %503 = vector.load %arg17[%c5_397, %c0_398, %c0_399] : memref<9x16x8xbf16, #tpu.memory_space<vmem>>, vector<1x16x8xbf16>
    %504 = vector.shape_cast %503 : vector<1x16x8xbf16> to vector<16x8xbf16>
    %cst_400 = arith.constant dense<0.000000e+00> : vector<64x8xf32>
    %505 = tpu.matmul %473, %504, %cst_400 {dimension_numbers = #tpu.dot_dimension_numbers<[1], [0], [0], [1], [0, 0, 1, 1], [], []>} : vector<64x16xbf16>, vector<16x8xbf16>, vector<64x8xf32> -> vector<64x8xf32>
    %506 = vector.broadcast %497 : vector<1x8xf32> to vector<64x8xf32>
    %507 = arith.addf %506, %505 : vector<64x8xf32>
    %c3_401 = arith.constant 3 : index
    %c0_402 = arith.constant 0 : index
    %c0_403 = arith.constant 0 : index
    %508 = vector.load %arg17[%c3_401, %c0_402, %c0_403] : memref<9x16x8xbf16, #tpu.memory_space<vmem>>, vector<1x16x8xbf16>
    %509 = vector.shape_cast %508 : vector<1x16x8xbf16> to vector<16x8xbf16>
    %cst_404 = arith.constant dense<0.000000e+00> : vector<64x8xf32>
    %510 = tpu.matmul %490, %509, %cst_404 {dimension_numbers = #tpu.dot_dimension_numbers<[1], [0], [0], [1], [0, 0, 1, 1], [], []>} : vector<64x16xbf16>, vector<16x8xbf16>, vector<64x8xf32> -> vector<64x8xf32>
    %511 = arith.addf %507, %510 : vector<64x8xf32>
    %c7_405 = arith.constant 7 : index
    %c0_406 = arith.constant 0 : index
    %c0_407 = arith.constant 0 : index
    %512 = vector.load %arg17[%c7_405, %c0_406, %c0_407] : memref<9x16x8xbf16, #tpu.memory_space<vmem>>, vector<1x16x8xbf16>
    %513 = vector.shape_cast %512 : vector<1x16x8xbf16> to vector<16x8xbf16>
    %cst_408 = arith.constant dense<0.000000e+00> : vector<64x8xf32>
    %514 = tpu.matmul %473, %513, %cst_408 {dimension_numbers = #tpu.dot_dimension_numbers<[1], [0], [0], [1], [0, 0, 1, 1], [], []>} : vector<64x16xbf16>, vector<16x8xbf16>, vector<64x8xf32> -> vector<64x8xf32>
    %515 = vector.broadcast %497 : vector<1x8xf32> to vector<64x8xf32>
    %516 = arith.addf %515, %514 : vector<64x8xf32>
    %c1_409 = arith.constant 1 : index
    %c0_410 = arith.constant 0 : index
    %c0_411 = arith.constant 0 : index
    %517 = vector.load %arg17[%c1_409, %c0_410, %c0_411] : memref<9x16x8xbf16, #tpu.memory_space<vmem>>, vector<1x16x8xbf16>
    %518 = vector.shape_cast %517 : vector<1x16x8xbf16> to vector<16x8xbf16>
    %cst_412 = arith.constant dense<0.000000e+00> : vector<64x8xf32>
    %519 = tpu.matmul %492, %518, %cst_412 {dimension_numbers = #tpu.dot_dimension_numbers<[1], [0], [0], [1], [0, 0, 1, 1], [], []>} : vector<64x16xbf16>, vector<16x8xbf16>, vector<64x8xf32> -> vector<64x8xf32>
    %520 = arith.addf %516, %519 : vector<64x8xf32>
    %c8_413 = arith.constant 8 : index
    %c0_414 = arith.constant 0 : index
    %c0_415 = arith.constant 0 : index
    %521 = vector.load %arg17[%c8_413, %c0_414, %c0_415] : memref<9x16x8xbf16, #tpu.memory_space<vmem>>, vector<1x16x8xbf16>
    %522 = vector.shape_cast %521 : vector<1x16x8xbf16> to vector<16x8xbf16>
    %cst_416 = arith.constant dense<0.000000e+00> : vector<64x8xf32>
    %523 = tpu.matmul %473, %522, %cst_416 {dimension_numbers = #tpu.dot_dimension_numbers<[1], [0], [0], [1], [0, 0, 1, 1], [], []>} : vector<64x16xbf16>, vector<16x8xbf16>, vector<64x8xf32> -> vector<64x8xf32>
    %524 = vector.broadcast %497 : vector<1x8xf32> to vector<64x8xf32>
    %525 = arith.addf %524, %523 : vector<64x8xf32>
    %c6_417 = arith.constant 6 : index
    %c0_418 = arith.constant 0 : index
    %c0_419 = arith.constant 0 : index
    %526 = vector.load %arg17[%c6_417, %c0_418, %c0_419] : memref<9x16x8xbf16, #tpu.memory_space<vmem>>, vector<1x16x8xbf16>
    %527 = vector.shape_cast %526 : vector<1x16x8xbf16> to vector<16x8xbf16>
    %cst_420 = arith.constant dense<0.000000e+00> : vector<64x8xf32>
    %528 = tpu.matmul %490, %527, %cst_420 {dimension_numbers = #tpu.dot_dimension_numbers<[1], [0], [0], [1], [0, 0, 1, 1], [], []>} : vector<64x16xbf16>, vector<16x8xbf16>, vector<64x8xf32> -> vector<64x8xf32>
    %529 = arith.addf %525, %528 : vector<64x8xf32>
    %c2_421 = arith.constant 2 : index
    %c0_422 = arith.constant 0 : index
    %c0_423 = arith.constant 0 : index
    %530 = vector.load %arg17[%c2_421, %c0_422, %c0_423] : memref<9x16x8xbf16, #tpu.memory_space<vmem>>, vector<1x16x8xbf16>
    %531 = vector.shape_cast %530 : vector<1x16x8xbf16> to vector<16x8xbf16>
    %cst_424 = arith.constant dense<0.000000e+00> : vector<64x8xf32>
    %532 = tpu.matmul %492, %531, %cst_424 {dimension_numbers = #tpu.dot_dimension_numbers<[1], [0], [0], [1], [0, 0, 1, 1], [], []>} : vector<64x16xbf16>, vector<16x8xbf16>, vector<64x8xf32> -> vector<64x8xf32>
    %533 = arith.addf %529, %532 : vector<64x8xf32>
    %c0_425 = arith.constant 0 : index
    %c0_426 = arith.constant 0 : index
    %c0_427 = arith.constant 0 : index
    %534 = vector.load %arg17[%c0_425, %c0_426, %c0_427] : memref<9x16x8xbf16, #tpu.memory_space<vmem>>, vector<1x16x8xbf16>
    %535 = vector.shape_cast %534 : vector<1x16x8xbf16> to vector<16x8xbf16>
    %cst_428 = arith.constant dense<0.000000e+00> : vector<64x8xf32>
    %536 = tpu.matmul %496, %535, %cst_428 {dimension_numbers = #tpu.dot_dimension_numbers<[1], [0], [0], [1], [0, 0, 1, 1], [], []>} : vector<64x16xbf16>, vector<16x8xbf16>, vector<64x8xf32> -> vector<64x8xf32>
    %537 = arith.addf %533, %536 : vector<64x8xf32>
    %cst_429 = arith.constant 0.000000e+00 : f32
    %538 = vector.broadcast %cst_429 : f32 to vector<64x8xf32>
    %539 = arith.subf %538, %502 : vector<64x8xf32>
    %540 = math.exp %539 : vector<64x8xf32>
    %cst_430 = arith.constant 1.000000e+00 : f32
    %541 = vector.broadcast %cst_430 : f32 to vector<64x8xf32>
    %542 = arith.addf %541, %540 : vector<64x8xf32>
    %543 = tpu.reciprocal %542 {approx = true} : vector<64x8xf32> -> vector<64x8xf32>
    %cst_431 = arith.constant 1.000000e+00 : f32
    %544 = vector.broadcast %cst_431 : f32 to vector<64x8xf32>
    %545 = arith.minimumf %543, %544 : vector<64x8xf32>
    %cst_432 = arith.constant 0.000000e+00 : f32
    %546 = vector.broadcast %cst_432 : f32 to vector<64x8xf32>
    %547 = arith.subf %546, %511 : vector<64x8xf32>
    %548 = math.exp %547 : vector<64x8xf32>
    %cst_433 = arith.constant 1.000000e+00 : f32
    %549 = vector.broadcast %cst_433 : f32 to vector<64x8xf32>
    %550 = arith.addf %549, %548 : vector<64x8xf32>
    %551 = tpu.reciprocal %550 {approx = true} : vector<64x8xf32> -> vector<64x8xf32>
    %cst_434 = arith.constant 1.000000e+00 : f32
    %552 = vector.broadcast %cst_434 : f32 to vector<64x8xf32>
    %553 = arith.minimumf %551, %552 : vector<64x8xf32>
    %cst_435 = arith.constant 0.000000e+00 : f32
    %554 = vector.broadcast %cst_435 : f32 to vector<64x8xf32>
    %555 = arith.subf %554, %520 : vector<64x8xf32>
    %556 = math.exp %555 : vector<64x8xf32>
    %cst_436 = arith.constant 1.000000e+00 : f32
    %557 = vector.broadcast %cst_436 : f32 to vector<64x8xf32>
    %558 = arith.addf %557, %556 : vector<64x8xf32>
    %559 = tpu.reciprocal %558 {approx = true} : vector<64x8xf32> -> vector<64x8xf32>
    %cst_437 = arith.constant 1.000000e+00 : f32
    %560 = vector.broadcast %cst_437 : f32 to vector<64x8xf32>
    %561 = arith.minimumf %559, %560 : vector<64x8xf32>
    %cst_438 = arith.constant 0.000000e+00 : f32
    %562 = vector.broadcast %cst_438 : f32 to vector<64x8xf32>
    %563 = arith.subf %562, %537 : vector<64x8xf32>
    %564 = math.exp %563 : vector<64x8xf32>
    %cst_439 = arith.constant 1.000000e+00 : f32
    %565 = vector.broadcast %cst_439 : f32 to vector<64x8xf32>
    %566 = arith.addf %565, %564 : vector<64x8xf32>
    %567 = tpu.reciprocal %566 {approx = true} : vector<64x8xf32> -> vector<64x8xf32>
    %cst_440 = arith.constant 1.000000e+00 : f32
    %568 = vector.broadcast %cst_440 : f32 to vector<64x8xf32>
    %569 = arith.minimumf %567, %568 : vector<64x8xf32>
    %c0_441 = arith.constant 0 : index
    %c0_442 = arith.constant 0 : index
    %c0_443 = arith.constant 0 : index
    %570 = vector.load %arg19[%c0_441, %c0_442, %c0_443] : memref<4x256x64xbf16, #tpu.memory_space<vmem>>, vector<1x256x64xbf16>
    %571 = vector.shape_cast %570 : vector<1x256x64xbf16> to vector<256x64xbf16>
    %572 = arith.truncf %545 : vector<64x8xf32> to vector<64x8xbf16>
    %cst_444 = arith.constant dense<0.000000e+00> : vector<256x8xf32>
    %573 = tpu.matmul %571, %572, %cst_444 {dimension_numbers = #tpu.dot_dimension_numbers<[1], [0], [0], [1], [0, 0, 1, 1], [], []>} : vector<256x64xbf16>, vector<64x8xbf16>, vector<256x8xf32> -> vector<256x8xf32>
    %c1_445 = arith.constant 1 : index
    %c0_446 = arith.constant 0 : index
    %c0_447 = arith.constant 0 : index
    %574 = vector.load %arg19[%c1_445, %c0_446, %c0_447] : memref<4x256x64xbf16, #tpu.memory_space<vmem>>, vector<1x256x64xbf16>
    %575 = vector.shape_cast %574 : vector<1x256x64xbf16> to vector<256x64xbf16>
    %576 = arith.truncf %553 : vector<64x8xf32> to vector<64x8xbf16>
    %cst_448 = arith.constant dense<0.000000e+00> : vector<256x8xf32>
    %577 = tpu.matmul %575, %576, %cst_448 {dimension_numbers = #tpu.dot_dimension_numbers<[1], [0], [0], [1], [0, 0, 1, 1], [], []>} : vector<256x64xbf16>, vector<64x8xbf16>, vector<256x8xf32> -> vector<256x8xf32>
    %578 = arith.addf %573, %577 : vector<256x8xf32>
    %c2_449 = arith.constant 2 : index
    %c0_450 = arith.constant 0 : index
    %c0_451 = arith.constant 0 : index
    %579 = vector.load %arg19[%c2_449, %c0_450, %c0_451] : memref<4x256x64xbf16, #tpu.memory_space<vmem>>, vector<1x256x64xbf16>
    %580 = vector.shape_cast %579 : vector<1x256x64xbf16> to vector<256x64xbf16>
    %581 = arith.truncf %561 : vector<64x8xf32> to vector<64x8xbf16>
    %cst_452 = arith.constant dense<0.000000e+00> : vector<256x8xf32>
    %582 = tpu.matmul %580, %581, %cst_452 {dimension_numbers = #tpu.dot_dimension_numbers<[1], [0], [0], [1], [0, 0, 1, 1], [], []>} : vector<256x64xbf16>, vector<64x8xbf16>, vector<256x8xf32> -> vector<256x8xf32>
    %583 = arith.addf %578, %582 : vector<256x8xf32>
    %c3_453 = arith.constant 3 : index
    %c0_454 = arith.constant 0 : index
    %c0_455 = arith.constant 0 : index
    %584 = vector.load %arg19[%c3_453, %c0_454, %c0_455] : memref<4x256x64xbf16, #tpu.memory_space<vmem>>, vector<1x256x64xbf16>
    %585 = vector.shape_cast %584 : vector<1x256x64xbf16> to vector<256x64xbf16>
    %586 = arith.truncf %569 : vector<64x8xf32> to vector<64x8xbf16>
    %cst_456 = arith.constant dense<0.000000e+00> : vector<256x8xf32>
    %587 = tpu.matmul %585, %586, %cst_456 {dimension_numbers = #tpu.dot_dimension_numbers<[1], [0], [0], [1], [0, 0, 1, 1], [], []>} : vector<256x64xbf16>, vector<64x8xbf16>, vector<256x8xf32> -> vector<256x8xf32>
    %588 = arith.addf %583, %587 : vector<256x8xf32>
    %c0_457 = arith.constant 0 : index
    %c0_458 = arith.constant 0 : index
    %c0_459 = arith.constant 0 : index
    %589 = vector.load %arg20[%c0_457, %c0_458, %c0_459] : memref<1x256x8xf32, #tpu.memory_space<vmem>>, vector<1x256x8xf32>
    %590 = vector.shape_cast %589 : vector<1x256x8xf32> to vector<256x8xf32>
    %591 = vector.shape_cast %588 : vector<256x8xf32> to vector<1x256x8xf32>
    tpu.vector_store %arg20[%c0_457, %c0_458, %c0_459], %591 {strides = array<i32>} : memref<1x256x8xf32, #tpu.memory_space<vmem>>, vector<1x256x8xf32>,
    return
  }
  func.func @transform_0(%arg0: i32) -> (i32, i32, i32) {
    %c0_i32 = arith.constant 0 : i32
    %c0_i32_0 = arith.constant 0 : i32
    %c0_i32_1 = arith.constant 0 : i32
    return %arg0, %c0_i32, %c0_i32_0 : i32, i32, i32
  }
  func.func @transform_1(%arg0: i32) -> (i32, i32, i32) {
    %c0_i32 = arith.constant 0 : i32
    %c0_i32_0 = arith.constant 0 : i32
    %c0_i32_1 = arith.constant 0 : i32
    %c0_i32_2 = arith.constant 0 : i32
    return %c0_i32, %c0_i32_0, %c0_i32_1 : i32, i32, i32
  }
  func.func @transform_2(%arg0: i32) -> (i32, i32) {
    %c0_i32 = arith.constant 0 : i32
    %c0_i32_0 = arith.constant 0 : i32
    %c0_i32_1 = arith.constant 0 : i32
    return %c0_i32, %c0_i32_0 : i32, i32
  }
  func.func @transform_3(%arg0: i32) -> (i32, i32, i32) {
    %c0_i32 = arith.constant 0 : i32
    %c0_i32_0 = arith.constant 0 : i32
    %c0_i32_1 = arith.constant 0 : i32
    %c0_i32_2 = arith.constant 0 : i32
    return %c0_i32, %c0_i32_0, %c0_i32_1 : i32, i32, i32
  }
  func.func @transform_4(%arg0: i32) -> (i32, i32, i32) {
    %c0_i32 = arith.constant 0 : i32
    %c0_i32_0 = arith.constant 0 : i32
    %c0_i32_1 = arith.constant 0 : i32
    %c0_i32_2 = arith.constant 0 : i32
    return %c0_i32, %c0_i32_0, %c0_i32_1 : i32, i32, i32
  }
  func.func @transform_5(%arg0: i32) -> (i32, i32) {
    %c0_i32 = arith.constant 0 : i32
    %c0_i32_0 = arith.constant 0 : i32
    %c0_i32_1 = arith.constant 0 : i32
    return %c0_i32, %c0_i32_0 : i32, i32
  }
  func.func @transform_6(%arg0: i32) -> (i32, i32, i32) {
    %c0_i32 = arith.constant 0 : i32
    %c0_i32_0 = arith.constant 0 : i32
    %c0_i32_1 = arith.constant 0 : i32
    %c0_i32_2 = arith.constant 0 : i32
    return %c0_i32, %c0_i32_0, %c0_i32_1 : i32, i32, i32
  }
  func.func @transform_7(%arg0: i32) -> (i32, i32, i32) {
    %c0_i32 = arith.constant 0 : i32
    %c0_i32_0 = arith.constant 0 : i32
    %c0_i32_1 = arith.constant 0 : i32
    %c0_i32_2 = arith.constant 0 : i32
    return %c0_i32, %c0_i32_0, %c0_i32_1 : i32, i32, i32
  }
  func.func @transform_8(%arg0: i32) -> (i32, i32) {
    %c0_i32 = arith.constant 0 : i32
    %c0_i32_0 = arith.constant 0 : i32
    %c0_i32_1 = arith.constant 0 : i32
    return %c0_i32, %c0_i32_0 : i32, i32
  }
  func.func @transform_9(%arg0: i32) -> (i32, i32, i32) {
    %c0_i32 = arith.constant 0 : i32
    %c0_i32_0 = arith.constant 0 : i32
    %c0_i32_1 = arith.constant 0 : i32
    %c0_i32_2 = arith.constant 0 : i32
    return %c0_i32, %c0_i32_0, %c0_i32_1 : i32, i32, i32
  }
  func.func @transform_10(%arg0: i32) -> (i32, i32, i32) {
    %c0_i32 = arith.constant 0 : i32
    %c0_i32_0 = arith.constant 0 : i32
    %c0_i32_1 = arith.constant 0 : i32
    %c0_i32_2 = arith.constant 0 : i32
    return %c0_i32, %c0_i32_0, %c0_i32_1 : i32, i32, i32
  }
  func.func @transform_11(%arg0: i32) -> (i32, i32) {
    %c0_i32 = arith.constant 0 : i32
    %c0_i32_0 = arith.constant 0 : i32
    %c0_i32_1 = arith.constant 0 : i32
    return %c0_i32, %c0_i32_0 : i32, i32
  }
  func.func @transform_12(%arg0: i32) -> (i32, i32, i32) {
    %c0_i32 = arith.constant 0 : i32
    %c0_i32_0 = arith.constant 0 : i32
    %c0_i32_1 = arith.constant 0 : i32
    %c0_i32_2 = arith.constant 0 : i32
    return %c0_i32, %c0_i32_0, %c0_i32_1 : i32, i32, i32
  }
  func.func @transform_13(%arg0: i32) -> (i32, i32, i32) {
    %c0_i32 = arith.constant 0 : i32
    %c0_i32_0 = arith.constant 0 : i32
    %c0_i32_1 = arith.constant 0 : i32
    %c0_i32_2 = arith.constant 0 : i32
    return %c0_i32, %c0_i32_0, %c0_i32_1 : i32, i32, i32
  }
  func.func @transform_14(%arg0: i32) -> (i32, i32) {
    %c0_i32 = arith.constant 0 : i32
    %c0_i32_0 = arith.constant 0 : i32
    %c0_i32_1 = arith.constant 0 : i32
    return %c0_i32, %c0_i32_0 : i32, i32
  }
  func.func @transform_15(%arg0: i32) -> (i32, i32, i32) {
    %c0_i32 = arith.constant 0 : i32
    %c0_i32_0 = arith.constant 0 : i32
    %c0_i32_1 = arith.constant 0 : i32
    %c0_i32_2 = arith.constant 0 : i32
    return %c0_i32, %c0_i32_0, %c0_i32_1 : i32, i32, i32
  }
  func.func @transform_16(%arg0: i32) -> (i32, i32, i32) {
    %c0_i32 = arith.constant 0 : i32
    %c0_i32_0 = arith.constant 0 : i32
    %c0_i32_1 = arith.constant 0 : i32
    %c0_i32_2 = arith.constant 0 : i32
    return %c0_i32, %c0_i32_0, %c0_i32_1 : i32, i32, i32
  }
  func.func @transform_17(%arg0: i32) -> (i32, i32) {
    %c0_i32 = arith.constant 0 : i32
    %c0_i32_0 = arith.constant 0 : i32
    %c0_i32_1 = arith.constant 0 : i32
    return %c0_i32, %c0_i32_0 : i32, i32
  }
  func.func @transform_18(%arg0: i32) -> (i32, i32, i32) {
    %c0_i32 = arith.constant 0 : i32
    %c0_i32_0 = arith.constant 0 : i32
    %c0_i32_1 = arith.constant 0 : i32
    %c0_i32_2 = arith.constant 0 : i32
    return %c0_i32, %c0_i32_0, %c0_i32_1 : i32, i32, i32
  }
  func.func @transform_19(%arg0: i32) -> (i32, i32, i32) {
    %c0_i32 = arith.constant 0 : i32
    %c0_i32_0 = arith.constant 0 : i32
    %c0_i32_1 = arith.constant 0 : i32
    return %arg0, %c0_i32, %c0_i32_0 : i32, i32, i32
  }
}

</mosaic_0001>

<llo_original>
// kernel: squeeze.1
$region0: #{squeeze.1}
  %s0 = inlined_call_operand.vmem [shape: f32[2,256], index: 0, kind: input, shape index: {}]
  %s1 = inlined_call_operand.hbm [shape: f32[2,1,16,16], index: 1, kind: output, shape index: {}]
  $region1: #{squeeze.1} parent=0
    #allocation0 [shape = 'u8[16384]{0}', space=vmem, size = 0x4000, scoped, tag = 'operand span for operand 1']
    #allocation1 [shape = 's32[1]{0}', space=sflag, size = 0x4, scoped, tag = 'scoped memory for squeeze.1']
    #allocation2 [shape = 'u8[8192]{0}', space=vmem, size = 0x2000, scoped, tag = 'scoped mem for input reshape']
    %2 = vsyncpa [#allocation1], 0
    %s4 = sshll.u32 1, 2
    %s5 = ssub.s32 %s4, 1
    %s6 = scalar_lea.vmem %s0, 2
    %v7 = vld [vmem:[%s6] sm:%s5]
    %s8 = scalar_lea.vmem [#allocation2], 8
    %9 = vst [vmem:[%s8] sm:%s5] %v7
    %v10 = vld [vmem:[%s0] sm:%s5]
    %11 = vst [vmem:[#allocation2] sm:%s5] %v10
    %v12 = vld [vmem:[#allocation2] sm:$0x3]
    %vm13 = vcmask 130048
    %14 = vst.msk [vmem:[#allocation0] ss:$16 sm:$0x3] %vm13, %v12
    %s15 = scalar_lea.vmem [#allocation2], 8
    %v16 = vld [vmem:[%s15] sm:$0x3]
    %vm17 = vcmask 130048
    %s18 = scalar_lea.vmem [#allocation0], 8
    %19 = vst.msk [vmem:[%s18] ss:$16 sm:$0x3] %vm17, %v16
    %v20 = vld.sshfl [vmem:[#allocation2] sm:$0xff pattern:$0x99999180]
    %21 = vrot.lane.b32.xlu0 %v20, 112
    %v22 = vpop.permute.xlu0 %21
    %vm23 = vcmask 130048
    %s24 = scalar_lea.vmem [#allocation0], 1
    %25 = vst.msk [vmem:[%s24] ss:$8 sm:$0xf] %vm23, %v22
    %v26 = vld.sshfl [vmem:[#allocation2] sm:$0xff pattern:$0x99999180]
    %27 = vrot.lane.b32.xlu0 %v26, 96
    %v28 = vpop.permute.xlu0 %27
    %vm29 = vcmask 130048
    %s30 = scalar_lea.vmem [#allocation0], 2
    %31 = vst.msk [vmem:[%s30] ss:$8 sm:$0xf] %vm29, %v28
    %v32 = vld.sshfl [vmem:[#allocation2] sm:$0xff pattern:$0x99999180]
    %33 = vrot.lane.b32.xlu0 %v32, 80
    %v34 = vpop.permute.xlu0 %33
    %vm35 = vcmask 130048
    %s36 = scalar_lea.vmem [#allocation0], 3
    %37 = vst.msk [vmem:[%s36] ss:$8 sm:$0xf] %vm35, %v34
    %v38 = vld.sshfl [vmem:[#allocation2] sm:$0xff pattern:$0x99999180]
    %39 = vrot.lane.b32.xlu0 %v38, 64
    %v40 = vpop.permute.xlu0 %39
    %vm41 = vcmask 130048
    %s42 = scalar_lea.vmem [#allocation0], 4
    %43 = vst.msk [vmem:[%s42] ss:$8 sm:$0xf] %vm41, %v40
    %v44 = vld.sshfl [vmem:[#allocation2] sm:$0xff pattern:$0x99999180]
    %45 = vrot.lane.b32.xlu0 %v44, 48
    %v46 = vpop.permute.xlu0 %45
    %vm47 = vcmask 130048
    %s48 = scalar_lea.vmem [#allocation0], 5
    %49 = vst.msk [vmem:[%s48] ss:$8 sm:$0xf] %vm47, %v46
    %v50 = vld.sshfl [vmem:[#allocation2] sm:$0xff pattern:$0x99999180]
    %51 = vrot.lane.b32.xlu0 %v50, 32
    %v52 = vpop.permute.xlu0 %51
    %vm53 = vcmask 130048
    %s54 = scalar_lea.vmem [#allocation0], 6
    %55 = vst.msk [vmem:[%s54] ss:$8 sm:$0xf] %vm53, %v52
    %v56 = vld.sshfl [vmem:[#allocation2] sm:$0xff pattern:$0x99999180]
    %57 = vrot.lane.b32.xlu0 %v56, 16
    %v58 = vpop.permute.xlu0 %57
    %vm59 = vcmask 130048
    %s60 = scalar_lea.vmem [#allocation0], 7
    %61 = vst.msk [vmem:[%s60] ss:$8 sm:$0xf] %vm59, %v58
    %s63 = ssub.s32 512, 512
    %64 = vsyncadd [#allocation1], %s63
    %s66 = sshll.u32 [#allocation0], 4
    %s67 = int_to_ptr.vmem [resolvable:$true] %s66
    %69 = dma.vmem_to_hbm [thread:$0]  %s67, 512, %s1, [#allocation1]
    %70 = dma.done [#allocation1], 512
    %71 = vsyncpa [#allocation1], 1

// kernel: denoising_autoencoder_forward.1
$region0: #{denoising_autoencoder_forward.1}
  #allocation0 [shape = 'u32[]', space=smem, size = 0x4, offset = 0x4, fixed_abs, tag = 'smem constant byte address 0x4 - core index']
  #allocation1 [shape = 'u32[144,128]{1,0:T(1,128)}', space=vmem, size = 0x12000, scoped, tag = 'internal scratch']
  #allocation2 [shape = 'f32[297,8]{1,0:T(8,128)}', space=vmem, size = 0x26000, scoped, tag = 'scratch operand']
  #allocation3 [shape = 'f32[89,16]{1,0:T(8,128)}', space=vmem, size = 0xc000, scoped, tag = 'scratch operand']
  #allocation4 [shape = 'f32[29,32]{1,0:T(8,128)}', space=vmem, size = 0x4000, scoped, tag = 'scratch operand']
  #allocation5 [shape = 'f32[7,64]{1,0:T(8,128)}', space=vmem, size = 0x1000, scoped, tag = 'scratch operand']
  #allocation6 [shape = 'f32[21,32]{1,0:T(8,128)}', space=vmem, size = 0x3000, scoped, tag = 'scratch operand']
  #allocation7 [shape = 'f32[73,16]{1,0:T(8,128)}', space=vmem, size = 0xa000, scoped, tag = 'scratch operand']
  %s0 = inlined_call_operand.vmem [shape: bf16[2,256,8], index: 0, kind: input, shape index: {}]
  %s1 = inlined_call_operand.vmem [shape: bf16[9,8,16], index: 1, kind: input, shape index: {}]
  %s2 = inlined_call_operand.vmem [shape: f32[1,16], index: 2, kind: input, shape index: {}]
  %s3 = inlined_call_operand.vmem [shape: bf16[4,64,256], index: 3, kind: input, shape index: {}]
  %s4 = inlined_call_operand.vmem [shape: bf16[9,16,32], index: 4, kind: input, shape index: {}]
  %s5 = inlined_call_operand.vmem [shape: f32[1,32], index: 5, kind: input, shape index: {}]
  %s6 = inlined_call_operand.vmem [shape: bf16[4,16,64], index: 6, kind: input, shape index: {}]
  %s7 = inlined_call_operand.vmem [shape: bf16[9,32,64], index: 7, kind: input, shape index: {}]
  %s8 = inlined_call_operand.vmem [shape: f32[1,64], index: 8, kind: input, shape index: {}]
  %s9 = inlined_call_operand.vmem [shape: bf16[4,4,16], index: 9, kind: input, shape index: {}]
  %s10 = inlined_call_operand.vmem [shape: bf16[9,64,32], index: 10, kind: input, shape index: {}]
  %s11 = inlined_call_operand.vmem [shape: f32[1,32], index: 11, kind: input, shape index: {}]
  %s12 = inlined_call_operand.vmem [shape: bf16[4,16,4], index: 12, kind: input, shape index: {}]
  %s13 = inlined_call_operand.vmem [shape: bf16[9,32,16], index: 13, kind: input, shape index: {}]
  %s14 = inlined_call_operand.vmem [shape: f32[1,16], index: 14, kind: input, shape index: {}]
  %s15 = inlined_call_operand.vmem [shape: bf16[4,64,16], index: 15, kind: input, shape index: {}]
  %s16 = inlined_call_operand.vmem [shape: bf16[9,16,8], index: 16, kind: input, shape index: {}]
  %s17 = inlined_call_operand.vmem [shape: f32[1,8], index: 17, kind: input, shape index: {}]
  %s18 = inlined_call_operand.vmem [shape: bf16[4,256,64], index: 18, kind: input, shape index: {}]
  %s19 = inlined_call_operand.vmem [shape: f32[2,256,8], index: 19, kind: output, shape index: {}]
  %s20 = sld [smem:[#allocation0]]
  $region109: #{denoising_autoencoder_forward.1} parent=0
    _
  %s22 = ssub.s32 1, %s20
  %s23 = scalar_select 0, %s22, %s20
  loop: start=0, step=1, limit=4
  $region2: #{denoising_autoencoder_forward.1} parent=0 // loop_pre_header
    _
  $region3: #{denoising_autoencoder_forward.1} parent=0 // loop_header
    %s25 = sphi 0, %s29
    %p26 = scmp.ge.s32.totalorder %s25, 4
    %s35 = sphi 0, %s37
    %s38 = sphi 0, %s35
    %s39 = sphi 0, %s38
    %s55 = sphi 0, %s39
    %s59 = sphi 0, %s59
    %s61 = sphi 0, %s59
    %s62 = sphi 0, %s61
    %s76 = sphi 0, %s62
    %s80 = sphi 0, %s80
    %s82 = sphi 0, %s80
    %s83 = sphi 0, %s82
    %s97 = sphi 0, %s83
    %s101 = sphi 0, %s101
    %s103 = sphi 0, %s101
    %s104 = sphi 0, %s103
    %s118 = sphi 0, %s104
    %s122 = sphi 0, %s122
    %s124 = sphi 0, %s122
    %s125 = sphi 0, %s124
    %s139 = sphi 0, %s125
    %s143 = sphi 0, %s143
    %s145 = sphi 0, %s143
    %s146 = sphi 0, %s145
    %s160 = sphi 0, %s146
    %s164 = sphi 0, %s164
    %s166 = sphi 0, %s164
    %s167 = sphi 0, %s166
    %s181 = sphi 0, %s167
    %s185 = sphi 0, %s185
    %s187 = sphi 0, %s185
    %s188 = sphi 0, %s187
    %s202 = sphi 0, %s188
    %s206 = sphi 0, %s206
    %s208 = sphi 0, %s206
    %s209 = sphi 0, %s208
    %s223 = sphi 0, %s209
    %s227 = sphi 0, %s227
    %s229 = sphi 0, %s227
    %s230 = sphi 0, %s229
    %s244 = sphi 0, %s230
    %s248 = sphi 0, %s248
    %s250 = sphi 0, %s248
    %s251 = sphi 0, %s250
    %s265 = sphi 0, %s251
    %s269 = sphi 0, %s269
    %s271 = sphi 0, %s269
    %s272 = sphi 0, %s271
    %s286 = sphi 0, %s272
    %s290 = sphi 0, %s290
    %s292 = sphi 0, %s290
    %s293 = sphi 0, %s292
    %s307 = sphi 0, %s293
    %s311 = sphi 0, %s311
    %s313 = sphi 0, %s311
    %s314 = sphi 0, %s313
    %s328 = sphi 0, %s314
    %s332 = sphi 0, %s332
    %s334 = sphi 0, %s332
    %s335 = sphi 0, %s334
    %s349 = sphi 0, %s335
    %s353 = sphi 0, %s353
    %s355 = sphi 0, %s353
    %s356 = sphi 0, %s355
    %s370 = sphi 0, %s356
    %s374 = sphi 0, %s374
    %s376 = sphi 0, %s374
    %s377 = sphi 0, %s376
    %s391 = sphi 0, %s377
    %s395 = sphi 0, %s395
    %s397 = sphi 0, %s395
    %s398 = sphi 0, %s397
    %s412 = sphi 0, %s398
    %s416 = sphi 0, %s416
    %s418 = sphi 0, %s416
    %s419 = sphi 0, %s418
    %s433 = sphi 0, %s419
    %s439 = sphi 0, %s441
    %s442 = sphi 0, %s439
    %s443 = sphi 0, %s442
    %s459 = sphi 0, %s443
  $region4: #{denoising_autoencoder_forward.1} parent=0 // loop_header_branch
    %28 = sbr.rel (%p26) target = $region8
  $region5: #{denoising_autoencoder_forward.1} parent=0 // loop_body
    %s30 = ssub.s32 %s25, 1
    %s31 = ssub.s32 %s25, 2
    %s32 = sadd.s32 %s25, 1
    %s33 = ssub.s32 %s25, %s32
    %p34 = scmp.eq.s32.totalorder %s33, 0
    %s36 = sadd.s32 %s35, 1
    %s37 = scalar_select %p34, %s35, %s36
    %p40 = pneg %p34
    %p41 = scmp.eq.s32.totalorder %s25, 1
    %p42 = por %p40, %p41
    %p43 = scmp.ne.s32.totalorder %s35, %s38
    %p44 = scmp.eq.s32.totalorder %s25, 0
    %p45 = por %p43, %p44
    %p46 = scmp.ne.s32.totalorder %s35, %s38
    %p47 = scmp.eq.s32.totalorder %s30, 1
    %p48 = por %p46, %p47
    %p49 = scmp.ne.s32.totalorder %s38, %s39
    %p50 = scmp.eq.s32.totalorder %s30, 0
    %p51 = por %p49, %p50
    %p52 = scmp.ne.s32.totalorder %s38, %s39
    %p53 = scmp.eq.s32.totalorder %s31, 1
    %p54 = por %p52, %p53
    %p56 = scmp.ne.s32.totalorder %s39, %s55
    %p57 = scmp.eq.s32.totalorder %s31, 0
    %p58 = por %p56, %p57
    %s60 = sadd.s32 %s59, 1
    %p63 = scmp.eq.s32.totalorder %s25, 1
    %p64 = scmp.ne.s32.totalorder %s59, %s61
    %p65 = scmp.eq.s32.totalorder %s25, 0
    %p66 = por %p64, %p65
    %p67 = scmp.ne.s32.totalorder %s59, %s61
    %p68 = scmp.eq.s32.totalorder %s30, 1
    %p69 = por %p67, %p68
    %p70 = scmp.ne.s32.totalorder %s61, %s62
    %p71 = scmp.eq.s32.totalorder %s30, 0
    %p72 = por %p70, %p71
    %p73 = scmp.ne.s32.totalorder %s61, %s62
    %p74 = scmp.eq.s32.totalorder %s31, 1
    %p75 = por %p73, %p74
    %p77 = scmp.ne.s32.totalorder %s62, %s76
    %p78 = scmp.eq.s32.totalorder %s31, 0
    %p79 = por %p77, %p78
    %s81 = sadd.s32 %s80, 1
    %p84 = scmp.eq.s32.totalorder %s25, 1
    %p85 = scmp.ne.s32.totalorder %s80, %s82
    %p86 = scmp.eq.s32.totalorder %s25, 0
    %p87 = por %p85, %p86
    %p88 = scmp.ne.s32.totalorder %s80, %s82
    %p89 = scmp.eq.s32.totalorder %s30, 1
    %p90 = por %p88, %p89
    %p91 = scmp.ne.s32.totalorder %s82, %s83
    %p92 = scmp.eq.s32.totalorder %s30, 0
    %p93 = por %p91, %p92
    %p94 = scmp.ne.s32.totalorder %s82, %s83
    %p95 = scmp.eq.s32.totalorder %s31, 1
    %p96 = por %p94, %p95
    %p98 = scmp.ne.s32.totalorder %s83, %s97
    %p99 = scmp.eq.s32.totalorder %s31, 0
    %p100 = por %p98, %p99
    %s102 = sadd.s32 %s101, 1
    %p105 = scmp.eq.s32.totalorder %s25, 1
    %p106 = scmp.ne.s32.totalorder %s101, %s103
    %p107 = scmp.eq.s32.totalorder %s25, 0
    %p108 = por %p106, %p107
    %p109 = scmp.ne.s32.totalorder %s101, %s103
    %p110 = scmp.eq.s32.totalorder %s30, 1
    %p111 = por %p109, %p110
    %p112 = scmp.ne.s32.totalorder %s103, %s104
    %p113 = scmp.eq.s32.totalorder %s30, 0
    %p114 = por %p112, %p113
    %p115 = scmp.ne.s32.totalorder %s103, %s104
    %p116 = scmp.eq.s32.totalorder %s31, 1
    %p117 = por %p115, %p116
    %p119 = scmp.ne.s32.totalorder %s104, %s118
    %p120 = scmp.eq.s32.totalorder %s31, 0
    %p121 = por %p119, %p120
    %s123 = sadd.s32 %s122, 1
    %p126 = scmp.eq.s32.totalorder %s25, 1
    %p127 = scmp.ne.s32.totalorder %s122, %s124
    %p128 = scmp.eq.s32.totalorder %s25, 0
    %p129 = por %p127, %p128
    %p130 = scmp.ne.s32.totalorder %s122, %s124
    %p131 = scmp.eq.s32.totalorder %s30, 1
    %p132 = por %p130, %p131
    %p133 = scmp.ne.s32.totalorder %s124, %s125
    %p134 = scmp.eq.s32.totalorder %s30, 0
    %p135 = por %p133, %p134
    %p136 = scmp.ne.s32.totalorder %s124, %s125
    %p137 = scmp.eq.s32.totalorder %s31, 1
    %p138 = por %p136, %p137
    %p140 = scmp.ne.s32.totalorder %s125, %s139
    %p141 = scmp.eq.s32.totalorder %s31, 0
    %p142 = por %p140, %p141
    %s144 = sadd.s32 %s143, 1
    %p147 = scmp.eq.s32.totalorder %s25, 1
    %p148 = scmp.ne.s32.totalorder %s143, %s145
    %p149 = scmp.eq.s32.totalorder %s25, 0
    %p150 = por %p148, %p149
    %p151 = scmp.ne.s32.totalorder %s143, %s145
    %p152 = scmp.eq.s32.totalorder %s30, 1
    %p153 = por %p151, %p152
    %p154 = scmp.ne.s32.totalorder %s145, %s146
    %p155 = scmp.eq.s32.totalorder %s30, 0
    %p156 = por %p154, %p155
    %p157 = scmp.ne.s32.totalorder %s145, %s146
    %p158 = scmp.eq.s32.totalorder %s31, 1
    %p159 = por %p157, %p158
    %p161 = scmp.ne.s32.totalorder %s146, %s160
    %p162 = scmp.eq.s32.totalorder %s31, 0
    %p163 = por %p161, %p162
    %s165 = sadd.s32 %s164, 1
    %p168 = scmp.eq.s32.totalorder %s25, 1
    %p169 = scmp.ne.s32.totalorder %s164, %s166
    %p170 = scmp.eq.s32.totalorder %s25, 0
    %p171 = por %p169, %p170
    %p172 = scmp.ne.s32.totalorder %s164, %s166
    %p173 = scmp.eq.s32.totalorder %s30, 1
    %p174 = por %p172, %p173
    %p175 = scmp.ne.s32.totalorder %s166, %s167
    %p176 = scmp.eq.s32.totalorder %s30, 0
    %p177 = por %p175, %p176
    %p178 = scmp.ne.s32.totalorder %s166, %s167
    %p179 = scmp.eq.s32.totalorder %s31, 1
    %p180 = por %p178, %p179
    %p182 = scmp.ne.s32.totalorder %s167, %s181
    %p183 = scmp.eq.s32.totalorder %s31, 0
    %p184 = por %p182, %p183
    %s186 = sadd.s32 %s185, 1
    %p189 = scmp.eq.s32.totalorder %s25, 1
    %p190 = scmp.ne.s32.totalorder %s185, %s187
    %p191 = scmp.eq.s32.totalorder %s25, 0
    %p192 = por %p190, %p191
    %p193 = scmp.ne.s32.totalorder %s185, %s187
    %p194 = scmp.eq.s32.totalorder %s30, 1
    %p195 = por %p193, %p194
    %p196 = scmp.ne.s32.totalorder %s187, %s188
    %p197 = scmp.eq.s32.totalorder %s30, 0
    %p198 = por %p196, %p197
    %p199 = scmp.ne.s32.totalorder %s187, %s188
    %p200 = scmp.eq.s32.totalorder %s31, 1
    %p201 = por %p199, %p200
    %p203 = scmp.ne.s32.totalorder %s188, %s202
    %p204 = scmp.eq.s32.totalorder %s31, 0
    %p205 = por %p203, %p204
    %s207 = sadd.s32 %s206, 1
    %p210 = scmp.eq.s32.totalorder %s25, 1
    %p211 = scmp.ne.s32.totalorder %s206, %s208
    %p212 = scmp.eq.s32.totalorder %s25, 0
    %p213 = por %p211, %p212
    %p214 = scmp.ne.s32.totalorder %s206, %s208
    %p215 = scmp.eq.s32.totalorder %s30, 1
    %p216 = por %p214, %p215
    %p217 = scmp.ne.s32.totalorder %s208, %s209
    %p218 = scmp.eq.s32.totalorder %s30, 0
    %p219 = por %p217, %p218
    %p220 = scmp.ne.s32.totalorder %s208, %s209
    %p221 = scmp.eq.s32.totalorder %s31, 1
    %p222 = por %p220, %p221
    %p224 = scmp.ne.s32.totalorder %s209, %s223
    %p225 = scmp.eq.s32.totalorder %s31, 0
    %p226 = por %p224, %p225
    %s228 = sadd.s32 %s227, 1
    %p231 = scmp.eq.s32.totalorder %s25, 1
    %p232 = scmp.ne.s32.totalorder %s227, %s229
    %p233 = scmp.eq.s32.totalorder %s25, 0
    %p234 = por %p232, %p233
    %p235 = scmp.ne.s32.totalorder %s227, %s229
    %p236 = scmp.eq.s32.totalorder %s30, 1
    %p237 = por %p235, %p236
    %p238 = scmp.ne.s32.totalorder %s229, %s230
    %p239 = scmp.eq.s32.totalorder %s30, 0
    %p240 = por %p238, %p239
    %p241 = scmp.ne.s32.totalorder %s229, %s230
    %p242 = scmp.eq.s32.totalorder %s31, 1
    %p243 = por %p241, %p242
    %p245 = scmp.ne.s32.totalorder %s230, %s244
    %p246 = scmp.eq.s32.totalorder %s31, 0
    %p247 = por %p245, %p246
    %s249 = sadd.s32 %s248, 1
    %p252 = scmp.eq.s32.totalorder %s25, 1
    %p253 = scmp.ne.s32.totalorder %s248, %s250
    %p254 = scmp.eq.s32.totalorder %s25, 0
    %p255 = por %p253, %p254
    %p256 = scmp.ne.s32.totalorder %s248, %s250
    %p257 = scmp.eq.s32.totalorder %s30, 1
    %p258 = por %p256, %p257
    %p259 = scmp.ne.s32.totalorder %s250, %s251
    %p260 = scmp.eq.s32.totalorder %s30, 0
    %p261 = por %p259, %p260
    %p262 = scmp.ne.s32.totalorder %s250, %s251
    %p263 = scmp.eq.s32.totalorder %s31, 1
    %p264 = por %p262, %p263
    %p266 = scmp.ne.s32.totalorder %s251, %s265
    %p267 = scmp.eq.s32.totalorder %s31, 0
    %p268 = por %p266, %p267
    %s270 = sadd.s32 %s269, 1
    %p273 = scmp.eq.s32.totalorder %s25, 1
    %p274 = scmp.ne.s32.totalorder %s269, %s271
    %p275 = scmp.eq.s32.totalorder %s25, 0
    %p276 = por %p274, %p275
    %p277 = scmp.ne.s32.totalorder %s269, %s271
    %p278 = scmp.eq.s32.totalorder %s30, 1
    %p279 = por %p277, %p278
    %p280 = scmp.ne.s32.totalorder %s271, %s272
    %p281 = scmp.eq.s32.totalorder %s30, 0
    %p282 = por %p280, %p281
    %p283 = scmp.ne.s32.totalorder %s271, %s272
    %p284 = scmp.eq.s32.totalorder %s31, 1
    %p285 = por %p283, %p284
    %p287 = scmp.ne.s32.totalorder %s272, %s286
    %p288 = scmp.eq.s32.totalorder %s31, 0
    %p289 = por %p287, %p288
    %s291 = sadd.s32 %s290, 1
    %p294 = scmp.eq.s32.totalorder %s25, 1
    %p295 = scmp.ne.s32.totalorder %s290, %s292
    %p296 = scmp.eq.s32.totalorder %s25, 0
    %p297 = por %p295, %p296
    %p298 = scmp.ne.s32.totalorder %s290, %s292
    %p299 = scmp.eq.s32.totalorder %s30, 1
    %p300 = por %p298, %p299
    %p301 = scmp.ne.s32.totalorder %s292, %s293
    %p302 = scmp.eq.s32.totalorder %s30, 0
    %p303 = por %p301, %p302
    %p304 = scmp.ne.s32.totalorder %s292, %s293
    %p305 = scmp.eq.s32.totalorder %s31, 1
    %p306 = por %p304, %p305
    %p308 = scmp.ne.s32.totalorder %s293, %s307
    %p309 = scmp.eq.s32.totalorder %s31, 0
    %p310 = por %p308, %p309
    %s312 = sadd.s32 %s311, 1
    %p315 = scmp.eq.s32.totalorder %s25, 1
    %p316 = scmp.ne.s32.totalorder %s311, %s313
    %p317 = scmp.eq.s32.totalorder %s25, 0
    %p318 = por %p316, %p317
    %p319 = scmp.ne.s32.totalorder %s311, %s313
    %p320 = scmp.eq.s32.totalorder %s30, 1
    %p321 = por %p319, %p320
    %p322 = scmp.ne.s32.totalorder %s313, %s314
    %p323 = scmp.eq.s32.totalorder %s30, 0
    %p324 = por %p322, %p323
    %p325 = scmp.ne.s32.totalorder %s313, %s314
    %p326 = scmp.eq.s32.totalorder %s31, 1
    %p327 = por %p325, %p326
    %p329 = scmp.ne.s32.totalorder %s314, %s328
    %p330 = scmp.eq.s32.totalorder %s31, 0
    %p331 = por %p329, %p330
    %s333 = sadd.s32 %s332, 1
    %p336 = scmp.eq.s32.totalorder %s25, 1
    %p337 = scmp.ne.s32.totalorder %s332, %s334
    %p338 = scmp.eq.s32.totalorder %s25, 0
    %p339 = por %p337, %p338
    %p340 = scmp.ne.s32.totalorder %s332, %s334
    %p341 = scmp.eq.s32.totalorder %s30, 1
    %p342 = por %p340, %p341
    %p343 = scmp.ne.s32.totalorder %s334, %s335
    %p344 = scmp.eq.s32.totalorder %s30, 0
    %p345 = por %p343, %p344
    %p346 = scmp.ne.s32.totalorder %s334, %s335
    %p347 = scmp.eq.s32.totalorder %s31, 1
    %p348 = por %p346, %p347
    %p350 = scmp.ne.s32.totalorder %s335, %s349
    %p351 = scmp.eq.s32.totalorder %s31, 0
    %p352 = por %p350, %p351
    %s354 = sadd.s32 %s353, 1
    %p357 = scmp.eq.s32.totalorder %s25, 1
    %p358 = scmp.ne.s32.totalorder %s353, %s355
    %p359 = scmp.eq.s32.totalorder %s25, 0
    %p360 = por %p358, %p359
    %p361 = scmp.ne.s32.totalorder %s353, %s355
    %p362 = scmp.eq.s32.totalorder %s30, 1
    %p363 = por %p361, %p362
    %p364 = scmp.ne.s32.totalorder %s355, %s356
    %p365 = scmp.eq.s32.totalorder %s30, 0
    %p366 = por %p364, %p365
    %p367 = scmp.ne.s32.totalorder %s355, %s356
    %p368 = scmp.eq.s32.totalorder %s31, 1
    %p369 = por %p367, %p368
    %p371 = scmp.ne.s32.totalorder %s356, %s370
    %p372 = scmp.eq.s32.totalorder %s31, 0
    %p373 = por %p371, %p372
    %s375 = sadd.s32 %s374, 1
    %p378 = scmp.eq.s32.totalorder %s25, 1
    %p379 = scmp.ne.s32.totalorder %s374, %s376
    %p380 = scmp.eq.s32.totalorder %s25, 0
    %p381 = por %p379, %p380
    %p382 = scmp.ne.s32.totalorder %s374, %s376
    %p383 = scmp.eq.s32.totalorder %s30, 1
    %p384 = por %p382, %p383
    %p385 = scmp.ne.s32.totalorder %s376, %s377
    %p386 = scmp.eq.s32.totalorder %s30, 0
    %p387 = por %p385, %p386
    %p388 = scmp.ne.s32.totalorder %s376, %s377
    %p389 = scmp.eq.s32.totalorder %s31, 1
    %p390 = por %p388, %p389
    %p392 = scmp.ne.s32.totalorder %s377, %s391
    %p393 = scmp.eq.s32.totalorder %s31, 0
    %p394 = por %p392, %p393
    %s396 = sadd.s32 %s395, 1
    %p399 = scmp.eq.s32.totalorder %s25, 1
    %p400 = scmp.ne.s32.totalorder %s395, %s397
    %p401 = scmp.eq.s32.totalorder %s25, 0
    %p402 = por %p400, %p401
    %p403 = scmp.ne.s32.totalorder %s395, %s397
    %p404 = scmp.eq.s32.totalorder %s30, 1
    %p405 = por %p403, %p404
    %p406 = scmp.ne.s32.totalorder %s397, %s398
    %p407 = scmp.eq.s32.totalorder %s30, 0
    %p408 = por %p406, %p407
    %p409 = scmp.ne.s32.totalorder %s397, %s398
    %p410 = scmp.eq.s32.totalorder %s31, 1
    %p411 = por %p409, %p410
    %p413 = scmp.ne.s32.totalorder %s398, %s412
    %p414 = scmp.eq.s32.totalorder %s31, 0
    %p415 = por %p413, %p414
    %s417 = sadd.s32 %s416, 1
    %p420 = scmp.eq.s32.totalorder %s25, 1
    %p421 = scmp.ne.s32.totalorder %s416, %s418
    %p422 = scmp.eq.s32.totalorder %s25, 0
    %p423 = por %p421, %p422
    %p424 = scmp.ne.s32.totalorder %s416, %s418
    %p425 = scmp.eq.s32.totalorder %s30, 1
    %p426 = por %p424, %p425
    %p427 = scmp.ne.s32.totalorder %s418, %s419
    %p428 = scmp.eq.s32.totalorder %s30, 0
    %p429 = por %p427, %p428
    %p430 = scmp.ne.s32.totalorder %s418, %s419
    %p431 = scmp.eq.s32.totalorder %s31, 1
    %p432 = por %p430, %p431
    %p434 = scmp.ne.s32.totalorder %s419, %s433
    %p435 = scmp.eq.s32.totalorder %s31, 0
    %p436 = por %p434, %p435
    %s437 = ssub.s32 %s25, %s32
    %p438 = scmp.eq.s32.totalorder %s437, 0
    %s440 = sadd.s32 %s439, 1
    %s441 = scalar_select %p438, %s439, %s440
    %p444 = pneg %p438
    %p445 = scmp.eq.s32.totalorder %s25, 1
    %p446 = por %p444, %p445
    %p447 = scmp.ne.s32.totalorder %s439, %s442
    %p448 = scmp.eq.s32.totalorder %s25, 0
    %p449 = por %p447, %p448
    %p450 = scmp.ne.s32.totalorder %s439, %s442
    %p451 = scmp.eq.s32.totalorder %s30, 1
    %p452 = por %p450, %p451
    %p453 = scmp.ne.s32.totalorder %s442, %s443
    %p454 = scmp.eq.s32.totalorder %s30, 0
    %p455 = por %p453, %p454
    %p456 = scmp.ne.s32.totalorder %s442, %s443
    %p457 = scmp.eq.s32.totalorder %s31, 1
    %p458 = por %p456, %p457
    %p460 = scmp.ne.s32.totalorder %s443, %s459
    %p461 = scmp.eq.s32.totalorder %s31, 0
    %p462 = por %p460, %p461
    %p463 = scmp.le.s32.totalorder 1, %s25
    %p464 = scmp.lt.s32.totalorder %s25, 3
    %p465 = pnand %p463, %p464
    %p466 = pneg %p465
    // Predicated region
    $region9: #{denoising_autoencoder_forward.1} parent=5 // pred_check
      _
    $region10: #{denoising_autoencoder_forward.1} parent=5 // pred_check_branch
      %468 = sbr.rel (%p465) target = $region12
    $region11: #{denoising_autoencoder_forward.1} parent=5 // pred_region
      %s469 = ssub.s32 %s25, 1
      // Predicated region
      $region13: #{denoising_autoencoder_forward.1} parent=11 // pred_check
        %p470 = pneg %p72
      $region14: #{denoising_autoencoder_forward.1} parent=11 // pred_check_branch
        %472 = sbr.rel (%p470) target = $region16
      $region15: #{denoising_autoencoder_forward.1} parent=11 // pred_region
        _
      $region16: #{denoising_autoencoder_forward.1} parent=11 // pred_fallthru
        _
      // Predicated region
      $region17: #{denoising_autoencoder_forward.1} parent=11 // pred_check
        %p473 = pneg %p93
      $region18: #{denoising_autoencoder_forward.1} parent=11 // pred_check_branch
        %475 = sbr.rel (%p473) target = $region20
      $region19: #{denoising_autoencoder_forward.1} parent=11 // pred_region
        _
      $region20: #{denoising_autoencoder_forward.1} parent=11 // pred_fallthru
        _
      // Predicated region
      $region21: #{denoising_autoencoder_forward.1} parent=11 // pred_check
        %p476 = pneg %p114
      $region22: #{denoising_autoencoder_forward.1} parent=11 // pred_check_branch
        %478 = sbr.rel (%p476) target = $region24
      $region23: #{denoising_autoencoder_forward.1} parent=11 // pred_region
        _
      $region24: #{denoising_autoencoder_forward.1} parent=11 // pred_fallthru
        _
      // Predicated region
      $region25: #{denoising_autoencoder_forward.1} parent=11 // pred_check
        %p479 = pneg %p135
      $region26: #{denoising_autoencoder_forward.1} parent=11 // pred_check_branch
        %481 = sbr.rel (%p479) target = $region28
      $region27: #{denoising_autoencoder_forward.1} parent=11 // pred_region
        _
      $region28: #{denoising_autoencoder_forward.1} parent=11 // pred_fallthru
        _
      // Predicated region
      $region29: #{denoising_autoencoder_forward.1} parent=11 // pred_check
        %p482 = pneg %p156
      $region30: #{denoising_autoencoder_forward.1} parent=11 // pred_check_branch
        %484 = sbr.rel (%p482) target = $region32
      $region31: #{denoising_autoencoder_forward.1} parent=11 // pred_region
        _
      $region32: #{denoising_autoencoder_forward.1} parent=11 // pred_fallthru
        _
      // Predicated region
      $region33: #{denoising_autoencoder_forward.1} parent=11 // pred_check
        %p485 = pneg %p177
      $region34: #{denoising_autoencoder_forward.1} parent=11 // pred_check_branch
        %487 = sbr.rel (%p485) target = $region36
      $region35: #{denoising_autoencoder_forward.1} parent=11 // pred_region
        _
      $region36: #{denoising_autoencoder_forward.1} parent=11 // pred_fallthru
        _
      // Predicated region
      $region37: #{denoising_autoencoder_forward.1} parent=11 // pred_check
        %p488 = pneg %p198
      $region38: #{denoising_autoencoder_forward.1} parent=11 // pred_check_branch
        %490 = sbr.rel (%p488) target = $region40
      $region39: #{denoising_autoencoder_forward.1} parent=11 // pred_region
        _
      $region40: #{denoising_autoencoder_forward.1} parent=11 // pred_fallthru
        _
      // Predicated region
      $region41: #{denoising_autoencoder_forward.1} parent=11 // pred_check
        %p491 = pneg %p219
      $region42: #{denoising_autoencoder_forward.1} parent=11 // pred_check_branch
        %493 = sbr.rel (%p491) target = $region44
      $region43: #{denoising_autoencoder_forward.1} parent=11 // pred_region
        _
      $region44: #{denoising_autoencoder_forward.1} parent=11 // pred_fallthru
        _
      // Predicated region
      $region45: #{denoising_autoencoder_forward.1} parent=11 // pred_check
        %p494 = pneg %p240
      $region46: #{denoising_autoencoder_forward.1} parent=11 // pred_check_branch
        %496 = sbr.rel (%p494) target = $region48
      $region47: #{denoising_autoencoder_forward.1} parent=11 // pred_region
        _
      $region48: #{denoising_autoencoder_forward.1} parent=11 // pred_fallthru
        _
      // Predicated region
      $region49: #{denoising_autoencoder_forward.1} parent=11 // pred_check
        %p497 = pneg %p261
      $region50: #{denoising_autoencoder_forward.1} parent=11 // pred_check_branch
        %499 = sbr.rel (%p497) target = $region52
      $region51: #{denoising_autoencoder_forward.1} parent=11 // pred_region
        _
      $region52: #{denoising_autoencoder_forward.1} parent=11 // pred_fallthru
        _
      // Predicated region
      $region53: #{denoising_autoencoder_forward.1} parent=11 // pred_check
        %p500 = pneg %p282
      $region54: #{denoising_autoencoder_forward.1} parent=11 // pred_check_branch
        %502 = sbr.rel (%p500) target = $region56
      $region55: #{denoising_autoencoder_forward.1} parent=11 // pred_region
        _
      $region56: #{denoising_autoencoder_forward.1} parent=11 // pred_fallthru
        _
      // Predicated region
      $region57: #{denoising_autoencoder_forward.1} parent=11 // pred_check
        %p503 = pneg %p303
      $region58: #{denoising_autoencoder_forward.1} parent=11 // pred_check_branch
        %505 = sbr.rel (%p503) target = $region60
      $region59: #{denoising_autoencoder_forward.1} parent=11 // pred_region
        _
      $region60: #{denoising_autoencoder_forward.1} parent=11 // pred_fallthru
        _
      // Predicated region
      $region61: #{denoising_autoencoder_forward.1} parent=11 // pred_check
        %p506 = pneg %p324
      $region62: #{denoising_autoencoder_forward.1} parent=11 // pred_check_branch
        %508 = sbr.rel (%p506) target = $region64
      $region63: #{denoising_autoencoder_forward.1} parent=11 // pred_region
        _
      $region64: #{denoising_autoencoder_forward.1} parent=11 // pred_fallthru
        _
      // Predicated region
      $region65: #{denoising_autoencoder_forward.1} parent=11 // pred_check
        %p509 = pneg %p345
      $region66: #{denoising_autoencoder_forward.1} parent=11 // pred_check_branch
        %511 = sbr.rel (%p509) target = $region68
      $region67: #{denoising_autoencoder_forward.1} parent=11 // pred_region
        _
      $region68: #{denoising_autoencoder_forward.1} parent=11 // pred_fallthru
        _
      // Predicated region
      $region69: #{denoising_autoencoder_forward.1} parent=11 // pred_check
        %p512 = pneg %p366
      $region70: #{denoising_autoencoder_forward.1} parent=11 // pred_check_branch
        %514 = sbr.rel (%p512) target = $region72
      $region71: #{denoising_autoencoder_forward.1} parent=11 // pred_region
        _
      $region72: #{denoising_autoencoder_forward.1} parent=11 // pred_fallthru
        _
      // Predicated region
      $region73: #{denoising_autoencoder_forward.1} parent=11 // pred_check
        %p515 = pneg %p387
      $region74: #{denoising_autoencoder_forward.1} parent=11 // pred_check_branch
        %517 = sbr.rel (%p515) target = $region76
      $region75: #{denoising_autoencoder_forward.1} parent=11 // pred_region
        _
      $region76: #{denoising_autoencoder_forward.1} parent=11 // pred_fallthru
        _
      // Predicated region
      $region77: #{denoising_autoencoder_forward.1} parent=11 // pred_check
        %p518 = pneg %p408
      $region78: #{denoising_autoencoder_forward.1} parent=11 // pred_check_branch
        %520 = sbr.rel (%p518) target = $region80
      $region79: #{denoising_autoencoder_forward.1} parent=11 // pred_region
        _
      $region80: #{denoising_autoencoder_forward.1} parent=11 // pred_fallthru
        _
      // Predicated region
      $region81: #{denoising_autoencoder_forward.1} parent=11 // pred_check
        %p521 = pneg %p429
      $region82: #{denoising_autoencoder_forward.1} parent=11 // pred_check_branch
        %523 = sbr.rel (%p521) target = $region84
      $region83: #{denoising_autoencoder_forward.1} parent=11 // pred_region
        _
      $region84: #{denoising_autoencoder_forward.1} parent=11 // pred_fallthru
        _
    $region12: #{denoising_autoencoder_forward.1} parent=5 // pred_fallthru
      _
    %p524 = scmp.lt.s32.totalorder %s25, 2
    // Predicated region
    $region85: #{denoising_autoencoder_forward.1} parent=5 // pred_check
      %p525 = pneg %p524
    $region86: #{denoising_autoencoder_forward.1} parent=5 // pred_check_branch
      %527 = sbr.rel (%p525) target = $region88
    $region87: #{denoising_autoencoder_forward.1} parent=5 // pred_region
      // Predicated region
      $region89: #{denoising_autoencoder_forward.1} parent=87 // pred_check
        %p528 = pneg %p45
      $region90: #{denoising_autoencoder_forward.1} parent=87 // pred_check_branch
        %530 = sbr.rel (%p528) target = $region92
      $region91: #{denoising_autoencoder_forward.1} parent=87 // pred_region
        %p531 = scmp.lt.s32.totalorder %s25, 1
        %s532 = scalar_select %p531, %s25, 1
        %s533 = smul.addr %s532, 32
        %s534 = smul.addr %s533, 4
        %s535 = scalar_lea.vmem %s0, %s534
      $region92: #{denoising_autoencoder_forward.1} parent=87 // pred_fallthru
        _
    $region88: #{denoising_autoencoder_forward.1} parent=5 // pred_fallthru
      _
    %p536 = scmp.le.s32.totalorder 1, %s25
    %p537 = scmp.lt.s32.totalorder %s25, 3
    %p538 = pnand %p536, %p537
    %p539 = pneg %p538
    // Predicated region
    $region93: #{denoising_autoencoder_forward.1} parent=5 // pred_check
      _
    $region94: #{denoising_autoencoder_forward.1} parent=5 // pred_check_branch
      %541 = sbr.rel (%p538) target = $region96
    $region95: #{denoising_autoencoder_forward.1} parent=5 // pred_region
      %s542 = ssub.s32 %s25, 1
      %p543 = scmp.lt.s32.totalorder %s30, 1
      %s544 = scalar_select %p543, %s30, 1
      %s545 = smul.addr %s544, 32
      %s546 = smul.addr %s545, 4
      %s547 = scalar_lea.vmem %s0, %s546
      %p548 = pneg %p51
      %p549 = pneg %p48
      %p550 = pneg %p72
      %p551 = pneg %p69
      %p552 = pneg %p93
      %p553 = pneg %p90
      %p554 = pneg %p114
      %p555 = pneg %p111
      %p556 = pneg %p135
      %p557 = pneg %p132
      %p558 = pneg %p156
      %p559 = pneg %p153
      %p560 = pneg %p177
      %p561 = pneg %p174
      %p562 = pneg %p198
      %p563 = pneg %p195
      %p564 = pneg %p219
      %p565 = pneg %p216
      %p566 = pneg %p240
      %p567 = pneg %p237
      %p568 = pneg %p261
      %p569 = pneg %p258
      %p570 = pneg %p282
      %p571 = pneg %p279
      %p572 = pneg %p303
      %p573 = pneg %p300
      %p574 = pneg %p324
      %p575 = pneg %p321
      %p576 = pneg %p345
      %p577 = pneg %p342
      %p578 = pneg %p366
      %p579 = pneg %p363
      %p580 = pneg %p387
      %p581 = pneg %p384
      %p582 = pneg %p408
      %p583 = pneg %p405
      %p584 = pneg %p429
      %p585 = pneg %p426
      %p586 = pneg %p455
      %p587 = pneg %p452
      %p588 = scmp.lt.s32.totalorder %s30, 1
      %s589 = scalar_select %p588, %s30, 1
      %s590 = smul.addr %s589, 32
      %s591 = smul.addr %s590, 8
      %s592 = scalar_lea.vmem %s19, %s591
      %p593 = scmp.lt.s32.totalorder %s30, 1
      %s594 = scalar_select %p593, %s30, 1
      %s595 = smul.addr %s594, 32
      %s596 = smul.addr %s595, 4
      %s597 = scalar_lea.vmem %s0, %s596
      %p598 = scmp.lt.s32.totalorder %s30, 1
      %s599 = scalar_select %p598, %s30, 1
      %s600 = smul.addr %s599, 32
      %s601 = smul.addr %s600, 8
      %s602 = scalar_lea.vmem %s19, %s601
      %v604 = vld [vmem:[%s597] sm:$0xf]
      %v605 = vld [vmem:[%s597 + $0x4] sm:$0xf]
      %v606 = vld [vmem:[%s597 + $0x8] sm:$0xf]
      %v607 = vld [vmem:[%s597 + $0xc] sm:$0xf]
      %v608 = vld [vmem:[%s597 + $0x10] sm:$0xf]
      %v609 = vld [vmem:[%s597 + $0x14] sm:$0xf]
      %v610 = vld [vmem:[%s597 + $0x18] sm:$0xf]
      %v611 = vld [vmem:[%s597 + $0x1c] sm:$0xf]
      %v612 = vld [vmem:[%s597 + $0x20] sm:$0xf]
      %v613 = vld [vmem:[%s597 + $0x24] sm:$0xf]
      %v614 = vld [vmem:[%s597 + $0x28] sm:$0xf]
      %v615 = vld [vmem:[%s597 + $0x2c] sm:$0xf]
      %v616 = vld [vmem:[%s597 + $0x30] sm:$0xf]
      %v617 = vld [vmem:[%s597 + $0x34] sm:$0xf]
      %v618 = vld [vmem:[%s597 + $0x38] sm:$0xf]
      %v619 = vld [vmem:[%s597 + $0x3c] sm:$0xf]
      %v620 = vld [vmem:[%s597 + $0x40] sm:$0xf]
      %v621 = vld [vmem:[%s597 + $0x44] sm:$0xf]
      %v622 = vld [vmem:[%s597 + $0x48] sm:$0xf]
      %v623 = vld [vmem:[%s597 + $0x4c] sm:$0xf]
      %v624 = vld [vmem:[%s597 + $0x50] sm:$0xf]
      %v625 = vld [vmem:[%s597 + $0x54] sm:$0xf]
      %v626 = vld [vmem:[%s597 + $0x58] sm:$0xf]
      %v627 = vld [vmem:[%s597 + $0x5c] sm:$0xf]
      %v628 = vld [vmem:[%s597 + $0x60] sm:$0xf]
      %v629 = vld [vmem:[%s597 + $0x64] sm:$0xf]
      %v630 = vld [vmem:[%s597 + $0x68] sm:$0xf]
      %v631 = vld [vmem:[%s597 + $0x6c] sm:$0xf]
      %v632 = vld [vmem:[%s597 + $0x70] sm:$0xf]
      %v633 = vld [vmem:[%s597 + $0x74] sm:$0xf]
      %v634 = vld [vmem:[%s597 + $0x78] sm:$0xf]
      %v635 = vld [vmem:[%s597 + $0x7c] sm:$0xf]
      %vm636 = vcmask 64512
      %637 = vst.msk [vmem:[#allocation2] sm:$0xff] %vm636, 0.0
      %638 = vst.msk [vmem:[#allocation2 + $0x8] sm:$0xff] %vm636, 0.0
      %639 = vst.msk [vmem:[#allocation2 + $0x10] sm:$0xff] %vm636, 0.0
      %640 = vst.msk [vmem:[#allocation2 + $0x18] sm:$0xff] %vm636, 0.0
      %641 = vst.msk [vmem:[#allocation2 + $0x20] sm:$0xff] %vm636, 0.0
      %642 = vst.msk [vmem:[#allocation2 + $0x28] sm:$0xff] %vm636, 0.0
      %643 = vst.msk [vmem:[#allocation2 + $0x30] sm:$0xff] %vm636, 0.0
      %644 = vst.msk [vmem:[#allocation2 + $0x38] sm:$0xff] %vm636, 0.0
      %645 = vst.msk [vmem:[#allocation2 + $0x40] sm:$0xff] %vm636, 0.0
      %646 = vst.msk [vmem:[#allocation2 + $0x48] sm:$0xff] %vm636, 0.0
      %647 = vst.msk [vmem:[#allocation2 + $0x50] sm:$0xff] %vm636, 0.0
      %648 = vst.msk [vmem:[#allocation2 + $0x58] sm:$0xff] %vm636, 0.0
      %649 = vst.msk [vmem:[#allocation2 + $0x60] sm:$0xff] %vm636, 0.0
      %650 = vst.msk [vmem:[#allocation2 + $0x68] sm:$0xff] %vm636, 0.0
      %651 = vst.msk [vmem:[#allocation2 + $0x70] sm:$0xff] %vm636, 0.0
      %652 = vst.msk [vmem:[#allocation2 + $0x78] sm:$0xff] %vm636, 0.0
      %653 = vst.msk [vmem:[#allocation2 + $0x80] sm:$0xff] %vm636, 0.0
      %654 = vst.msk [vmem:[#allocation2 + $0x88] sm:$0xff] %vm636, 0.0
      %655 = vst.msk [vmem:[#allocation2 + $0x90] sm:$0xff] %vm636, 0.0
      %656 = vst.msk [vmem:[#allocation2 + $0x98] sm:$0xff] %vm636, 0.0
      %657 = vst.msk [vmem:[#allocation2 + $0xa0] sm:$0xff] %vm636, 0.0
      %658 = vst.msk [vmem:[#allocation2 + $0xa8] sm:$0xff] %vm636, 0.0
      %659 = vst.msk [vmem:[#allocation2 + $0xb0] sm:$0xff] %vm636, 0.0
      %660 = vst.msk [vmem:[#allocation2 + $0xb8] sm:$0xff] %vm636, 0.0
      %661 = vst.msk [vmem:[#allocation2 + $0xc0] sm:$0xff] %vm636, 0.0
      %662 = vst.msk [vmem:[#allocation2 + $0xc8] sm:$0xff] %vm636, 0.0
      %663 = vst.msk [vmem:[#allocation2 + $0xd0] sm:$0xff] %vm636, 0.0
      %664 = vst.msk [vmem:[#allocation2 + $0xd8] sm:$0xff] %vm636, 0.0
      %665 = vst.msk [vmem:[#allocation2 + $0xe0] sm:$0xff] %vm636, 0.0
      %666 = vst.msk [vmem:[#allocation2 + $0xe8] sm:$0xff] %vm636, 0.0
      %667 = vst.msk [vmem:[#allocation2 + $0xf0] sm:$0xff] %vm636, 0.0
      %668 = vst.msk [vmem:[#allocation2 + $0xf8] sm:$0xff] %vm636, 0.0
      %669 = vst.msk [vmem:[#allocation2 + $0x100] sm:$0xff] %vm636, 0.0
      %670 = vst.msk [vmem:[#allocation2 + $0x108] sm:$0xff] %vm636, 0.0
      %671 = vst.msk [vmem:[#allocation2 + $0x110] sm:$0xff] %vm636, 0.0
      %672 = vst.msk [vmem:[#allocation2 + $0x118] sm:$0xff] %vm636, 0.0
      %673 = vst.msk [vmem:[#allocation2 + $0x120] sm:$0xff] %vm636, 0.0
      %vm674 = vcmask 57344
      %675 = vst.msk [vmem:[#allocation2 + $0x128] sm:$0x1] %vm674, 0.0
      %v676 = vunpack.c.l.bf16 %v604
      %v677 = vunpack.c.l.bf16 %v605
      %v678 = vunpack.c.l.bf16 %v606
      %v679 = vunpack.c.l.bf16 %v607
      %v680 = vunpack.c.l.bf16 %v608
      %v681 = vunpack.c.l.bf16 %v609
      %v682 = vunpack.c.l.bf16 %v610
      %v683 = vunpack.c.l.bf16 %v611
      %v684 = vunpack.c.l.bf16 %v612
      %v685 = vunpack.c.l.bf16 %v613
      %v686 = vunpack.c.l.bf16 %v614
      %v687 = vunpack.c.l.bf16 %v615
      %v688 = vunpack.c.l.bf16 %v616
      %v689 = vunpack.c.l.bf16 %v617
      %v690 = vunpack.c.l.bf16 %v618
      %v691 = vunpack.c.l.bf16 %v619
      %v692 = vunpack.c.l.bf16 %v620
      %v693 = vunpack.c.l.bf16 %v621
      %v694 = vunpack.c.l.bf16 %v622
      %v695 = vunpack.c.l.bf16 %v623
      %v696 = vunpack.c.l.bf16 %v624
      %v697 = vunpack.c.l.bf16 %v625
      %v698 = vunpack.c.l.bf16 %v626
      %v699 = vunpack.c.l.bf16 %v627
      %v700 = vunpack.c.l.bf16 %v628
      %v701 = vunpack.c.l.bf16 %v629
      %v702 = vunpack.c.l.bf16 %v630
      %v703 = vunpack.c.l.bf16 %v631
      %v704 = vunpack.c.l.bf16 %v632
      %v705 = vunpack.c.l.bf16 %v633
      %v706 = vunpack.c.l.bf16 %v634
      %v707 = vunpack.c.l.bf16 %v635
      %708 = vst.msk [vmem:[#allocation2 + $0x18] sm:$0xff] %vm636, %v676
      %709 = vst.msk [vmem:[#allocation2 + $0x20] sm:$0xff] %vm636, %v677
      %710 = vst.msk [vmem:[#allocation2 + $0x28] sm:$0xff] %vm636, %v678
      %711 = vst.msk [vmem:[#allocation2 + $0x30] sm:$0xff] %vm636, %v679
      %712 = vst.msk [vmem:[#allocation2 + $0x38] sm:$0xff] %vm636, %v680
      %713 = vst.msk [vmem:[#allocation2 + $0x40] sm:$0xff] %vm636, %v681
      %714 = vst.msk [vmem:[#allocation2 + $0x48] sm:$0xff] %vm636, %v682
      %715 = vst.msk [vmem:[#allocation2 + $0x50] sm:$0xff] %vm636, %v683
      %716 = vst.msk [vmem:[#allocation2 + $0x58] sm:$0xff] %vm636, %v684
      %717 = vst.msk [vmem:[#allocation2 + $0x60] sm:$0xff] %vm636, %v685
      %718 = vst.msk [vmem:[#allocation2 + $0x68] sm:$0xff] %vm636, %v686
      %719 = vst.msk [vmem:[#allocation2 + $0x70] sm:$0xff] %vm636, %v687
      %720 = vst.msk [vmem:[#allocation2 + $0x78] sm:$0xff] %vm636, %v688
      %721 = vst.msk [vmem:[#allocation2 + $0x80] sm:$0xff] %vm636, %v689
      %722 = vst.msk [vmem:[#allocation2 + $0x88] sm:$0xff] %vm636, %v690
      %723 = vst.msk [vmem:[#allocation2 + $0x90] sm:$0xff] %vm636, %v691
      %724 = vst.msk [vmem:[#allocation2 + $0x98] sm:$0xff] %vm636, %v692
      %725 = vst.msk [vmem:[#allocation2 + $0xa0] sm:$0xff] %vm636, %v693
      %726 = vst.msk [vmem:[#allocation2 + $0xa8] sm:$0xff] %vm636, %v694
      %727 = vst.msk [vmem:[#allocation2 + $0xb0] sm:$0xff] %vm636, %v695
      %728 = vst.msk [vmem:[#allocation2 + $0xb8] sm:$0xff] %vm636, %v696
      %729 = vst.msk [vmem:[#allocation2 + $0xc0] sm:$0xff] %vm636, %v697
      %730 = vst.msk [vmem:[#allocation2 + $0xc8] sm:$0xff] %vm636, %v698
      %731 = vst.msk [vmem:[#allocation2 + $0xd0] sm:$0xff] %vm636, %v699
      %732 = vst.msk [vmem:[#allocation2 + $0xd8] sm:$0xff] %vm636, %v700
      %733 = vst.msk [vmem:[#allocation2 + $0xe0] sm:$0xff] %vm636, %v701
      %734 = vst.msk [vmem:[#allocation2 + $0xe8] sm:$0xff] %vm636, %v702
      %735 = vst.msk [vmem:[#allocation2 + $0xf0] sm:$0xff] %vm636, %v703
      %736 = vst.msk [vmem:[#allocation2 + $0xf8] sm:$0xff] %vm636, %v704
      %737 = vst.msk [vmem:[#allocation2 + $0x100] sm:$0xff] %vm636, %v705
      %738 = vst.msk [vmem:[#allocation2 + $0x108] sm:$0xff] %vm636, %v706
      %739 = vst.msk [vmem:[#allocation2 + $0x110] sm:$0xff] %vm636, %v707
      %v740 = vlaneseq
      %v741 = vshrl.u32 %v740, 7
      %v742 = vadd.s32 %v741, 8
      %v743 = vadd.s32 %v741, 16
      %v744 = vadd.s32 %v741, 24
      %v745 = vadd.s32 %v741, 32
      %v746 = vadd.s32 %v741, 40
      %v747 = vadd.s32 %v741, 48
      %v748 = vadd.s32 %v741, 56
      %v749 = vadd.s32 %v741, 64
      %v750 = vadd.s32 %v741, 72
      %v751 = vadd.s32 %v741, 80
      %v752 = vadd.s32 %v741, 88
      %v753 = vadd.s32 %v741, 96
      %v754 = vadd.s32 %v741, 104
      %v755 = vadd.s32 %v741, 112
      %v756 = vadd.s32 %v741, 120
      %v757 = vadd.s32 %v741, 128
      %v758 = vadd.s32 %v741, 136
      %v759 = vadd.s32 %v741, 144
      %v760 = vadd.s32 %v741, 152
      %v761 = vadd.s32 %v741, 160
      %v762 = vadd.s32 %v741, 168
      %v763 = vadd.s32 %v741, 176
      %v764 = vadd.s32 %v741, 184
      %v765 = vadd.s32 %v741, 192
      %v766 = vadd.s32 %v741, 200
      %v767 = vadd.s32 %v741, 208
      %v768 = vadd.s32 %v741, 216
      %v769 = vadd.s32 %v741, 224
      %v770 = vadd.s32 %v741, 232
      %v771 = vadd.s32 %v741, 240
      %v772 = vadd.s32 %v741, 248
      %v773 = vand.u32 %v741, 15
      %v774 = vand.u32 %v742, 15
      %v775 = vand.u32 %v743, 15
      %v776 = vand.u32 %v744, 15
      %v777 = vand.u32 %v745, 15
      %v778 = vand.u32 %v746, 15
      %v779 = vand.u32 %v747, 15
      %v780 = vand.u32 %v748, 15
      %v781 = vand.u32 %v749, 15
      %v782 = vand.u32 %v750, 15
      %v783 = vand.u32 %v751, 15
      %v784 = vand.u32 %v752, 15
      %v785 = vand.u32 %v753, 15
      %v786 = vand.u32 %v754, 15
      %v787 = vand.u32 %v755, 15
      %v788 = vand.u32 %v756, 15
      %v789 = vand.u32 %v757, 15
      %v790 = vand.u32 %v758, 15
      %v791 = vand.u32 %v759, 15
      %v792 = vand.u32 %v760, 15
      %v793 = vand.u32 %v761, 15
      %v794 = vand.u32 %v762, 15
      %v795 = vand.u32 %v763, 15
      %v796 = vand.u32 %v764, 15
      %v797 = vand.u32 %v765, 15
      %v798 = vand.u32 %v766, 15
      %v799 = vand.u32 %v767, 15
      %v800 = vand.u32 %v768, 15
      %v801 = vand.u32 %v769, 15
      %v802 = vand.u32 %v770, 15
      %v803 = vand.u32 %v771, 15
      %v804 = vand.u32 %v772, 15
      %vm805 = vcmp.ne.s32.totalorder %v773, 0
      %vm806 = vcmp.ne.s32.totalorder %v774, 0
      %vm807 = vcmp.ne.s32.totalorder %v775, 0
      %vm808 = vcmp.ne.s32.totalorder %v776, 0
      %vm809 = vcmp.ne.s32.totalorder %v777, 0
      %vm810 = vcmp.ne.s32.totalorder %v778, 0
      %vm811 = vcmp.ne.s32.totalorder %v779, 0
      %vm812 = vcmp.ne.s32.totalorder %v780, 0
      %vm813 = vcmp.ne.s32.totalorder %v781, 0
      %vm814 = vcmp.ne.s32.totalorder %v782, 0
      %vm815 = vcmp.ne.s32.totalorder %v783, 0
      %vm816 = vcmp.ne.s32.totalorder %v784, 0
      %vm817 = vcmp.ne.s32.totalorder %v785, 0
      %vm818 = vcmp.ne.s32.totalorder %v786, 0
      %vm819 = vcmp.ne.s32.totalorder %v787, 0
      %vm820 = vcmp.ne.s32.totalorder %v788, 0
      %vm821 = vcmp.ne.s32.totalorder %v789, 0
      %vm822 = vcmp.ne.s32.totalorder %v790, 0
      %vm823 = vcmp.ne.s32.totalorder %v791, 0
      %vm824 = vcmp.ne.s32.totalorder %v792, 0
      %vm825 = vcmp.ne.s32.totalorder %v793, 0
      %vm826 = vcmp.ne.s32.totalorder %v794, 0
      %vm827 = vcmp.ne.s32.totalorder %v795, 0
      %vm828 = vcmp.ne.s32.totalorder %v796, 0
      %vm829 = vcmp.ne.s32.totalorder %v797, 0
      %vm830 = vcmp.ne.s32.totalorder %v798, 0
      %vm831 = vcmp.ne.s32.totalorder %v799, 0
      %vm832 = vcmp.ne.s32.totalorder %v800, 0
      %vm833 = vcmp.ne.s32.totalorder %v801, 0
      %vm834 = vcmp.ne.s32.totalorder %v802, 0
      %vm835 = vcmp.ne.s32.totalorder %v803, 0
      %vm836 = vcmp.ne.s32.totalorder %v804, 0
      %v837 = vsel %vm805, 1.0, 0.0
      %v838 = vsel %vm806, 1.0, 0.0
      %v839 = vsel %vm807, 1.0, 0.0
      %v840 = vsel %vm808, 1.0, 0.0
      %v841 = vsel %vm809, 1.0, 0.0
      %v842 = vsel %vm810, 1.0, 0.0
      %v843 = vsel %vm811, 1.0, 0.0
      %v844 = vsel %vm812, 1.0, 0.0
      %v845 = vsel %vm813, 1.0, 0.0
      %v846 = vsel %vm814, 1.0, 0.0
      %v847 = vsel %vm815, 1.0, 0.0
      %v848 = vsel %vm816, 1.0, 0.0
      %v849 = vsel %vm817, 1.0, 0.0
      %v850 = vsel %vm818, 1.0, 0.0
      %v851 = vsel %vm819, 1.0, 0.0
      %v852 = vsel %vm820, 1.0, 0.0
      %v853 = vsel %vm821, 1.0, 0.0
      %v854 = vsel %vm822, 1.0, 0.0
      %v855 = vsel %vm823, 1.0, 0.0
      %v856 = vsel %vm824, 1.0, 0.0
      %v857 = vsel %vm825, 1.0, 0.0
      %v858 = vsel %vm826, 1.0, 0.0
      %v859 = vsel %vm827, 1.0, 0.0
      %v860 = vsel %vm828, 1.0, 0.0
      %v861 = vsel %vm829, 1.0, 0.0
      %v862 = vsel %vm830, 1.0, 0.0
      %v863 = vsel %vm831, 1.0, 0.0
      %v864 = vsel %vm832, 1.0, 0.0
      %v865 = vsel %vm833, 1.0, 0.0
      %v866 = vsel %vm834, 1.0, 0.0
      %v867 = vsel %vm835, 1.0, 0.0
      %v868 = vsel %vm836, 1.0, 0.0
      %vm869 = vcmp.ne.s32.totalorder %v773, 15
      %vm870 = vcmp.ne.s32.totalorder %v774, 15
      %vm871 = vcmp.ne.s32.totalorder %v775, 15
      %vm872 = vcmp.ne.s32.totalorder %v776, 15
      %vm873 = vcmp.ne.s32.totalorder %v777, 15
      %vm874 = vcmp.ne.s32.totalorder %v778, 15
      %vm875 = vcmp.ne.s32.totalorder %v779, 15
      %vm876 = vcmp.ne.s32.totalorder %v780, 15
      %vm877 = vcmp.ne.s32.totalorder %v781, 15
      %vm878 = vcmp.ne.s32.totalorder %v782, 15
      %vm879 = vcmp.ne.s32.totalorder %v783, 15
      %vm880 = vcmp.ne.s32.totalorder %v784, 15
      %vm881 = vcmp.ne.s32.totalorder %v785, 15
      %vm882 = vcmp.ne.s32.totalorder %v786, 15
      %vm883 = vcmp.ne.s32.totalorder %v787, 15
      %vm884 = vcmp.ne.s32.totalorder %v788, 15
      %vm885 = vcmp.ne.s32.totalorder %v789, 15
      %vm886 = vcmp.ne.s32.totalorder %v790, 15
      %vm887 = vcmp.ne.s32.totalorder %v791, 15
      %vm888 = vcmp.ne.s32.totalorder %v792, 15
      %vm889 = vcmp.ne.s32.totalorder %v793, 15
      %vm890 = vcmp.ne.s32.totalorder %v794, 15
      %vm891 = vcmp.ne.s32.totalorder %v795, 15
      %vm892 = vcmp.ne.s32.totalorder %v796, 15
      %vm893 = vcmp.ne.s32.totalorder %v797, 15
      %vm894 = vcmp.ne.s32.totalorder %v798, 15
      %vm895 = vcmp.ne.s32.totalorder %v799, 15
      %vm896 = vcmp.ne.s32.totalorder %v800, 15
      %vm897 = vcmp.ne.s32.totalorder %v801, 15
      %vm898 = vcmp.ne.s32.totalorder %v802, 15
      %vm899 = vcmp.ne.s32.totalorder %v803, 15
      %vm900 = vcmp.ne.s32.totalorder %v804, 15
      %v901 = vsel %vm869, 1.0, 0.0
      %v902 = vsel %vm870, 1.0, 0.0
      %v903 = vsel %vm871, 1.0, 0.0
      %v904 = vsel %vm872, 1.0, 0.0
      %v905 = vsel %vm873, 1.0, 0.0
      %v906 = vsel %vm874, 1.0, 0.0
      %v907 = vsel %vm875, 1.0, 0.0
      %v908 = vsel %vm876, 1.0, 0.0
      %v909 = vsel %vm877, 1.0, 0.0
      %v910 = vsel %vm878, 1.0, 0.0
      %v911 = vsel %vm879, 1.0, 0.0
      %v912 = vsel %vm880, 1.0, 0.0
      %v913 = vsel %vm881, 1.0, 0.0
      %v914 = vsel %vm882, 1.0, 0.0
      %v915 = vsel %vm883, 1.0, 0.0
      %v916 = vsel %vm884, 1.0, 0.0
      %v917 = vsel %vm885, 1.0, 0.0
      %v918 = vsel %vm886, 1.0, 0.0
      %v919 = vsel %vm887, 1.0, 0.0
      %v920 = vsel %vm888, 1.0, 0.0
      %v921 = vsel %vm889, 1.0, 0.0
      %v922 = vsel %vm890, 1.0, 0.0
      %v923 = vsel %vm891, 1.0, 0.0
      %v924 = vsel %vm892, 1.0, 0.0
      %v925 = vsel %vm893, 1.0, 0.0
      %v926 = vsel %vm894, 1.0, 0.0
      %v927 = vsel %vm895, 1.0, 0.0
      %v928 = vsel %vm896, 1.0, 0.0
      %v929 = vsel %vm897, 1.0, 0.0
      %v930 = vsel %vm898, 1.0, 0.0
      %v931 = vsel %vm899, 1.0, 0.0
      %v932 = vsel %vm900, 1.0, 0.0
      %v933 = vld [vmem:[#allocation2 + $0x7] sm:$0xff]
      %v934 = vld [vmem:[#allocation2 + $0xf] sm:$0xff]
      %v935 = vld [vmem:[#allocation2 + $0x17] sm:$0xff]
      %v936 = vld [vmem:[#allocation2 + $0x1f] sm:$0xff]
      %v937 = vld [vmem:[#allocation2 + $0x27] sm:$0xff]
      %v938 = vld [vmem:[#allocation2 + $0x2f] sm:$0xff]
      %v939 = vld [vmem:[#allocation2 + $0x37] sm:$0xff]
      %v940 = vld [vmem:[#allocation2 + $0x3f] sm:$0xff]
      %v941 = vld [vmem:[#allocation2 + $0x47] sm:$0xff]
      %v942 = vld [vmem:[#allocation2 + $0x4f] sm:$0xff]
      %v943 = vld [vmem:[#allocation2 + $0x57] sm:$0xff]
      %v944 = vld [vmem:[#allocation2 + $0x5f] sm:$0xff]
      %v945 = vld [vmem:[#allocation2 + $0x67] sm:$0xff]
      %v946 = vld [vmem:[#allocation2 + $0x6f] sm:$0xff]
      %v947 = vld [vmem:[#allocation2 + $0x77] sm:$0xff]
      %v948 = vld [vmem:[#allocation2 + $0x7f] sm:$0xff]
      %v949 = vld [vmem:[#allocation2 + $0x87] sm:$0xff]
      %v950 = vld [vmem:[#allocation2 + $0x8f] sm:$0xff]
      %v951 = vld [vmem:[#allocation2 + $0x97] sm:$0xff]
      %v952 = vld [vmem:[#allocation2 + $0x9f] sm:$0xff]
      %v953 = vld [vmem:[#allocation2 + $0xa7] sm:$0xff]
      %v954 = vld [vmem:[#allocation2 + $0xaf] sm:$0xff]
      %v955 = vld [vmem:[#allocation2 + $0xb7] sm:$0xff]
      %v956 = vld [vmem:[#allocation2 + $0xbf] sm:$0xff]
      %v957 = vld [vmem:[#allocation2 + $0xc7] sm:$0xff]
      %v958 = vld [vmem:[#allocation2 + $0xcf] sm:$0xff]
      %v959 = vld [vmem:[#allocation2 + $0xd7] sm:$0xff]
      %v960 = vld [vmem:[#allocation2 + $0xdf] sm:$0xff]
      %v961 = vld [vmem:[#allocation2 + $0xe7] sm:$0xff]
      %v962 = vld [vmem:[#allocation2 + $0xef] sm:$0xff]
      %v963 = vld [vmem:[#allocation2 + $0xf7] sm:$0xff]
      %v964 = vld [vmem:[#allocation2 + $0xff] sm:$0xff]
      %v965 = vpack.c.bf16 %v934, %v933
      %v966 = vpack.c.bf16 %v936, %v935
      %v967 = vpack.c.bf16 %v938, %v937
      %v968 = vpack.c.bf16 %v940, %v939
      %v969 = vpack.c.bf16 %v942, %v941
      %v970 = vpack.c.bf16 %v944, %v943
      %v971 = vpack.c.bf16 %v946, %v945
      %v972 = vpack.c.bf16 %v948, %v947
      %v973 = vpack.c.bf16 %v950, %v949
      %v974 = vpack.c.bf16 %v952, %v951
      %v975 = vpack.c.bf16 %v954, %v953
      %v976 = vpack.c.bf16 %v956, %v955
      %v977 = vpack.c.bf16 %v958, %v957
      %v978 = vpack.c.bf16 %v960, %v959
      %v979 = vpack.c.bf16 %v962, %v961
      %v980 = vpack.c.bf16 %v964, %v963
      %v981 = vld [vmem:[%s1] sm:$0xf]
      %v982 = vld [vmem:[#allocation2 + $0x107] sm:$0xff]
      %v983 = vld [vmem:[#allocation2 + $0x10f] sm:$0xff]
      %v984 = vpack.c.bf16 %v983, %v982
      %s985 = scalar_lea.vmem %s1, 12
      %v986 = vld [vmem:[%s985] sm:$0xf]
      %v988 = vsel %vm636, %v966, 0
      %v991 = vsel %vm636, %v967, 0
      %v994 = vsel %vm636, %v968, 0
      %v997 = vsel %vm636, %v969, 0
      %v1000 = vsel %vm636, %v970, 0
      %v1003 = vsel %vm636, %v971, 0
      %v1006 = vsel %vm636, %v972, 0
      %v1009 = vsel %vm636, %v973, 0
      %v1012 = vsel %vm636, %v974, 0
      %v1015 = vsel %vm636, %v975, 0
      %v1018 = vsel %vm636, %v976, 0
      %v1021 = vsel %vm636, %v977, 0
      %v1024 = vsel %vm636, %v978, 0
      %v1027 = vsel %vm636, %v979, 0
      %v1030 = vsel %vm636, %v980, 0
      %v1033 = vsel %vm636, %v984, 0
      %vm1035 = vcmask 1043456
      %v1037 = vsel %vm1035, %v986, 0
      %1039 = vmatprep.subr.bf16.mxu0 0
      %1040 = vmatpush1.bf16.msra.mxu0 0
      %1041 = vmatprep.subr.bf16.mxu0 0
      %1042 = vmatpush1.bf16.msra.mxu0 0
      %1043 = vmatprep.subr.bf16.mxu0 0
      %1044 = vmatpush1.bf16.msra.mxu0 0
      %1045 = vmatprep.subr.bf16.mxu0 0
      %1046 = vmatpush1.bf16.msra.mxu0 0
      %1047 = vmatprep.subr.bf16.mxu0 0
      %1048 = vmatpush1.bf16.msra.mxu0 0
      %1049 = vmatprep.subr.bf16.mxu0 0
      %1050 = vmatpush1.bf16.msra.mxu0 0
      %1051 = vmatprep.subr.bf16.mxu0 0
      %1052 = vmatpush1.bf16.msra.mxu0 0
      %1053 = vmatprep.subr.bf16.mxu0 0
      %1054 = vmatpush1.bf16.msra.mxu0 %v1037
      %1055 = vmatprep.subr.bf16.mxu0 0
      %1056 = vmatpush2.bf16.msra.mxu0 0
      %1057 = vmatprep.subr.bf16.mxu0 0
      %1058 = vmatpush2.bf16.msra.mxu0 0
      %1059 = vmatprep.subr.bf16.mxu0 0
      %1060 = vmatpush2.bf16.msra.mxu0 0
      %1061 = vmatprep.subr.bf16.mxu0 0
      %1062 = vmatpush2.bf16.msra.mxu0 0
      %1063 = vmatprep.subr.bf16.mxu0 0
      %1064 = vmatpush2.bf16.msra.mxu0 0
      %1065 = vmatprep.subr.bf16.mxu0 0
      %1066 = vmatpush2.bf16.msra.mxu0 0
      %1067 = vmatprep.subr.bf16.mxu0 0
      %1068 = vmatpush2.bf16.msra.mxu0 0
      %1069 = vmatprep.subr.bf16.mxu0 0
      %1070 = vmatpush2.bf16.msra.mxu0 0
      %1071 = vmatprep.mubr.bf16.mxu0 0
      %1072 = vmatmul.mubr.bf16.gmra.mxu0 %v988
      %v1073 = vpop.f32.mrf.mxu0
      %v1074 = vadd.f32 0.0, %v1073
      %v1075 = vpop.f32.mrf.mxu0
      %v1076 = vpop.f32.mrf.mxu0
      %v1077 = vadd.f32 0.0, %v1076
      %v1078 = vpop.f32.mrf.mxu0
      %1079 = vmatprep.mubr.bf16.mxu0 0
      %1080 = vmatmul.mubr.bf16.gmra.mxu0 %v991
      %v1081 = vpop.f32.mrf.mxu0
      %v1082 = vadd.f32 0.0, %v1081
      %v1083 = vpop.f32.mrf.mxu0
      %v1084 = vpop.f32.mrf.mxu0
      %v1085 = vadd.f32 0.0, %v1084
      %v1086 = vpop.f32.mrf.mxu0
      %1087 = vmatprep.mubr.bf16.mxu0 0
      %1088 = vmatmul.mubr.bf16.gmra.mxu0 %v994
      %v1089 = vpop.f32.mrf.mxu0
      %v1090 = vadd.f32 0.0, %v1089
      %v1091 = vpop.f32.mrf.mxu0
      %v1092 = vpop.f32.mrf.mxu0
      %v1093 = vadd.f32 0.0, %v1092
      %v1094 = vpop.f32.mrf.mxu0
      %1095 = vmatprep.mubr.bf16.mxu0 0
      %1096 = vmatmul.mubr.bf16.gmra.mxu0 %v997
      %v1097 = vpop.f32.mrf.mxu0
      %v1098 = vadd.f32 0.0, %v1097
      %v1099 = vpop.f32.mrf.mxu0
      %v1100 = vpop.f32.mrf.mxu0
      %v1101 = vadd.f32 0.0, %v1100
      %v1102 = vpop.f32.mrf.mxu0
      %1103 = vmatprep.mubr.bf16.mxu0 0
      %1104 = vmatmul.mubr.bf16.gmra.mxu0 %v1000
      %v1105 = vpop.f32.mrf.mxu0
      %v1106 = vadd.f32 0.0, %v1105
      %v1107 = vpop.f32.mrf.mxu0
      %v1108 = vpop.f32.mrf.mxu0
      %v1109 = vadd.f32 0.0, %v1108
      %v1110 = vpop.f32.mrf.mxu0
      %1111 = vmatprep.mubr.bf16.mxu0 0
      %1112 = vmatmul.mubr.bf16.gmra.mxu0 %v1003
      %v1113 = vpop.f32.mrf.mxu0
      %v1114 = vadd.f32 0.0, %v1113
      %v1115 = vpop.f32.mrf.mxu0
      %v1116 = vpop.f32.mrf.mxu0
      %v1117 = vadd.f32 0.0, %v1116
      %v1118 = vpop.f32.mrf.mxu0
      %1119 = vmatprep.mubr.bf16.mxu0 0
      %1120 = vmatmul.mubr.bf16.gmra.mxu0 %v1006
      %v1121 = vpop.f32.mrf.mxu0
      %v1122 = vadd.f32 0.0, %v1121
      %v1123 = vpop.f32.mrf.mxu0
      %v1124 = vpop.f32.mrf.mxu0
      %v1125 = vadd.f32 0.0, %v1124
      %v1126 = vpop.f32.mrf.mxu0
      %1127 = vmatprep.mubr.bf16.mxu0 0
      %1128 = vmatmul.mubr.bf16.gmra.mxu0 %v1009
      %v1129 = vpop.f32.mrf.mxu0
      %v1130 = vadd.f32 0.0, %v1129
      %v1131 = vpop.f32.mrf.mxu0
      %v1132 = vpop.f32.mrf.mxu0
      %v1133 = vadd.f32 0.0, %v1132
      %v1134 = vpop.f32.mrf.mxu0
      %1135 = vmatprep.mubr.bf16.mxu0 0
      %1136 = vmatmul.mubr.bf16.gmra.mxu0 %v1012
      %v1137 = vpop.f32.mrf.mxu0
      %v1138 = vadd.f32 0.0, %v1137
      %v1139 = vpop.f32.mrf.mxu0
      %v1140 = vpop.f32.mrf.mxu0
      %v1141 = vadd.f32 0.0, %v1140
      %v1142 = vpop.f32.mrf.mxu0
      %1143 = vmatprep.mubr.bf16.mxu0 0
      %1144 = vmatmul.mubr.bf16.gmra.mxu0 %v1015
      %v1145 = vpop.f32.mrf.mxu0
      %v1146 = vadd.f32 0.0, %v1145
      %v1147 = vpop.f32.mrf.mxu0
      %v1148 = vpop.f32.mrf.mxu0
      %v1149 = vadd.f32 0.0, %v1148
      %v1150 = vpop.f32.mrf.mxu0
      %1151 = vmatprep.mubr.bf16.mxu0 0
      %1152 = vmatmul.mubr.bf16.gmra.mxu0 %v1018
      %v1153 = vpop.f32.mrf.mxu0
      %v1154 = vadd.f32 0.0, %v1153
      %v1155 = vpop.f32.mrf.mxu0
      %v1156 = vpop.f32.mrf.mxu0
      %v1157 = vadd.f32 0.0, %v1156
      %v1158 = vpop.f32.mrf.mxu0
      %1159 = vmatprep.mubr.bf16.mxu0 0
      %1160 = vmatmul.mubr.bf16.gmra.mxu0 %v1021
      %v1161 = vpop.f32.mrf.mxu0
      %v1162 = vadd.f32 0.0, %v1161
      %v1163 = vpop.f32.mrf.mxu0
      %v1164 = vpop.f32.mrf.mxu0
      %v1165 = vadd.f32 0.0, %v1164
      %v1166 = vpop.f32.mrf.mxu0
      %1167 = vmatprep.mubr.bf16.mxu0 0
      %1168 = vmatmul.mubr.bf16.gmra.mxu0 %v1024
      %v1169 = vpop.f32.mrf.mxu0
      %v1170 = vadd.f32 0.0, %v1169
      %v1171 = vpop.f32.mrf.mxu0
      %v1172 = vpop.f32.mrf.mxu0
      %v1173 = vadd.f32 0.0, %v1172
      %v1174 = vpop.f32.mrf.mxu0
      %1175 = vmatprep.mubr.bf16.mxu0 0
      %1176 = vmatmul.mubr.bf16.gmra.mxu0 %v1027
      %v1177 = vpop.f32.mrf.mxu0
      %v1178 = vadd.f32 0.0, %v1177
      %v1179 = vpop.f32.mrf.mxu0
      %v1180 = vpop.f32.mrf.mxu0
      %v1181 = vadd.f32 0.0, %v1180
      %v1182 = vpop.f32.mrf.mxu0
      %1183 = vmatprep.mubr.bf16.mxu0 0
      %1184 = vmatmul.mubr.bf16.gmra.mxu0 %v1030
      %v1185 = vpop.f32.mrf.mxu0
      %v1186 = vadd.f32 0.0, %v1185
      %v1187 = vpop.f32.mrf.mxu0
      %v1188 = vpop.f32.mrf.mxu0
      %v1189 = vadd.f32 0.0, %v1188
      %v1190 = vpop.f32.mrf.mxu0
      %1191 = vmatprep.mubr.bf16.mxu0 0
      %1192 = vmatmul.mubr.bf16.gmra.mxu0 %v1033
      %v1193 = vpop.f32.mrf.mxu0
      %v1194 = vadd.f32 0.0, %v1193
      %v1195 = vpop.f32.mrf.mxu0
      %v1196 = vpop.f32.mrf.mxu0
      %v1197 = vadd.f32 0.0, %v1196
      %v1198 = vpop.f32.mrf.mxu0
      %1199 = vdwg.mxu0
      %v1201 = vsel %vm636, %v965, 0
      %v1204 = vsel %vm1035, %v981, 0
      %1206 = vmatprep.subr.bf16.mxu0 0
      %1207 = vmatpush1.bf16.msra.mxu0 0
      %1208 = vmatprep.subr.bf16.mxu0 0
      %1209 = vmatpush1.bf16.msra.mxu0 0
      %1210 = vmatprep.subr.bf16.mxu0 0
      %1211 = vmatpush1.bf16.msra.mxu0 0
      %1212 = vmatprep.subr.bf16.mxu0 0
      %1213 = vmatpush1.bf16.msra.mxu0 0
      %1214 = vmatprep.subr.bf16.mxu0 0
      %1215 = vmatpush1.bf16.msra.mxu0 0
      %1216 = vmatprep.subr.bf16.mxu0 0
      %1217 = vmatpush1.bf16.msra.mxu0 0
      %1218 = vmatprep.subr.bf16.mxu0 0
      %1219 = vmatpush1.bf16.msra.mxu0 0
      %1220 = vmatprep.subr.bf16.mxu0 0
      %1221 = vmatpush1.bf16.msra.mxu0 %v1204
      %1222 = vmatprep.subr.bf16.mxu0 0
      %1223 = vmatpush2.bf16.msra.mxu0 0
      %1224 = vmatprep.subr.bf16.mxu0 0
      %1225 = vmatpush2.bf16.msra.mxu0 0
      %1226 = vmatprep.subr.bf16.mxu0 0
      %1227 = vmatpush2.bf16.msra.mxu0 0
      %1228 = vmatprep.subr.bf16.mxu0 0
      %1229 = vmatpush2.bf16.msra.mxu0 0
      %1230 = vmatprep.subr.bf16.mxu0 0
      %1231 = vmatpush2.bf16.msra.mxu0 0
      %1232 = vmatprep.subr.bf16.mxu0 0
      %1233 = vmatpush2.bf16.msra.mxu0 0
      %1234 = vmatprep.subr.bf16.mxu0 0
      %1235 = vmatpush2.bf16.msra.mxu0 0
      %1236 = vmatprep.subr.bf16.mxu0 0
      %1237 = vmatpush2.bf16.msra.mxu0 0
      %1238 = vmatprep.mubr.bf16.mxu0 0
      %1239 = vmatmul.mubr.bf16.gmra.mxu0 %v1201
      %v1240 = vpop.f32.mrf.mxu0
      %v1241 = vadd.f32 %v1074, %v1240
      %v1242 = vpop.f32.mrf.mxu0
      %v1243 = vpop.f32.mrf.mxu0
      %v1244 = vadd.f32 %v1077, %v1243
      %v1245 = vpop.f32.mrf.mxu0
      %1246 = vmatprep.mubr.bf16.mxu0 0
      %1247 = vmatmul.mubr.bf16.gmra.mxu0 %v988
      %v1248 = vpop.f32.mrf.mxu0
      %v1249 = vadd.f32 %v1082, %v1248
      %v1250 = vpop.f32.mrf.mxu0
      %v1251 = vpop.f32.mrf.mxu0
      %v1252 = vadd.f32 %v1085, %v1251
      %v1253 = vpop.f32.mrf.mxu0
      %1254 = vmatprep.mubr.bf16.mxu0 0
      %1255 = vmatmul.mubr.bf16.gmra.mxu0 %v991
      %v1256 = vpop.f32.mrf.mxu0
      %v1257 = vadd.f32 %v1090, %v1256
      %v1258 = vpop.f32.mrf.mxu0
      %v1259 = vpop.f32.mrf.mxu0
      %v1260 = vadd.f32 %v1093, %v1259
      %v1261 = vpop.f32.mrf.mxu0
      %1262 = vmatprep.mubr.bf16.mxu0 0
      %1263 = vmatmul.mubr.bf16.gmra.mxu0 %v994
      %v1264 = vpop.f32.mrf.mxu0
      %v1265 = vadd.f32 %v1098, %v1264
      %v1266 = vpop.f32.mrf.mxu0
      %v1267 = vpop.f32.mrf.mxu0
      %v1268 = vadd.f32 %v1101, %v1267
      %v1269 = vpop.f32.mrf.mxu0
      %1270 = vmatprep.mubr.bf16.mxu0 0
      %1271 = vmatmul.mubr.bf16.gmra.mxu0 %v997
      %v1272 = vpop.f32.mrf.mxu0
      %v1273 = vadd.f32 %v1106, %v1272
      %v1274 = vpop.f32.mrf.mxu0
      %v1275 = vpop.f32.mrf.mxu0
      %v1276 = vadd.f32 %v1109, %v1275
      %v1277 = vpop.f32.mrf.mxu0
      %1278 = vmatprep.mubr.bf16.mxu0 0
      %1279 = vmatmul.mubr.bf16.gmra.mxu0 %v1000
      %v1280 = vpop.f32.mrf.mxu0
      %v1281 = vadd.f32 %v1114, %v1280
      %v1282 = vpop.f32.mrf.mxu0
      %v1283 = vpop.f32.mrf.mxu0
      %v1284 = vadd.f32 %v1117, %v1283
      %v1285 = vpop.f32.mrf.mxu0
      %1286 = vmatprep.mubr.bf16.mxu0 0
      %1287 = vmatmul.mubr.bf16.gmra.mxu0 %v1003
      %v1288 = vpop.f32.mrf.mxu0
      %v1289 = vadd.f32 %v1122, %v1288
      %v1290 = vpop.f32.mrf.mxu0
      %v1291 = vpop.f32.mrf.mxu0
      %v1292 = vadd.f32 %v1125, %v1291
      %v1293 = vpop.f32.mrf.mxu0
      %1294 = vmatprep.mubr.bf16.mxu0 0
      %1295 = vmatmul.mubr.bf16.gmra.mxu0 %v1006
      %v1296 = vpop.f32.mrf.mxu0
      %v1297 = vadd.f32 %v1130, %v1296
      %v1298 = vpop.f32.mrf.mxu0
      %v1299 = vpop.f32.mrf.mxu0
      %v1300 = vadd.f32 %v1133, %v1299
      %v1301 = vpop.f32.mrf.mxu0
      %1302 = vmatprep.mubr.bf16.mxu0 0
      %1303 = vmatmul.mubr.bf16.gmra.mxu0 %v1009
      %v1304 = vpop.f32.mrf.mxu0
      %v1305 = vadd.f32 %v1138, %v1304
      %v1306 = vpop.f32.mrf.mxu0
      %v1307 = vpop.f32.mrf.mxu0
      %v1308 = vadd.f32 %v1141, %v1307
      %v1309 = vpop.f32.mrf.mxu0
      %1310 = vmatprep.mubr.bf16.mxu0 0
      %1311 = vmatmul.mubr.bf16.gmra.mxu0 %v1012
      %v1312 = vpop.f32.mrf.mxu0
      %v1313 = vadd.f32 %v1146, %v1312
      %v1314 = vpop.f32.mrf.mxu0
      %v1315 = vpop.f32.mrf.mxu0
      %v1316 = vadd.f32 %v1149, %v1315
      %v1317 = vpop.f32.mrf.mxu0
      %1318 = vmatprep.mubr.bf16.mxu0 0
      %1319 = vmatmul.mubr.bf16.gmra.mxu0 %v1015
      %v1320 = vpop.f32.mrf.mxu0
      %v1321 = vadd.f32 %v1154, %v1320
      %v1322 = vpop.f32.mrf.mxu0
      %v1323 = vpop.f32.mrf.mxu0
      %v1324 = vadd.f32 %v1157, %v1323
      %v1325 = vpop.f32.mrf.mxu0
      %1326 = vmatprep.mubr.bf16.mxu0 0
      %1327 = vmatmul.mubr.bf16.gmra.mxu0 %v1018
      %v1328 = vpop.f32.mrf.mxu0
      %v1329 = vadd.f32 %v1162, %v1328
      %v1330 = vpop.f32.mrf.mxu0
      %v1331 = vpop.f32.mrf.mxu0
      %v1332 = vadd.f32 %v1165, %v1331
      %v1333 = vpop.f32.mrf.mxu0
      %1334 = vmatprep.mubr.bf16.mxu0 0
      %1335 = vmatmul.mubr.bf16.gmra.mxu0 %v1021
      %v1336 = vpop.f32.mrf.mxu0
      %v1337 = vadd.f32 %v1170, %v1336
      %v1338 = vpop.f32.mrf.mxu0
      %v1339 = vpop.f32.mrf.mxu0
      %v1340 = vadd.f32 %v1173, %v1339
      %v1341 = vpop.f32.mrf.mxu0
      %1342 = vmatprep.mubr.bf16.mxu0 0
      %1343 = vmatmul.mubr.bf16.gmra.mxu0 %v1024
      %v1344 = vpop.f32.mrf.mxu0
      %v1345 = vadd.f32 %v1178, %v1344
      %v1346 = vpop.f32.mrf.mxu0
      %v1347 = vpop.f32.mrf.mxu0
      %v1348 = vadd.f32 %v1181, %v1347
      %v1349 = vpop.f32.mrf.mxu0
      %1350 = vmatprep.mubr.bf16.mxu0 0
      %1351 = vmatmul.mubr.bf16.gmra.mxu0 %v1027
      %v1352 = vpop.f32.mrf.mxu0
      %v1353 = vadd.f32 %v1186, %v1352
      %v1354 = vpop.f32.mrf.mxu0
      %v1355 = vpop.f32.mrf.mxu0
      %v1356 = vadd.f32 %v1189, %v1355
      %v1357 = vpop.f32.mrf.mxu0
      %1358 = vmatprep.mubr.bf16.mxu0 0
      %1359 = vmatmul.mubr.bf16.gmra.mxu0 %v1030
      %v1360 = vpop.f32.mrf.mxu0
      %v1361 = vadd.f32 %v1194, %v1360
      %v1362 = vpop.f32.mrf.mxu0
      %v1363 = vpop.f32.mrf.mxu0
      %v1364 = vadd.f32 %v1197, %v1363
      %v1365 = vpop.f32.mrf.mxu0
      %1366 = vdwg.mxu0
      %v1367 = vld [vmem:[#allocation2 + $0x27] sm:$0xff]
      %v1368 = vld [vmem:[#allocation2 + $0x2f] sm:$0xff]
      %v1369 = vld [vmem:[#allocation2 + $0x37] sm:$0xff]
      %v1370 = vld [vmem:[#allocation2 + $0x3f] sm:$0xff]
      %v1371 = vld [vmem:[#allocation2 + $0x47] sm:$0xff]
      %v1372 = vld [vmem:[#allocation2 + $0x4f] sm:$0xff]
      %v1373 = vld [vmem:[#allocation2 + $0x57] sm:$0xff]
      %v1374 = vld [vmem:[#allocation2 + $0x5f] sm:$0xff]
      %v1375 = vld [vmem:[#allocation2 + $0x67] sm:$0xff]
      %v1376 = vld [vmem:[#allocation2 + $0x6f] sm:$0xff]
      %v1377 = vld [vmem:[#allocation2 + $0x77] sm:$0xff]
      %v1378 = vld [vmem:[#allocation2 + $0x7f] sm:$0xff]
      %v1379 = vld [vmem:[#allocation2 + $0x87] sm:$0xff]
      %v1380 = vld [vmem:[#allocation2 + $0x8f] sm:$0xff]
      %v1381 = vld [vmem:[#allocation2 + $0x97] sm:$0xff]
      %v1382 = vld [vmem:[#allocation2 + $0x9f] sm:$0xff]
      %v1383 = vld [vmem:[#allocation2 + $0xa7] sm:$0xff]
      %v1384 = vld [vmem:[#allocation2 + $0xaf] sm:$0xff]
      %v1385 = vld [vmem:[#allocation2 + $0xb7] sm:$0xff]
      %v1386 = vld [vmem:[#allocation2 + $0xbf] sm:$0xff]
      %v1387 = vld [vmem:[#allocation2 + $0xc7] sm:$0xff]
      %v1388 = vld [vmem:[#allocation2 + $0xcf] sm:$0xff]
      %v1389 = vld [vmem:[#allocation2 + $0xd7] sm:$0xff]
      %v1390 = vld [vmem:[#allocation2 + $0xdf] sm:$0xff]
      %v1391 = vld [vmem:[#allocation2 + $0xe7] sm:$0xff]
      %v1392 = vld [vmem:[#allocation2 + $0xef] sm:$0xff]
      %v1393 = vld [vmem:[#allocation2 + $0xf7] sm:$0xff]
      %v1394 = vld [vmem:[#allocation2 + $0xff] sm:$0xff]
      %v1395 = vld [vmem:[#allocation2 + $0x107] sm:$0xff]
      %v1396 = vld [vmem:[#allocation2 + $0x10f] sm:$0xff]
      %v1397 = vld [vmem:[#allocation2 + $0x117] sm:$0xff]
      %v1398 = vld [vmem:[#allocation2 + $0x11f] sm:$0xff]
      %v1399 = vpack.c.bf16 %v1368, %v1367
      %v1400 = vpack.c.bf16 %v1370, %v1369
      %v1401 = vpack.c.bf16 %v1372, %v1371
      %v1402 = vpack.c.bf16 %v1374, %v1373
      %v1403 = vpack.c.bf16 %v1376, %v1375
      %v1404 = vpack.c.bf16 %v1378, %v1377
      %v1405 = vpack.c.bf16 %v1380, %v1379
      %v1406 = vpack.c.bf16 %v1382, %v1381
      %v1407 = vpack.c.bf16 %v1384, %v1383
      %v1408 = vpack.c.bf16 %v1386, %v1385
      %v1409 = vpack.c.bf16 %v1388, %v1387
      %v1410 = vpack.c.bf16 %v1390, %v1389
      %v1411 = vpack.c.bf16 %v1392, %v1391
      %v1412 = vpack.c.bf16 %v1394, %v1393
      %v1413 = vpack.c.bf16 %v1396, %v1395
      %v1414 = vpack.c.bf16 %v1398, %v1397
      %s1415 = scalar_lea.vmem %s1, 24
      %v1416 = vld [vmem:[%s1415] sm:$0xf]
      %v1418 = vsel %vm636, %v1399, 0
      %v1421 = vsel %vm636, %v1400, 0
      %v1424 = vsel %vm636, %v1401, 0
      %v1427 = vsel %vm636, %v1402, 0
      %v1430 = vsel %vm636, %v1403, 0
      %v1433 = vsel %vm636, %v1404, 0
      %v1436 = vsel %vm636, %v1405, 0
      %v1439 = vsel %vm636, %v1406, 0
      %v1442 = vsel %vm636, %v1407, 0
      %v1445 = vsel %vm636, %v1408, 0
      %v1448 = vsel %vm636, %v1409, 0
      %v1451 = vsel %vm636, %v1410, 0
      %v1454 = vsel %vm636, %v1411, 0
      %v1457 = vsel %vm636, %v1412, 0
      %v1460 = vsel %vm636, %v1413, 0
      %v1463 = vsel %vm636, %v1414, 0
      %v1466 = vsel %vm1035, %v1416, 0
      %1468 = vmatprep.subr.bf16.mxu0 0
      %1469 = vmatpush1.bf16.msra.mxu0 0
      %1470 = vmatprep.subr.bf16.mxu0 0
      %1471 = vmatpush1.bf16.msra.mxu0 0
      %1472 = vmatprep.subr.bf16.mxu0 0
      %1473 = vmatpush1.bf16.msra.mxu0 0
      %1474 = vmatprep.subr.bf16.mxu0 0
      %1475 = vmatpush1.bf16.msra.mxu0 0
      %1476 = vmatprep.subr.bf16.mxu0 0
      %1477 = vmatpush1.bf16.msra.mxu0 0
      %1478 = vmatprep.subr.bf16.mxu0 0
      %1479 = vmatpush1.bf16.msra.mxu0 0
      %1480 = vmatprep.subr.bf16.mxu0 0
      %1481 = vmatpush1.bf16.msra.mxu0 0
      %1482 = vmatprep.subr.bf16.mxu0 0
      %1483 = vmatpush1.bf16.msra.mxu0 %v1466
      %1484 = vmatprep.subr.bf16.mxu0 0
      %1485 = vmatpush2.bf16.msra.mxu0 0
      %1486 = vmatprep.subr.bf16.mxu0 0
      %1487 = vmatpush2.bf16.msra.mxu0 0
      %1488 = vmatprep.subr.bf16.mxu0 0
      %1489 = vmatpush2.bf16.msra.mxu0 0
      %1490 = vmatprep.subr.bf16.mxu0 0
      %1491 = vmatpush2.bf16.msra.mxu0 0
      %1492 = vmatprep.subr.bf16.mxu0 0
      %1493 = vmatpush2.bf16.msra.mxu0 0
      %1494 = vmatprep.subr.bf16.mxu0 0
      %1495 = vmatpush2.bf16.msra.mxu0 0
      %1496 = vmatprep.subr.bf16.mxu0 0
      %1497 = vmatpush2.bf16.msra.mxu0 0
      %1498 = vmatprep.subr.bf16.mxu0 0
      %1499 = vmatpush2.bf16.msra.mxu0 0
      %1500 = vmatprep.mubr.bf16.mxu0 0
      %1501 = vmatmul.mubr.bf16.gmra.mxu0 %v1418
      %v1502 = vpop.f32.mrf.mxu0
      %v1503 = vadd.f32 0.0, %v1502
      %v1504 = vpop.f32.mrf.mxu0
      %v1505 = vpop.f32.mrf.mxu0
      %v1506 = vadd.f32 0.0, %v1505
      %v1507 = vpop.f32.mrf.mxu0
      %1508 = vmatprep.mubr.bf16.mxu0 0
      %1509 = vmatmul.mubr.bf16.gmra.mxu0 %v1421
      %v1510 = vpop.f32.mrf.mxu0
      %v1511 = vadd.f32 0.0, %v1510
      %v1512 = vpop.f32.mrf.mxu0
      %v1513 = vpop.f32.mrf.mxu0
      %v1514 = vadd.f32 0.0, %v1513
      %v1515 = vpop.f32.mrf.mxu0
      %1516 = vmatprep.mubr.bf16.mxu0 0
      %1517 = vmatmul.mubr.bf16.gmra.mxu0 %v1424
      %v1518 = vpop.f32.mrf.mxu0
      %v1519 = vadd.f32 0.0, %v1518
      %v1520 = vpop.f32.mrf.mxu0
      %v1521 = vpop.f32.mrf.mxu0
      %v1522 = vadd.f32 0.0, %v1521
      %v1523 = vpop.f32.mrf.mxu0
      %1524 = vmatprep.mubr.bf16.mxu0 0
      %1525 = vmatmul.mubr.bf16.gmra.mxu0 %v1427
      %v1526 = vpop.f32.mrf.mxu0
      %v1527 = vadd.f32 0.0, %v1526
      %v1528 = vpop.f32.mrf.mxu0
      %v1529 = vpop.f32.mrf.mxu0
      %v1530 = vadd.f32 0.0, %v1529
      %v1531 = vpop.f32.mrf.mxu0
      %1532 = vmatprep.mubr.bf16.mxu0 0
      %1533 = vmatmul.mubr.bf16.gmra.mxu0 %v1430
      %v1534 = vpop.f32.mrf.mxu0
      %v1535 = vadd.f32 0.0, %v1534
      %v1536 = vpop.f32.mrf.mxu0
      %v1537 = vpop.f32.mrf.mxu0
      %v1538 = vadd.f32 0.0, %v1537
      %v1539 = vpop.f32.mrf.mxu0
      %1540 = vmatprep.mubr.bf16.mxu0 0
      %1541 = vmatmul.mubr.bf16.gmra.mxu0 %v1433
      %v1542 = vpop.f32.mrf.mxu0
      %v1543 = vadd.f32 0.0, %v1542
      %v1544 = vpop.f32.mrf.mxu0
      %v1545 = vpop.f32.mrf.mxu0
      %v1546 = vadd.f32 0.0, %v1545
      %v1547 = vpop.f32.mrf.mxu0
      %1548 = vmatprep.mubr.bf16.mxu0 0
      %1549 = vmatmul.mubr.bf16.gmra.mxu0 %v1436
      %v1550 = vpop.f32.mrf.mxu0
      %v1551 = vadd.f32 0.0, %v1550
      %v1552 = vpop.f32.mrf.mxu0
      %v1553 = vpop.f32.mrf.mxu0
      %v1554 = vadd.f32 0.0, %v1553
      %v1555 = vpop.f32.mrf.mxu0
      %1556 = vmatprep.mubr.bf16.mxu0 0
      %1557 = vmatmul.mubr.bf16.gmra.mxu0 %v1439
      %v1558 = vpop.f32.mrf.mxu0
      %v1559 = vadd.f32 0.0, %v1558
      %v1560 = vpop.f32.mrf.mxu0
      %v1561 = vpop.f32.mrf.mxu0
      %v1562 = vadd.f32 0.0, %v1561
      %v1563 = vpop.f32.mrf.mxu0
      %1564 = vmatprep.mubr.bf16.mxu0 0
      %1565 = vmatmul.mubr.bf16.gmra.mxu0 %v1442
      %v1566 = vpop.f32.mrf.mxu0
      %v1567 = vadd.f32 0.0, %v1566
      %v1568 = vpop.f32.mrf.mxu0
      %v1569 = vpop.f32.mrf.mxu0
      %v1570 = vadd.f32 0.0, %v1569
      %v1571 = vpop.f32.mrf.mxu0
      %1572 = vmatprep.mubr.bf16.mxu0 0
      %1573 = vmatmul.mubr.bf16.gmra.mxu0 %v1445
      %v1574 = vpop.f32.mrf.mxu0
      %v1575 = vadd.f32 0.0, %v1574
      %v1576 = vpop.f32.mrf.mxu0
      %v1577 = vpop.f32.mrf.mxu0
      %v1578 = vadd.f32 0.0, %v1577
      %v1579 = vpop.f32.mrf.mxu0
      %1580 = vmatprep.mubr.bf16.mxu0 0
      %1581 = vmatmul.mubr.bf16.gmra.mxu0 %v1448
      %v1582 = vpop.f32.mrf.mxu0
      %v1583 = vadd.f32 0.0, %v1582
      %v1584 = vpop.f32.mrf.mxu0
      %v1585 = vpop.f32.mrf.mxu0
      %v1586 = vadd.f32 0.0, %v1585
      %v1587 = vpop.f32.mrf.mxu0
      %1588 = vmatprep.mubr.bf16.mxu0 0
      %1589 = vmatmul.mubr.bf16.gmra.mxu0 %v1451
      %v1590 = vpop.f32.mrf.mxu0
      %v1591 = vadd.f32 0.0, %v1590
      %v1592 = vpop.f32.mrf.mxu0
      %v1593 = vpop.f32.mrf.mxu0
      %v1594 = vadd.f32 0.0, %v1593
      %v1595 = vpop.f32.mrf.mxu0
      %1596 = vmatprep.mubr.bf16.mxu0 0
      %1597 = vmatmul.mubr.bf16.gmra.mxu0 %v1454
      %v1598 = vpop.f32.mrf.mxu0
      %v1599 = vadd.f32 0.0, %v1598
      %v1600 = vpop.f32.mrf.mxu0
      %v1601 = vpop.f32.mrf.mxu0
      %v1602 = vadd.f32 0.0, %v1601
      %v1603 = vpop.f32.mrf.mxu0
      %1604 = vmatprep.mubr.bf16.mxu0 0
      %1605 = vmatmul.mubr.bf16.gmra.mxu0 %v1457
      %v1606 = vpop.f32.mrf.mxu0
      %v1607 = vadd.f32 0.0, %v1606
      %v1608 = vpop.f32.mrf.mxu0
      %v1609 = vpop.f32.mrf.mxu0
      %v1610 = vadd.f32 0.0, %v1609
      %v1611 = vpop.f32.mrf.mxu0
      %1612 = vmatprep.mubr.bf16.mxu0 0
      %1613 = vmatmul.mubr.bf16.gmra.mxu0 %v1460
      %v1614 = vpop.f32.mrf.mxu0
      %v1615 = vadd.f32 0.0, %v1614
      %v1616 = vpop.f32.mrf.mxu0
      %v1617 = vpop.f32.mrf.mxu0
      %v1618 = vadd.f32 0.0, %v1617
      %v1619 = vpop.f32.mrf.mxu0
      %1620 = vmatprep.mubr.bf16.mxu0 0
      %1621 = vmatmul.mubr.bf16.gmra.mxu0 %v1463
      %v1622 = vpop.f32.mrf.mxu0
      %v1623 = vadd.f32 0.0, %v1622
      %v1624 = vpop.f32.mrf.mxu0
      %v1625 = vpop.f32.mrf.mxu0
      %v1626 = vadd.f32 0.0, %v1625
      %v1627 = vpop.f32.mrf.mxu0
      %1628 = vdwg.mxu0
      %v1629 = vadd.f32 %v1241, %v1503
      %v1630 = vadd.f32 %v1244, %v1506
      %v1631 = vadd.f32 %v1249, %v1511
      %v1632 = vadd.f32 %v1252, %v1514
      %v1633 = vadd.f32 %v1257, %v1519
      %v1634 = vadd.f32 %v1260, %v1522
      %v1635 = vadd.f32 %v1265, %v1527
      %v1636 = vadd.f32 %v1268, %v1530
      %v1637 = vadd.f32 %v1273, %v1535
      %v1638 = vadd.f32 %v1276, %v1538
      %v1639 = vadd.f32 %v1281, %v1543
      %v1640 = vadd.f32 %v1284, %v1546
      %v1641 = vadd.f32 %v1289, %v1551
      %v1642 = vadd.f32 %v1292, %v1554
      %v1643 = vadd.f32 %v1297, %v1559
      %v1644 = vadd.f32 %v1300, %v1562
      %v1645 = vadd.f32 %v1305, %v1567
      %v1646 = vadd.f32 %v1308, %v1570
      %v1647 = vadd.f32 %v1313, %v1575
      %v1648 = vadd.f32 %v1316, %v1578
      %v1649 = vadd.f32 %v1321, %v1583
      %v1650 = vadd.f32 %v1324, %v1586
      %v1651 = vadd.f32 %v1329, %v1591
      %v1652 = vadd.f32 %v1332, %v1594
      %v1653 = vadd.f32 %v1337, %v1599
      %v1654 = vadd.f32 %v1340, %v1602
      %v1655 = vadd.f32 %v1345, %v1607
      %v1656 = vadd.f32 %v1348, %v1610
      %v1657 = vadd.f32 %v1353, %v1615
      %v1658 = vadd.f32 %v1356, %v1618
      %v1659 = vadd.f32 %v1361, %v1623
      %v1660 = vadd.f32 %v1364, %v1626
      %v1661 = vmul.f32 %v1629, %v837
      %v1662 = vmul.f32 %v1630, %v838
      %v1663 = vmul.f32 %v1631, %v839
      %v1664 = vmul.f32 %v1632, %v840
      %v1665 = vmul.f32 %v1633, %v841
      %v1666 = vmul.f32 %v1634, %v842
      %v1667 = vmul.f32 %v1635, %v843
      %v1668 = vmul.f32 %v1636, %v844
      %v1669 = vmul.f32 %v1637, %v845
      %v1670 = vmul.f32 %v1638, %v846
      %v1671 = vmul.f32 %v1639, %v847
      %v1672 = vmul.f32 %v1640, %v848
      %v1673 = vmul.f32 %v1641, %v849
      %v1674 = vmul.f32 %v1642, %v850
      %v1675 = vmul.f32 %v1643, %v851
      %v1676 = vmul.f32 %v1644, %v852
      %v1677 = vmul.f32 %v1645, %v853
      %v1678 = vmul.f32 %v1646, %v854
      %v1679 = vmul.f32 %v1647, %v855
      %v1680 = vmul.f32 %v1648, %v856
      %v1681 = vmul.f32 %v1649, %v857
      %v1682 = vmul.f32 %v1650, %v858
      %v1683 = vmul.f32 %v1651, %v859
      %v1684 = vmul.f32 %v1652, %v860
      %v1685 = vmul.f32 %v1653, %v861
      %v1686 = vmul.f32 %v1654, %v862
      %v1687 = vmul.f32 %v1655, %v863
      %v1688 = vmul.f32 %v1656, %v864
      %v1689 = vmul.f32 %v1657, %v865
      %v1690 = vmul.f32 %v1658, %v866
      %v1691 = vmul.f32 %v1659, %v867
      %v1692 = vmul.f32 %v1660, %v868
      %v1693 = vld [vmem:[#allocation2 + $0x8] sm:$0xff]
      %v1694 = vld [vmem:[#allocation2 + $0x10] sm:$0xff]
      %v1695 = vld [vmem:[#allocation2 + $0x18] sm:$0xff]
      %v1696 = vld [vmem:[#allocation2 + $0x20] sm:$0xff]
      %v1697 = vld [vmem:[#allocation2 + $0x28] sm:$0xff]
      %v1698 = vld [vmem:[#allocation2 + $0x30] sm:$0xff]
      %v1699 = vld [vmem:[#allocation2 + $0x38] sm:$0xff]
      %v1700 = vld [vmem:[#allocation2 + $0x40] sm:$0xff]
      %v1701 = vld [vmem:[#allocation2 + $0x48] sm:$0xff]
      %v1702 = vld [vmem:[#allocation2 + $0x50] sm:$0xff]
      %v1703 = vld [vmem:[#allocation2 + $0x58] sm:$0xff]
      %v1704 = vld [vmem:[#allocation2 + $0x60] sm:$0xff]
      %v1705 = vld [vmem:[#allocation2 + $0x68] sm:$0xff]
      %v1706 = vld [vmem:[#allocation2 + $0x70] sm:$0xff]
      %v1707 = vld [vmem:[#allocation2 + $0x78] sm:$0xff]
      %v1708 = vld [vmem:[#allocation2 + $0x80] sm:$0xff]
      %v1709 = vld [vmem:[#allocation2 + $0x88] sm:$0xff]
      %v1710 = vld [vmem:[#allocation2 + $0x90] sm:$0xff]
      %v1711 = vld [vmem:[#allocation2 + $0x98] sm:$0xff]
      %v1712 = vld [vmem:[#allocation2 + $0xa0] sm:$0xff]
      %v1713 = vld [vmem:[#allocation2 + $0xa8] sm:$0xff]
      %v1714 = vld [vmem:[#allocation2 + $0xb0] sm:$0xff]
      %v1715 = vld [vmem:[#allocation2 + $0xb8] sm:$0xff]
      %v1716 = vld [vmem:[#allocation2 + $0xc0] sm:$0xff]
      %v1717 = vld [vmem:[#allocation2 + $0xc8] sm:$0xff]
      %v1718 = vld [vmem:[#allocation2 + $0xd0] sm:$0xff]
      %v1719 = vld [vmem:[#allocation2 + $0xd8] sm:$0xff]
      %v1720 = vld [vmem:[#allocation2 + $0xe0] sm:$0xff]
      %v1721 = vld [vmem:[#allocation2 + $0xe8] sm:$0xff]
      %v1722 = vld [vmem:[#allocation2 + $0xf0] sm:$0xff]
      %v1723 = vld [vmem:[#allocation2 + $0xf8] sm:$0xff]
      %v1724 = vld [vmem:[#allocation2 + $0x100] sm:$0xff]
      %v1725 = vpack.c.bf16 %v1694, %v1693
      %v1726 = vpack.c.bf16 %v1696, %v1695
      %v1727 = vpack.c.bf16 %v1698, %v1697
      %v1728 = vpack.c.bf16 %v1700, %v1699
      %v1729 = vpack.c.bf16 %v1702, %v1701
      %v1730 = vpack.c.bf16 %v1704, %v1703
      %v1731 = vpack.c.bf16 %v1706, %v1705
      %v1732 = vpack.c.bf16 %v1708, %v1707
      %v1733 = vpack.c.bf16 %v1710, %v1709
      %v1734 = vpack.c.bf16 %v1712, %v1711
      %v1735 = vpack.c.bf16 %v1714, %v1713
      %v1736 = vpack.c.bf16 %v1716, %v1715
      %v1737 = vpack.c.bf16 %v1718, %v1717
      %v1738 = vpack.c.bf16 %v1720, %v1719
      %v1739 = vpack.c.bf16 %v1722, %v1721
      %v1740 = vpack.c.bf16 %v1724, %v1723
      %s1741 = scalar_lea.vmem %s1, 4
      %v1742 = vld [vmem:[%s1741] sm:$0xf]
      %v1743 = vld [vmem:[#allocation2 + $0x108] sm:$0xff]
      %v1744 = vld [vmem:[#allocation2 + $0x110] sm:$0xff]
      %v1745 = vpack.c.bf16 %v1744, %v1743
      %s1746 = scalar_lea.vmem %s1, 16
      %v1747 = vld [vmem:[%s1746] sm:$0xf]
      %v1749 = vsel %vm636, %v1726, 0
      %v1752 = vsel %vm636, %v1727, 0
      %v1755 = vsel %vm636, %v1728, 0
      %v1758 = vsel %vm636, %v1729, 0
      %v1761 = vsel %vm636, %v1730, 0
      %v1764 = vsel %vm636, %v1731, 0
      %v1767 = vsel %vm636, %v1732, 0
      %v1770 = vsel %vm636, %v1733, 0
      %v1773 = vsel %vm636, %v1734, 0
      %v1776 = vsel %vm636, %v1735, 0
      %v1779 = vsel %vm636, %v1736, 0
      %v1782 = vsel %vm636, %v1737, 0
      %v1785 = vsel %vm636, %v1738, 0
      %v1788 = vsel %vm636, %v1739, 0
      %v1791 = vsel %vm636, %v1740, 0
      %v1794 = vsel %vm636, %v1745, 0
      %v1797 = vsel %vm1035, %v1747, 0
      %1799 = vmatprep.subr.bf16.mxu0 0
      %1800 = vmatpush1.bf16.msra.mxu0 0
      %1801 = vmatprep.subr.bf16.mxu0 0
      %1802 = vmatpush1.bf16.msra.mxu0 0
      %1803 = vmatprep.subr.bf16.mxu0 0
      %1804 = vmatpush1.bf16.msra.mxu0 0
      %1805 = vmatprep.subr.bf16.mxu0 0
      %1806 = vmatpush1.bf16.msra.mxu0 0
      %1807 = vmatprep.subr.bf16.mxu0 0
      %1808 = vmatpush1.bf16.msra.mxu0 0
      %1809 = vmatprep.subr.bf16.mxu0 0
      %1810 = vmatpush1.bf16.msra.mxu0 0
      %1811 = vmatprep.subr.bf16.mxu0 0
      %1812 = vmatpush1.bf16.msra.mxu0 0
      %1813 = vmatprep.subr.bf16.mxu0 0
      %1814 = vmatpush1.bf16.msra.mxu0 %v1797
      %1815 = vmatprep.subr.bf16.mxu0 0
      %1816 = vmatpush2.bf16.msra.mxu0 0
      %1817 = vmatprep.subr.bf16.mxu0 0
      %1818 = vmatpush2.bf16.msra.mxu0 0
      %1819 = vmatprep.subr.bf16.mxu0 0
      %1820 = vmatpush2.bf16.msra.mxu0 0
      %1821 = vmatprep.subr.bf16.mxu0 0
      %1822 = vmatpush2.bf16.msra.mxu0 0
      %1823 = vmatprep.subr.bf16.mxu0 0
      %1824 = vmatpush2.bf16.msra.mxu0 0
      %1825 = vmatprep.subr.bf16.mxu0 0
      %1826 = vmatpush2.bf16.msra.mxu0 0
      %1827 = vmatprep.subr.bf16.mxu0 0
      %1828 = vmatpush2.bf16.msra.mxu0 0
      %1829 = vmatprep.subr.bf16.mxu0 0
      %1830 = vmatpush2.bf16.msra.mxu0 0
      %1831 = vmatprep.mubr.bf16.mxu0 0
      %1832 = vmatmul.mubr.bf16.gmra.mxu0 %v1749
      %v1833 = vpop.f32.mrf.mxu0
      %v1834 = vadd.f32 0.0, %v1833
      %v1835 = vpop.f32.mrf.mxu0
      %v1836 = vpop.f32.mrf.mxu0
      %v1837 = vadd.f32 0.0, %v1836
      %v1838 = vpop.f32.mrf.mxu0
      %1839 = vmatprep.mubr.bf16.mxu0 0
      %1840 = vmatmul.mubr.bf16.gmra.mxu0 %v1752
      %v1841 = vpop.f32.mrf.mxu0
      %v1842 = vadd.f32 0.0, %v1841
      %v1843 = vpop.f32.mrf.mxu0
      %v1844 = vpop.f32.mrf.mxu0
      %v1845 = vadd.f32 0.0, %v1844
      %v1846 = vpop.f32.mrf.mxu0
      %1847 = vmatprep.mubr.bf16.mxu0 0
      %1848 = vmatmul.mubr.bf16.gmra.mxu0 %v1755
      %v1849 = vpop.f32.mrf.mxu0
      %v1850 = vadd.f32 0.0, %v1849
      %v1851 = vpop.f32.mrf.mxu0
      %v1852 = vpop.f32.mrf.mxu0
      %v1853 = vadd.f32 0.0, %v1852
      %v1854 = vpop.f32.mrf.mxu0
      %1855 = vmatprep.mubr.bf16.mxu0 0
      %1856 = vmatmul.mubr.bf16.gmra.mxu0 %v1758
      %v1857 = vpop.f32.mrf.mxu0
      %v1858 = vadd.f32 0.0, %v1857
      %v1859 = vpop.f32.mrf.mxu0
      %v1860 = vpop.f32.mrf.mxu0
      %v1861 = vadd.f32 0.0, %v1860
      %v1862 = vpop.f32.mrf.mxu0
      %1863 = vmatprep.mubr.bf16.mxu0 0
      %1864 = vmatmul.mubr.bf16.gmra.mxu0 %v1761
      %v1865 = vpop.f32.mrf.mxu0
      %v1866 = vadd.f32 0.0, %v1865
      %v1867 = vpop.f32.mrf.mxu0
      %v1868 = vpop.f32.mrf.mxu0
      %v1869 = vadd.f32 0.0, %v1868
      %v1870 = vpop.f32.mrf.mxu0
      %1871 = vmatprep.mubr.bf16.mxu0 0
      %1872 = vmatmul.mubr.bf16.gmra.mxu0 %v1764
      %v1873 = vpop.f32.mrf.mxu0
      %v1874 = vadd.f32 0.0, %v1873
      %v1875 = vpop.f32.mrf.mxu0
      %v1876 = vpop.f32.mrf.mxu0
      %v1877 = vadd.f32 0.0, %v1876
      %v1878 = vpop.f32.mrf.mxu0
      %1879 = vmatprep.mubr.bf16.mxu0 0
      %1880 = vmatmul.mubr.bf16.gmra.mxu0 %v1767
      %v1881 = vpop.f32.mrf.mxu0
      %v1882 = vadd.f32 0.0, %v1881
      %v1883 = vpop.f32.mrf.mxu0
      %v1884 = vpop.f32.mrf.mxu0
      %v1885 = vadd.f32 0.0, %v1884
      %v1886 = vpop.f32.mrf.mxu0
      %1887 = vmatprep.mubr.bf16.mxu0 0
      %1888 = vmatmul.mubr.bf16.gmra.mxu0 %v1770
      %v1889 = vpop.f32.mrf.mxu0
      %v1890 = vadd.f32 0.0, %v1889
      %v1891 = vpop.f32.mrf.mxu0
      %v1892 = vpop.f32.mrf.mxu0
      %v1893 = vadd.f32 0.0, %v1892
      %v1894 = vpop.f32.mrf.mxu0
      %1895 = vmatprep.mubr.bf16.mxu0 0
      %1896 = vmatmul.mubr.bf16.gmra.mxu0 %v1773
      %v1897 = vpop.f32.mrf.mxu0
      %v1898 = vadd.f32 0.0, %v1897
      %v1899 = vpop.f32.mrf.mxu0
      %v1900 = vpop.f32.mrf.mxu0
      %v1901 = vadd.f32 0.0, %v1900
      %v1902 = vpop.f32.mrf.mxu0
      %1903 = vmatprep.mubr.bf16.mxu0 0
      %1904 = vmatmul.mubr.bf16.gmra.mxu0 %v1776
      %v1905 = vpop.f32.mrf.mxu0
      %v1906 = vadd.f32 0.0, %v1905
      %v1907 = vpop.f32.mrf.mxu0
      %v1908 = vpop.f32.mrf.mxu0
      %v1909 = vadd.f32 0.0, %v1908
      %v1910 = vpop.f32.mrf.mxu0
      %1911 = vmatprep.mubr.bf16.mxu0 0
      %1912 = vmatmul.mubr.bf16.gmra.mxu0 %v1779
      %v1913 = vpop.f32.mrf.mxu0
      %v1914 = vadd.f32 0.0, %v1913
      %v1915 = vpop.f32.mrf.mxu0
      %v1916 = vpop.f32.mrf.mxu0
      %v1917 = vadd.f32 0.0, %v1916
      %v1918 = vpop.f32.mrf.mxu0
      %1919 = vmatprep.mubr.bf16.mxu0 0
      %1920 = vmatmul.mubr.bf16.gmra.mxu0 %v1782
      %v1921 = vpop.f32.mrf.mxu0
      %v1922 = vadd.f32 0.0, %v1921
      %v1923 = vpop.f32.mrf.mxu0
      %v1924 = vpop.f32.mrf.mxu0
      %v1925 = vadd.f32 0.0, %v1924
      %v1926 = vpop.f32.mrf.mxu0
      %1927 = vmatprep.mubr.bf16.mxu0 0
      %1928 = vmatmul.mubr.bf16.gmra.mxu0 %v1785
      %v1929 = vpop.f32.mrf.mxu0
      %v1930 = vadd.f32 0.0, %v1929
      %v1931 = vpop.f32.mrf.mxu0
      %v1932 = vpop.f32.mrf.mxu0
      %v1933 = vadd.f32 0.0, %v1932
      %v1934 = vpop.f32.mrf.mxu0
      %1935 = vmatprep.mubr.bf16.mxu0 0
      %1936 = vmatmul.mubr.bf16.gmra.mxu0 %v1788
      %v1937 = vpop.f32.mrf.mxu0
      %v1938 = vadd.f32 0.0, %v1937
      %v1939 = vpop.f32.mrf.mxu0
      %v1940 = vpop.f32.mrf.mxu0
      %v1941 = vadd.f32 0.0, %v1940
      %v1942 = vpop.f32.mrf.mxu0
      %1943 = vmatprep.mubr.bf16.mxu0 0
      %1944 = vmatmul.mubr.bf16.gmra.mxu0 %v1791
      %v1945 = vpop.f32.mrf.mxu0
      %v1946 = vadd.f32 0.0, %v1945
      %v1947 = vpop.f32.mrf.mxu0
      %v1948 = vpop.f32.mrf.mxu0
      %v1949 = vadd.f32 0.0, %v1948
      %v1950 = vpop.f32.mrf.mxu0
      %1951 = vmatprep.mubr.bf16.mxu0 0
      %1952 = vmatmul.mubr.bf16.gmra.mxu0 %v1794
      %v1953 = vpop.f32.mrf.mxu0
      %v1954 = vadd.f32 0.0, %v1953
      %v1955 = vpop.f32.mrf.mxu0
      %v1956 = vpop.f32.mrf.mxu0
      %v1957 = vadd.f32 0.0, %v1956
      %v1958 = vpop.f32.mrf.mxu0
      %1959 = vdwg.mxu0
      %v1961 = vsel %vm636, %v1725, 0
      %v1964 = vsel %vm1035, %v1742, 0
      %1966 = vmatprep.subr.bf16.mxu0 0
      %1967 = vmatpush1.bf16.msra.mxu0 0
      %1968 = vmatprep.subr.bf16.mxu0 0
      %1969 = vmatpush1.bf16.msra.mxu0 0
      %1970 = vmatprep.subr.bf16.mxu0 0
      %1971 = vmatpush1.bf16.msra.mxu0 0
      %1972 = vmatprep.subr.bf16.mxu0 0
      %1973 = vmatpush1.bf16.msra.mxu0 0
      %1974 = vmatprep.subr.bf16.mxu0 0
      %1975 = vmatpush1.bf16.msra.mxu0 0
      %1976 = vmatprep.subr.bf16.mxu0 0
      %1977 = vmatpush1.bf16.msra.mxu0 0
      %1978 = vmatprep.subr.bf16.mxu0 0
      %1979 = vmatpush1.bf16.msra.mxu0 0
      %1980 = vmatprep.subr.bf16.mxu0 0
      %1981 = vmatpush1.bf16.msra.mxu0 %v1964
      %1982 = vmatprep.subr.bf16.mxu0 0
      %1983 = vmatpush2.bf16.msra.mxu0 0
      %1984 = vmatprep.subr.bf16.mxu0 0
      %1985 = vmatpush2.bf16.msra.mxu0 0
      %1986 = vmatprep.subr.bf16.mxu0 0
      %1987 = vmatpush2.bf16.msra.mxu0 0
      %1988 = vmatprep.subr.bf16.mxu0 0
      %1989 = vmatpush2.bf16.msra.mxu0 0
      %1990 = vmatprep.subr.bf16.mxu0 0
      %1991 = vmatpush2.bf16.msra.mxu0 0
      %1992 = vmatprep.subr.bf16.mxu0 0
      %1993 = vmatpush2.bf16.msra.mxu0 0
      %1994 = vmatprep.subr.bf16.mxu0 0
      %1995 = vmatpush2.bf16.msra.mxu0 0
      %1996 = vmatprep.subr.bf16.mxu0 0
      %1997 = vmatpush2.bf16.msra.mxu0 0
      %1998 = vmatprep.mubr.bf16.mxu0 0
      %1999 = vmatmul.mubr.bf16.gmra.mxu0 %v1961
      %v2000 = vpop.f32.mrf.mxu0
      %v2001 = vadd.f32 %v1834, %v2000
      %v2002 = vpop.f32.mrf.mxu0
      %v2003 = vpop.f32.mrf.mxu0
      %v2004 = vadd.f32 %v1837, %v2003
      %v2005 = vpop.f32.mrf.mxu0
      %2006 = vmatprep.mubr.bf16.mxu0 0
      %2007 = vmatmul.mubr.bf16.gmra.mxu0 %v1749
      %v2008 = vpop.f32.mrf.mxu0
      %v2009 = vadd.f32 %v1842, %v2008
      %v2010 = vpop.f32.mrf.mxu0
      %v2011 = vpop.f32.mrf.mxu0
      %v2012 = vadd.f32 %v1845, %v2011
      %v2013 = vpop.f32.mrf.mxu0
      %2014 = vmatprep.mubr.bf16.mxu0 0
      %2015 = vmatmul.mubr.bf16.gmra.mxu0 %v1752
      %v2016 = vpop.f32.mrf.mxu0
      %v2017 = vadd.f32 %v1850, %v2016
      %v2018 = vpop.f32.mrf.mxu0
      %v2019 = vpop.f32.mrf.mxu0
      %v2020 = vadd.f32 %v1853, %v2019
      %v2021 = vpop.f32.mrf.mxu0
      %2022 = vmatprep.mubr.bf16.mxu0 0
      %2023 = vmatmul.mubr.bf16.gmra.mxu0 %v1755
      %v2024 = vpop.f32.mrf.mxu0
      %v2025 = vadd.f32 %v1858, %v2024
      %v2026 = vpop.f32.mrf.mxu0
      %v2027 = vpop.f32.mrf.mxu0
      %v2028 = vadd.f32 %v1861, %v2027
      %v2029 = vpop.f32.mrf.mxu0
      %2030 = vmatprep.mubr.bf16.mxu0 0
      %2031 = vmatmul.mubr.bf16.gmra.mxu0 %v1758
      %v2032 = vpop.f32.mrf.mxu0
      %v2033 = vadd.f32 %v1866, %v2032
      %v2034 = vpop.f32.mrf.mxu0
      %v2035 = vpop.f32.mrf.mxu0
      %v2036 = vadd.f32 %v1869, %v2035
      %v2037 = vpop.f32.mrf.mxu0
      %2038 = vmatprep.mubr.bf16.mxu0 0
      %2039 = vmatmul.mubr.bf16.gmra.mxu0 %v1761
      %v2040 = vpop.f32.mrf.mxu0
      %v2041 = vadd.f32 %v1874, %v2040
      %v2042 = vpop.f32.mrf.mxu0
      %v2043 = vpop.f32.mrf.mxu0
      %v2044 = vadd.f32 %v1877, %v2043
      %v2045 = vpop.f32.mrf.mxu0
      %2046 = vmatprep.mubr.bf16.mxu0 0
      %2047 = vmatmul.mubr.bf16.gmra.mxu0 %v1764
      %v2048 = vpop.f32.mrf.mxu0
      %v2049 = vadd.f32 %v1882, %v2048
      %v2050 = vpop.f32.mrf.mxu0
      %v2051 = vpop.f32.mrf.mxu0
      %v2052 = vadd.f32 %v1885, %v2051
      %v2053 = vpop.f32.mrf.mxu0
      %2054 = vmatprep.mubr.bf16.mxu0 0
      %2055 = vmatmul.mubr.bf16.gmra.mxu0 %v1767
      %v2056 = vpop.f32.mrf.mxu0
      %v2057 = vadd.f32 %v1890, %v2056
      %v2058 = vpop.f32.mrf.mxu0
      %v2059 = vpop.f32.mrf.mxu0
      %v2060 = vadd.f32 %v1893, %v2059
      %v2061 = vpop.f32.mrf.mxu0
      %2062 = vmatprep.mubr.bf16.mxu0 0
      %2063 = vmatmul.mubr.bf16.gmra.mxu0 %v1770
      %v2064 = vpop.f32.mrf.mxu0
      %v2065 = vadd.f32 %v1898, %v2064
      %v2066 = vpop.f32.mrf.mxu0
      %v2067 = vpop.f32.mrf.mxu0
      %v2068 = vadd.f32 %v1901, %v2067
      %v2069 = vpop.f32.mrf.mxu0
      %2070 = vmatprep.mubr.bf16.mxu0 0
      %2071 = vmatmul.mubr.bf16.gmra.mxu0 %v1773
      %v2072 = vpop.f32.mrf.mxu0
      %v2073 = vadd.f32 %v1906, %v2072
      %v2074 = vpop.f32.mrf.mxu0
      %v2075 = vpop.f32.mrf.mxu0
      %v2076 = vadd.f32 %v1909, %v2075
      %v2077 = vpop.f32.mrf.mxu0
      %2078 = vmatprep.mubr.bf16.mxu0 0
      %2079 = vmatmul.mubr.bf16.gmra.mxu0 %v1776
      %v2080 = vpop.f32.mrf.mxu0
      %v2081 = vadd.f32 %v1914, %v2080
      %v2082 = vpop.f32.mrf.mxu0
      %v2083 = vpop.f32.mrf.mxu0
      %v2084 = vadd.f32 %v1917, %v2083
      %v2085 = vpop.f32.mrf.mxu0
      %2086 = vmatprep.mubr.bf16.mxu0 0
      %2087 = vmatmul.mubr.bf16.gmra.mxu0 %v1779
      %v2088 = vpop.f32.mrf.mxu0
      %v2089 = vadd.f32 %v1922, %v2088
      %v2090 = vpop.f32.mrf.mxu0
      %v2091 = vpop.f32.mrf.mxu0
      %v2092 = vadd.f32 %v1925, %v2091
      %v2093 = vpop.f32.mrf.mxu0
      %2094 = vmatprep.mubr.bf16.mxu0 0
      %2095 = vmatmul.mubr.bf16.gmra.mxu0 %v1782
      %v2096 = vpop.f32.mrf.mxu0
      %v2097 = vadd.f32 %v1930, %v2096
      %v2098 = vpop.f32.mrf.mxu0
      %v2099 = vpop.f32.mrf.mxu0
      %v2100 = vadd.f32 %v1933, %v2099
      %v2101 = vpop.f32.mrf.mxu0
      %2102 = vmatprep.mubr.bf16.mxu0 0
      %2103 = vmatmul.mubr.bf16.gmra.mxu0 %v1785
      %v2104 = vpop.f32.mrf.mxu0
      %v2105 = vadd.f32 %v1938, %v2104
      %v2106 = vpop.f32.mrf.mxu0
      %v2107 = vpop.f32.mrf.mxu0
      %v2108 = vadd.f32 %v1941, %v2107
      %v2109 = vpop.f32.mrf.mxu0
      %2110 = vmatprep.mubr.bf16.mxu0 0
      %2111 = vmatmul.mubr.bf16.gmra.mxu0 %v1788
      %v2112 = vpop.f32.mrf.mxu0
      %v2113 = vadd.f32 %v1946, %v2112
      %v2114 = vpop.f32.mrf.mxu0
      %v2115 = vpop.f32.mrf.mxu0
      %v2116 = vadd.f32 %v1949, %v2115
      %v2117 = vpop.f32.mrf.mxu0
      %2118 = vmatprep.mubr.bf16.mxu0 0
      %2119 = vmatmul.mubr.bf16.gmra.mxu0 %v1791
      %v2120 = vpop.f32.mrf.mxu0
      %v2121 = vadd.f32 %v1954, %v2120
      %v2122 = vpop.f32.mrf.mxu0
      %v2123 = vpop.f32.mrf.mxu0
      %v2124 = vadd.f32 %v1957, %v2123
      %v2125 = vpop.f32.mrf.mxu0
      %2126 = vdwg.mxu0
      %v2127 = vld [vmem:[#allocation2 + $0x28] sm:$0xff]
      %v2128 = vld [vmem:[#allocation2 + $0x30] sm:$0xff]
      %v2129 = vld [vmem:[#allocation2 + $0x38] sm:$0xff]
      %v2130 = vld [vmem:[#allocation2 + $0x40] sm:$0xff]
      %v2131 = vld [vmem:[#allocation2 + $0x48] sm:$0xff]
      %v2132 = vld [vmem:[#allocation2 + $0x50] sm:$0xff]
      %v2133 = vld [vmem:[#allocation2 + $0x58] sm:$0xff]
      %v2134 = vld [vmem:[#allocation2 + $0x60] sm:$0xff]
      %v2135 = vld [vmem:[#allocation2 + $0x68] sm:$0xff]
      %v2136 = vld [vmem:[#allocation2 + $0x70] sm:$0xff]
      %v2137 = vld [vmem:[#allocation2 + $0x78] sm:$0xff]
      %v2138 = vld [vmem:[#allocation2 + $0x80] sm:$0xff]
      %v2139 = vld [vmem:[#allocation2 + $0x88] sm:$0xff]
      %v2140 = vld [vmem:[#allocation2 + $0x90] sm:$0xff]
      %v2141 = vld [vmem:[#allocation2 + $0x98] sm:$0xff]
      %v2142 = vld [vmem:[#allocation2 + $0xa0] sm:$0xff]
      %v2143 = vld [vmem:[#allocation2 + $0xa8] sm:$0xff]
      %v2144 = vld [vmem:[#allocation2 + $0xb0] sm:$0xff]
      %v2145 = vld [vmem:[#allocation2 + $0xb8] sm:$0xff]
      %v2146 = vld [vmem:[#allocation2 + $0xc0] sm:$0xff]
      %v2147 = vld [vmem:[#allocation2 + $0xc8] sm:$0xff]
      %v2148 = vld [vmem:[#allocation2 + $0xd0] sm:$0xff]
      %v2149 = vld [vmem:[#allocation2 + $0xd8] sm:$0xff]
      %v2150 = vld [vmem:[#allocation2 + $0xe0] sm:$0xff]
      %v2151 = vld [vmem:[#allocation2 + $0xe8] sm:$0xff]
      %v2152 = vld [vmem:[#allocation2 + $0xf0] sm:$0xff]
      %v2153 = vld [vmem:[#allocation2 + $0xf8] sm:$0xff]
      %v2154 = vld [vmem:[#allocation2 + $0x100] sm:$0xff]
      %v2155 = vld [vmem:[#allocation2 + $0x108] sm:$0xff]
      %v2156 = vld [vmem:[#allocation2 + $0x110] sm:$0xff]
      %v2157 = vld [vmem:[#allocation2 + $0x118] sm:$0xff]
      %v2158 = vld [vmem:[#allocation2 + $0x120] sm:$0xff]
      %v2159 = vpack.c.bf16 %v2128, %v2127
      %v2160 = vpack.c.bf16 %v2130, %v2129
      %v2161 = vpack.c.bf16 %v2132, %v2131
      %v2162 = vpack.c.bf16 %v2134, %v2133
      %v2163 = vpack.c.bf16 %v2136, %v2135
      %v2164 = vpack.c.bf16 %v2138, %v2137
      %v2165 = vpack.c.bf16 %v2140, %v2139
      %v2166 = vpack.c.bf16 %v2142, %v2141
      %v2167 = vpack.c.bf16 %v2144, %v2143
      %v2168 = vpack.c.bf16 %v2146, %v2145
      %v2169 = vpack.c.bf16 %v2148, %v2147
      %v2170 = vpack.c.bf16 %v2150, %v2149
      %v2171 = vpack.c.bf16 %v2152, %v2151
      %v2172 = vpack.c.bf16 %v2154, %v2153
      %v2173 = vpack.c.bf16 %v2156, %v2155
      %v2174 = vpack.c.bf16 %v2158, %v2157
      %s2175 = scalar_lea.vmem %s1, 28
      %v2176 = vld [vmem:[%s2175] sm:$0xf]
      %v2178 = vsel %vm636, %v2159, 0
      %v2181 = vsel %vm636, %v2160, 0
      %v2184 = vsel %vm636, %v2161, 0
      %v2187 = vsel %vm636, %v2162, 0
      %v2190 = vsel %vm636, %v2163, 0
      %v2193 = vsel %vm636, %v2164, 0
      %v2196 = vsel %vm636, %v2165, 0
      %v2199 = vsel %vm636, %v2166, 0
      %v2202 = vsel %vm636, %v2167, 0
      %v2205 = vsel %vm636, %v2168, 0
      %v2208 = vsel %vm636, %v2169, 0
      %v2211 = vsel %vm636, %v2170, 0
      %v2214 = vsel %vm636, %v2171, 0
      %v2217 = vsel %vm636, %v2172, 0
      %v2220 = vsel %vm636, %v2173, 0
      %v2223 = vsel %vm636, %v2174, 0
      %v2226 = vsel %vm1035, %v2176, 0
      %2228 = vmatprep.subr.bf16.mxu0 0
      %2229 = vmatpush1.bf16.msra.mxu0 0
      %2230 = vmatprep.subr.bf16.mxu0 0
      %2231 = vmatpush1.bf16.msra.mxu0 0
      %2232 = vmatprep.subr.bf16.mxu0 0
      %2233 = vmatpush1.bf16.msra.mxu0 0
      %2234 = vmatprep.subr.bf16.mxu0 0
      %2235 = vmatpush1.bf16.msra.mxu0 0
      %2236 = vmatprep.subr.bf16.mxu0 0
      %2237 = vmatpush1.bf16.msra.mxu0 0
      %2238 = vmatprep.subr.bf16.mxu0 0
      %2239 = vmatpush1.bf16.msra.mxu0 0
      %2240 = vmatprep.subr.bf16.mxu0 0
      %2241 = vmatpush1.bf16.msra.mxu0 0
      %2242 = vmatprep.subr.bf16.mxu0 0
      %2243 = vmatpush1.bf16.msra.mxu0 %v2226
      %2244 = vmatprep.subr.bf16.mxu0 0
      %2245 = vmatpush2.bf16.msra.mxu0 0
      %2246 = vmatprep.subr.bf16.mxu0 0
      %2247 = vmatpush2.bf16.msra.mxu0 0
      %2248 = vmatprep.subr.bf16.mxu0 0
      %2249 = vmatpush2.bf16.msra.mxu0 0
      %2250 = vmatprep.subr.bf16.mxu0 0
      %2251 = vmatpush2.bf16.msra.mxu0 0
      %2252 = vmatprep.subr.bf16.mxu0 0
      %2253 = vmatpush2.bf16.msra.mxu0 0
      %2254 = vmatprep.subr.bf16.mxu0 0
      %2255 = vmatpush2.bf16.msra.mxu0 0
      %2256 = vmatprep.subr.bf16.mxu0 0
      %2257 = vmatpush2.bf16.msra.mxu0 0
      %2258 = vmatprep.subr.bf16.mxu0 0
      %2259 = vmatpush2.bf16.msra.mxu0 0
      %2260 = vmatprep.mubr.bf16.mxu0 0
      %2261 = vmatmul.mubr.bf16.gmra.mxu0 %v2178
      %v2262 = vpop.f32.mrf.mxu0
      %v2263 = vadd.f32 0.0, %v2262
      %v2264 = vpop.f32.mrf.mxu0
      %v2265 = vpop.f32.mrf.mxu0
      %v2266 = vadd.f32 0.0, %v2265
      %v2267 = vpop.f32.mrf.mxu0
      %2268 = vmatprep.mubr.bf16.mxu0 0
      %2269 = vmatmul.mubr.bf16.gmra.mxu0 %v2181
      %v2270 = vpop.f32.mrf.mxu0
      %v2271 = vadd.f32 0.0, %v2270
      %v2272 = vpop.f32.mrf.mxu0
      %v2273 = vpop.f32.mrf.mxu0
      %v2274 = vadd.f32 0.0, %v2273
      %v2275 = vpop.f32.mrf.mxu0
      %2276 = vmatprep.mubr.bf16.mxu0 0
      %2277 = vmatmul.mubr.bf16.gmra.mxu0 %v2184
      %v2278 = vpop.f32.mrf.mxu0
      %v2279 = vadd.f32 0.0, %v2278
      %v2280 = vpop.f32.mrf.mxu0
      %v2281 = vpop.f32.mrf.mxu0
      %v2282 = vadd.f32 0.0, %v2281
      %v2283 = vpop.f32.mrf.mxu0
      %2284 = vmatprep.mubr.bf16.mxu0 0
      %2285 = vmatmul.mubr.bf16.gmra.mxu0 %v2187
      %v2286 = vpop.f32.mrf.mxu0
      %v2287 = vadd.f32 0.0, %v2286
      %v2288 = vpop.f32.mrf.mxu0
      %v2289 = vpop.f32.mrf.mxu0
      %v2290 = vadd.f32 0.0, %v2289
      %v2291 = vpop.f32.mrf.mxu0
      %2292 = vmatprep.mubr.bf16.mxu0 0
      %2293 = vmatmul.mubr.bf16.gmra.mxu0 %v2190
      %v2294 = vpop.f32.mrf.mxu0
      %v2295 = vadd.f32 0.0, %v2294
      %v2296 = vpop.f32.mrf.mxu0
      %v2297 = vpop.f32.mrf.mxu0
      %v2298 = vadd.f32 0.0, %v2297
      %v2299 = vpop.f32.mrf.mxu0
      %2300 = vmatprep.mubr.bf16.mxu0 0
      %2301 = vmatmul.mubr.bf16.gmra.mxu0 %v2193
      %v2302 = vpop.f32.mrf.mxu0
      %v2303 = vadd.f32 0.0, %v2302
      %v2304 = vpop.f32.mrf.mxu0
      %v2305 = vpop.f32.mrf.mxu0
      %v2306 = vadd.f32 0.0, %v2305
      %v2307 = vpop.f32.mrf.mxu0
      %2308 = vmatprep.mubr.bf16.mxu0 0
      %2309 = vmatmul.mubr.bf16.gmra.mxu0 %v2196
      %v2310 = vpop.f32.mrf.mxu0
      %v2311 = vadd.f32 0.0, %v2310
      %v2312 = vpop.f32.mrf.mxu0
      %v2313 = vpop.f32.mrf.mxu0
      %v2314 = vadd.f32 0.0, %v2313
      %v2315 = vpop.f32.mrf.mxu0
      %2316 = vmatprep.mubr.bf16.mxu0 0
      %2317 = vmatmul.mubr.bf16.gmra.mxu0 %v2199
      %v2318 = vpop.f32.mrf.mxu0
      %v2319 = vadd.f32 0.0, %v2318
      %v2320 = vpop.f32.mrf.mxu0
      %v2321 = vpop.f32.mrf.mxu0
      %v2322 = vadd.f32 0.0, %v2321
      %v2323 = vpop.f32.mrf.mxu0
      %2324 = vmatprep.mubr.bf16.mxu0 0
      %2325 = vmatmul.mubr.bf16.gmra.mxu0 %v2202
      %v2326 = vpop.f32.mrf.mxu0
      %v2327 = vadd.f32 0.0, %v2326
      %v2328 = vpop.f32.mrf.mxu0
      %v2329 = vpop.f32.mrf.mxu0
      %v2330 = vadd.f32 0.0, %v2329
      %v2331 = vpop.f32.mrf.mxu0
      %2332 = vmatprep.mubr.bf16.mxu0 0
      %2333 = vmatmul.mubr.bf16.gmra.mxu0 %v2205
      %v2334 = vpop.f32.mrf.mxu0
      %v2335 = vadd.f32 0.0, %v2334
      %v2336 = vpop.f32.mrf.mxu0
      %v2337 = vpop.f32.mrf.mxu0
      %v2338 = vadd.f32 0.0, %v2337
      %v2339 = vpop.f32.mrf.mxu0
      %2340 = vmatprep.mubr.bf16.mxu0 0
      %2341 = vmatmul.mubr.bf16.gmra.mxu0 %v2208
      %v2342 = vpop.f32.mrf.mxu0
      %v2343 = vadd.f32 0.0, %v2342
      %v2344 = vpop.f32.mrf.mxu0
      %v2345 = vpop.f32.mrf.mxu0
      %v2346 = vadd.f32 0.0, %v2345
      %v2347 = vpop.f32.mrf.mxu0
      %2348 = vmatprep.mubr.bf16.mxu0 0
      %2349 = vmatmul.mubr.bf16.gmra.mxu0 %v2211
      %v2350 = vpop.f32.mrf.mxu0
      %v2351 = vadd.f32 0.0, %v2350
      %v2352 = vpop.f32.mrf.mxu0
      %v2353 = vpop.f32.mrf.mxu0
      %v2354 = vadd.f32 0.0, %v2353
      %v2355 = vpop.f32.mrf.mxu0
      %2356 = vmatprep.mubr.bf16.mxu0 0
      %2357 = vmatmul.mubr.bf16.gmra.mxu0 %v2214
      %v2358 = vpop.f32.mrf.mxu0
      %v2359 = vadd.f32 0.0, %v2358
      %v2360 = vpop.f32.mrf.mxu0
      %v2361 = vpop.f32.mrf.mxu0
      %v2362 = vadd.f32 0.0, %v2361
      %v2363 = vpop.f32.mrf.mxu0
      %2364 = vmatprep.mubr.bf16.mxu0 0
      %2365 = vmatmul.mubr.bf16.gmra.mxu0 %v2217
      %v2366 = vpop.f32.mrf.mxu0
      %v2367 = vadd.f32 0.0, %v2366
      %v2368 = vpop.f32.mrf.mxu0
      %v2369 = vpop.f32.mrf.mxu0
      %v2370 = vadd.f32 0.0, %v2369
      %v2371 = vpop.f32.mrf.mxu0
      %2372 = vmatprep.mubr.bf16.mxu0 0
      %2373 = vmatmul.mubr.bf16.gmra.mxu0 %v2220
      %v2374 = vpop.f32.mrf.mxu0
      %v2375 = vadd.f32 0.0, %v2374
      %v2376 = vpop.f32.mrf.mxu0
      %v2377 = vpop.f32.mrf.mxu0
      %v2378 = vadd.f32 0.0, %v2377
      %v2379 = vpop.f32.mrf.mxu0
      %2380 = vmatprep.mubr.bf16.mxu0 0
      %2381 = vmatmul.mubr.bf16.gmra.mxu0 %v2223
      %v2382 = vpop.f32.mrf.mxu0
      %v2383 = vadd.f32 0.0, %v2382
      %v2384 = vpop.f32.mrf.mxu0
      %v2385 = vpop.f32.mrf.mxu0
      %v2386 = vadd.f32 0.0, %v2385
      %v2387 = vpop.f32.mrf.mxu0
      %2388 = vdwg.mxu0
      %v2389 = vadd.f32 %v2001, %v2263
      %v2390 = vadd.f32 %v2004, %v2266
      %v2391 = vadd.f32 %v2009, %v2271
      %v2392 = vadd.f32 %v2012, %v2274
      %v2393 = vadd.f32 %v2017, %v2279
      %v2394 = vadd.f32 %v2020, %v2282
      %v2395 = vadd.f32 %v2025, %v2287
      %v2396 = vadd.f32 %v2028, %v2290
      %v2397 = vadd.f32 %v2033, %v2295
      %v2398 = vadd.f32 %v2036, %v2298
      %v2399 = vadd.f32 %v2041, %v2303
      %v2400 = vadd.f32 %v2044, %v2306
      %v2401 = vadd.f32 %v2049, %v2311
      %v2402 = vadd.f32 %v2052, %v2314
      %v2403 = vadd.f32 %v2057, %v2319
      %v2404 = vadd.f32 %v2060, %v2322
      %v2405 = vadd.f32 %v2065, %v2327
      %v2406 = vadd.f32 %v2068, %v2330
      %v2407 = vadd.f32 %v2073, %v2335
      %v2408 = vadd.f32 %v2076, %v2338
      %v2409 = vadd.f32 %v2081, %v2343
      %v2410 = vadd.f32 %v2084, %v2346
      %v2411 = vadd.f32 %v2089, %v2351
      %v2412 = vadd.f32 %v2092, %v2354
      %v2413 = vadd.f32 %v2097, %v2359
      %v2414 = vadd.f32 %v2100, %v2362
      %v2415 = vadd.f32 %v2105, %v2367
      %v2416 = vadd.f32 %v2108, %v2370
      %v2417 = vadd.f32 %v2113, %v2375
      %v2418 = vadd.f32 %v2116, %v2378
      %v2419 = vadd.f32 %v2121, %v2383
      %v2420 = vadd.f32 %v2124, %v2386
      %v2421 = vadd.f32 %v1661, %v2389
      %v2422 = vadd.f32 %v1662, %v2390
      %v2423 = vadd.f32 %v1663, %v2391
      %v2424 = vadd.f32 %v1664, %v2392
      %v2425 = vadd.f32 %v1665, %v2393
      %v2426 = vadd.f32 %v1666, %v2394
      %v2427 = vadd.f32 %v1667, %v2395
      %v2428 = vadd.f32 %v1668, %v2396
      %v2429 = vadd.f32 %v1669, %v2397
      %v2430 = vadd.f32 %v1670, %v2398
      %v2431 = vadd.f32 %v1671, %v2399
      %v2432 = vadd.f32 %v1672, %v2400
      %v2433 = vadd.f32 %v1673, %v2401
      %v2434 = vadd.f32 %v1674, %v2402
      %v2435 = vadd.f32 %v1675, %v2403
      %v2436 = vadd.f32 %v1676, %v2404
      %v2437 = vadd.f32 %v1677, %v2405
      %v2438 = vadd.f32 %v1678, %v2406
      %v2439 = vadd.f32 %v1679, %v2407
      %v2440 = vadd.f32 %v1680, %v2408
      %v2441 = vadd.f32 %v1681, %v2409
      %v2442 = vadd.f32 %v1682, %v2410
      %v2443 = vadd.f32 %v1683, %v2411
      %v2444 = vadd.f32 %v1684, %v2412
      %v2445 = vadd.f32 %v1685, %v2413
      %v2446 = vadd.f32 %v1686, %v2414
      %v2447 = vadd.f32 %v1687, %v2415
      %v2448 = vadd.f32 %v1688, %v2416
      %v2449 = vadd.f32 %v1689, %v2417
      %v2450 = vadd.f32 %v1690, %v2418
      %v2451 = vadd.f32 %v1691, %v2419
      %v2452 = vadd.f32 %v1692, %v2420
      %v2453 = vld [vmem:[#allocation2 + $0x9] sm:$0xff]
      %v2454 = vld [vmem:[#allocation2 + $0x11] sm:$0xff]
      %v2455 = vld [vmem:[#allocation2 + $0x19] sm:$0xff]
      %v2456 = vld [vmem:[#allocation2 + $0x21] sm:$0xff]
      %v2457 = vld [vmem:[#allocation2 + $0x29] sm:$0xff]
      %v2458 = vld [vmem:[#allocation2 + $0x31] sm:$0xff]
      %v2459 = vld [vmem:[#allocation2 + $0x39] sm:$0xff]
      %v2460 = vld [vmem:[#allocation2 + $0x41] sm:$0xff]
      %v2461 = vld [vmem:[#allocation2 + $0x49] sm:$0xff]
      %v2462 = vld [vmem:[#allocation2 + $0x51] sm:$0xff]
      %v2463 = vld [vmem:[#allocation2 + $0x59] sm:$0xff]
      %v2464 = vld [vmem:[#allocation2 + $0x61] sm:$0xff]
      %v2465 = vld [vmem:[#allocation2 + $0x69] sm:$0xff]
      %v2466 = vld [vmem:[#allocation2 + $0x71] sm:$0xff]
      %v2467 = vld [vmem:[#allocation2 + $0x79] sm:$0xff]
      %v2468 = vld [vmem:[#allocation2 + $0x81] sm:$0xff]
      %v2469 = vld [vmem:[#allocation2 + $0x89] sm:$0xff]
      %v2470 = vld [vmem:[#allocation2 + $0x91] sm:$0xff]
      %v2471 = vld [vmem:[#allocation2 + $0x99] sm:$0xff]
      %v2472 = vld [vmem:[#allocation2 + $0xa1] sm:$0xff]
      %v2473 = vld [vmem:[#allocation2 + $0xa9] sm:$0xff]
      %v2474 = vld [vmem:[#allocation2 + $0xb1] sm:$0xff]
      %v2475 = vld [vmem:[#allocation2 + $0xb9] sm:$0xff]
      %v2476 = vld [vmem:[#allocation2 + $0xc1] sm:$0xff]
      %v2477 = vld [vmem:[#allocation2 + $0xc9] sm:$0xff]
      %v2478 = vld [vmem:[#allocation2 + $0xd1] sm:$0xff]
      %v2479 = vld [vmem:[#allocation2 + $0xd9] sm:$0xff]
      %v2480 = vld [vmem:[#allocation2 + $0xe1] sm:$0xff]
      %v2481 = vld [vmem:[#allocation2 + $0xe9] sm:$0xff]
      %v2482 = vld [vmem:[#allocation2 + $0xf1] sm:$0xff]
      %v2483 = vld [vmem:[#allocation2 + $0xf9] sm:$0xff]
      %v2484 = vld [vmem:[#allocation2 + $0x101] sm:$0xff]
      %v2485 = vpack.c.bf16 %v2454, %v2453
      %v2486 = vpack.c.bf16 %v2456, %v2455
      %v2487 = vpack.c.bf16 %v2458, %v2457
      %v2488 = vpack.c.bf16 %v2460, %v2459
      %v2489 = vpack.c.bf16 %v2462, %v2461
      %v2490 = vpack.c.bf16 %v2464, %v2463
      %v2491 = vpack.c.bf16 %v2466, %v2465
      %v2492 = vpack.c.bf16 %v2468, %v2467
      %v2493 = vpack.c.bf16 %v2470, %v2469
      %v2494 = vpack.c.bf16 %v2472, %v2471
      %v2495 = vpack.c.bf16 %v2474, %v2473
      %v2496 = vpack.c.bf16 %v2476, %v2475
      %v2497 = vpack.c.bf16 %v2478, %v2477
      %v2498 = vpack.c.bf16 %v2480, %v2479
      %v2499 = vpack.c.bf16 %v2482, %v2481
      %v2500 = vpack.c.bf16 %v2484, %v2483
      %s2501 = scalar_lea.vmem %s1, 8
      %v2502 = vld [vmem:[%s2501] sm:$0xf]
      %v2503 = vld [vmem:[#allocation2 + $0x109] sm:$0xff]
      %v2504 = vld [vmem:[#allocation2 + $0x111] sm:$0xff]
      %v2505 = vpack.c.bf16 %v2504, %v2503
      %s2506 = scalar_lea.vmem %s1, 20
      %v2507 = vld [vmem:[%s2506] sm:$0xf]
      %v2509 = vsel %vm636, %v2486, 0
      %v2512 = vsel %vm636, %v2487, 0
      %v2515 = vsel %vm636, %v2488, 0
      %v2518 = vsel %vm636, %v2489, 0
      %v2521 = vsel %vm636, %v2490, 0
      %v2524 = vsel %vm636, %v2491, 0
      %v2527 = vsel %vm636, %v2492, 0
      %v2530 = vsel %vm636, %v2493, 0
      %v2533 = vsel %vm636, %v2494, 0
      %v2536 = vsel %vm636, %v2495, 0
      %v2539 = vsel %vm636, %v2496, 0
      %v2542 = vsel %vm636, %v2497, 0
      %v2545 = vsel %vm636, %v2498, 0
      %v2548 = vsel %vm636, %v2499, 0
      %v2551 = vsel %vm636, %v2500, 0
      %v2554 = vsel %vm636, %v2505, 0
      %v2557 = vsel %vm1035, %v2507, 0
      %2559 = vmatprep.subr.bf16.mxu0 0
      %2560 = vmatpush1.bf16.msra.mxu0 0
      %2561 = vmatprep.subr.bf16.mxu0 0
      %2562 = vmatpush1.bf16.msra.mxu0 0
      %2563 = vmatprep.subr.bf16.mxu0 0
      %2564 = vmatpush1.bf16.msra.mxu0 0
      %2565 = vmatprep.subr.bf16.mxu0 0
      %2566 = vmatpush1.bf16.msra.mxu0 0
      %2567 = vmatprep.subr.bf16.mxu0 0
      %2568 = vmatpush1.bf16.msra.mxu0 0
      %2569 = vmatprep.subr.bf16.mxu0 0
      %2570 = vmatpush1.bf16.msra.mxu0 0
      %2571 = vmatprep.subr.bf16.mxu0 0
      %2572 = vmatpush1.bf16.msra.mxu0 0
      %2573 = vmatprep.subr.bf16.mxu0 0
      %2574 = vmatpush1.bf16.msra.mxu0 %v2557
      %2575 = vmatprep.subr.bf16.mxu0 0
      %2576 = vmatpush2.bf16.msra.mxu0 0
      %2577 = vmatprep.subr.bf16.mxu0 0
      %2578 = vmatpush2.bf16.msra.mxu0 0
      %2579 = vmatprep.subr.bf16.mxu0 0
      %2580 = vmatpush2.bf16.msra.mxu0 0
      %2581 = vmatprep.subr.bf16.mxu0 0
      %2582 = vmatpush2.bf16.msra.mxu0 0
      %2583 = vmatprep.subr.bf16.mxu0 0
      %2584 = vmatpush2.bf16.msra.mxu0 0
      %2585 = vmatprep.subr.bf16.mxu0 0
      %2586 = vmatpush2.bf16.msra.mxu0 0
      %2587 = vmatprep.subr.bf16.mxu0 0
      %2588 = vmatpush2.bf16.msra.mxu0 0
      %2589 = vmatprep.subr.bf16.mxu0 0
      %2590 = vmatpush2.bf16.msra.mxu0 0
      %2591 = vmatprep.mubr.bf16.mxu0 0
      %2592 = vmatmul.mubr.bf16.gmra.mxu0 %v2509
      %v2593 = vpop.f32.mrf.mxu0
      %v2594 = vadd.f32 0.0, %v2593
      %v2595 = vpop.f32.mrf.mxu0
      %v2596 = vpop.f32.mrf.mxu0
      %v2597 = vadd.f32 0.0, %v2596
      %v2598 = vpop.f32.mrf.mxu0
      %2599 = vmatprep.mubr.bf16.mxu0 0
      %2600 = vmatmul.mubr.bf16.gmra.mxu0 %v2512
      %v2601 = vpop.f32.mrf.mxu0
      %v2602 = vadd.f32 0.0, %v2601
      %v2603 = vpop.f32.mrf.mxu0
      %v2604 = vpop.f32.mrf.mxu0
      %v2605 = vadd.f32 0.0, %v2604
      %v2606 = vpop.f32.mrf.mxu0
      %2607 = vmatprep.mubr.bf16.mxu0 0
      %2608 = vmatmul.mubr.bf16.gmra.mxu0 %v2515
      %v2609 = vpop.f32.mrf.mxu0
      %v2610 = vadd.f32 0.0, %v2609
      %v2611 = vpop.f32.mrf.mxu0
      %v2612 = vpop.f32.mrf.mxu0
      %v2613 = vadd.f32 0.0, %v2612
      %v2614 = vpop.f32.mrf.mxu0
      %2615 = vmatprep.mubr.bf16.mxu0 0
      %2616 = vmatmul.mubr.bf16.gmra.mxu0 %v2518
      %v2617 = vpop.f32.mrf.mxu0
      %v2618 = vadd.f32 0.0, %v2617
      %v2619 = vpop.f32.mrf.mxu0
      %v2620 = vpop.f32.mrf.mxu0
      %v2621 = vadd.f32 0.0, %v2620
      %v2622 = vpop.f32.mrf.mxu0
      %2623 = vmatprep.mubr.bf16.mxu0 0
      %2624 = vmatmul.mubr.bf16.gmra.mxu0 %v2521
      %v2625 = vpop.f32.mrf.mxu0
      %v2626 = vadd.f32 0.0, %v2625
      %v2627 = vpop.f32.mrf.mxu0
      %v2628 = vpop.f32.mrf.mxu0
      %v2629 = vadd.f32 0.0, %v2628
      %v2630 = vpop.f32.mrf.mxu0
      %2631 = vmatprep.mubr.bf16.mxu0 0
      %2632 = vmatmul.mubr.bf16.gmra.mxu0 %v2524
      %v2633 = vpop.f32.mrf.mxu0
      %v2634 = vadd.f32 0.0, %v2633
      %v2635 = vpop.f32.mrf.mxu0
      %v2636 = vpop.f32.mrf.mxu0
      %v2637 = vadd.f32 0.0, %v2636
      %v2638 = vpop.f32.mrf.mxu0
      %2639 = vmatprep.mubr.bf16.mxu0 0
      %2640 = vmatmul.mubr.bf16.gmra.mxu0 %v2527
      %v2641 = vpop.f32.mrf.mxu0
      %v2642 = vadd.f32 0.0, %v2641
      %v2643 = vpop.f32.mrf.mxu0
      %v2644 = vpop.f32.mrf.mxu0
      %v2645 = vadd.f32 0.0, %v2644
      %v2646 = vpop.f32.mrf.mxu0
      %2647 = vmatprep.mubr.bf16.mxu0 0
      %2648 = vmatmul.mubr.bf16.gmra.mxu0 %v2530
      %v2649 = vpop.f32.mrf.mxu0
      %v2650 = vadd.f32 0.0, %v2649
      %v2651 = vpop.f32.mrf.mxu0
      %v2652 = vpop.f32.mrf.mxu0
      %v2653 = vadd.f32 0.0, %v2652
      %v2654 = vpop.f32.mrf.mxu0
      %2655 = vmatprep.mubr.bf16.mxu0 0
      %2656 = vmatmul.mubr.bf16.gmra.mxu0 %v2533
      %v2657 = vpop.f32.mrf.mxu0
      %v2658 = vadd.f32 0.0, %v2657
      %v2659 = vpop.f32.mrf.mxu0
      %v2660 = vpop.f32.mrf.mxu0
      %v2661 = vadd.f32 0.0, %v2660
      %v2662 = vpop.f32.mrf.mxu0
      %2663 = vmatprep.mubr.bf16.mxu0 0
      %2664 = vmatmul.mubr.bf16.gmra.mxu0 %v2536
      %v2665 = vpop.f32.mrf.mxu0
      %v2666 = vadd.f32 0.0, %v2665
      %v2667 = vpop.f32.mrf.mxu0
      %v2668 = vpop.f32.mrf.mxu0
      %v2669 = vadd.f32 0.0, %v2668
      %v2670 = vpop.f32.mrf.mxu0
      %2671 = vmatprep.mubr.bf16.mxu0 0
      %2672 = vmatmul.mubr.bf16.gmra.mxu0 %v2539
      %v2673 = vpop.f32.mrf.mxu0
      %v2674 = vadd.f32 0.0, %v2673
      %v2675 = vpop.f32.mrf.mxu0
      %v2676 = vpop.f32.mrf.mxu0
      %v2677 = vadd.f32 0.0, %v2676
      %v2678 = vpop.f32.mrf.mxu0
      %2679 = vmatprep.mubr.bf16.mxu0 0
      %2680 = vmatmul.mubr.bf16.gmra.mxu0 %v2542
      %v2681 = vpop.f32.mrf.mxu0
      %v2682 = vadd.f32 0.0, %v2681
      %v2683 = vpop.f32.mrf.mxu0
      %v2684 = vpop.f32.mrf.mxu0
      %v2685 = vadd.f32 0.0, %v2684
      %v2686 = vpop.f32.mrf.mxu0
      %2687 = vmatprep.mubr.bf16.mxu0 0
      %2688 = vmatmul.mubr.bf16.gmra.mxu0 %v2545
      %v2689 = vpop.f32.mrf.mxu0
      %v2690 = vadd.f32 0.0, %v2689
      %v2691 = vpop.f32.mrf.mxu0
      %v2692 = vpop.f32.mrf.mxu0
      %v2693 = vadd.f32 0.0, %v2692
      %v2694 = vpop.f32.mrf.mxu0
      %2695 = vmatprep.mubr.bf16.mxu0 0
      %2696 = vmatmul.mubr.bf16.gmra.mxu0 %v2548
      %v2697 = vpop.f32.mrf.mxu0
      %v2698 = vadd.f32 0.0, %v2697
      %v2699 = vpop.f32.mrf.mxu0
      %v2700 = vpop.f32.mrf.mxu0
      %v2701 = vadd.f32 0.0, %v2700
      %v2702 = vpop.f32.mrf.mxu0
      %2703 = vmatprep.mubr.bf16.mxu0 0
      %2704 = vmatmul.mubr.bf16.gmra.mxu0 %v2551
      %v2705 = vpop.f32.mrf.mxu0
      %v2706 = vadd.f32 0.0, %v2705
      %v2707 = vpop.f32.mrf.mxu0
      %v2708 = vpop.f32.mrf.mxu0
      %v2709 = vadd.f32 0.0, %v2708
      %v2710 = vpop.f32.mrf.mxu0
      %2711 = vmatprep.mubr.bf16.mxu0 0
      %2712 = vmatmul.mubr.bf16.gmra.mxu0 %v2554
      %v2713 = vpop.f32.mrf.mxu0
      %v2714 = vadd.f32 0.0, %v2713
      %v2715 = vpop.f32.mrf.mxu0
      %v2716 = vpop.f32.mrf.mxu0
      %v2717 = vadd.f32 0.0, %v2716
      %v2718 = vpop.f32.mrf.mxu0
      %2719 = vdwg.mxu0
      %v2721 = vsel %vm636, %v2485, 0
      %v2724 = vsel %vm1035, %v2502, 0
      %2726 = vmatprep.subr.bf16.mxu0 0
      %2727 = vmatpush1.bf16.msra.mxu0 0
      %2728 = vmatprep.subr.bf16.mxu0 0
      %2729 = vmatpush1.bf16.msra.mxu0 0
      %2730 = vmatprep.subr.bf16.mxu0 0
      %2731 = vmatpush1.bf16.msra.mxu0 0
      %2732 = vmatprep.subr.bf16.mxu0 0
      %2733 = vmatpush1.bf16.msra.mxu0 0
      %2734 = vmatprep.subr.bf16.mxu0 0
      %2735 = vmatpush1.bf16.msra.mxu0 0
      %2736 = vmatprep.subr.bf16.mxu0 0
      %2737 = vmatpush1.bf16.msra.mxu0 0
      %2738 = vmatprep.subr.bf16.mxu0 0
      %2739 = vmatpush1.bf16.msra.mxu0 0
      %2740 = vmatprep.subr.bf16.mxu0 0
      %2741 = vmatpush1.bf16.msra.mxu0 %v2724
      %2742 = vmatprep.subr.bf16.mxu0 0
      %2743 = vmatpush2.bf16.msra.mxu0 0
      %2744 = vmatprep.subr.bf16.mxu0 0
      %2745 = vmatpush2.bf16.msra.mxu0 0
      %2746 = vmatprep.subr.bf16.mxu0 0
      %2747 = vmatpush2.bf16.msra.mxu0 0
      %2748 = vmatprep.subr.bf16.mxu0 0
      %2749 = vmatpush2.bf16.msra.mxu0 0
      %2750 = vmatprep.subr.bf16.mxu0 0
      %2751 = vmatpush2.bf16.msra.mxu0 0
      %2752 = vmatprep.subr.bf16.mxu0 0
      %2753 = vmatpush2.bf16.msra.mxu0 0
      %2754 = vmatprep.subr.bf16.mxu0 0
      %2755 = vmatpush2.bf16.msra.mxu0 0
      %2756 = vmatprep.subr.bf16.mxu0 0
      %2757 = vmatpush2.bf16.msra.mxu0 0
      %2758 = vmatprep.mubr.bf16.mxu0 0
      %2759 = vmatmul.mubr.bf16.gmra.mxu0 %v2721
      %v2760 = vpop.f32.mrf.mxu0
      %v2761 = vadd.f32 %v2594, %v2760
      %v2762 = vpop.f32.mrf.mxu0
      %v2763 = vpop.f32.mrf.mxu0
      %v2764 = vadd.f32 %v2597, %v2763
      %v2765 = vpop.f32.mrf.mxu0
      %2766 = vmatprep.mubr.bf16.mxu0 0
      %2767 = vmatmul.mubr.bf16.gmra.mxu0 %v2509
      %v2768 = vpop.f32.mrf.mxu0
      %v2769 = vadd.f32 %v2602, %v2768
      %v2770 = vpop.f32.mrf.mxu0
      %v2771 = vpop.f32.mrf.mxu0
      %v2772 = vadd.f32 %v2605, %v2771
      %v2773 = vpop.f32.mrf.mxu0
      %2774 = vmatprep.mubr.bf16.mxu0 0
      %2775 = vmatmul.mubr.bf16.gmra.mxu0 %v2512
      %v2776 = vpop.f32.mrf.mxu0
      %v2777 = vadd.f32 %v2610, %v2776
      %v2778 = vpop.f32.mrf.mxu0
      %v2779 = vpop.f32.mrf.mxu0
      %v2780 = vadd.f32 %v2613, %v2779
      %v2781 = vpop.f32.mrf.mxu0
      %2782 = vmatprep.mubr.bf16.mxu0 0
      %2783 = vmatmul.mubr.bf16.gmra.mxu0 %v2515
      %v2784 = vpop.f32.mrf.mxu0
      %v2785 = vadd.f32 %v2618, %v2784
      %v2786 = vpop.f32.mrf.mxu0
      %v2787 = vpop.f32.mrf.mxu0
      %v2788 = vadd.f32 %v2621, %v2787
      %v2789 = vpop.f32.mrf.mxu0
      %2790 = vmatprep.mubr.bf16.mxu0 0
      %2791 = vmatmul.mubr.bf16.gmra.mxu0 %v2518
      %v2792 = vpop.f32.mrf.mxu0
      %v2793 = vadd.f32 %v2626, %v2792
      %v2794 = vpop.f32.mrf.mxu0
      %v2795 = vpop.f32.mrf.mxu0
      %v2796 = vadd.f32 %v2629, %v2795
      %v2797 = vpop.f32.mrf.mxu0
      %2798 = vmatprep.mubr.bf16.mxu0 0
      %2799 = vmatmul.mubr.bf16.gmra.mxu0 %v2521
      %v2800 = vpop.f32.mrf.mxu0
      %v2801 = vadd.f32 %v2634, %v2800
      %v2802 = vpop.f32.mrf.mxu0
      %v2803 = vpop.f32.mrf.mxu0
      %v2804 = vadd.f32 %v2637, %v2803
      %v2805 = vpop.f32.mrf.mxu0
      %2806 = vmatprep.mubr.bf16.mxu0 0
      %2807 = vmatmul.mubr.bf16.gmra.mxu0 %v2524
      %v2808 = vpop.f32.mrf.mxu0
      %v2809 = vadd.f32 %v2642, %v2808
      %v2810 = vpop.f32.mrf.mxu0
      %v2811 = vpop.f32.mrf.mxu0
      %v2812 = vadd.f32 %v2645, %v2811
      %v2813 = vpop.f32.mrf.mxu0
      %2814 = vmatprep.mubr.bf16.mxu0 0
      %2815 = vmatmul.mubr.bf16.gmra.mxu0 %v2527
      %v2816 = vpop.f32.mrf.mxu0
      %v2817 = vadd.f32 %v2650, %v2816
      %v2818 = vpop.f32.mrf.mxu0
      %v2819 = vpop.f32.mrf.mxu0
      %v2820 = vadd.f32 %v2653, %v2819
      %v2821 = vpop.f32.mrf.mxu0
      %2822 = vmatprep.mubr.bf16.mxu0 0
      %2823 = vmatmul.mubr.bf16.gmra.mxu0 %v2530
      %v2824 = vpop.f32.mrf.mxu0
      %v2825 = vadd.f32 %v2658, %v2824
      %v2826 = vpop.f32.mrf.mxu0
      %v2827 = vpop.f32.mrf.mxu0
      %v2828 = vadd.f32 %v2661, %v2827
      %v2829 = vpop.f32.mrf.mxu0
      %2830 = vmatprep.mubr.bf16.mxu0 0
      %2831 = vmatmul.mubr.bf16.gmra.mxu0 %v2533
      %v2832 = vpop.f32.mrf.mxu0
      %v2833 = vadd.f32 %v2666, %v2832
      %v2834 = vpop.f32.mrf.mxu0
      %v2835 = vpop.f32.mrf.mxu0
      %v2836 = vadd.f32 %v2669, %v2835
      %v2837 = vpop.f32.mrf.mxu0
      %2838 = vmatprep.mubr.bf16.mxu0 0
      %2839 = vmatmul.mubr.bf16.gmra.mxu0 %v2536
      %v2840 = vpop.f32.mrf.mxu0
      %v2841 = vadd.f32 %v2674, %v2840
      %v2842 = vpop.f32.mrf.mxu0
      %v2843 = vpop.f32.mrf.mxu0
      %v2844 = vadd.f32 %v2677, %v2843
      %v2845 = vpop.f32.mrf.mxu0
      %2846 = vmatprep.mubr.bf16.mxu0 0
      %2847 = vmatmul.mubr.bf16.gmra.mxu0 %v2539
      %v2848 = vpop.f32.mrf.mxu0
      %v2849 = vadd.f32 %v2682, %v2848
      %v2850 = vpop.f32.mrf.mxu0
      %v2851 = vpop.f32.mrf.mxu0
      %v2852 = vadd.f32 %v2685, %v2851
      %v2853 = vpop.f32.mrf.mxu0
      %2854 = vmatprep.mubr.bf16.mxu0 0
      %2855 = vmatmul.mubr.bf16.gmra.mxu0 %v2542
      %v2856 = vpop.f32.mrf.mxu0
      %v2857 = vadd.f32 %v2690, %v2856
      %v2858 = vpop.f32.mrf.mxu0
      %v2859 = vpop.f32.mrf.mxu0
      %v2860 = vadd.f32 %v2693, %v2859
      %v2861 = vpop.f32.mrf.mxu0
      %2862 = vmatprep.mubr.bf16.mxu0 0
      %2863 = vmatmul.mubr.bf16.gmra.mxu0 %v2545
      %v2864 = vpop.f32.mrf.mxu0
      %v2865 = vadd.f32 %v2698, %v2864
      %v2866 = vpop.f32.mrf.mxu0
      %v2867 = vpop.f32.mrf.mxu0
      %v2868 = vadd.f32 %v2701, %v2867
      %v2869 = vpop.f32.mrf.mxu0
      %2870 = vmatprep.mubr.bf16.mxu0 0
      %2871 = vmatmul.mubr.bf16.gmra.mxu0 %v2548
      %v2872 = vpop.f32.mrf.mxu0
      %v2873 = vadd.f32 %v2706, %v2872
      %v2874 = vpop.f32.mrf.mxu0
      %v2875 = vpop.f32.mrf.mxu0
      %v2876 = vadd.f32 %v2709, %v2875
      %v2877 = vpop.f32.mrf.mxu0
      %2878 = vmatprep.mubr.bf16.mxu0 0
      %2879 = vmatmul.mubr.bf16.gmra.mxu0 %v2551
      %v2880 = vpop.f32.mrf.mxu0
      %v2881 = vadd.f32 %v2714, %v2880
      %v2882 = vpop.f32.mrf.mxu0
      %v2883 = vpop.f32.mrf.mxu0
      %v2884 = vadd.f32 %v2717, %v2883
      %v2885 = vpop.f32.mrf.mxu0
      %2886 = vdwg.mxu0
      %v2887 = vld [vmem:[#allocation2 + $0x29] sm:$0xff]
      %v2888 = vld [vmem:[#allocation2 + $0x31] sm:$0xff]
      %v2889 = vld [vmem:[#allocation2 + $0x39] sm:$0xff]
      %v2890 = vld [vmem:[#allocation2 + $0x41] sm:$0xff]
      %v2891 = vld [vmem:[#allocation2 + $0x49] sm:$0xff]
      %v2892 = vld [vmem:[#allocation2 + $0x51] sm:$0xff]
      %v2893 = vld [vmem:[#allocation2 + $0x59] sm:$0xff]
      %v2894 = vld [vmem:[#allocation2 + $0x61] sm:$0xff]
      %v2895 = vld [vmem:[#allocation2 + $0x69] sm:$0xff]
      %v2896 = vld [vmem:[#allocation2 + $0x71] sm:$0xff]
      %v2897 = vld [vmem:[#allocation2 + $0x79] sm:$0xff]
      %v2898 = vld [vmem:[#allocation2 + $0x81] sm:$0xff]
      %v2899 = vld [vmem:[#allocation2 + $0x89] sm:$0xff]
      %v2900 = vld [vmem:[#allocation2 + $0x91] sm:$0xff]
      %v2901 = vld [vmem:[#allocation2 + $0x99] sm:$0xff]
      %v2902 = vld [vmem:[#allocation2 + $0xa1] sm:$0xff]
      %v2903 = vld [vmem:[#allocation2 + $0xa9] sm:$0xff]
      %v2904 = vld [vmem:[#allocation2 + $0xb1] sm:$0xff]
      %v2905 = vld [vmem:[#allocation2 + $0xb9] sm:$0xff]
      %v2906 = vld [vmem:[#allocation2 + $0xc1] sm:$0xff]
      %v2907 = vld [vmem:[#allocation2 + $0xc9] sm:$0xff]
      %v2908 = vld [vmem:[#allocation2 + $0xd1] sm:$0xff]
      %v2909 = vld [vmem:[#allocation2 + $0xd9] sm:$0xff]
      %v2910 = vld [vmem:[#allocation2 + $0xe1] sm:$0xff]
      %v2911 = vld [vmem:[#allocation2 + $0xe9] sm:$0xff]
      %v2912 = vld [vmem:[#allocation2 + $0xf1] sm:$0xff]
      %v2913 = vld [vmem:[#allocation2 + $0xf9] sm:$0xff]
      %v2914 = vld [vmem:[#allocation2 + $0x101] sm:$0xff]
      %v2915 = vld [vmem:[#allocation2 + $0x109] sm:$0xff]
      %v2916 = vld [vmem:[#allocation2 + $0x111] sm:$0xff]
      %v2917 = vld [vmem:[#allocation2 + $0x119] sm:$0xff]
      %v2918 = vld [vmem:[#allocation2 + $0x121] sm:$0xff]
      %v2919 = vpack.c.bf16 %v2888, %v2887
      %v2920 = vpack.c.bf16 %v2890, %v2889
      %v2921 = vpack.c.bf16 %v2892, %v2891
      %v2922 = vpack.c.bf16 %v2894, %v2893
      %v2923 = vpack.c.bf16 %v2896, %v2895
      %v2924 = vpack.c.bf16 %v2898, %v2897
      %v2925 = vpack.c.bf16 %v2900, %v2899
      %v2926 = vpack.c.bf16 %v2902, %v2901
      %v2927 = vpack.c.bf16 %v2904, %v2903
      %v2928 = vpack.c.bf16 %v2906, %v2905
      %v2929 = vpack.c.bf16 %v2908, %v2907
      %v2930 = vpack.c.bf16 %v2910, %v2909
      %v2931 = vpack.c.bf16 %v2912, %v2911
      %v2932 = vpack.c.bf16 %v2914, %v2913
      %v2933 = vpack.c.bf16 %v2916, %v2915
      %v2934 = vpack.c.bf16 %v2918, %v2917
      %s2935 = scalar_lea.vmem %s1, 32
      %v2936 = vld [vmem:[%s2935] sm:$0xf]
      %v2938 = vsel %vm636, %v2919, 0
      %v2941 = vsel %vm636, %v2920, 0
      %v2944 = vsel %vm636, %v2921, 0
      %v2947 = vsel %vm636, %v2922, 0
      %v2950 = vsel %vm636, %v2923, 0
      %v2953 = vsel %vm636, %v2924, 0
      %v2956 = vsel %vm636, %v2925, 0
      %v2959 = vsel %vm636, %v2926, 0
      %v2962 = vsel %vm636, %v2927, 0
      %v2965 = vsel %vm636, %v2928, 0
      %v2968 = vsel %vm636, %v2929, 0
      %v2971 = vsel %vm636, %v2930, 0
      %v2974 = vsel %vm636, %v2931, 0
      %v2977 = vsel %vm636, %v2932, 0
      %v2980 = vsel %vm636, %v2933, 0
      %v2983 = vsel %vm636, %v2934, 0
      %v2986 = vsel %vm1035, %v2936, 0
      %2988 = vmatprep.subr.bf16.mxu0 0
      %2989 = vmatpush1.bf16.msra.mxu0 0
      %2990 = vmatprep.subr.bf16.mxu0 0
      %2991 = vmatpush1.bf16.msra.mxu0 0
      %2992 = vmatprep.subr.bf16.mxu0 0
      %2993 = vmatpush1.bf16.msra.mxu0 0
      %2994 = vmatprep.subr.bf16.mxu0 0
      %2995 = vmatpush1.bf16.msra.mxu0 0
      %2996 = vmatprep.subr.bf16.mxu0 0
      %2997 = vmatpush1.bf16.msra.mxu0 0
      %2998 = vmatprep.subr.bf16.mxu0 0
      %2999 = vmatpush1.bf16.msra.mxu0 0
      %3000 = vmatprep.subr.bf16.mxu0 0
      %3001 = vmatpush1.bf16.msra.mxu0 0
      %3002 = vmatprep.subr.bf16.mxu0 0
      %3003 = vmatpush1.bf16.msra.mxu0 %v2986
      %3004 = vmatprep.subr.bf16.mxu0 0
      %3005 = vmatpush2.bf16.msra.mxu0 0
      %3006 = vmatprep.subr.bf16.mxu0 0
      %3007 = vmatpush2.bf16.msra.mxu0 0
      %3008 = vmatprep.subr.bf16.mxu0 0
      %3009 = vmatpush2.bf16.msra.mxu0 0
      %3010 = vmatprep.subr.bf16.mxu0 0
      %3011 = vmatpush2.bf16.msra.mxu0 0
      %3012 = vmatprep.subr.bf16.mxu0 0
      %3013 = vmatpush2.bf16.msra.mxu0 0
      %3014 = vmatprep.subr.bf16.mxu0 0
      %3015 = vmatpush2.bf16.msra.mxu0 0
      %3016 = vmatprep.subr.bf16.mxu0 0
      %3017 = vmatpush2.bf16.msra.mxu0 0
      %3018 = vmatprep.subr.bf16.mxu0 0
      %3019 = vmatpush2.bf16.msra.mxu0 0
      %3020 = vmatprep.mubr.bf16.mxu0 0
      %3021 = vmatmul.mubr.bf16.gmra.mxu0 %v2938
      %v3022 = vpop.f32.mrf.mxu0
      %v3023 = vadd.f32 0.0, %v3022
      %v3024 = vpop.f32.mrf.mxu0
      %v3025 = vpop.f32.mrf.mxu0
      %v3026 = vadd.f32 0.0, %v3025
      %v3027 = vpop.f32.mrf.mxu0
      %3028 = vmatprep.mubr.bf16.mxu0 0
      %3029 = vmatmul.mubr.bf16.gmra.mxu0 %v2941
      %v3030 = vpop.f32.mrf.mxu0
      %v3031 = vadd.f32 0.0, %v3030
      %v3032 = vpop.f32.mrf.mxu0
      %v3033 = vpop.f32.mrf.mxu0
      %v3034 = vadd.f32 0.0, %v3033
      %v3035 = vpop.f32.mrf.mxu0
      %3036 = vmatprep.mubr.bf16.mxu0 0
      %3037 = vmatmul.mubr.bf16.gmra.mxu0 %v2944
      %v3038 = vpop.f32.mrf.mxu0
      %v3039 = vadd.f32 0.0, %v3038
      %v3040 = vpop.f32.mrf.mxu0
      %v3041 = vpop.f32.mrf.mxu0
      %v3042 = vadd.f32 0.0, %v3041
      %v3043 = vpop.f32.mrf.mxu0
      %3044 = vmatprep.mubr.bf16.mxu0 0
      %3045 = vmatmul.mubr.bf16.gmra.mxu0 %v2947
      %v3046 = vpop.f32.mrf.mxu0
      %v3047 = vadd.f32 0.0, %v3046
      %v3048 = vpop.f32.mrf.mxu0
      %v3049 = vpop.f32.mrf.mxu0
      %v3050 = vadd.f32 0.0, %v3049
      %v3051 = vpop.f32.mrf.mxu0
      %3052 = vmatprep.mubr.bf16.mxu0 0
      %3053 = vmatmul.mubr.bf16.gmra.mxu0 %v2950
      %v3054 = vpop.f32.mrf.mxu0
      %v3055 = vadd.f32 0.0, %v3054
      %v3056 = vpop.f32.mrf.mxu0
      %v3057 = vpop.f32.mrf.mxu0
      %v3058 = vadd.f32 0.0, %v3057
      %v3059 = vpop.f32.mrf.mxu0
      %3060 = vmatprep.mubr.bf16.mxu0 0
      %3061 = vmatmul.mubr.bf16.gmra.mxu0 %v2953
      %v3062 = vpop.f32.mrf.mxu0
      %v3063 = vadd.f32 0.0, %v3062
      %v3064 = vpop.f32.mrf.mxu0
      %v3065 = vpop.f32.mrf.mxu0
      %v3066 = vadd.f32 0.0, %v3065
      %v3067 = vpop.f32.mrf.mxu0
      %3068 = vmatprep.mubr.bf16.mxu0 0
      %3069 = vmatmul.mubr.bf16.gmra.mxu0 %v2956
      %v3070 = vpop.f32.mrf.mxu0
      %v3071 = vadd.f32 0.0, %v3070
      %v3072 = vpop.f32.mrf.mxu0
      %v3073 = vpop.f32.mrf.mxu0
      %v3074 = vadd.f32 0.0, %v3073
      %v3075 = vpop.f32.mrf.mxu0
      %3076 = vmatprep.mubr.bf16.mxu0 0
      %3077 = vmatmul.mubr.bf16.gmra.mxu0 %v2959
      %v3078 = vpop.f32.mrf.mxu0
      %v3079 = vadd.f32 0.0, %v3078
      %v3080 = vpop.f32.mrf.mxu0
      %v3081 = vpop.f32.mrf.mxu0
      %v3082 = vadd.f32 0.0, %v3081
      %v3083 = vpop.f32.mrf.mxu0
      %3084 = vmatprep.mubr.bf16.mxu0 0
      %3085 = vmatmul.mubr.bf16.gmra.mxu0 %v2962
      %v3086 = vpop.f32.mrf.mxu0
      %v3087 = vadd.f32 0.0, %v3086
      %v3088 = vpop.f32.mrf.mxu0
      %v3089 = vpop.f32.mrf.mxu0
      %v3090 = vadd.f32 0.0, %v3089
      %v3091 = vpop.f32.mrf.mxu0
      %3092 = vmatprep.mubr.bf16.mxu0 0
      %3093 = vmatmul.mubr.bf16.gmra.mxu0 %v2965
      %v3094 = vpop.f32.mrf.mxu0
      %v3095 = vadd.f32 0.0, %v3094
      %v3096 = vpop.f32.mrf.mxu0
      %v3097 = vpop.f32.mrf.mxu0
      %v3098 = vadd.f32 0.0, %v3097
      %v3099 = vpop.f32.mrf.mxu0
      %3100 = vmatprep.mubr.bf16.mxu0 0
      %3101 = vmatmul.mubr.bf16.gmra.mxu0 %v2968
      %v3102 = vpop.f32.mrf.mxu0
      %v3103 = vadd.f32 0.0, %v3102
      %v3104 = vpop.f32.mrf.mxu0
      %v3105 = vpop.f32.mrf.mxu0
      %v3106 = vadd.f32 0.0, %v3105
      %v3107 = vpop.f32.mrf.mxu0
      %3108 = vmatprep.mubr.bf16.mxu0 0
      %3109 = vmatmul.mubr.bf16.gmra.mxu0 %v2971
      %v3110 = vpop.f32.mrf.mxu0
      %v3111 = vadd.f32 0.0, %v3110
      %v3112 = vpop.f32.mrf.mxu0
      %v3113 = vpop.f32.mrf.mxu0
      %v3114 = vadd.f32 0.0, %v3113
      %v3115 = vpop.f32.mrf.mxu0
      %3116 = vmatprep.mubr.bf16.mxu0 0
      %3117 = vmatmul.mubr.bf16.gmra.mxu0 %v2974
      %v3118 = vpop.f32.mrf.mxu0
      %v3119 = vadd.f32 0.0, %v3118
      %v3120 = vpop.f32.mrf.mxu0
      %v3121 = vpop.f32.mrf.mxu0
      %v3122 = vadd.f32 0.0, %v3121
      %v3123 = vpop.f32.mrf.mxu0
      %3124 = vmatprep.mubr.bf16.mxu0 0
      %3125 = vmatmul.mubr.bf16.gmra.mxu0 %v2977
      %v3126 = vpop.f32.mrf.mxu0
      %v3127 = vadd.f32 0.0, %v3126
      %v3128 = vpop.f32.mrf.mxu0
      %v3129 = vpop.f32.mrf.mxu0
      %v3130 = vadd.f32 0.0, %v3129
      %v3131 = vpop.f32.mrf.mxu0
      %3132 = vmatprep.mubr.bf16.mxu0 0
      %3133 = vmatmul.mubr.bf16.gmra.mxu0 %v2980
      %v3134 = vpop.f32.mrf.mxu0
      %v3135 = vadd.f32 0.0, %v3134
      %v3136 = vpop.f32.mrf.mxu0
      %v3137 = vpop.f32.mrf.mxu0
      %v3138 = vadd.f32 0.0, %v3137
      %v3139 = vpop.f32.mrf.mxu0
      %3140 = vmatprep.mubr.bf16.mxu0 0
      %3141 = vmatmul.mubr.bf16.gmra.mxu0 %v2983
      %v3142 = vpop.f32.mrf.mxu0
      %v3143 = vadd.f32 0.0, %v3142
      %v3144 = vpop.f32.mrf.mxu0
      %v3145 = vpop.f32.mrf.mxu0
      %v3146 = vadd.f32 0.0, %v3145
      %v3147 = vpop.f32.mrf.mxu0
      %3148 = vdwg.mxu0
      %v3149 = vadd.f32 %v2761, %v3023
      %v3150 = vadd.f32 %v2764, %v3026
      %v3151 = vadd.f32 %v2769, %v3031
      %v3152 = vadd.f32 %v2772, %v3034
      %v3153 = vadd.f32 %v2777, %v3039
      %v3154 = vadd.f32 %v2780, %v3042
      %v3155 = vadd.f32 %v2785, %v3047
      %v3156 = vadd.f32 %v2788, %v3050
      %v3157 = vadd.f32 %v2793, %v3055
      %v3158 = vadd.f32 %v2796, %v3058
      %v3159 = vadd.f32 %v2801, %v3063
      %v3160 = vadd.f32 %v2804, %v3066
      %v3161 = vadd.f32 %v2809, %v3071
      %v3162 = vadd.f32 %v2812, %v3074
      %v3163 = vadd.f32 %v2817, %v3079
      %v3164 = vadd.f32 %v2820, %v3082
      %v3165 = vadd.f32 %v2825, %v3087
      %v3166 = vadd.f32 %v2828, %v3090
      %v3167 = vadd.f32 %v2833, %v3095
      %v3168 = vadd.f32 %v2836, %v3098
      %v3169 = vadd.f32 %v2841, %v3103
      %v3170 = vadd.f32 %v2844, %v3106
      %v3171 = vadd.f32 %v2849, %v3111
      %v3172 = vadd.f32 %v2852, %v3114
      %v3173 = vadd.f32 %v2857, %v3119
      %v3174 = vadd.f32 %v2860, %v3122
      %v3175 = vadd.f32 %v2865, %v3127
      %v3176 = vadd.f32 %v2868, %v3130
      %v3177 = vadd.f32 %v2873, %v3135
      %v3178 = vadd.f32 %v2876, %v3138
      %v3179 = vadd.f32 %v2881, %v3143
      %v3180 = vadd.f32 %v2884, %v3146
      %v3181 = vmul.f32 %v3149, %v901
      %v3182 = vmul.f32 %v3150, %v902
      %v3183 = vmul.f32 %v3151, %v903
      %v3184 = vmul.f32 %v3152, %v904
      %v3185 = vmul.f32 %v3153, %v905
      %v3186 = vmul.f32 %v3154, %v906
      %v3187 = vmul.f32 %v3155, %v907
      %v3188 = vmul.f32 %v3156, %v908
      %v3189 = vmul.f32 %v3157, %v909
      %v3190 = vmul.f32 %v3158, %v910
      %v3191 = vmul.f32 %v3159, %v911
      %v3192 = vmul.f32 %v3160, %v912
      %v3193 = vmul.f32 %v3161, %v913
      %v3194 = vmul.f32 %v3162, %v914
      %v3195 = vmul.f32 %v3163, %v915
      %v3196 = vmul.f32 %v3164, %v916
      %v3197 = vmul.f32 %v3165, %v917
      %v3198 = vmul.f32 %v3166, %v918
      %v3199 = vmul.f32 %v3167, %v919
      %v3200 = vmul.f32 %v3168, %v920
      %v3201 = vmul.f32 %v3169, %v921
      %v3202 = vmul.f32 %v3170, %v922
      %v3203 = vmul.f32 %v3171, %v923
      %v3204 = vmul.f32 %v3172, %v924
      %v3205 = vmul.f32 %v3173, %v925
      %v3206 = vmul.f32 %v3174, %v926
      %v3207 = vmul.f32 %v3175, %v927
      %v3208 = vmul.f32 %v3176, %v928
      %v3209 = vmul.f32 %v3177, %v929
      %v3210 = vmul.f32 %v3178, %v930
      %v3211 = vmul.f32 %v3179, %v931
      %v3212 = vmul.f32 %v3180, %v932
      %v3213 = vadd.f32 %v2421, %v3181
      %v3214 = vadd.f32 %v2422, %v3182
      %v3215 = vadd.f32 %v2423, %v3183
      %v3216 = vadd.f32 %v2424, %v3184
      %v3217 = vadd.f32 %v2425, %v3185
      %v3218 = vadd.f32 %v2426, %v3186
      %v3219 = vadd.f32 %v2427, %v3187
      %v3220 = vadd.f32 %v2428, %v3188
      %v3221 = vadd.f32 %v2429, %v3189
      %v3222 = vadd.f32 %v2430, %v3190
      %v3223 = vadd.f32 %v2431, %v3191
      %v3224 = vadd.f32 %v2432, %v3192
      %v3225 = vadd.f32 %v2433, %v3193
      %v3226 = vadd.f32 %v2434, %v3194
      %v3227 = vadd.f32 %v2435, %v3195
      %v3228 = vadd.f32 %v2436, %v3196
      %v3229 = vadd.f32 %v2437, %v3197
      %v3230 = vadd.f32 %v2438, %v3198
      %v3231 = vadd.f32 %v2439, %v3199
      %v3232 = vadd.f32 %v2440, %v3200
      %v3233 = vadd.f32 %v2441, %v3201
      %v3234 = vadd.f32 %v2442, %v3202
      %v3235 = vadd.f32 %v2443, %v3203
      %v3236 = vadd.f32 %v2444, %v3204
      %v3237 = vadd.f32 %v2445, %v3205
      %v3238 = vadd.f32 %v2446, %v3206
      %v3239 = vadd.f32 %v2447, %v3207
      %v3240 = vadd.f32 %v2448, %v3208
      %v3241 = vadd.f32 %v2449, %v3209
      %v3242 = vadd.f32 %v2450, %v3210
      %v3243 = vadd.f32 %v2451, %v3211
      %v3244 = vadd.f32 %v2452, %v3212
      %v3245 = vld [vmem:[%s2] sm:$0x1]
      %v3247 = vlaneseq
      %v3248 = vshrl.u32 %v3247, 7
      %v3249 = vsub.s32 0, %v3248
      %v3250 = vrot.slane %v3245, %v3249
      %v3252 = vadd.f32 %v3213, %v3250
      %v3253 = vadd.f32 %v3214, %v3250
      %v3254 = vadd.f32 %v3215, %v3250
      %v3255 = vadd.f32 %v3216, %v3250
      %v3256 = vadd.f32 %v3217, %v3250
      %v3257 = vadd.f32 %v3218, %v3250
      %v3258 = vadd.f32 %v3219, %v3250
      %v3259 = vadd.f32 %v3220, %v3250
      %v3260 = vadd.f32 %v3221, %v3250
      %v3261 = vadd.f32 %v3222, %v3250
      %v3262 = vadd.f32 %v3223, %v3250
      %v3263 = vadd.f32 %v3224, %v3250
      %v3264 = vadd.f32 %v3225, %v3250
      %v3265 = vadd.f32 %v3226, %v3250
      %v3266 = vadd.f32 %v3227, %v3250
      %v3267 = vadd.f32 %v3228, %v3250
      %v3268 = vadd.f32 %v3229, %v3250
      %v3269 = vadd.f32 %v3230, %v3250
      %v3270 = vadd.f32 %v3231, %v3250
      %v3271 = vadd.f32 %v3232, %v3250
      %v3272 = vadd.f32 %v3233, %v3250
      %v3273 = vadd.f32 %v3234, %v3250
      %v3274 = vadd.f32 %v3235, %v3250
      %v3275 = vadd.f32 %v3236, %v3250
      %v3276 = vadd.f32 %v3237, %v3250
      %v3277 = vadd.f32 %v3238, %v3250
      %v3278 = vadd.f32 %v3239, %v3250
      %v3279 = vadd.f32 %v3240, %v3250
      %v3280 = vadd.f32 %v3241, %v3250
      %v3281 = vadd.f32 %v3242, %v3250
      %v3282 = vadd.f32 %v3243, %v3250
      %v3283 = vadd.f32 %v3244, %v3250
      %v3284 = vmax.f32 %v3252, 0.0
      %v3285 = vmax.f32 %v3253, 0.0
      %v3286 = vmax.f32 %v3254, 0.0
      %v3287 = vmax.f32 %v3255, 0.0
      %v3288 = vmax.f32 %v3256, 0.0
      %v3289 = vmax.f32 %v3257, 0.0
      %v3290 = vmax.f32 %v3258, 0.0
      %v3291 = vmax.f32 %v3259, 0.0
      %v3292 = vmax.f32 %v3260, 0.0
      %v3293 = vmax.f32 %v3261, 0.0
      %v3294 = vmax.f32 %v3262, 0.0
      %v3295 = vmax.f32 %v3263, 0.0
      %v3296 = vmax.f32 %v3264, 0.0
      %v3297 = vmax.f32 %v3265, 0.0
      %v3298 = vmax.f32 %v3266, 0.0
      %v3299 = vmax.f32 %v3267, 0.0
      %v3300 = vmax.f32 %v3268, 0.0
      %v3301 = vmax.f32 %v3269, 0.0
      %v3302 = vmax.f32 %v3270, 0.0
      %v3303 = vmax.f32 %v3271, 0.0
      %v3304 = vmax.f32 %v3272, 0.0
      %v3305 = vmax.f32 %v3273, 0.0
      %v3306 = vmax.f32 %v3274, 0.0
      %v3307 = vmax.f32 %v3275, 0.0
      %v3308 = vmax.f32 %v3276, 0.0
      %v3309 = vmax.f32 %v3277, 0.0
      %v3310 = vmax.f32 %v3278, 0.0
      %v3311 = vmax.f32 %v3279, 0.0
      %v3312 = vmax.f32 %v3280, 0.0
      %v3313 = vmax.f32 %v3281, 0.0
      %v3314 = vmax.f32 %v3282, 0.0
      %v3315 = vmax.f32 %v3283, 0.0
      %v3316 = vpack.c.bf16 %v3285, %v3284
      %v3317 = vpack.c.bf16 %v3287, %v3286
      %v3318 = vpack.c.bf16 %v3289, %v3288
      %v3319 = vpack.c.bf16 %v3291, %v3290
      %v3320 = vpack.c.bf16 %v3293, %v3292
      %v3321 = vpack.c.bf16 %v3295, %v3294
      %v3322 = vpack.c.bf16 %v3297, %v3296
      %v3323 = vpack.c.bf16 %v3299, %v3298
      %v3324 = vpack.c.bf16 %v3301, %v3300
      %v3325 = vpack.c.bf16 %v3303, %v3302
      %v3326 = vpack.c.bf16 %v3305, %v3304
      %v3327 = vpack.c.bf16 %v3307, %v3306
      %v3328 = vpack.c.bf16 %v3309, %v3308
      %v3329 = vpack.c.bf16 %v3311, %v3310
      %v3330 = vpack.c.bf16 %v3313, %v3312
      %v3331 = vpack.c.bf16 %v3315, %v3314
      %v3332 = vld [vmem:[%s3] sm:$0xff]
      %v3333 = vld [vmem:[%s3 + $0x8] sm:$0xff]
      %v3334 = vld [vmem:[%s3 + $0x10] sm:$0xff]
      %v3335 = vld [vmem:[%s3 + $0x18] sm:$0xff]
      %v3336 = vld [vmem:[%s3 + $0x20] sm:$0xff]
      %v3337 = vld [vmem:[%s3 + $0x28] sm:$0xff]
      %v3338 = vld [vmem:[%s3 + $0x30] sm:$0xff]
      %v3339 = vld [vmem:[%s3 + $0x38] sm:$0xff]
      %v3348 = vunpack.c.l.b16 %v3332
      %v3349 = vunpack.c.h.b16 %v3332
      %v3350 = vunpack.c.l.b16 %v3333
      %v3351 = vunpack.c.h.b16 %v3333
      %v3352 = vunpack.c.l.b16 %v3334
      %v3353 = vunpack.c.h.b16 %v3334
      %v3354 = vunpack.c.l.b16 %v3335
      %v3355 = vunpack.c.h.b16 %v3335
      %v3356 = vunpack.c.l.b16 %v3336
      %v3357 = vunpack.c.h.b16 %v3336
      %v3358 = vunpack.c.l.b16 %v3337
      %v3359 = vunpack.c.h.b16 %v3337
      %v3360 = vunpack.c.l.b16 %v3338
      %v3361 = vunpack.c.h.b16 %v3338
      %v3362 = vunpack.c.l.b16 %v3339
      %v3363 = vunpack.c.h.b16 %v3339
      %v3364 = vpack.c.b16 %v3350, %v3348
      %v3365 = vpack.c.b16 %v3351, %v3349
      %v3366 = vpack.c.b16 %v3354, %v3352
      %v3367 = vpack.c.b16 %v3355, %v3353
      %v3368 = vpack.c.b16 %v3358, %v3356
      %v3369 = vpack.c.b16 %v3359, %v3357
      %v3370 = vpack.c.b16 %v3362, %v3360
      %v3371 = vpack.c.b16 %v3363, %v3361
      %3380 = vmatprep.subr.bf16.mxu0 0
      %3381 = vmatpush1.bf16.msra.mxu0 %v3323
      %3382 = vmatprep.subr.bf16.mxu0 0
      %3383 = vmatpush1.bf16.msra.mxu0 %v3322
      %3384 = vmatprep.subr.bf16.mxu0 0
      %3385 = vmatpush1.bf16.msra.mxu0 %v3321
      %3386 = vmatprep.subr.bf16.mxu0 0
      %3387 = vmatpush1.bf16.msra.mxu0 %v3320
      %3388 = vmatprep.subr.bf16.mxu0 0
      %3389 = vmatpush1.bf16.msra.mxu0 %v3319
      %3390 = vmatprep.subr.bf16.mxu0 0
      %3391 = vmatpush1.bf16.msra.mxu0 %v3318
      %3392 = vmatprep.subr.bf16.mxu0 0
      %3393 = vmatpush1.bf16.msra.mxu0 %v3317
      %3394 = vmatprep.subr.bf16.mxu0 0
      %3395 = vmatpush1.bf16.msra.mxu0 %v3316
      %3396 = vmatprep.subr.bf16.mxu0 0
      %3397 = vmatpush2.bf16.msra.mxu0 %v3331
      %3398 = vmatprep.subr.bf16.mxu0 0
      %3399 = vmatpush2.bf16.msra.mxu0 %v3330
      %3400 = vmatprep.subr.bf16.mxu0 0
      %3401 = vmatpush2.bf16.msra.mxu0 %v3329
      %3402 = vmatprep.subr.bf16.mxu0 0
      %3403 = vmatpush2.bf16.msra.mxu0 %v3328
      %3404 = vmatprep.subr.bf16.mxu0 0
      %3405 = vmatpush2.bf16.msra.mxu0 %v3327
      %3406 = vmatprep.subr.bf16.mxu0 0
      %3407 = vmatpush2.bf16.msra.mxu0 %v3326
      %3408 = vmatprep.subr.bf16.mxu0 0
      %3409 = vmatpush2.bf16.msra.mxu0 %v3325
      %3410 = vmatprep.subr.bf16.mxu0 0
      %3411 = vmatpush2.bf16.msra.mxu0 %v3324
      %3412 = vmatprep.mubr.bf16.mxu0 %v3365
      %3413 = vmatmul.mubr.bf16.gmra.mxu0 %v3364
      %v3414 = vpop.f32.mrf.mxu0
      %v3415 = vadd.f32 0.0, %v3414
      %v3416 = vpop.f32.mrf.mxu0
      %v3417 = vpop.f32.mrf.mxu0
      %v3418 = vadd.f32 0.0, %v3417
      %v3419 = vpop.f32.mrf.mxu0
      %3420 = vmatprep.mubr.bf16.mxu0 %v3367
      %3421 = vmatmul.mubr.bf16.gmra.mxu0 %v3366
      %v3422 = vpop.f32.mrf.mxu0
      %v3423 = vadd.f32 0.0, %v3422
      %v3424 = vpop.f32.mrf.mxu0
      %v3425 = vpop.f32.mrf.mxu0
      %v3426 = vadd.f32 0.0, %v3425
      %v3427 = vpop.f32.mrf.mxu0
      %3428 = vmatprep.mubr.bf16.mxu0 %v3369
      %3429 = vmatmul.mubr.bf16.gmra.mxu0 %v3368
      %v3430 = vpop.f32.mrf.mxu0
      %v3431 = vadd.f32 0.0, %v3430
      %v3432 = vpop.f32.mrf.mxu0
      %v3433 = vpop.f32.mrf.mxu0
      %v3434 = vadd.f32 0.0, %v3433
      %v3435 = vpop.f32.mrf.mxu0
      %3436 = vmatprep.mubr.bf16.mxu0 %v3371
      %3437 = vmatmul.mubr.bf16.gmra.mxu0 %v3370
      %v3438 = vpop.f32.mrf.mxu0
      %v3439 = vadd.f32 0.0, %v3438
      %v3440 = vpop.f32.mrf.mxu0
      %v3441 = vpop.f32.mrf.mxu0
      %v3442 = vadd.f32 0.0, %v3441
      %v3443 = vpop.f32.mrf.mxu0
      %3444 = vdwg.mxu0
      %s3445 = scalar_lea.vmem %s3, 64
      %v3446 = vld [vmem:[%s3445] sm:$0xff]
      %v3447 = vld [vmem:[%s3445 + $0x8] sm:$0xff]
      %v3448 = vld [vmem:[%s3445 + $0x10] sm:$0xff]
      %v3449 = vld [vmem:[%s3445 + $0x18] sm:$0xff]
      %v3450 = vld [vmem:[%s3445 + $0x20] sm:$0xff]
      %v3451 = vld [vmem:[%s3445 + $0x28] sm:$0xff]
      %v3452 = vld [vmem:[%s3445 + $0x30] sm:$0xff]
      %v3453 = vld [vmem:[%s3445 + $0x38] sm:$0xff]
      %v3462 = vunpack.c.l.b16 %v3446
      %v3463 = vunpack.c.h.b16 %v3446
      %v3464 = vunpack.c.l.b16 %v3447
      %v3465 = vunpack.c.h.b16 %v3447
      %v3466 = vunpack.c.l.b16 %v3448
      %v3467 = vunpack.c.h.b16 %v3448
      %v3468 = vunpack.c.l.b16 %v3449
      %v3469 = vunpack.c.h.b16 %v3449
      %v3470 = vunpack.c.l.b16 %v3450
      %v3471 = vunpack.c.h.b16 %v3450
      %v3472 = vunpack.c.l.b16 %v3451
      %v3473 = vunpack.c.h.b16 %v3451
      %v3474 = vunpack.c.l.b16 %v3452
      %v3475 = vunpack.c.h.b16 %v3452
      %v3476 = vunpack.c.l.b16 %v3453
      %v3477 = vunpack.c.h.b16 %v3453
      %v3478 = vpack.c.b16 %v3464, %v3462
      %v3479 = vpack.c.b16 %v3465, %v3463
      %v3480 = vpack.c.b16 %v3468, %v3466
      %v3481 = vpack.c.b16 %v3469, %v3467
      %v3482 = vpack.c.b16 %v3472, %v3470
      %v3483 = vpack.c.b16 %v3473, %v3471
      %v3484 = vpack.c.b16 %v3476, %v3474
      %v3485 = vpack.c.b16 %v3477, %v3475
      %3494 = vmatprep.subr.bf16.mxu0 0
      %3495 = vmatpush1.bf16.msra.mxu0 %v3323
      %3496 = vmatprep.subr.bf16.mxu0 0
      %3497 = vmatpush1.bf16.msra.mxu0 %v3322
      %3498 = vmatprep.subr.bf16.mxu0 0
      %3499 = vmatpush1.bf16.msra.mxu0 %v3321
      %3500 = vmatprep.subr.bf16.mxu0 0
      %3501 = vmatpush1.bf16.msra.mxu0 %v3320
      %3502 = vmatprep.subr.bf16.mxu0 0
      %3503 = vmatpush1.bf16.msra.mxu0 %v3319
      %3504 = vmatprep.subr.bf16.mxu0 0
      %3505 = vmatpush1.bf16.msra.mxu0 %v3318
      %3506 = vmatprep.subr.bf16.mxu0 0
      %3507 = vmatpush1.bf16.msra.mxu0 %v3317
      %3508 = vmatprep.subr.bf16.mxu0 0
      %3509 = vmatpush1.bf16.msra.mxu0 %v3316
      %3510 = vmatprep.subr.bf16.mxu0 0
      %3511 = vmatpush2.bf16.msra.mxu0 %v3331
      %3512 = vmatprep.subr.bf16.mxu0 0
      %3513 = vmatpush2.bf16.msra.mxu0 %v3330
      %3514 = vmatprep.subr.bf16.mxu0 0
      %3515 = vmatpush2.bf16.msra.mxu0 %v3329
      %3516 = vmatprep.subr.bf16.mxu0 0
      %3517 = vmatpush2.bf16.msra.mxu0 %v3328
      %3518 = vmatprep.subr.bf16.mxu0 0
      %3519 = vmatpush2.bf16.msra.mxu0 %v3327
      %3520 = vmatprep.subr.bf16.mxu0 0
      %3521 = vmatpush2.bf16.msra.mxu0 %v3326
      %3522 = vmatprep.subr.bf16.mxu0 0
      %3523 = vmatpush2.bf16.msra.mxu0 %v3325
      %3524 = vmatprep.subr.bf16.mxu0 0
      %3525 = vmatpush2.bf16.msra.mxu0 %v3324
      %3526 = vmatprep.mubr.bf16.mxu0 %v3479
      %3527 = vmatmul.mubr.bf16.gmra.mxu0 %v3478
      %v3528 = vpop.f32.mrf.mxu0
      %v3529 = vadd.f32 0.0, %v3528
      %v3530 = vpop.f32.mrf.mxu0
      %v3531 = vpop.f32.mrf.mxu0
      %v3532 = vadd.f32 0.0, %v3531
      %v3533 = vpop.f32.mrf.mxu0
      %3534 = vmatprep.mubr.bf16.mxu0 %v3481
      %3535 = vmatmul.mubr.bf16.gmra.mxu0 %v3480
      %v3536 = vpop.f32.mrf.mxu0
      %v3537 = vadd.f32 0.0, %v3536
      %v3538 = vpop.f32.mrf.mxu0
      %v3539 = vpop.f32.mrf.mxu0
      %v3540 = vadd.f32 0.0, %v3539
      %v3541 = vpop.f32.mrf.mxu0
      %3542 = vmatprep.mubr.bf16.mxu0 %v3483
      %3543 = vmatmul.mubr.bf16.gmra.mxu0 %v3482
      %v3544 = vpop.f32.mrf.mxu0
      %v3545 = vadd.f32 0.0, %v3544
      %v3546 = vpop.f32.mrf.mxu0
      %v3547 = vpop.f32.mrf.mxu0
      %v3548 = vadd.f32 0.0, %v3547
      %v3549 = vpop.f32.mrf.mxu0
      %3550 = vmatprep.mubr.bf16.mxu0 %v3485
      %3551 = vmatmul.mubr.bf16.gmra.mxu0 %v3484
      %v3552 = vpop.f32.mrf.mxu0
      %v3553 = vadd.f32 0.0, %v3552
      %v3554 = vpop.f32.mrf.mxu0
      %v3555 = vpop.f32.mrf.mxu0
      %v3556 = vadd.f32 0.0, %v3555
      %v3557 = vpop.f32.mrf.mxu0
      %3558 = vdwg.mxu0
      %v3559 = vmax.f32 %v3415, %v3529
      %v3560 = vmax.f32 %v3418, %v3532
      %v3561 = vmax.f32 %v3423, %v3537
      %v3562 = vmax.f32 %v3426, %v3540
      %v3563 = vmax.f32 %v3431, %v3545
      %v3564 = vmax.f32 %v3434, %v3548
      %v3565 = vmax.f32 %v3439, %v3553
      %v3566 = vmax.f32 %v3442, %v3556
      %s3567 = scalar_lea.vmem %s3, 128
      %v3568 = vld [vmem:[%s3567] sm:$0xff]
      %v3569 = vld [vmem:[%s3567 + $0x8] sm:$0xff]
      %v3570 = vld [vmem:[%s3567 + $0x10] sm:$0xff]
      %v3571 = vld [vmem:[%s3567 + $0x18] sm:$0xff]
      %v3572 = vld [vmem:[%s3567 + $0x20] sm:$0xff]
      %v3573 = vld [vmem:[%s3567 + $0x28] sm:$0xff]
      %v3574 = vld [vmem:[%s3567 + $0x30] sm:$0xff]
      %v3575 = vld [vmem:[%s3567 + $0x38] sm:$0xff]
      %v3584 = vunpack.c.l.b16 %v3568
      %v3585 = vunpack.c.h.b16 %v3568
      %v3586 = vunpack.c.l.b16 %v3569
      %v3587 = vunpack.c.h.b16 %v3569
      %v3588 = vunpack.c.l.b16 %v3570
      %v3589 = vunpack.c.h.b16 %v3570
      %v3590 = vunpack.c.l.b16 %v3571
      %v3591 = vunpack.c.h.b16 %v3571
      %v3592 = vunpack.c.l.b16 %v3572
      %v3593 = vunpack.c.h.b16 %v3572
      %v3594 = vunpack.c.l.b16 %v3573
      %v3595 = vunpack.c.h.b16 %v3573
      %v3596 = vunpack.c.l.b16 %v3574
      %v3597 = vunpack.c.h.b16 %v3574
      %v3598 = vunpack.c.l.b16 %v3575
      %v3599 = vunpack.c.h.b16 %v3575
      %v3600 = vpack.c.b16 %v3586, %v3584
      %v3601 = vpack.c.b16 %v3587, %v3585
      %v3602 = vpack.c.b16 %v3590, %v3588
      %v3603 = vpack.c.b16 %v3591, %v3589
      %v3604 = vpack.c.b16 %v3594, %v3592
      %v3605 = vpack.c.b16 %v3595, %v3593
      %v3606 = vpack.c.b16 %v3598, %v3596
      %v3607 = vpack.c.b16 %v3599, %v3597
      %3616 = vmatprep.subr.bf16.mxu0 0
      %3617 = vmatpush1.bf16.msra.mxu0 %v3323
      %3618 = vmatprep.subr.bf16.mxu0 0
      %3619 = vmatpush1.bf16.msra.mxu0 %v3322
      %3620 = vmatprep.subr.bf16.mxu0 0
      %3621 = vmatpush1.bf16.msra.mxu0 %v3321
      %3622 = vmatprep.subr.bf16.mxu0 0
      %3623 = vmatpush1.bf16.msra.mxu0 %v3320
      %3624 = vmatprep.subr.bf16.mxu0 0
      %3625 = vmatpush1.bf16.msra.mxu0 %v3319
      %3626 = vmatprep.subr.bf16.mxu0 0
      %3627 = vmatpush1.bf16.msra.mxu0 %v3318
      %3628 = vmatprep.subr.bf16.mxu0 0
      %3629 = vmatpush1.bf16.msra.mxu0 %v3317
      %3630 = vmatprep.subr.bf16.mxu0 0
      %3631 = vmatpush1.bf16.msra.mxu0 %v3316
      %3632 = vmatprep.subr.bf16.mxu0 0
      %3633 = vmatpush2.bf16.msra.mxu0 %v3331
      %3634 = vmatprep.subr.bf16.mxu0 0
      %3635 = vmatpush2.bf16.msra.mxu0 %v3330
      %3636 = vmatprep.subr.bf16.mxu0 0
      %3637 = vmatpush2.bf16.msra.mxu0 %v3329
      %3638 = vmatprep.subr.bf16.mxu0 0
      %3639 = vmatpush2.bf16.msra.mxu0 %v3328
      %3640 = vmatprep.subr.bf16.mxu0 0
      %3641 = vmatpush2.bf16.msra.mxu0 %v3327
      %3642 = vmatprep.subr.bf16.mxu0 0
      %3643 = vmatpush2.bf16.msra.mxu0 %v3326
      %3644 = vmatprep.subr.bf16.mxu0 0
      %3645 = vmatpush2.bf16.msra.mxu0 %v3325
      %3646 = vmatprep.subr.bf16.mxu0 0
      %3647 = vmatpush2.bf16.msra.mxu0 %v3324
      %3648 = vmatprep.mubr.bf16.mxu0 %v3601
      %3649 = vmatmul.mubr.bf16.gmra.mxu0 %v3600
      %v3650 = vpop.f32.mrf.mxu0
      %v3651 = vadd.f32 0.0, %v3650
      %v3652 = vpop.f32.mrf.mxu0
      %v3653 = vpop.f32.mrf.mxu0
      %v3654 = vadd.f32 0.0, %v3653
      %v3655 = vpop.f32.mrf.mxu0
      %3656 = vmatprep.mubr.bf16.mxu0 %v3603
      %3657 = vmatmul.mubr.bf16.gmra.mxu0 %v3602
      %v3658 = vpop.f32.mrf.mxu0
      %v3659 = vadd.f32 0.0, %v3658
      %v3660 = vpop.f32.mrf.mxu0
      %v3661 = vpop.f32.mrf.mxu0
      %v3662 = vadd.f32 0.0, %v3661
      %v3663 = vpop.f32.mrf.mxu0
      %3664 = vmatprep.mubr.bf16.mxu0 %v3605
      %3665 = vmatmul.mubr.bf16.gmra.mxu0 %v3604
      %v3666 = vpop.f32.mrf.mxu0
      %v3667 = vadd.f32 0.0, %v3666
      %v3668 = vpop.f32.mrf.mxu0
      %v3669 = vpop.f32.mrf.mxu0
      %v3670 = vadd.f32 0.0, %v3669
      %v3671 = vpop.f32.mrf.mxu0
      %3672 = vmatprep.mubr.bf16.mxu0 %v3607
      %3673 = vmatmul.mubr.bf16.gmra.mxu0 %v3606
      %v3674 = vpop.f32.mrf.mxu0
      %v3675 = vadd.f32 0.0, %v3674
      %v3676 = vpop.f32.mrf.mxu0
      %v3677 = vpop.f32.mrf.mxu0
      %v3678 = vadd.f32 0.0, %v3677
      %v3679 = vpop.f32.mrf.mxu0
      %3680 = vdwg.mxu0
      %v3681 = vmax.f32 %v3559, %v3651
      %v3682 = vmax.f32 %v3560, %v3654
      %v3683 = vmax.f32 %v3561, %v3659
      %v3684 = vmax.f32 %v3562, %v3662
      %v3685 = vmax.f32 %v3563, %v3667
      %v3686 = vmax.f32 %v3564, %v3670
      %v3687 = vmax.f32 %v3565, %v3675
      %v3688 = vmax.f32 %v3566, %v3678
      %s3689 = scalar_lea.vmem %s3, 192
      %v3690 = vld [vmem:[%s3689] sm:$0xff]
      %v3691 = vld [vmem:[%s3689 + $0x8] sm:$0xff]
      %v3692 = vld [vmem:[%s3689 + $0x10] sm:$0xff]
      %v3693 = vld [vmem:[%s3689 + $0x18] sm:$0xff]
      %v3694 = vld [vmem:[%s3689 + $0x20] sm:$0xff]
      %v3695 = vld [vmem:[%s3689 + $0x28] sm:$0xff]
      %v3696 = vld [vmem:[%s3689 + $0x30] sm:$0xff]
      %v3697 = vld [vmem:[%s3689 + $0x38] sm:$0xff]
      %v3706 = vunpack.c.l.b16 %v3690
      %v3707 = vunpack.c.h.b16 %v3690
      %v3708 = vunpack.c.l.b16 %v3691
      %v3709 = vunpack.c.h.b16 %v3691
      %v3710 = vunpack.c.l.b16 %v3692
      %v3711 = vunpack.c.h.b16 %v3692
      %v3712 = vunpack.c.l.b16 %v3693
      %v3713 = vunpack.c.h.b16 %v3693
      %v3714 = vunpack.c.l.b16 %v3694
      %v3715 = vunpack.c.h.b16 %v3694
      %v3716 = vunpack.c.l.b16 %v3695
      %v3717 = vunpack.c.h.b16 %v3695
      %v3718 = vunpack.c.l.b16 %v3696
      %v3719 = vunpack.c.h.b16 %v3696
      %v3720 = vunpack.c.l.b16 %v3697
      %v3721 = vunpack.c.h.b16 %v3697
      %v3722 = vpack.c.b16 %v3708, %v3706
      %v3723 = vpack.c.b16 %v3709, %v3707
      %v3724 = vpack.c.b16 %v3712, %v3710
      %v3725 = vpack.c.b16 %v3713, %v3711
      %v3726 = vpack.c.b16 %v3716, %v3714
      %v3727 = vpack.c.b16 %v3717, %v3715
      %v3728 = vpack.c.b16 %v3720, %v3718
      %v3729 = vpack.c.b16 %v3721, %v3719
      %3738 = vmatprep.subr.bf16.mxu0 0
      %3739 = vmatpush1.bf16.msra.mxu0 %v3323
      %3740 = vmatprep.subr.bf16.mxu0 0
      %3741 = vmatpush1.bf16.msra.mxu0 %v3322
      %3742 = vmatprep.subr.bf16.mxu0 0
      %3743 = vmatpush1.bf16.msra.mxu0 %v3321
      %3744 = vmatprep.subr.bf16.mxu0 0
      %3745 = vmatpush1.bf16.msra.mxu0 %v3320
      %3746 = vmatprep.subr.bf16.mxu0 0
      %3747 = vmatpush1.bf16.msra.mxu0 %v3319
      %3748 = vmatprep.subr.bf16.mxu0 0
      %3749 = vmatpush1.bf16.msra.mxu0 %v3318
      %3750 = vmatprep.subr.bf16.mxu0 0
      %3751 = vmatpush1.bf16.msra.mxu0 %v3317
      %3752 = vmatprep.subr.bf16.mxu0 0
      %3753 = vmatpush1.bf16.msra.mxu0 %v3316
      %3754 = vmatprep.subr.bf16.mxu0 0
      %3755 = vmatpush2.bf16.msra.mxu0 %v3331
      %3756 = vmatprep.subr.bf16.mxu0 0
      %3757 = vmatpush2.bf16.msra.mxu0 %v3330
      %3758 = vmatprep.subr.bf16.mxu0 0
      %3759 = vmatpush2.bf16.msra.mxu0 %v3329
      %3760 = vmatprep.subr.bf16.mxu0 0
      %3761 = vmatpush2.bf16.msra.mxu0 %v3328
      %3762 = vmatprep.subr.bf16.mxu0 0
      %3763 = vmatpush2.bf16.msra.mxu0 %v3327
      %3764 = vmatprep.subr.bf16.mxu0 0
      %3765 = vmatpush2.bf16.msra.mxu0 %v3326
      %3766 = vmatprep.subr.bf16.mxu0 0
      %3767 = vmatpush2.bf16.msra.mxu0 %v3325
      %3768 = vmatprep.subr.bf16.mxu0 0
      %3769 = vmatpush2.bf16.msra.mxu0 %v3324
      %3770 = vmatprep.mubr.bf16.mxu0 %v3723
      %3771 = vmatmul.mubr.bf16.gmra.mxu0 %v3722
      %v3772 = vpop.f32.mrf.mxu0
      %v3773 = vadd.f32 0.0, %v3772
      %v3774 = vpop.f32.mrf.mxu0
      %v3775 = vpop.f32.mrf.mxu0
      %v3776 = vadd.f32 0.0, %v3775
      %v3777 = vpop.f32.mrf.mxu0
      %3778 = vmatprep.mubr.bf16.mxu0 %v3725
      %3779 = vmatmul.mubr.bf16.gmra.mxu0 %v3724
      %v3780 = vpop.f32.mrf.mxu0
      %v3781 = vadd.f32 0.0, %v3780
      %v3782 = vpop.f32.mrf.mxu0
      %v3783 = vpop.f32.mrf.mxu0
      %v3784 = vadd.f32 0.0, %v3783
      %v3785 = vpop.f32.mrf.mxu0
      %3786 = vmatprep.mubr.bf16.mxu0 %v3727
      %3787 = vmatmul.mubr.bf16.gmra.mxu0 %v3726
      %v3788 = vpop.f32.mrf.mxu0
      %v3789 = vadd.f32 0.0, %v3788
      %v3790 = vpop.f32.mrf.mxu0
      %v3791 = vpop.f32.mrf.mxu0
      %v3792 = vadd.f32 0.0, %v3791
      %v3793 = vpop.f32.mrf.mxu0
      %3794 = vmatprep.mubr.bf16.mxu0 %v3729
      %3795 = vmatmul.mubr.bf16.gmra.mxu0 %v3728
      %v3796 = vpop.f32.mrf.mxu0
      %v3797 = vadd.f32 0.0, %v3796
      %v3798 = vpop.f32.mrf.mxu0
      %v3799 = vpop.f32.mrf.mxu0
      %v3800 = vadd.f32 0.0, %v3799
      %v3801 = vpop.f32.mrf.mxu0
      %3802 = vdwg.mxu0
      %v3803 = vmax.f32 %v3681, %v3773
      %v3804 = vmax.f32 %v3682, %v3776
      %v3805 = vmax.f32 %v3683, %v3781
      %v3806 = vmax.f32 %v3684, %v3784
      %v3807 = vmax.f32 %v3685, %v3789
      %v3808 = vmax.f32 %v3686, %v3792
      %v3809 = vmax.f32 %v3687, %v3797
      %v3810 = vmax.f32 %v3688, %v3800
      %v3811 = vpack.c.bf16 %v3804, %v3803
      %v3812 = vpack.c.bf16 %v3806, %v3805
      %v3813 = vpack.c.bf16 %v3808, %v3807
      %v3814 = vpack.c.bf16 %v3810, %v3809
      %vm3815 = vcmask 130048
      %3816 = vst.msk [vmem:[#allocation3] sm:$0xff] %vm3815, 0.0
      %3817 = vst.msk [vmem:[#allocation3 + $0x8] sm:$0xff] %vm3815, 0.0
      %3818 = vst.msk [vmem:[#allocation3 + $0x10] sm:$0xff] %vm3815, 0.0
      %3819 = vst.msk [vmem:[#allocation3 + $0x18] sm:$0xff] %vm3815, 0.0
      %3820 = vst.msk [vmem:[#allocation3 + $0x20] sm:$0xff] %vm3815, 0.0
      %3821 = vst.msk [vmem:[#allocation3 + $0x28] sm:$0xff] %vm3815, 0.0
      %3822 = vst.msk [vmem:[#allocation3 + $0x30] sm:$0xff] %vm3815, 0.0
      %3823 = vst.msk [vmem:[#allocation3 + $0x38] sm:$0xff] %vm3815, 0.0
      %3824 = vst.msk [vmem:[#allocation3 + $0x40] sm:$0xff] %vm3815, 0.0
      %3825 = vst.msk [vmem:[#allocation3 + $0x48] sm:$0xff] %vm3815, 0.0
      %3826 = vst.msk [vmem:[#allocation3 + $0x50] sm:$0xff] %vm3815, 0.0
      %vm3827 = vcmask 122880
      %3828 = vst.msk [vmem:[#allocation3 + $0x58] sm:$0x1] %vm3827, 0.0
      %v3829 = vunpack.c.l.bf16 %v3811
      %v3830 = vunpack.c.h.bf16 %v3811
      %v3831 = vunpack.c.l.bf16 %v3812
      %v3832 = vunpack.c.h.bf16 %v3812
      %v3833 = vunpack.c.l.bf16 %v3813
      %v3834 = vunpack.c.h.bf16 %v3813
      %v3835 = vunpack.c.l.bf16 %v3814
      %v3836 = vunpack.c.h.bf16 %v3814
      %3837 = vst.msk [vmem:[#allocation3 + $0x10] sm:$0xff] %vm3815, %v3829
      %3838 = vst.msk [vmem:[#allocation3 + $0x18] sm:$0xff] %vm3815, %v3830
      %3839 = vst.msk [vmem:[#allocation3 + $0x20] sm:$0xff] %vm3815, %v3831
      %3840 = vst.msk [vmem:[#allocation3 + $0x28] sm:$0xff] %vm3815, %v3832
      %3841 = vst.msk [vmem:[#allocation3 + $0x30] sm:$0xff] %vm3815, %v3833
      %3842 = vst.msk [vmem:[#allocation3 + $0x38] sm:$0xff] %vm3815, %v3834
      %3843 = vst.msk [vmem:[#allocation3 + $0x40] sm:$0xff] %vm3815, %v3835
      %3844 = vst.msk [vmem:[#allocation3 + $0x48] sm:$0xff] %vm3815, %v3836
      %v3845 = vand.u32 %v741, 7
      %v3846 = vand.u32 %v742, 7
      %v3847 = vand.u32 %v743, 7
      %v3848 = vand.u32 %v744, 7
      %v3849 = vand.u32 %v745, 7
      %v3850 = vand.u32 %v746, 7
      %v3851 = vand.u32 %v747, 7
      %v3852 = vand.u32 %v748, 7
      %vm3853 = vcmp.ne.s32.totalorder %v3845, 0
      %vm3854 = vcmp.ne.s32.totalorder %v3846, 0
      %vm3855 = vcmp.ne.s32.totalorder %v3847, 0
      %vm3856 = vcmp.ne.s32.totalorder %v3848, 0
      %vm3857 = vcmp.ne.s32.totalorder %v3849, 0
      %vm3858 = vcmp.ne.s32.totalorder %v3850, 0
      %vm3859 = vcmp.ne.s32.totalorder %v3851, 0
      %vm3860 = vcmp.ne.s32.totalorder %v3852, 0
      %v3861 = vsel %vm3853, 1.0, 0.0
      %v3862 = vsel %vm3854, 1.0, 0.0
      %v3863 = vsel %vm3855, 1.0, 0.0
      %v3864 = vsel %vm3856, 1.0, 0.0
      %v3865 = vsel %vm3857, 1.0, 0.0
      %v3866 = vsel %vm3858, 1.0, 0.0
      %v3867 = vsel %vm3859, 1.0, 0.0
      %v3868 = vsel %vm3860, 1.0, 0.0
      %vm3869 = vcmp.ne.s32.totalorder %v3845, 7
      %vm3870 = vcmp.ne.s32.totalorder %v3846, 7
      %vm3871 = vcmp.ne.s32.totalorder %v3847, 7
      %vm3872 = vcmp.ne.s32.totalorder %v3848, 7
      %vm3873 = vcmp.ne.s32.totalorder %v3849, 7
      %vm3874 = vcmp.ne.s32.totalorder %v3850, 7
      %vm3875 = vcmp.ne.s32.totalorder %v3851, 7
      %vm3876 = vcmp.ne.s32.totalorder %v3852, 7
      %v3877 = vsel %vm3869, 1.0, 0.0
      %v3878 = vsel %vm3870, 1.0, 0.0
      %v3879 = vsel %vm3871, 1.0, 0.0
      %v3880 = vsel %vm3872, 1.0, 0.0
      %v3881 = vsel %vm3873, 1.0, 0.0
      %v3882 = vsel %vm3874, 1.0, 0.0
      %v3883 = vsel %vm3875, 1.0, 0.0
      %v3884 = vsel %vm3876, 1.0, 0.0
      %v3885 = vld [vmem:[#allocation3 + $0x7] sm:$0xff]
      %v3886 = vld [vmem:[#allocation3 + $0xf] sm:$0xff]
      %v3887 = vld [vmem:[#allocation3 + $0x17] sm:$0xff]
      %v3888 = vld [vmem:[#allocation3 + $0x1f] sm:$0xff]
      %v3889 = vld [vmem:[#allocation3 + $0x27] sm:$0xff]
      %v3890 = vld [vmem:[#allocation3 + $0x2f] sm:$0xff]
      %v3891 = vld [vmem:[#allocation3 + $0x37] sm:$0xff]
      %v3892 = vld [vmem:[#allocation3 + $0x3f] sm:$0xff]
      %v3893 = vpack.c.bf16 %v3886, %v3885
      %v3894 = vpack.c.bf16 %v3888, %v3887
      %v3895 = vpack.c.bf16 %v3890, %v3889
      %v3896 = vpack.c.bf16 %v3892, %v3891
      %v3897 = vld [vmem:[%s4] sm:$0xf]
      %v3898 = vld [vmem:[%s4 + $0x4] sm:$0xf]
      %v3899 = vld [vmem:[#allocation3 + $0x47] sm:$0xff]
      %v3900 = vpack.c.bf16 %v3887, %v3886
      %v3901 = vpack.c.bf16 %v3889, %v3888
      %v3902 = vpack.c.bf16 %v3891, %v3890
      %v3903 = vpack.c.bf16 %v3899, %v3892
      %s3904 = scalar_lea.vmem %s4, 24
      %v3905 = vld [vmem:[%s3904] sm:$0xf]
      %v3906 = vld [vmem:[%s3904 + $0x4] sm:$0xf]
      %v3909 = vunpack.c.l.b16 %v3905
      %v3910 = vunpack.c.l.b16 %v3906
      %v3911 = vpack.c.b16 %v3910, %v3909
      %v3914 = vsel %vm3815, %v3900, 0
      %v3917 = vsel %vm3815, %v3901, 0
      %v3920 = vsel %vm3815, %v3902, 0
      %v3923 = vsel %vm3815, %v3903, 0
      %3925 = vmatprep.subr.bf16.mxu0 0
      %3926 = vmatpush1.bf16.msra.mxu0 0
      %3927 = vmatprep.subr.bf16.mxu0 0
      %3928 = vmatpush1.bf16.msra.mxu0 0
      %3929 = vmatprep.subr.bf16.mxu0 0
      %3930 = vmatpush1.bf16.msra.mxu0 0
      %3931 = vmatprep.subr.bf16.mxu0 0
      %3932 = vmatpush1.bf16.msra.mxu0 0
      %3933 = vmatprep.subr.bf16.mxu0 0
      %3934 = vmatpush1.bf16.msra.mxu0 0
      %3935 = vmatprep.subr.bf16.mxu0 0
      %3936 = vmatpush1.bf16.msra.mxu0 0
      %3937 = vmatprep.subr.bf16.mxu0 0
      %3938 = vmatpush1.bf16.msra.mxu0 0
      %3939 = vmatprep.subr.bf16.mxu0 0
      %3940 = vmatpush1.bf16.msra.mxu0 %v3911
      %3941 = vmatprep.subr.bf16.mxu0 0
      %3942 = vmatpush2.bf16.msra.mxu0 0
      %3943 = vmatprep.subr.bf16.mxu0 0
      %3944 = vmatpush2.bf16.msra.mxu0 0
      %3945 = vmatprep.subr.bf16.mxu0 0
      %3946 = vmatpush2.bf16.msra.mxu0 0
      %3947 = vmatprep.subr.bf16.mxu0 0
      %3948 = vmatpush2.bf16.msra.mxu0 0
      %3949 = vmatprep.subr.bf16.mxu0 0
      %3950 = vmatpush2.bf16.msra.mxu0 0
      %3951 = vmatprep.subr.bf16.mxu0 0
      %3952 = vmatpush2.bf16.msra.mxu0 0
      %3953 = vmatprep.subr.bf16.mxu0 0
      %3954 = vmatpush2.bf16.msra.mxu0 0
      %3955 = vmatprep.subr.bf16.mxu0 0
      %3956 = vmatpush2.bf16.msra.mxu0 0
      %3957 = vmatprep.mubr.bf16.mxu0 0
      %3958 = vmatmul.mubr.bf16.gmra.mxu0 %v3914
      %v3959 = vpop.f32.mrf.mxu0
      %v3960 = vadd.f32 0.0, %v3959
      %v3961 = vpop.f32.mrf.mxu0
      %v3962 = vpop.f32.mrf.mxu0
      %v3963 = vadd.f32 0.0, %v3962
      %v3964 = vpop.f32.mrf.mxu0
      %3965 = vmatprep.mubr.bf16.mxu0 0
      %3966 = vmatmul.mubr.bf16.gmra.mxu0 %v3917
      %v3967 = vpop.f32.mrf.mxu0
      %v3968 = vadd.f32 0.0, %v3967
      %v3969 = vpop.f32.mrf.mxu0
      %v3970 = vpop.f32.mrf.mxu0
      %v3971 = vadd.f32 0.0, %v3970
      %v3972 = vpop.f32.mrf.mxu0
      %3973 = vmatprep.mubr.bf16.mxu0 0
      %3974 = vmatmul.mubr.bf16.gmra.mxu0 %v3920
      %v3975 = vpop.f32.mrf.mxu0
      %v3976 = vadd.f32 0.0, %v3975
      %v3977 = vpop.f32.mrf.mxu0
      %v3978 = vpop.f32.mrf.mxu0
      %v3979 = vadd.f32 0.0, %v3978
      %v3980 = vpop.f32.mrf.mxu0
      %3981 = vmatprep.mubr.bf16.mxu0 0
      %3982 = vmatmul.mubr.bf16.gmra.mxu0 %v3923
      %v3983 = vpop.f32.mrf.mxu0
      %v3984 = vadd.f32 0.0, %v3983
      %v3985 = vpop.f32.mrf.mxu0
      %v3986 = vpop.f32.mrf.mxu0
      %v3987 = vadd.f32 0.0, %v3986
      %v3988 = vpop.f32.mrf.mxu0
      %3989 = vdwg.mxu0
      %v3992 = vunpack.c.l.b16 %v3897
      %v3993 = vunpack.c.l.b16 %v3898
      %v3994 = vpack.c.b16 %v3993, %v3992
      %v3997 = vsel %vm3815, %v3893, 0
      %v4000 = vsel %vm3815, %v3894, 0
      %v4003 = vsel %vm3815, %v3895, 0
      %v4006 = vsel %vm3815, %v3896, 0
      %4008 = vmatprep.subr.bf16.mxu0 0
      %4009 = vmatpush1.bf16.msra.mxu0 0
      %4010 = vmatprep.subr.bf16.mxu0 0
      %4011 = vmatpush1.bf16.msra.mxu0 0
      %4012 = vmatprep.subr.bf16.mxu0 0
      %4013 = vmatpush1.bf16.msra.mxu0 0
      %4014 = vmatprep.subr.bf16.mxu0 0
      %4015 = vmatpush1.bf16.msra.mxu0 0
      %4016 = vmatprep.subr.bf16.mxu0 0
      %4017 = vmatpush1.bf16.msra.mxu0 0
      %4018 = vmatprep.subr.bf16.mxu0 0
      %4019 = vmatpush1.bf16.msra.mxu0 0
      %4020 = vmatprep.subr.bf16.mxu0 0
      %4021 = vmatpush1.bf16.msra.mxu0 0
      %4022 = vmatprep.subr.bf16.mxu0 0
      %4023 = vmatpush1.bf16.msra.mxu0 %v3994
      %4024 = vmatprep.subr.bf16.mxu0 0
      %4025 = vmatpush2.bf16.msra.mxu0 0
      %4026 = vmatprep.subr.bf16.mxu0 0
      %4027 = vmatpush2.bf16.msra.mxu0 0
      %4028 = vmatprep.subr.bf16.mxu0 0
      %4029 = vmatpush2.bf16.msra.mxu0 0
      %4030 = vmatprep.subr.bf16.mxu0 0
      %4031 = vmatpush2.bf16.msra.mxu0 0
      %4032 = vmatprep.subr.bf16.mxu0 0
      %4033 = vmatpush2.bf16.msra.mxu0 0
      %4034 = vmatprep.subr.bf16.mxu0 0
      %4035 = vmatpush2.bf16.msra.mxu0 0
      %4036 = vmatprep.subr.bf16.mxu0 0
      %4037 = vmatpush2.bf16.msra.mxu0 0
      %4038 = vmatprep.subr.bf16.mxu0 0
      %4039 = vmatpush2.bf16.msra.mxu0 0
      %4040 = vmatprep.mubr.bf16.mxu0 0
      %4041 = vmatmul.mubr.bf16.gmra.mxu0 %v3997
      %v4042 = vpop.f32.mrf.mxu0
      %v4043 = vadd.f32 %v3960, %v4042
      %v4044 = vpop.f32.mrf.mxu0
      %v4045 = vpop.f32.mrf.mxu0
      %v4046 = vadd.f32 %v3963, %v4045
      %v4047 = vpop.f32.mrf.mxu0
      %4048 = vmatprep.mubr.bf16.mxu0 0
      %4049 = vmatmul.mubr.bf16.gmra.mxu0 %v4000
      %v4050 = vpop.f32.mrf.mxu0
      %v4051 = vadd.f32 %v3968, %v4050
      %v4052 = vpop.f32.mrf.mxu0
      %v4053 = vpop.f32.mrf.mxu0
      %v4054 = vadd.f32 %v3971, %v4053
      %v4055 = vpop.f32.mrf.mxu0
      %4056 = vmatprep.mubr.bf16.mxu0 0
      %4057 = vmatmul.mubr.bf16.gmra.mxu0 %v4003
      %v4058 = vpop.f32.mrf.mxu0
      %v4059 = vadd.f32 %v3976, %v4058
      %v4060 = vpop.f32.mrf.mxu0
      %v4061 = vpop.f32.mrf.mxu0
      %v4062 = vadd.f32 %v3979, %v4061
      %v4063 = vpop.f32.mrf.mxu0
      %4064 = vmatprep.mubr.bf16.mxu0 0
      %4065 = vmatmul.mubr.bf16.gmra.mxu0 %v4006
      %v4066 = vpop.f32.mrf.mxu0
      %v4067 = vadd.f32 %v3984, %v4066
      %v4068 = vpop.f32.mrf.mxu0
      %v4069 = vpop.f32.mrf.mxu0
      %v4070 = vadd.f32 %v3987, %v4069
      %v4071 = vpop.f32.mrf.mxu0
      %4072 = vdwg.mxu0
      %v4073 = vld [vmem:[#allocation3 + $0x17] sm:$0xff]
      %v4074 = vld [vmem:[#allocation3 + $0x1f] sm:$0xff]
      %v4075 = vld [vmem:[#allocation3 + $0x27] sm:$0xff]
      %v4076 = vld [vmem:[#allocation3 + $0x2f] sm:$0xff]
      %v4077 = vld [vmem:[#allocation3 + $0x37] sm:$0xff]
      %v4078 = vld [vmem:[#allocation3 + $0x3f] sm:$0xff]
      %v4079 = vld [vmem:[#allocation3 + $0x47] sm:$0xff]
      %v4080 = vld [vmem:[#allocation3 + $0x4f] sm:$0xff]
      %v4081 = vpack.c.bf16 %v4074, %v4073
      %v4082 = vpack.c.bf16 %v4076, %v4075
      %v4083 = vpack.c.bf16 %v4078, %v4077
      %v4084 = vpack.c.bf16 %v4080, %v4079
      %s4085 = scalar_lea.vmem %s4, 48
      %v4086 = vld [vmem:[%s4085] sm:$0xf]
      %v4087 = vld [vmem:[%s4085 + $0x4] sm:$0xf]
      %v4090 = vunpack.c.l.b16 %v4086
      %v4091 = vunpack.c.l.b16 %v4087
      %v4092 = vpack.c.b16 %v4091, %v4090
      %v4095 = vsel %vm3815, %v4081, 0
      %v4098 = vsel %vm3815, %v4082, 0
      %v4101 = vsel %vm3815, %v4083, 0
      %v4104 = vsel %vm3815, %v4084, 0
      %4106 = vmatprep.subr.bf16.mxu0 0
      %4107 = vmatpush1.bf16.msra.mxu0 0
      %4108 = vmatprep.subr.bf16.mxu0 0
      %4109 = vmatpush1.bf16.msra.mxu0 0
      %4110 = vmatprep.subr.bf16.mxu0 0
      %4111 = vmatpush1.bf16.msra.mxu0 0
      %4112 = vmatprep.subr.bf16.mxu0 0
      %4113 = vmatpush1.bf16.msra.mxu0 0
      %4114 = vmatprep.subr.bf16.mxu0 0
      %4115 = vmatpush1.bf16.msra.mxu0 0
      %4116 = vmatprep.subr.bf16.mxu0 0
      %4117 = vmatpush1.bf16.msra.mxu0 0
      %4118 = vmatprep.subr.bf16.mxu0 0
      %4119 = vmatpush1.bf16.msra.mxu0 0
      %4120 = vmatprep.subr.bf16.mxu0 0
      %4121 = vmatpush1.bf16.msra.mxu0 %v4092
      %4122 = vmatprep.subr.bf16.mxu0 0
      %4123 = vmatpush2.bf16.msra.mxu0 0
      %4124 = vmatprep.subr.bf16.mxu0 0
      %4125 = vmatpush2.bf16.msra.mxu0 0
      %4126 = vmatprep.subr.bf16.mxu0 0
      %4127 = vmatpush2.bf16.msra.mxu0 0
      %4128 = vmatprep.subr.bf16.mxu0 0
      %4129 = vmatpush2.bf16.msra.mxu0 0
      %4130 = vmatprep.subr.bf16.mxu0 0
      %4131 = vmatpush2.bf16.msra.mxu0 0
      %4132 = vmatprep.subr.bf16.mxu0 0
      %4133 = vmatpush2.bf16.msra.mxu0 0
      %4134 = vmatprep.subr.bf16.mxu0 0
      %4135 = vmatpush2.bf16.msra.mxu0 0
      %4136 = vmatprep.subr.bf16.mxu0 0
      %4137 = vmatpush2.bf16.msra.mxu0 0
      %4138 = vmatprep.mubr.bf16.mxu0 0
      %4139 = vmatmul.mubr.bf16.gmra.mxu0 %v4095
      %v4140 = vpop.f32.mrf.mxu0
      %v4141 = vadd.f32 0.0, %v4140
      %v4142 = vpop.f32.mrf.mxu0
      %v4143 = vpop.f32.mrf.mxu0
      %v4144 = vadd.f32 0.0, %v4143
      %v4145 = vpop.f32.mrf.mxu0
      %4146 = vmatprep.mubr.bf16.mxu0 0
      %4147 = vmatmul.mubr.bf16.gmra.mxu0 %v4098
      %v4148 = vpop.f32.mrf.mxu0
      %v4149 = vadd.f32 0.0, %v4148
      %v4150 = vpop.f32.mrf.mxu0
      %v4151 = vpop.f32.mrf.mxu0
      %v4152 = vadd.f32 0.0, %v4151
      %v4153 = vpop.f32.mrf.mxu0
      %4154 = vmatprep.mubr.bf16.mxu0 0
      %4155 = vmatmul.mubr.bf16.gmra.mxu0 %v4101
      %v4156 = vpop.f32.mrf.mxu0
      %v4157 = vadd.f32 0.0, %v4156
      %v4158 = vpop.f32.mrf.mxu0
      %v4159 = vpop.f32.mrf.mxu0
      %v4160 = vadd.f32 0.0, %v4159
      %v4161 = vpop.f32.mrf.mxu0
      %4162 = vmatprep.mubr.bf16.mxu0 0
      %4163 = vmatmul.mubr.bf16.gmra.mxu0 %v4104
      %v4164 = vpop.f32.mrf.mxu0
      %v4165 = vadd.f32 0.0, %v4164
      %v4166 = vpop.f32.mrf.mxu0
      %v4167 = vpop.f32.mrf.mxu0
      %v4168 = vadd.f32 0.0, %v4167
      %v4169 = vpop.f32.mrf.mxu0
      %4170 = vdwg.mxu0
      %v4171 = vadd.f32 %v4043, %v4141
      %v4172 = vadd.f32 %v4046, %v4144
      %v4173 = vadd.f32 %v4051, %v4149
      %v4174 = vadd.f32 %v4054, %v4152
      %v4175 = vadd.f32 %v4059, %v4157
      %v4176 = vadd.f32 %v4062, %v4160
      %v4177 = vadd.f32 %v4067, %v4165
      %v4178 = vadd.f32 %v4070, %v4168
      %v4179 = vmul.f32 %v4171, %v3861
      %v4180 = vmul.f32 %v4172, %v3862
      %v4181 = vmul.f32 %v4173, %v3863
      %v4182 = vmul.f32 %v4174, %v3864
      %v4183 = vmul.f32 %v4175, %v3865
      %v4184 = vmul.f32 %v4176, %v3866
      %v4185 = vmul.f32 %v4177, %v3867
      %v4186 = vmul.f32 %v4178, %v3868
      %v4187 = vld [vmem:[#allocation3 + $0x8] sm:$0xff]
      %v4188 = vld [vmem:[#allocation3 + $0x10] sm:$0xff]
      %v4189 = vld [vmem:[#allocation3 + $0x18] sm:$0xff]
      %v4190 = vld [vmem:[#allocation3 + $0x20] sm:$0xff]
      %v4191 = vld [vmem:[#allocation3 + $0x28] sm:$0xff]
      %v4192 = vld [vmem:[#allocation3 + $0x30] sm:$0xff]
      %v4193 = vld [vmem:[#allocation3 + $0x38] sm:$0xff]
      %v4194 = vld [vmem:[#allocation3 + $0x40] sm:$0xff]
      %v4195 = vpack.c.bf16 %v4188, %v4187
      %v4196 = vpack.c.bf16 %v4190, %v4189
      %v4197 = vpack.c.bf16 %v4192, %v4191
      %v4198 = vpack.c.bf16 %v4194, %v4193
      %s4199 = scalar_lea.vmem %s4, 8
      %v4200 = vld [vmem:[%s4199] sm:$0xf]
      %v4201 = vld [vmem:[%s4199 + $0x4] sm:$0xf]
      %v4202 = vld [vmem:[#allocation3 + $0x48] sm:$0xff]
      %v4203 = vpack.c.bf16 %v4189, %v4188
      %v4204 = vpack.c.bf16 %v4191, %v4190
      %v4205 = vpack.c.bf16 %v4193, %v4192
      %v4206 = vpack.c.bf16 %v4202, %v4194
      %s4207 = scalar_lea.vmem %s4, 32
      %v4208 = vld [vmem:[%s4207] sm:$0xf]
      %v4209 = vld [vmem:[%s4207 + $0x4] sm:$0xf]
      %v4212 = vunpack.c.l.b16 %v4208
      %v4213 = vunpack.c.l.b16 %v4209
      %v4214 = vpack.c.b16 %v4213, %v4212
      %v4217 = vsel %vm3815, %v4203, 0
      %v4220 = vsel %vm3815, %v4204, 0
      %v4223 = vsel %vm3815, %v4205, 0
      %v4226 = vsel %vm3815, %v4206, 0
      %4228 = vmatprep.subr.bf16.mxu0 0
      %4229 = vmatpush1.bf16.msra.mxu0 0
      %4230 = vmatprep.subr.bf16.mxu0 0
      %4231 = vmatpush1.bf16.msra.mxu0 0
      %4232 = vmatprep.subr.bf16.mxu0 0
      %4233 = vmatpush1.bf16.msra.mxu0 0
      %4234 = vmatprep.subr.bf16.mxu0 0
      %4235 = vmatpush1.bf16.msra.mxu0 0
      %4236 = vmatprep.subr.bf16.mxu0 0
      %4237 = vmatpush1.bf16.msra.mxu0 0
      %4238 = vmatprep.subr.bf16.mxu0 0
      %4239 = vmatpush1.bf16.msra.mxu0 0
      %4240 = vmatprep.subr.bf16.mxu0 0
      %4241 = vmatpush1.bf16.msra.mxu0 0
      %4242 = vmatprep.subr.bf16.mxu0 0
      %4243 = vmatpush1.bf16.msra.mxu0 %v4214
      %4244 = vmatprep.subr.bf16.mxu0 0
      %4245 = vmatpush2.bf16.msra.mxu0 0
      %4246 = vmatprep.subr.bf16.mxu0 0
      %4247 = vmatpush2.bf16.msra.mxu0 0
      %4248 = vmatprep.subr.bf16.mxu0 0
      %4249 = vmatpush2.bf16.msra.mxu0 0
      %4250 = vmatprep.subr.bf16.mxu0 0
      %4251 = vmatpush2.bf16.msra.mxu0 0
      %4252 = vmatprep.subr.bf16.mxu0 0
      %4253 = vmatpush2.bf16.msra.mxu0 0
      %4254 = vmatprep.subr.bf16.mxu0 0
      %4255 = vmatpush2.bf16.msra.mxu0 0
      %4256 = vmatprep.subr.bf16.mxu0 0
      %4257 = vmatpush2.bf16.msra.mxu0 0
      %4258 = vmatprep.subr.bf16.mxu0 0
      %4259 = vmatpush2.bf16.msra.mxu0 0
      %4260 = vmatprep.mubr.bf16.mxu0 0
      %4261 = vmatmul.mubr.bf16.gmra.mxu0 %v4217
      %v4262 = vpop.f32.mrf.mxu0
      %v4263 = vadd.f32 0.0, %v4262
      %v4264 = vpop.f32.mrf.mxu0
      %v4265 = vpop.f32.mrf.mxu0
      %v4266 = vadd.f32 0.0, %v4265
      %v4267 = vpop.f32.mrf.mxu0
      %4268 = vmatprep.mubr.bf16.mxu0 0
      %4269 = vmatmul.mubr.bf16.gmra.mxu0 %v4220
      %v4270 = vpop.f32.mrf.mxu0
      %v4271 = vadd.f32 0.0, %v4270
      %v4272 = vpop.f32.mrf.mxu0
      %v4273 = vpop.f32.mrf.mxu0
      %v4274 = vadd.f32 0.0, %v4273
      %v4275 = vpop.f32.mrf.mxu0
      %4276 = vmatprep.mubr.bf16.mxu0 0
      %4277 = vmatmul.mubr.bf16.gmra.mxu0 %v4223
      %v4278 = vpop.f32.mrf.mxu0
      %v4279 = vadd.f32 0.0, %v4278
      %v4280 = vpop.f32.mrf.mxu0
      %v4281 = vpop.f32.mrf.mxu0
      %v4282 = vadd.f32 0.0, %v4281
      %v4283 = vpop.f32.mrf.mxu0
      %4284 = vmatprep.mubr.bf16.mxu0 0
      %4285 = vmatmul.mubr.bf16.gmra.mxu0 %v4226
      %v4286 = vpop.f32.mrf.mxu0
      %v4287 = vadd.f32 0.0, %v4286
      %v4288 = vpop.f32.mrf.mxu0
      %v4289 = vpop.f32.mrf.mxu0
      %v4290 = vadd.f32 0.0, %v4289
      %v4291 = vpop.f32.mrf.mxu0
      %4292 = vdwg.mxu0
      %v4295 = vunpack.c.l.b16 %v4200
      %v4296 = vunpack.c.l.b16 %v4201
      %v4297 = vpack.c.b16 %v4296, %v4295
      %v4300 = vsel %vm3815, %v4195, 0
      %v4303 = vsel %vm3815, %v4196, 0
      %v4306 = vsel %vm3815, %v4197, 0
      %v4309 = vsel %vm3815, %v4198, 0
      %4311 = vmatprep.subr.bf16.mxu0 0
      %4312 = vmatpush1.bf16.msra.mxu0 0
      %4313 = vmatprep.subr.bf16.mxu0 0
      %4314 = vmatpush1.bf16.msra.mxu0 0
      %4315 = vmatprep.subr.bf16.mxu0 0
      %4316 = vmatpush1.bf16.msra.mxu0 0
      %4317 = vmatprep.subr.bf16.mxu0 0
      %4318 = vmatpush1.bf16.msra.mxu0 0
      %4319 = vmatprep.subr.bf16.mxu0 0
      %4320 = vmatpush1.bf16.msra.mxu0 0
      %4321 = vmatprep.subr.bf16.mxu0 0
      %4322 = vmatpush1.bf16.msra.mxu0 0
      %4323 = vmatprep.subr.bf16.mxu0 0
      %4324 = vmatpush1.bf16.msra.mxu0 0
      %4325 = vmatprep.subr.bf16.mxu0 0
      %4326 = vmatpush1.bf16.msra.mxu0 %v4297
      %4327 = vmatprep.subr.bf16.mxu0 0
      %4328 = vmatpush2.bf16.msra.mxu0 0
      %4329 = vmatprep.subr.bf16.mxu0 0
      %4330 = vmatpush2.bf16.msra.mxu0 0
      %4331 = vmatprep.subr.bf16.mxu0 0
      %4332 = vmatpush2.bf16.msra.mxu0 0
      %4333 = vmatprep.subr.bf16.mxu0 0
      %4334 = vmatpush2.bf16.msra.mxu0 0
      %4335 = vmatprep.subr.bf16.mxu0 0
      %4336 = vmatpush2.bf16.msra.mxu0 0
      %4337 = vmatprep.subr.bf16.mxu0 0
      %4338 = vmatpush2.bf16.msra.mxu0 0
      %4339 = vmatprep.subr.bf16.mxu0 0
      %4340 = vmatpush2.bf16.msra.mxu0 0
      %4341 = vmatprep.subr.bf16.mxu0 0
      %4342 = vmatpush2.bf16.msra.mxu0 0
      %4343 = vmatprep.mubr.bf16.mxu0 0
      %4344 = vmatmul.mubr.bf16.gmra.mxu0 %v4300
      %v4345 = vpop.f32.mrf.mxu0
      %v4346 = vadd.f32 %v4263, %v4345
      %v4347 = vpop.f32.mrf.mxu0
      %v4348 = vpop.f32.mrf.mxu0
      %v4349 = vadd.f32 %v4266, %v4348
      %v4350 = vpop.f32.mrf.mxu0
      %4351 = vmatprep.mubr.bf16.mxu0 0
      %4352 = vmatmul.mubr.bf16.gmra.mxu0 %v4303
      %v4353 = vpop.f32.mrf.mxu0
      %v4354 = vadd.f32 %v4271, %v4353
      %v4355 = vpop.f32.mrf.mxu0
      %v4356 = vpop.f32.mrf.mxu0
      %v4357 = vadd.f32 %v4274, %v4356
      %v4358 = vpop.f32.mrf.mxu0
      %4359 = vmatprep.mubr.bf16.mxu0 0
      %4360 = vmatmul.mubr.bf16.gmra.mxu0 %v4306
      %v4361 = vpop.f32.mrf.mxu0
      %v4362 = vadd.f32 %v4279, %v4361
      %v4363 = vpop.f32.mrf.mxu0
      %v4364 = vpop.f32.mrf.mxu0
      %v4365 = vadd.f32 %v4282, %v4364
      %v4366 = vpop.f32.mrf.mxu0
      %4367 = vmatprep.mubr.bf16.mxu0 0
      %4368 = vmatmul.mubr.bf16.gmra.mxu0 %v4309
      %v4369 = vpop.f32.mrf.mxu0
      %v4370 = vadd.f32 %v4287, %v4369
      %v4371 = vpop.f32.mrf.mxu0
      %v4372 = vpop.f32.mrf.mxu0
      %v4373 = vadd.f32 %v4290, %v4372
      %v4374 = vpop.f32.mrf.mxu0
      %4375 = vdwg.mxu0
      %v4376 = vld [vmem:[#allocation3 + $0x18] sm:$0xff]
      %v4377 = vld [vmem:[#allocation3 + $0x20] sm:$0xff]
      %v4378 = vld [vmem:[#allocation3 + $0x28] sm:$0xff]
      %v4379 = vld [vmem:[#allocation3 + $0x30] sm:$0xff]
      %v4380 = vld [vmem:[#allocation3 + $0x38] sm:$0xff]
      %v4381 = vld [vmem:[#allocation3 + $0x40] sm:$0xff]
      %v4382 = vld [vmem:[#allocation3 + $0x48] sm:$0xff]
      %v4383 = vld [vmem:[#allocation3 + $0x50] sm:$0xff]
      %v4384 = vpack.c.bf16 %v4377, %v4376
      %v4385 = vpack.c.bf16 %v4379, %v4378
      %v4386 = vpack.c.bf16 %v4381, %v4380
      %v4387 = vpack.c.bf16 %v4383, %v4382
      %s4388 = scalar_lea.vmem %s4, 56
      %v4389 = vld [vmem:[%s4388] sm:$0xf]
      %v4390 = vld [vmem:[%s4388 + $0x4] sm:$0xf]
      %v4393 = vunpack.c.l.b16 %v4389
      %v4394 = vunpack.c.l.b16 %v4390
      %v4395 = vpack.c.b16 %v4394, %v4393
      %v4398 = vsel %vm3815, %v4384, 0
      %v4401 = vsel %vm3815, %v4385, 0
      %v4404 = vsel %vm3815, %v4386, 0
      %v4407 = vsel %vm3815, %v4387, 0
      %4409 = vmatprep.subr.bf16.mxu0 0
      %4410 = vmatpush1.bf16.msra.mxu0 0
      %4411 = vmatprep.subr.bf16.mxu0 0
      %4412 = vmatpush1.bf16.msra.mxu0 0
      %4413 = vmatprep.subr.bf16.mxu0 0
      %4414 = vmatpush1.bf16.msra.mxu0 0
      %4415 = vmatprep.subr.bf16.mxu0 0
      %4416 = vmatpush1.bf16.msra.mxu0 0
      %4417 = vmatprep.subr.bf16.mxu0 0
      %4418 = vmatpush1.bf16.msra.mxu0 0
      %4419 = vmatprep.subr.bf16.mxu0 0
      %4420 = vmatpush1.bf16.msra.mxu0 0
      %4421 = vmatprep.subr.bf16.mxu0 0
      %4422 = vmatpush1.bf16.msra.mxu0 0
      %4423 = vmatprep.subr.bf16.mxu0 0
      %4424 = vmatpush1.bf16.msra.mxu0 %v4395
      %4425 = vmatprep.subr.bf16.mxu0 0
      %4426 = vmatpush2.bf16.msra.mxu0 0
      %4427 = vmatprep.subr.bf16.mxu0 0
      %4428 = vmatpush2.bf16.msra.mxu0 0
      %4429 = vmatprep.subr.bf16.mxu0 0
      %4430 = vmatpush2.bf16.msra.mxu0 0
      %4431 = vmatprep.subr.bf16.mxu0 0
      %4432 = vmatpush2.bf16.msra.mxu0 0
      %4433 = vmatprep.subr.bf16.mxu0 0
      %4434 = vmatpush2.bf16.msra.mxu0 0
      %4435 = vmatprep.subr.bf16.mxu0 0
      %4436 = vmatpush2.bf16.msra.mxu0 0
      %4437 = vmatprep.subr.bf16.mxu0 0
      %4438 = vmatpush2.bf16.msra.mxu0 0
      %4439 = vmatprep.subr.bf16.mxu0 0
      %4440 = vmatpush2.bf16.msra.mxu0 0
      %4441 = vmatprep.mubr.bf16.mxu0 0
      %4442 = vmatmul.mubr.bf16.gmra.mxu0 %v4398
      %v4443 = vpop.f32.mrf.mxu0
      %v4444 = vadd.f32 0.0, %v4443
      %v4445 = vpop.f32.mrf.mxu0
      %v4446 = vpop.f32.mrf.mxu0
      %v4447 = vadd.f32 0.0, %v4446
      %v4448 = vpop.f32.mrf.mxu0
      %4449 = vmatprep.mubr.bf16.mxu0 0
      %4450 = vmatmul.mubr.bf16.gmra.mxu0 %v4401
      %v4451 = vpop.f32.mrf.mxu0
      %v4452 = vadd.f32 0.0, %v4451
      %v4453 = vpop.f32.mrf.mxu0
      %v4454 = vpop.f32.mrf.mxu0
      %v4455 = vadd.f32 0.0, %v4454
      %v4456 = vpop.f32.mrf.mxu0
      %4457 = vmatprep.mubr.bf16.mxu0 0
      %4458 = vmatmul.mubr.bf16.gmra.mxu0 %v4404
      %v4459 = vpop.f32.mrf.mxu0
      %v4460 = vadd.f32 0.0, %v4459
      %v4461 = vpop.f32.mrf.mxu0
      %v4462 = vpop.f32.mrf.mxu0
      %v4463 = vadd.f32 0.0, %v4462
      %v4464 = vpop.f32.mrf.mxu0
      %4465 = vmatprep.mubr.bf16.mxu0 0
      %4466 = vmatmul.mubr.bf16.gmra.mxu0 %v4407
      %v4467 = vpop.f32.mrf.mxu0
      %v4468 = vadd.f32 0.0, %v4467
      %v4469 = vpop.f32.mrf.mxu0
      %v4470 = vpop.f32.mrf.mxu0
      %v4471 = vadd.f32 0.0, %v4470
      %v4472 = vpop.f32.mrf.mxu0
      %4473 = vdwg.mxu0
      %v4474 = vadd.f32 %v4346, %v4444
      %v4475 = vadd.f32 %v4349, %v4447
      %v4476 = vadd.f32 %v4354, %v4452
      %v4477 = vadd.f32 %v4357, %v4455
      %v4478 = vadd.f32 %v4362, %v4460
      %v4479 = vadd.f32 %v4365, %v4463
      %v4480 = vadd.f32 %v4370, %v4468
      %v4481 = vadd.f32 %v4373, %v4471
      %v4482 = vadd.f32 %v4179, %v4474
      %v4483 = vadd.f32 %v4180, %v4475
      %v4484 = vadd.f32 %v4181, %v4476
      %v4485 = vadd.f32 %v4182, %v4477
      %v4486 = vadd.f32 %v4183, %v4478
      %v4487 = vadd.f32 %v4184, %v4479
      %v4488 = vadd.f32 %v4185, %v4480
      %v4489 = vadd.f32 %v4186, %v4481
      %v4490 = vld [vmem:[#allocation3 + $0x9] sm:$0xff]
      %v4491 = vld [vmem:[#allocation3 + $0x11] sm:$0xff]
      %v4492 = vld [vmem:[#allocation3 + $0x19] sm:$0xff]
      %v4493 = vld [vmem:[#allocation3 + $0x21] sm:$0xff]
      %v4494 = vld [vmem:[#allocation3 + $0x29] sm:$0xff]
      %v4495 = vld [vmem:[#allocation3 + $0x31] sm:$0xff]
      %v4496 = vld [vmem:[#allocation3 + $0x39] sm:$0xff]
      %v4497 = vld [vmem:[#allocation3 + $0x41] sm:$0xff]
      %v4498 = vpack.c.bf16 %v4491, %v4490
      %v4499 = vpack.c.bf16 %v4493, %v4492
      %v4500 = vpack.c.bf16 %v4495, %v4494
      %v4501 = vpack.c.bf16 %v4497, %v4496
      %s4502 = scalar_lea.vmem %s4, 16
      %v4503 = vld [vmem:[%s4502] sm:$0xf]
      %v4504 = vld [vmem:[%s4502 + $0x4] sm:$0xf]
      %v4505 = vld [vmem:[#allocation3 + $0x49] sm:$0xff]
      %v4506 = vpack.c.bf16 %v4492, %v4491
      %v4507 = vpack.c.bf16 %v4494, %v4493
      %v4508 = vpack.c.bf16 %v4496, %v4495
      %v4509 = vpack.c.bf16 %v4505, %v4497
      %s4510 = scalar_lea.vmem %s4, 40
      %v4511 = vld [vmem:[%s4510] sm:$0xf]
      %v4512 = vld [vmem:[%s4510 + $0x4] sm:$0xf]
      %v4515 = vunpack.c.l.b16 %v4511
      %v4516 = vunpack.c.l.b16 %v4512
      %v4517 = vpack.c.b16 %v4516, %v4515
      %v4520 = vsel %vm3815, %v4506, 0
      %v4523 = vsel %vm3815, %v4507, 0
      %v4526 = vsel %vm3815, %v4508, 0
      %v4529 = vsel %vm3815, %v4509, 0
      %4531 = vmatprep.subr.bf16.mxu0 0
      %4532 = vmatpush1.bf16.msra.mxu0 0
      %4533 = vmatprep.subr.bf16.mxu0 0
      %4534 = vmatpush1.bf16.msra.mxu0 0
      %4535 = vmatprep.subr.bf16.mxu0 0
      %4536 = vmatpush1.bf16.msra.mxu0 0
      %4537 = vmatprep.subr.bf16.mxu0 0
      %4538 = vmatpush1.bf16.msra.mxu0 0
      %4539 = vmatprep.subr.bf16.mxu0 0
      %4540 = vmatpush1.bf16.msra.mxu0 0
      %4541 = vmatprep.subr.bf16.mxu0 0
      %4542 = vmatpush1.bf16.msra.mxu0 0
      %4543 = vmatprep.subr.bf16.mxu0 0
      %4544 = vmatpush1.bf16.msra.mxu0 0
      %4545 = vmatprep.subr.bf16.mxu0 0
      %4546 = vmatpush1.bf16.msra.mxu0 %v4517
      %4547 = vmatprep.subr.bf16.mxu0 0
      %4548 = vmatpush2.bf16.msra.mxu0 0
      %4549 = vmatprep.subr.bf16.mxu0 0
      %4550 = vmatpush2.bf16.msra.mxu0 0
      %4551 = vmatprep.subr.bf16.mxu0 0
      %4552 = vmatpush2.bf16.msra.mxu0 0
      %4553 = vmatprep.subr.bf16.mxu0 0
      %4554 = vmatpush2.bf16.msra.mxu0 0
      %4555 = vmatprep.subr.bf16.mxu0 0
      %4556 = vmatpush2.bf16.msra.mxu0 0
      %4557 = vmatprep.subr.bf16.mxu0 0
      %4558 = vmatpush2.bf16.msra.mxu0 0
      %4559 = vmatprep.subr.bf16.mxu0 0
      %4560 = vmatpush2.bf16.msra.mxu0 0
      %4561 = vmatprep.subr.bf16.mxu0 0
      %4562 = vmatpush2.bf16.msra.mxu0 0
      %4563 = vmatprep.mubr.bf16.mxu0 0
      %4564 = vmatmul.mubr.bf16.gmra.mxu0 %v4520
      %v4565 = vpop.f32.mrf.mxu0
      %v4566 = vadd.f32 0.0, %v4565
      %v4567 = vpop.f32.mrf.mxu0
      %v4568 = vpop.f32.mrf.mxu0
      %v4569 = vadd.f32 0.0, %v4568
      %v4570 = vpop.f32.mrf.mxu0
      %4571 = vmatprep.mubr.bf16.mxu0 0
      %4572 = vmatmul.mubr.bf16.gmra.mxu0 %v4523
      %v4573 = vpop.f32.mrf.mxu0
      %v4574 = vadd.f32 0.0, %v4573
      %v4575 = vpop.f32.mrf.mxu0
      %v4576 = vpop.f32.mrf.mxu0
      %v4577 = vadd.f32 0.0, %v4576
      %v4578 = vpop.f32.mrf.mxu0
      %4579 = vmatprep.mubr.bf16.mxu0 0
      %4580 = vmatmul.mubr.bf16.gmra.mxu0 %v4526
      %v4581 = vpop.f32.mrf.mxu0
      %v4582 = vadd.f32 0.0, %v4581
      %v4583 = vpop.f32.mrf.mxu0
      %v4584 = vpop.f32.mrf.mxu0
      %v4585 = vadd.f32 0.0, %v4584
      %v4586 = vpop.f32.mrf.mxu0
      %4587 = vmatprep.mubr.bf16.mxu0 0
      %4588 = vmatmul.mubr.bf16.gmra.mxu0 %v4529
      %v4589 = vpop.f32.mrf.mxu0
      %v4590 = vadd.f32 0.0, %v4589
      %v4591 = vpop.f32.mrf.mxu0
      %v4592 = vpop.f32.mrf.mxu0
      %v4593 = vadd.f32 0.0, %v4592
      %v4594 = vpop.f32.mrf.mxu0
      %4595 = vdwg.mxu0
      %v4598 = vunpack.c.l.b16 %v4503
      %v4599 = vunpack.c.l.b16 %v4504
      %v4600 = vpack.c.b16 %v4599, %v4598
      %v4603 = vsel %vm3815, %v4498, 0
      %v4606 = vsel %vm3815, %v4499, 0
      %v4609 = vsel %vm3815, %v4500, 0
      %v4612 = vsel %vm3815, %v4501, 0
      %4614 = vmatprep.subr.bf16.mxu0 0
      %4615 = vmatpush1.bf16.msra.mxu0 0
      %4616 = vmatprep.subr.bf16.mxu0 0
      %4617 = vmatpush1.bf16.msra.mxu0 0
      %4618 = vmatprep.subr.bf16.mxu0 0
      %4619 = vmatpush1.bf16.msra.mxu0 0
      %4620 = vmatprep.subr.bf16.mxu0 0
      %4621 = vmatpush1.bf16.msra.mxu0 0
      %4622 = vmatprep.subr.bf16.mxu0 0
      %4623 = vmatpush1.bf16.msra.mxu0 0
      %4624 = vmatprep.subr.bf16.mxu0 0
      %4625 = vmatpush1.bf16.msra.mxu0 0
      %4626 = vmatprep.subr.bf16.mxu0 0
      %4627 = vmatpush1.bf16.msra.mxu0 0
      %4628 = vmatprep.subr.bf16.mxu0 0
      %4629 = vmatpush1.bf16.msra.mxu0 %v4600
      %4630 = vmatprep.subr.bf16.mxu0 0
      %4631 = vmatpush2.bf16.msra.mxu0 0
      %4632 = vmatprep.subr.bf16.mxu0 0
      %4633 = vmatpush2.bf16.msra.mxu0 0
      %4634 = vmatprep.subr.bf16.mxu0 0
      %4635 = vmatpush2.bf16.msra.mxu0 0
      %4636 = vmatprep.subr.bf16.mxu0 0
      %4637 = vmatpush2.bf16.msra.mxu0 0
      %4638 = vmatprep.subr.bf16.mxu0 0
      %4639 = vmatpush2.bf16.msra.mxu0 0
      %4640 = vmatprep.subr.bf16.mxu0 0
      %4641 = vmatpush2.bf16.msra.mxu0 0
      %4642 = vmatprep.subr.bf16.mxu0 0
      %4643 = vmatpush2.bf16.msra.mxu0 0
      %4644 = vmatprep.subr.bf16.mxu0 0
      %4645 = vmatpush2.bf16.msra.mxu0 0
      %4646 = vmatprep.mubr.bf16.mxu0 0
      %4647 = vmatmul.mubr.bf16.gmra.mxu0 %v4603
      %v4648 = vpop.f32.mrf.mxu0
      %v4649 = vadd.f32 %v4566, %v4648
      %v4650 = vpop.f32.mrf.mxu0
      %v4651 = vpop.f32.mrf.mxu0
      %v4652 = vadd.f32 %v4569, %v4651
      %v4653 = vpop.f32.mrf.mxu0
      %4654 = vmatprep.mubr.bf16.mxu0 0
      %4655 = vmatmul.mubr.bf16.gmra.mxu0 %v4606
      %v4656 = vpop.f32.mrf.mxu0
      %v4657 = vadd.f32 %v4574, %v4656
      %v4658 = vpop.f32.mrf.mxu0
      %v4659 = vpop.f32.mrf.mxu0
      %v4660 = vadd.f32 %v4577, %v4659
      %v4661 = vpop.f32.mrf.mxu0
      %4662 = vmatprep.mubr.bf16.mxu0 0
      %4663 = vmatmul.mubr.bf16.gmra.mxu0 %v4609
      %v4664 = vpop.f32.mrf.mxu0
      %v4665 = vadd.f32 %v4582, %v4664
      %v4666 = vpop.f32.mrf.mxu0
      %v4667 = vpop.f32.mrf.mxu0
      %v4668 = vadd.f32 %v4585, %v4667
      %v4669 = vpop.f32.mrf.mxu0
      %4670 = vmatprep.mubr.bf16.mxu0 0
      %4671 = vmatmul.mubr.bf16.gmra.mxu0 %v4612
      %v4672 = vpop.f32.mrf.mxu0
      %v4673 = vadd.f32 %v4590, %v4672
      %v4674 = vpop.f32.mrf.mxu0
      %v4675 = vpop.f32.mrf.mxu0
      %v4676 = vadd.f32 %v4593, %v4675
      %v4677 = vpop.f32.mrf.mxu0
      %4678 = vdwg.mxu0
      %v4679 = vld [vmem:[#allocation3 + $0x19] sm:$0xff]
      %v4680 = vld [vmem:[#allocation3 + $0x21] sm:$0xff]
      %v4681 = vld [vmem:[#allocation3 + $0x29] sm:$0xff]
      %v4682 = vld [vmem:[#allocation3 + $0x31] sm:$0xff]
      %v4683 = vld [vmem:[#allocation3 + $0x39] sm:$0xff]
      %v4684 = vld [vmem:[#allocation3 + $0x41] sm:$0xff]
      %v4685 = vld [vmem:[#allocation3 + $0x49] sm:$0xff]
      %v4686 = vld [vmem:[#allocation3 + $0x51] sm:$0xff]
      %v4687 = vpack.c.bf16 %v4680, %v4679
      %v4688 = vpack.c.bf16 %v4682, %v4681
      %v4689 = vpack.c.bf16 %v4684, %v4683
      %v4690 = vpack.c.bf16 %v4686, %v4685
      %s4691 = scalar_lea.vmem %s4, 64
      %v4692 = vld [vmem:[%s4691] sm:$0xf]
      %v4693 = vld [vmem:[%s4691 + $0x4] sm:$0xf]
      %v4696 = vunpack.c.l.b16 %v4692
      %v4697 = vunpack.c.l.b16 %v4693
      %v4698 = vpack.c.b16 %v4697, %v4696
      %v4701 = vsel %vm3815, %v4687, 0
      %v4704 = vsel %vm3815, %v4688, 0
      %v4707 = vsel %vm3815, %v4689, 0
      %v4710 = vsel %vm3815, %v4690, 0
      %4712 = vmatprep.subr.bf16.mxu0 0
      %4713 = vmatpush1.bf16.msra.mxu0 0
      %4714 = vmatprep.subr.bf16.mxu0 0
      %4715 = vmatpush1.bf16.msra.mxu0 0
      %4716 = vmatprep.subr.bf16.mxu0 0
      %4717 = vmatpush1.bf16.msra.mxu0 0
      %4718 = vmatprep.subr.bf16.mxu0 0
      %4719 = vmatpush1.bf16.msra.mxu0 0
      %4720 = vmatprep.subr.bf16.mxu0 0
      %4721 = vmatpush1.bf16.msra.mxu0 0
      %4722 = vmatprep.subr.bf16.mxu0 0
      %4723 = vmatpush1.bf16.msra.mxu0 0
      %4724 = vmatprep.subr.bf16.mxu0 0
      %4725 = vmatpush1.bf16.msra.mxu0 0
      %4726 = vmatprep.subr.bf16.mxu0 0
      %4727 = vmatpush1.bf16.msra.mxu0 %v4698
      %4728 = vmatprep.subr.bf16.mxu0 0
      %4729 = vmatpush2.bf16.msra.mxu0 0
      %4730 = vmatprep.subr.bf16.mxu0 0
      %4731 = vmatpush2.bf16.msra.mxu0 0
      %4732 = vmatprep.subr.bf16.mxu0 0
      %4733 = vmatpush2.bf16.msra.mxu0 0
      %4734 = vmatprep.subr.bf16.mxu0 0
      %4735 = vmatpush2.bf16.msra.mxu0 0
      %4736 = vmatprep.subr.bf16.mxu0 0
      %4737 = vmatpush2.bf16.msra.mxu0 0
      %4738 = vmatprep.subr.bf16.mxu0 0
      %4739 = vmatpush2.bf16.msra.mxu0 0
      %4740 = vmatprep.subr.bf16.mxu0 0
      %4741 = vmatpush2.bf16.msra.mxu0 0
      %4742 = vmatprep.subr.bf16.mxu0 0
      %4743 = vmatpush2.bf16.msra.mxu0 0
      %4744 = vmatprep.mubr.bf16.mxu0 0
      %4745 = vmatmul.mubr.bf16.gmra.mxu0 %v4701
      %v4746 = vpop.f32.mrf.mxu0
      %v4747 = vadd.f32 0.0, %v4746
      %v4748 = vpop.f32.mrf.mxu0
      %v4749 = vpop.f32.mrf.mxu0
      %v4750 = vadd.f32 0.0, %v4749
      %v4751 = vpop.f32.mrf.mxu0
      %4752 = vmatprep.mubr.bf16.mxu0 0
      %4753 = vmatmul.mubr.bf16.gmra.mxu0 %v4704
      %v4754 = vpop.f32.mrf.mxu0
      %v4755 = vadd.f32 0.0, %v4754
      %v4756 = vpop.f32.mrf.mxu0
      %v4757 = vpop.f32.mrf.mxu0
      %v4758 = vadd.f32 0.0, %v4757
      %v4759 = vpop.f32.mrf.mxu0
      %4760 = vmatprep.mubr.bf16.mxu0 0
      %4761 = vmatmul.mubr.bf16.gmra.mxu0 %v4707
      %v4762 = vpop.f32.mrf.mxu0
      %v4763 = vadd.f32 0.0, %v4762
      %v4764 = vpop.f32.mrf.mxu0
      %v4765 = vpop.f32.mrf.mxu0
      %v4766 = vadd.f32 0.0, %v4765
      %v4767 = vpop.f32.mrf.mxu0
      %4768 = vmatprep.mubr.bf16.mxu0 0
      %4769 = vmatmul.mubr.bf16.gmra.mxu0 %v4710
      %v4770 = vpop.f32.mrf.mxu0
      %v4771 = vadd.f32 0.0, %v4770
      %v4772 = vpop.f32.mrf.mxu0
      %v4773 = vpop.f32.mrf.mxu0
      %v4774 = vadd.f32 0.0, %v4773
      %v4775 = vpop.f32.mrf.mxu0
      %4776 = vdwg.mxu0
      %v4777 = vadd.f32 %v4649, %v4747
      %v4778 = vadd.f32 %v4652, %v4750
      %v4779 = vadd.f32 %v4657, %v4755
      %v4780 = vadd.f32 %v4660, %v4758
      %v4781 = vadd.f32 %v4665, %v4763
      %v4782 = vadd.f32 %v4668, %v4766
      %v4783 = vadd.f32 %v4673, %v4771
      %v4784 = vadd.f32 %v4676, %v4774
      %v4785 = vmul.f32 %v4777, %v3877
      %v4786 = vmul.f32 %v4778, %v3878
      %v4787 = vmul.f32 %v4779, %v3879
      %v4788 = vmul.f32 %v4780, %v3880
      %v4789 = vmul.f32 %v4781, %v3881
      %v4790 = vmul.f32 %v4782, %v3882
      %v4791 = vmul.f32 %v4783, %v3883
      %v4792 = vmul.f32 %v4784, %v3884
      %v4793 = vadd.f32 %v4482, %v4785
      %v4794 = vadd.f32 %v4483, %v4786
      %v4795 = vadd.f32 %v4484, %v4787
      %v4796 = vadd.f32 %v4485, %v4788
      %v4797 = vadd.f32 %v4486, %v4789
      %v4798 = vadd.f32 %v4487, %v4790
      %v4799 = vadd.f32 %v4488, %v4791
      %v4800 = vadd.f32 %v4489, %v4792
      %v4801 = vld [vmem:[%s5] sm:$0x1]
      %v4803 = vlaneseq
      %v4804 = vshrl.u32 %v4803, 7
      %v4805 = vsub.s32 0, %v4804
      %v4806 = vrot.slane %v4801, %v4805
      %v4808 = vadd.f32 %v4793, %v4806
      %v4809 = vadd.f32 %v4794, %v4806
      %v4810 = vadd.f32 %v4795, %v4806
      %v4811 = vadd.f32 %v4796, %v4806
      %v4812 = vadd.f32 %v4797, %v4806
      %v4813 = vadd.f32 %v4798, %v4806
      %v4814 = vadd.f32 %v4799, %v4806
      %v4815 = vadd.f32 %v4800, %v4806
      %v4816 = vmax.f32 %v4808, 0.0
      %v4817 = vmax.f32 %v4809, 0.0
      %v4818 = vmax.f32 %v4810, 0.0
      %v4819 = vmax.f32 %v4811, 0.0
      %v4820 = vmax.f32 %v4812, 0.0
      %v4821 = vmax.f32 %v4813, 0.0
      %v4822 = vmax.f32 %v4814, 0.0
      %v4823 = vmax.f32 %v4815, 0.0
      %v4824 = vpack.c.bf16 %v4817, %v4816
      %v4825 = vpack.c.bf16 %v4819, %v4818
      %v4826 = vpack.c.bf16 %v4821, %v4820
      %v4827 = vpack.c.bf16 %v4823, %v4822
      %v4828 = vld [vmem:[%s6] sm:$0xf]
      %v4829 = vld [vmem:[%s6 + $0x4] sm:$0xf]
      %v4832 = vunpack.c.l.b16 %v4828
      %v4833 = vunpack.c.l.b16 %v4829
      %v4834 = vpack.c.b16 %v4833, %v4832
      %vm4835 = vcmask 523264
      %v4837 = vsel %vm4835, %v4834, 0
      %4839 = vmatprep.subr.bf16.mxu0 0
      %4840 = vmatpush1.bf16.msra.mxu0 0
      %4841 = vmatprep.subr.bf16.mxu0 0
      %4842 = vmatpush1.bf16.msra.mxu0 0
      %4843 = vmatprep.subr.bf16.mxu0 0
      %4844 = vmatpush1.bf16.msra.mxu0 0
      %4845 = vmatprep.subr.bf16.mxu0 0
      %4846 = vmatpush1.bf16.msra.mxu0 0
      %4847 = vmatprep.subr.bf16.mxu0 0
      %4848 = vmatpush1.bf16.msra.mxu0 %v4827
      %4849 = vmatprep.subr.bf16.mxu0 0
      %4850 = vmatpush1.bf16.msra.mxu0 %v4826
      %4851 = vmatprep.subr.bf16.mxu0 0
      %4852 = vmatpush1.bf16.msra.mxu0 %v4825
      %4853 = vmatprep.subr.bf16.mxu0 0
      %4854 = vmatpush1.bf16.msra.mxu0 %v4824
      %4855 = vmatprep.subr.bf16.mxu0 0
      %4856 = vmatpush2.bf16.msra.mxu0 0
      %4857 = vmatprep.subr.bf16.mxu0 0
      %4858 = vmatpush2.bf16.msra.mxu0 0
      %4859 = vmatprep.subr.bf16.mxu0 0
      %4860 = vmatpush2.bf16.msra.mxu0 0
      %4861 = vmatprep.subr.bf16.mxu0 0
      %4862 = vmatpush2.bf16.msra.mxu0 0
      %4863 = vmatprep.subr.bf16.mxu0 0
      %4864 = vmatpush2.bf16.msra.mxu0 0
      %4865 = vmatprep.subr.bf16.mxu0 0
      %4866 = vmatpush2.bf16.msra.mxu0 0
      %4867 = vmatprep.subr.bf16.mxu0 0
      %4868 = vmatpush2.bf16.msra.mxu0 0
      %4869 = vmatprep.subr.bf16.mxu0 0
      %4870 = vmatpush2.bf16.msra.mxu0 0
      %4871 = vmatprep.mubr.bf16.mxu0 0
      %4872 = vmatmul.mubr.bf16.gmra.mxu0 %v4837
      %v4873 = vpop.f32.mrf.mxu0
      %v4874 = vadd.f32 0.0, %v4873
      %v4875 = vpop.f32.mrf.mxu0
      %v4876 = vpop.f32.mrf.mxu0
      %v4877 = vadd.f32 0.0, %v4876
      %v4878 = vpop.f32.mrf.mxu0
      %4879 = vdwg.mxu0
      %s4880 = scalar_lea.vmem %s6, 8
      %v4881 = vld [vmem:[%s4880] sm:$0xf]
      %v4882 = vld [vmem:[%s4880 + $0x4] sm:$0xf]
      %v4885 = vunpack.c.l.b16 %v4881
      %v4886 = vunpack.c.l.b16 %v4882
      %v4887 = vpack.c.b16 %v4886, %v4885
      %v4889 = vsel %vm4835, %v4887, 0
      %4891 = vmatprep.subr.bf16.mxu0 0
      %4892 = vmatpush1.bf16.msra.mxu0 0
      %4893 = vmatprep.subr.bf16.mxu0 0
      %4894 = vmatpush1.bf16.msra.mxu0 0
      %4895 = vmatprep.subr.bf16.mxu0 0
      %4896 = vmatpush1.bf16.msra.mxu0 0
      %4897 = vmatprep.subr.bf16.mxu0 0
      %4898 = vmatpush1.bf16.msra.mxu0 0
      %4899 = vmatprep.subr.bf16.mxu0 0
      %4900 = vmatpush1.bf16.msra.mxu0 %v4827
      %4901 = vmatprep.subr.bf16.mxu0 0
      %4902 = vmatpush1.bf16.msra.mxu0 %v4826
      %4903 = vmatprep.subr.bf16.mxu0 0
      %4904 = vmatpush1.bf16.msra.mxu0 %v4825
      %4905 = vmatprep.subr.bf16.mxu0 0
      %4906 = vmatpush1.bf16.msra.mxu0 %v4824
      %4907 = vmatprep.subr.bf16.mxu0 0
      %4908 = vmatpush2.bf16.msra.mxu0 0
      %4909 = vmatprep.subr.bf16.mxu0 0
      %4910 = vmatpush2.bf16.msra.mxu0 0
      %4911 = vmatprep.subr.bf16.mxu0 0
      %4912 = vmatpush2.bf16.msra.mxu0 0
      %4913 = vmatprep.subr.bf16.mxu0 0
      %4914 = vmatpush2.bf16.msra.mxu0 0
      %4915 = vmatprep.subr.bf16.mxu0 0
      %4916 = vmatpush2.bf16.msra.mxu0 0
      %4917 = vmatprep.subr.bf16.mxu0 0
      %4918 = vmatpush2.bf16.msra.mxu0 0
      %4919 = vmatprep.subr.bf16.mxu0 0
      %4920 = vmatpush2.bf16.msra.mxu0 0
      %4921 = vmatprep.subr.bf16.mxu0 0
      %4922 = vmatpush2.bf16.msra.mxu0 0
      %4923 = vmatprep.mubr.bf16.mxu0 0
      %4924 = vmatmul.mubr.bf16.gmra.mxu0 %v4889
      %v4925 = vpop.f32.mrf.mxu0
      %v4926 = vadd.f32 0.0, %v4925
      %v4927 = vpop.f32.mrf.mxu0
      %v4928 = vpop.f32.mrf.mxu0
      %v4929 = vadd.f32 0.0, %v4928
      %v4930 = vpop.f32.mrf.mxu0
      %4931 = vdwg.mxu0
      %v4932 = vmax.f32 %v4874, %v4926
      %v4933 = vmax.f32 %v4877, %v4929
      %s4934 = scalar_lea.vmem %s6, 16
      %v4935 = vld [vmem:[%s4934] sm:$0xf]
      %v4936 = vld [vmem:[%s4934 + $0x4] sm:$0xf]
      %v4939 = vunpack.c.l.b16 %v4935
      %v4940 = vunpack.c.l.b16 %v4936
      %v4941 = vpack.c.b16 %v4940, %v4939
      %v4943 = vsel %vm4835, %v4941, 0
      %4945 = vmatprep.subr.bf16.mxu0 0
      %4946 = vmatpush1.bf16.msra.mxu0 0
      %4947 = vmatprep.subr.bf16.mxu0 0
      %4948 = vmatpush1.bf16.msra.mxu0 0
      %4949 = vmatprep.subr.bf16.mxu0 0
      %4950 = vmatpush1.bf16.msra.mxu0 0
      %4951 = vmatprep.subr.bf16.mxu0 0
      %4952 = vmatpush1.bf16.msra.mxu0 0
      %4953 = vmatprep.subr.bf16.mxu0 0
      %4954 = vmatpush1.bf16.msra.mxu0 %v4827
      %4955 = vmatprep.subr.bf16.mxu0 0
      %4956 = vmatpush1.bf16.msra.mxu0 %v4826
      %4957 = vmatprep.subr.bf16.mxu0 0
      %4958 = vmatpush1.bf16.msra.mxu0 %v4825
      %4959 = vmatprep.subr.bf16.mxu0 0
      %4960 = vmatpush1.bf16.msra.mxu0 %v4824
      %4961 = vmatprep.subr.bf16.mxu0 0
      %4962 = vmatpush2.bf16.msra.mxu0 0
      %4963 = vmatprep.subr.bf16.mxu0 0
      %4964 = vmatpush2.bf16.msra.mxu0 0
      %4965 = vmatprep.subr.bf16.mxu0 0
      %4966 = vmatpush2.bf16.msra.mxu0 0
      %4967 = vmatprep.subr.bf16.mxu0 0
      %4968 = vmatpush2.bf16.msra.mxu0 0
      %4969 = vmatprep.subr.bf16.mxu0 0
      %4970 = vmatpush2.bf16.msra.mxu0 0
      %4971 = vmatprep.subr.bf16.mxu0 0
      %4972 = vmatpush2.bf16.msra.mxu0 0
      %4973 = vmatprep.subr.bf16.mxu0 0
      %4974 = vmatpush2.bf16.msra.mxu0 0
      %4975 = vmatprep.subr.bf16.mxu0 0
      %4976 = vmatpush2.bf16.msra.mxu0 0
      %4977 = vmatprep.mubr.bf16.mxu0 0
      %4978 = vmatmul.mubr.bf16.gmra.mxu0 %v4943
      %v4979 = vpop.f32.mrf.mxu0
      %v4980 = vadd.f32 0.0, %v4979
      %v4981 = vpop.f32.mrf.mxu0
      %v4982 = vpop.f32.mrf.mxu0
      %v4983 = vadd.f32 0.0, %v4982
      %v4984 = vpop.f32.mrf.mxu0
      %4985 = vdwg.mxu0
      %v4986 = vmax.f32 %v4932, %v4980
      %v4987 = vmax.f32 %v4933, %v4983
      %s4988 = scalar_lea.vmem %s6, 24
      %v4989 = vld [vmem:[%s4988] sm:$0xf]
      %v4990 = vld [vmem:[%s4988 + $0x4] sm:$0xf]
      %v4993 = vunpack.c.l.b16 %v4989
      %v4994 = vunpack.c.l.b16 %v4990
      %v4995 = vpack.c.b16 %v4994, %v4993
      %v4997 = vsel %vm4835, %v4995, 0
      %4999 = vmatprep.subr.bf16.mxu0 0
      %5000 = vmatpush1.bf16.msra.mxu0 0
      %5001 = vmatprep.subr.bf16.mxu0 0
      %5002 = vmatpush1.bf16.msra.mxu0 0
      %5003 = vmatprep.subr.bf16.mxu0 0
      %5004 = vmatpush1.bf16.msra.mxu0 0
      %5005 = vmatprep.subr.bf16.mxu0 0
      %5006 = vmatpush1.bf16.msra.mxu0 0
      %5007 = vmatprep.subr.bf16.mxu0 0
      %5008 = vmatpush1.bf16.msra.mxu0 %v4827
      %5009 = vmatprep.subr.bf16.mxu0 0
      %5010 = vmatpush1.bf16.msra.mxu0 %v4826
      %5011 = vmatprep.subr.bf16.mxu0 0
      %5012 = vmatpush1.bf16.msra.mxu0 %v4825
      %5013 = vmatprep.subr.bf16.mxu0 0
      %5014 = vmatpush1.bf16.msra.mxu0 %v4824
      %5015 = vmatprep.subr.bf16.mxu0 0
      %5016 = vmatpush2.bf16.msra.mxu0 0
      %5017 = vmatprep.subr.bf16.mxu0 0
      %5018 = vmatpush2.bf16.msra.mxu0 0
      %5019 = vmatprep.subr.bf16.mxu0 0
      %5020 = vmatpush2.bf16.msra.mxu0 0
      %5021 = vmatprep.subr.bf16.mxu0 0
      %5022 = vmatpush2.bf16.msra.mxu0 0
      %5023 = vmatprep.subr.bf16.mxu0 0
      %5024 = vmatpush2.bf16.msra.mxu0 0
      %5025 = vmatprep.subr.bf16.mxu0 0
      %5026 = vmatpush2.bf16.msra.mxu0 0
      %5027 = vmatprep.subr.bf16.mxu0 0
      %5028 = vmatpush2.bf16.msra.mxu0 0
      %5029 = vmatprep.subr.bf16.mxu0 0
      %5030 = vmatpush2.bf16.msra.mxu0 0
      %5031 = vmatprep.mubr.bf16.mxu0 0
      %5032 = vmatmul.mubr.bf16.gmra.mxu0 %v4997
      %v5033 = vpop.f32.mrf.mxu0
      %v5034 = vadd.f32 0.0, %v5033
      %v5035 = vpop.f32.mrf.mxu0
      %v5036 = vpop.f32.mrf.mxu0
      %v5037 = vadd.f32 0.0, %v5036
      %v5038 = vpop.f32.mrf.mxu0
      %5039 = vdwg.mxu0
      %v5040 = vmax.f32 %v4986, %v5034
      %v5041 = vmax.f32 %v4987, %v5037
      %v5042 = vpack.c.bf16 %v5041, %v5040
      %vm5043 = vcmask 261120
      %5044 = vst.msk [vmem:[#allocation4] sm:$0xff] %vm5043, 0.0
      %5045 = vst.msk [vmem:[#allocation4 + $0x8] sm:$0xff] %vm5043, 0.0
      %5046 = vst.msk [vmem:[#allocation4 + $0x10] sm:$0xff] %vm5043, 0.0
      %vm5047 = vcmask 258048
      %5048 = vst.msk [vmem:[#allocation4 + $0x18] sm:$0x1f] %vm5047, 0.0
      %v5049 = vunpack.c.l.bf16 %v5042
      %v5050 = vunpack.c.h.bf16 %v5042
      %5051 = vst.msk [vmem:[#allocation4 + $0x8] sm:$0xff] %vm5043, %v5049
      %5052 = vst.msk [vmem:[#allocation4 + $0x10] sm:$0xff] %vm5043, %v5050
      %v5053 = vand.u32 %v741, 3
      %v5054 = vand.u32 %v742, 3
      %vm5055 = vcmp.ne.s32.totalorder %v5053, 0
      %vm5056 = vcmp.ne.s32.totalorder %v5054, 0
      %v5057 = vsel %vm5055, 1.0, 0.0
      %v5058 = vsel %vm5056, 1.0, 0.0
      %vm5059 = vcmp.ne.s32.totalorder %v5053, 3
      %vm5060 = vcmp.ne.s32.totalorder %v5054, 3
      %v5061 = vsel %vm5059, 1.0, 0.0
      %v5062 = vsel %vm5060, 1.0, 0.0
      %v5063 = vld [vmem:[#allocation4 + $0x3] sm:$0xff]
      %v5064 = vld [vmem:[#allocation4 + $0xb] sm:$0xff]
      %v5065 = vpack.c.bf16 %v5064, %v5063
      %v5066 = vld [vmem:[%s7] sm:$0xf]
      %v5067 = vld [vmem:[%s7 + $0x4] sm:$0xf]
      %v5068 = vld [vmem:[%s7 + $0x8] sm:$0xf]
      %v5069 = vld [vmem:[%s7 + $0xc] sm:$0xf]
      %v5070 = vld [vmem:[#allocation4 + $0x7] sm:$0xff]
      %v5071 = vld [vmem:[#allocation4 + $0xf] sm:$0xff]
      %v5072 = vpack.c.bf16 %v5071, %v5070
      %s5073 = scalar_lea.vmem %s7, 48
      %v5074 = vld [vmem:[%s5073] sm:$0xf]
      %v5075 = vld [vmem:[%s5073 + $0x4] sm:$0xf]
      %v5076 = vld [vmem:[%s5073 + $0x8] sm:$0xf]
      %v5077 = vld [vmem:[%s5073 + $0xc] sm:$0xf]
      %v5082 = vunpack.c.l.b16 %v5074
      %v5083 = vunpack.c.l.b16 %v5075
      %v5084 = vunpack.c.l.b16 %v5076
      %v5085 = vunpack.c.l.b16 %v5077
      %v5086 = vpack.c.b16 %v5083, %v5082
      %v5087 = vpack.c.b16 %v5085, %v5084
      %v5091 = vsel %vm5043, %v5072, 0
      %5093 = vmatprep.subr.bf16.mxu0 0
      %5094 = vmatpush1.bf16.msra.mxu0 0
      %5095 = vmatprep.subr.bf16.mxu0 0
      %5096 = vmatpush1.bf16.msra.mxu0 0
      %5097 = vmatprep.subr.bf16.mxu0 0
      %5098 = vmatpush1.bf16.msra.mxu0 0
      %5099 = vmatprep.subr.bf16.mxu0 0
      %5100 = vmatpush1.bf16.msra.mxu0 0
      %5101 = vmatprep.subr.bf16.mxu0 0
      %5102 = vmatpush1.bf16.msra.mxu0 0
      %5103 = vmatprep.subr.bf16.mxu0 0
      %5104 = vmatpush1.bf16.msra.mxu0 0
      %5105 = vmatprep.subr.bf16.mxu0 0
      %5106 = vmatpush1.bf16.msra.mxu0 %v5087
      %5107 = vmatprep.subr.bf16.mxu0 0
      %5108 = vmatpush1.bf16.msra.mxu0 %v5086
      %5109 = vmatprep.subr.bf16.mxu0 0
      %5110 = vmatpush2.bf16.msra.mxu0 0
      %5111 = vmatprep.subr.bf16.mxu0 0
      %5112 = vmatpush2.bf16.msra.mxu0 0
      %5113 = vmatprep.subr.bf16.mxu0 0
      %5114 = vmatpush2.bf16.msra.mxu0 0
      %5115 = vmatprep.subr.bf16.mxu0 0
      %5116 = vmatpush2.bf16.msra.mxu0 0
      %5117 = vmatprep.subr.bf16.mxu0 0
      %5118 = vmatpush2.bf16.msra.mxu0 0
      %5119 = vmatprep.subr.bf16.mxu0 0
      %5120 = vmatpush2.bf16.msra.mxu0 0
      %5121 = vmatprep.subr.bf16.mxu0 0
      %5122 = vmatpush2.bf16.msra.mxu0 0
      %5123 = vmatprep.subr.bf16.mxu0 0
      %5124 = vmatpush2.bf16.msra.mxu0 0
      %5125 = vmatprep.mubr.bf16.mxu0 0
      %5126 = vmatmul.mubr.bf16.gmra.mxu0 %v5091
      %v5127 = vpop.f32.mrf.mxu0
      %v5128 = vadd.f32 0.0, %v5127
      %v5129 = vpop.f32.mrf.mxu0
      %v5130 = vpop.f32.mrf.mxu0
      %v5131 = vadd.f32 0.0, %v5130
      %v5132 = vpop.f32.mrf.mxu0
      %5133 = vdwg.mxu0
      %v5138 = vunpack.c.l.b16 %v5066
      %v5139 = vunpack.c.l.b16 %v5067
      %v5140 = vunpack.c.l.b16 %v5068
      %v5141 = vunpack.c.l.b16 %v5069
      %v5142 = vpack.c.b16 %v5139, %v5138
      %v5143 = vpack.c.b16 %v5141, %v5140
      %v5147 = vsel %vm5043, %v5065, 0
      %5149 = vmatprep.subr.bf16.mxu0 0
      %5150 = vmatpush1.bf16.msra.mxu0 0
      %5151 = vmatprep.subr.bf16.mxu0 0
      %5152 = vmatpush1.bf16.msra.mxu0 0
      %5153 = vmatprep.subr.bf16.mxu0 0
      %5154 = vmatpush1.bf16.msra.mxu0 0
      %5155 = vmatprep.subr.bf16.mxu0 0
      %5156 = vmatpush1.bf16.msra.mxu0 0
      %5157 = vmatprep.subr.bf16.mxu0 0
      %5158 = vmatpush1.bf16.msra.mxu0 0
      %5159 = vmatprep.subr.bf16.mxu0 0
      %5160 = vmatpush1.bf16.msra.mxu0 0
      %5161 = vmatprep.subr.bf16.mxu0 0
      %5162 = vmatpush1.bf16.msra.mxu0 %v5143
      %5163 = vmatprep.subr.bf16.mxu0 0
      %5164 = vmatpush1.bf16.msra.mxu0 %v5142
      %5165 = vmatprep.subr.bf16.mxu0 0
      %5166 = vmatpush2.bf16.msra.mxu0 0
      %5167 = vmatprep.subr.bf16.mxu0 0
      %5168 = vmatpush2.bf16.msra.mxu0 0
      %5169 = vmatprep.subr.bf16.mxu0 0
      %5170 = vmatpush2.bf16.msra.mxu0 0
      %5171 = vmatprep.subr.bf16.mxu0 0
      %5172 = vmatpush2.bf16.msra.mxu0 0
      %5173 = vmatprep.subr.bf16.mxu0 0
      %5174 = vmatpush2.bf16.msra.mxu0 0
      %5175 = vmatprep.subr.bf16.mxu0 0
      %5176 = vmatpush2.bf16.msra.mxu0 0
      %5177 = vmatprep.subr.bf16.mxu0 0
      %5178 = vmatpush2.bf16.msra.mxu0 0
      %5179 = vmatprep.subr.bf16.mxu0 0
      %5180 = vmatpush2.bf16.msra.mxu0 0
      %5181 = vmatprep.mubr.bf16.mxu0 0
      %5182 = vmatmul.mubr.bf16.gmra.mxu0 %v5147
      %v5183 = vpop.f32.mrf.mxu0
      %v5184 = vadd.f32 %v5128, %v5183
      %v5185 = vpop.f32.mrf.mxu0
      %v5186 = vpop.f32.mrf.mxu0
      %v5187 = vadd.f32 %v5131, %v5186
      %v5188 = vpop.f32.mrf.mxu0
      %5189 = vdwg.mxu0
      %v5190 = vld [vmem:[#allocation4 + $0xb] sm:$0xff]
      %v5191 = vld [vmem:[#allocation4 + $0x13] sm:$0xff]
      %v5192 = vpack.c.bf16 %v5191, %v5190
      %s5193 = scalar_lea.vmem %s7, 96
      %v5194 = vld [vmem:[%s5193] sm:$0xf]
      %v5195 = vld [vmem:[%s5193 + $0x4] sm:$0xf]
      %v5196 = vld [vmem:[%s5193 + $0x8] sm:$0xf]
      %v5197 = vld [vmem:[%s5193 + $0xc] sm:$0xf]
      %v5202 = vunpack.c.l.b16 %v5194
      %v5203 = vunpack.c.l.b16 %v5195
      %v5204 = vunpack.c.l.b16 %v5196
      %v5205 = vunpack.c.l.b16 %v5197
      %v5206 = vpack.c.b16 %v5203, %v5202
      %v5207 = vpack.c.b16 %v5205, %v5204
      %v5211 = vsel %vm5043, %v5192, 0
      %5213 = vmatprep.subr.bf16.mxu0 0
      %5214 = vmatpush1.bf16.msra.mxu0 0
      %5215 = vmatprep.subr.bf16.mxu0 0
      %5216 = vmatpush1.bf16.msra.mxu0 0
      %5217 = vmatprep.subr.bf16.mxu0 0
      %5218 = vmatpush1.bf16.msra.mxu0 0
      %5219 = vmatprep.subr.bf16.mxu0 0
      %5220 = vmatpush1.bf16.msra.mxu0 0
      %5221 = vmatprep.subr.bf16.mxu0 0
      %5222 = vmatpush1.bf16.msra.mxu0 0
      %5223 = vmatprep.subr.bf16.mxu0 0
      %5224 = vmatpush1.bf16.msra.mxu0 0
      %5225 = vmatprep.subr.bf16.mxu0 0
      %5226 = vmatpush1.bf16.msra.mxu0 %v5207
      %5227 = vmatprep.subr.bf16.mxu0 0
      %5228 = vmatpush1.bf16.msra.mxu0 %v5206
      %5229 = vmatprep.subr.bf16.mxu0 0
      %5230 = vmatpush2.bf16.msra.mxu0 0
      %5231 = vmatprep.subr.bf16.mxu0 0
      %5232 = vmatpush2.bf16.msra.mxu0 0
      %5233 = vmatprep.subr.bf16.mxu0 0
      %5234 = vmatpush2.bf16.msra.mxu0 0
      %5235 = vmatprep.subr.bf16.mxu0 0
      %5236 = vmatpush2.bf16.msra.mxu0 0
      %5237 = vmatprep.subr.bf16.mxu0 0
      %5238 = vmatpush2.bf16.msra.mxu0 0
      %5239 = vmatprep.subr.bf16.mxu0 0
      %5240 = vmatpush2.bf16.msra.mxu0 0
      %5241 = vmatprep.subr.bf16.mxu0 0
      %5242 = vmatpush2.bf16.msra.mxu0 0
      %5243 = vmatprep.subr.bf16.mxu0 0
      %5244 = vmatpush2.bf16.msra.mxu0 0
      %5245 = vmatprep.mubr.bf16.mxu0 0
      %5246 = vmatmul.mubr.bf16.gmra.mxu0 %v5211
      %v5247 = vpop.f32.mrf.mxu0
      %v5248 = vadd.f32 0.0, %v5247
      %v5249 = vpop.f32.mrf.mxu0
      %v5250 = vpop.f32.mrf.mxu0
      %v5251 = vadd.f32 0.0, %v5250
      %v5252 = vpop.f32.mrf.mxu0
      %5253 = vdwg.mxu0
      %v5254 = vadd.f32 %v5184, %v5248
      %v5255 = vadd.f32 %v5187, %v5251
      %v5256 = vmul.f32 %v5254, %v5057
      %v5257 = vmul.f32 %v5255, %v5058
      %v5258 = vld [vmem:[#allocation4 + $0x4] sm:$0xff]
      %v5259 = vld [vmem:[#allocation4 + $0xc] sm:$0xff]
      %v5260 = vpack.c.bf16 %v5259, %v5258
      %s5261 = scalar_lea.vmem %s7, 16
      %v5262 = vld [vmem:[%s5261] sm:$0xf]
      %v5263 = vld [vmem:[%s5261 + $0x4] sm:$0xf]
      %v5264 = vld [vmem:[%s5261 + $0x8] sm:$0xf]
      %v5265 = vld [vmem:[%s5261 + $0xc] sm:$0xf]
      %v5266 = vld [vmem:[#allocation4 + $0x8] sm:$0xff]
      %v5267 = vld [vmem:[#allocation4 + $0x10] sm:$0xff]
      %v5268 = vpack.c.bf16 %v5267, %v5266
      %s5269 = scalar_lea.vmem %s7, 64
      %v5270 = vld [vmem:[%s5269] sm:$0xf]
      %v5271 = vld [vmem:[%s5269 + $0x4] sm:$0xf]
      %v5272 = vld [vmem:[%s5269 + $0x8] sm:$0xf]
      %v5273 = vld [vmem:[%s5269 + $0xc] sm:$0xf]
      %v5278 = vunpack.c.l.b16 %v5270
      %v5279 = vunpack.c.l.b16 %v5271
      %v5280 = vunpack.c.l.b16 %v5272
      %v5281 = vunpack.c.l.b16 %v5273
      %v5282 = vpack.c.b16 %v5279, %v5278
      %v5283 = vpack.c.b16 %v5281, %v5280
      %v5287 = vsel %vm5043, %v5268, 0
      %5289 = vmatprep.subr.bf16.mxu0 0
      %5290 = vmatpush1.bf16.msra.mxu0 0
      %5291 = vmatprep.subr.bf16.mxu0 0
      %5292 = vmatpush1.bf16.msra.mxu0 0
      %5293 = vmatprep.subr.bf16.mxu0 0
      %5294 = vmatpush1.bf16.msra.mxu0 0
      %5295 = vmatprep.subr.bf16.mxu0 0
      %5296 = vmatpush1.bf16.msra.mxu0 0
      %5297 = vmatprep.subr.bf16.mxu0 0
      %5298 = vmatpush1.bf16.msra.mxu0 0
      %5299 = vmatprep.subr.bf16.mxu0 0
      %5300 = vmatpush1.bf16.msra.mxu0 0
      %5301 = vmatprep.subr.bf16.mxu0 0
      %5302 = vmatpush1.bf16.msra.mxu0 %v5283
      %5303 = vmatprep.subr.bf16.mxu0 0
      %5304 = vmatpush1.bf16.msra.mxu0 %v5282
      %5305 = vmatprep.subr.bf16.mxu0 0
      %5306 = vmatpush2.bf16.msra.mxu0 0
      %5307 = vmatprep.subr.bf16.mxu0 0
      %5308 = vmatpush2.bf16.msra.mxu0 0
      %5309 = vmatprep.subr.bf16.mxu0 0
      %5310 = vmatpush2.bf16.msra.mxu0 0
      %5311 = vmatprep.subr.bf16.mxu0 0
      %5312 = vmatpush2.bf16.msra.mxu0 0
      %5313 = vmatprep.subr.bf16.mxu0 0
      %5314 = vmatpush2.bf16.msra.mxu0 0
      %5315 = vmatprep.subr.bf16.mxu0 0
      %5316 = vmatpush2.bf16.msra.mxu0 0
      %5317 = vmatprep.subr.bf16.mxu0 0
      %5318 = vmatpush2.bf16.msra.mxu0 0
      %5319 = vmatprep.subr.bf16.mxu0 0
      %5320 = vmatpush2.bf16.msra.mxu0 0
      %5321 = vmatprep.mubr.bf16.mxu0 0
      %5322 = vmatmul.mubr.bf16.gmra.mxu0 %v5287
      %v5323 = vpop.f32.mrf.mxu0
      %v5324 = vadd.f32 0.0, %v5323
      %v5325 = vpop.f32.mrf.mxu0
      %v5326 = vpop.f32.mrf.mxu0
      %v5327 = vadd.f32 0.0, %v5326
      %v5328 = vpop.f32.mrf.mxu0
      %5329 = vdwg.mxu0
      %v5334 = vunpack.c.l.b16 %v5262
      %v5335 = vunpack.c.l.b16 %v5263
      %v5336 = vunpack.c.l.b16 %v5264
      %v5337 = vunpack.c.l.b16 %v5265
      %v5338 = vpack.c.b16 %v5335, %v5334
      %v5339 = vpack.c.b16 %v5337, %v5336
      %v5343 = vsel %vm5043, %v5260, 0
      %5345 = vmatprep.subr.bf16.mxu0 0
      %5346 = vmatpush1.bf16.msra.mxu0 0
      %5347 = vmatprep.subr.bf16.mxu0 0
      %5348 = vmatpush1.bf16.msra.mxu0 0
      %5349 = vmatprep.subr.bf16.mxu0 0
      %5350 = vmatpush1.bf16.msra.mxu0 0
      %5351 = vmatprep.subr.bf16.mxu0 0
      %5352 = vmatpush1.bf16.msra.mxu0 0
      %5353 = vmatprep.subr.bf16.mxu0 0
      %5354 = vmatpush1.bf16.msra.mxu0 0
      %5355 = vmatprep.subr.bf16.mxu0 0
      %5356 = vmatpush1.bf16.msra.mxu0 0
      %5357 = vmatprep.subr.bf16.mxu0 0
      %5358 = vmatpush1.bf16.msra.mxu0 %v5339
      %5359 = vmatprep.subr.bf16.mxu0 0
      %5360 = vmatpush1.bf16.msra.mxu0 %v5338
      %5361 = vmatprep.subr.bf16.mxu0 0
      %5362 = vmatpush2.bf16.msra.mxu0 0
      %5363 = vmatprep.subr.bf16.mxu0 0
      %5364 = vmatpush2.bf16.msra.mxu0 0
      %5365 = vmatprep.subr.bf16.mxu0 0
      %5366 = vmatpush2.bf16.msra.mxu0 0
      %5367 = vmatprep.subr.bf16.mxu0 0
      %5368 = vmatpush2.bf16.msra.mxu0 0
      %5369 = vmatprep.subr.bf16.mxu0 0
      %5370 = vmatpush2.bf16.msra.mxu0 0
      %5371 = vmatprep.subr.bf16.mxu0 0
      %5372 = vmatpush2.bf16.msra.mxu0 0
      %5373 = vmatprep.subr.bf16.mxu0 0
      %5374 = vmatpush2.bf16.msra.mxu0 0
      %5375 = vmatprep.subr.bf16.mxu0 0
      %5376 = vmatpush2.bf16.msra.mxu0 0
      %5377 = vmatprep.mubr.bf16.mxu0 0
      %5378 = vmatmul.mubr.bf16.gmra.mxu0 %v5343
      %v5379 = vpop.f32.mrf.mxu0
      %v5380 = vadd.f32 %v5324, %v5379
      %v5381 = vpop.f32.mrf.mxu0
      %v5382 = vpop.f32.mrf.mxu0
      %v5383 = vadd.f32 %v5327, %v5382
      %v5384 = vpop.f32.mrf.mxu0
      %5385 = vdwg.mxu0
      %v5386 = vld [vmem:[#allocation4 + $0xc] sm:$0xff]
      %v5387 = vld [vmem:[#allocation4 + $0x14] sm:$0xff]
      %v5388 = vpack.c.bf16 %v5387, %v5386
      %s5389 = scalar_lea.vmem %s7, 112
      %v5390 = vld [vmem:[%s5389] sm:$0xf]
      %v5391 = vld [vmem:[%s5389 + $0x4] sm:$0xf]
      %v5392 = vld [vmem:[%s5389 + $0x8] sm:$0xf]
      %v5393 = vld [vmem:[%s5389 + $0xc] sm:$0xf]
      %v5398 = vunpack.c.l.b16 %v5390
      %v5399 = vunpack.c.l.b16 %v5391
      %v5400 = vunpack.c.l.b16 %v5392
      %v5401 = vunpack.c.l.b16 %v5393
      %v5402 = vpack.c.b16 %v5399, %v5398
      %v5403 = vpack.c.b16 %v5401, %v5400
      %v5407 = vsel %vm5043, %v5388, 0
      %5409 = vmatprep.subr.bf16.mxu0 0
      %5410 = vmatpush1.bf16.msra.mxu0 0
      %5411 = vmatprep.subr.bf16.mxu0 0
      %5412 = vmatpush1.bf16.msra.mxu0 0
      %5413 = vmatprep.subr.bf16.mxu0 0
      %5414 = vmatpush1.bf16.msra.mxu0 0
      %5415 = vmatprep.subr.bf16.mxu0 0
      %5416 = vmatpush1.bf16.msra.mxu0 0
      %5417 = vmatprep.subr.bf16.mxu0 0
      %5418 = vmatpush1.bf16.msra.mxu0 0
      %5419 = vmatprep.subr.bf16.mxu0 0
      %5420 = vmatpush1.bf16.msra.mxu0 0
      %5421 = vmatprep.subr.bf16.mxu0 0
      %5422 = vmatpush1.bf16.msra.mxu0 %v5403
      %5423 = vmatprep.subr.bf16.mxu0 0
      %5424 = vmatpush1.bf16.msra.mxu0 %v5402
      %5425 = vmatprep.subr.bf16.mxu0 0
      %5426 = vmatpush2.bf16.msra.mxu0 0
      %5427 = vmatprep.subr.bf16.mxu0 0
      %5428 = vmatpush2.bf16.msra.mxu0 0
      %5429 = vmatprep.subr.bf16.mxu0 0
      %5430 = vmatpush2.bf16.msra.mxu0 0
      %5431 = vmatprep.subr.bf16.mxu0 0
      %5432 = vmatpush2.bf16.msra.mxu0 0
      %5433 = vmatprep.subr.bf16.mxu0 0
      %5434 = vmatpush2.bf16.msra.mxu0 0
      %5435 = vmatprep.subr.bf16.mxu0 0
      %5436 = vmatpush2.bf16.msra.mxu0 0
      %5437 = vmatprep.subr.bf16.mxu0 0
      %5438 = vmatpush2.bf16.msra.mxu0 0
      %5439 = vmatprep.subr.bf16.mxu0 0
      %5440 = vmatpush2.bf16.msra.mxu0 0
      %5441 = vmatprep.mubr.bf16.mxu0 0
      %5442 = vmatmul.mubr.bf16.gmra.mxu0 %v5407
      %v5443 = vpop.f32.mrf.mxu0
      %v5444 = vadd.f32 0.0, %v5443
      %v5445 = vpop.f32.mrf.mxu0
      %v5446 = vpop.f32.mrf.mxu0
      %v5447 = vadd.f32 0.0, %v5446
      %v5448 = vpop.f32.mrf.mxu0
      %5449 = vdwg.mxu0
      %v5450 = vadd.f32 %v5380, %v5444
      %v5451 = vadd.f32 %v5383, %v5447
      %v5452 = vadd.f32 %v5256, %v5450
      %v5453 = vadd.f32 %v5257, %v5451
      %v5454 = vld [vmem:[#allocation4 + $0x5] sm:$0xff]
      %v5455 = vld [vmem:[#allocation4 + $0xd] sm:$0xff]
      %v5456 = vpack.c.bf16 %v5455, %v5454
      %s5457 = scalar_lea.vmem %s7, 32
      %v5458 = vld [vmem:[%s5457] sm:$0xf]
      %v5459 = vld [vmem:[%s5457 + $0x4] sm:$0xf]
      %v5460 = vld [vmem:[%s5457 + $0x8] sm:$0xf]
      %v5461 = vld [vmem:[%s5457 + $0xc] sm:$0xf]
      %v5462 = vld [vmem:[#allocation4 + $0x9] sm:$0xff]
      %v5463 = vld [vmem:[#allocation4 + $0x11] sm:$0xff]
      %v5464 = vpack.c.bf16 %v5463, %v5462
      %s5465 = scalar_lea.vmem %s7, 80
      %v5466 = vld [vmem:[%s5465] sm:$0xf]
      %v5467 = vld [vmem:[%s5465 + $0x4] sm:$0xf]
      %v5468 = vld [vmem:[%s5465 + $0x8] sm:$0xf]
      %v5469 = vld [vmem:[%s5465 + $0xc] sm:$0xf]
      %v5474 = vunpack.c.l.b16 %v5466
      %v5475 = vunpack.c.l.b16 %v5467
      %v5476 = vunpack.c.l.b16 %v5468
      %v5477 = vunpack.c.l.b16 %v5469
      %v5478 = vpack.c.b16 %v5475, %v5474
      %v5479 = vpack.c.b16 %v5477, %v5476
      %v5483 = vsel %vm5043, %v5464, 0
      %5485 = vmatprep.subr.bf16.mxu0 0
      %5486 = vmatpush1.bf16.msra.mxu0 0
      %5487 = vmatprep.subr.bf16.mxu0 0
      %5488 = vmatpush1.bf16.msra.mxu0 0
      %5489 = vmatprep.subr.bf16.mxu0 0
      %5490 = vmatpush1.bf16.msra.mxu0 0
      %5491 = vmatprep.subr.bf16.mxu0 0
      %5492 = vmatpush1.bf16.msra.mxu0 0
      %5493 = vmatprep.subr.bf16.mxu0 0
      %5494 = vmatpush1.bf16.msra.mxu0 0
      %5495 = vmatprep.subr.bf16.mxu0 0
      %5496 = vmatpush1.bf16.msra.mxu0 0
      %5497 = vmatprep.subr.bf16.mxu0 0
      %5498 = vmatpush1.bf16.msra.mxu0 %v5479
      %5499 = vmatprep.subr.bf16.mxu0 0
      %5500 = vmatpush1.bf16.msra.mxu0 %v5478
      %5501 = vmatprep.subr.bf16.mxu0 0
      %5502 = vmatpush2.bf16.msra.mxu0 0
      %5503 = vmatprep.subr.bf16.mxu0 0
      %5504 = vmatpush2.bf16.msra.mxu0 0
      %5505 = vmatprep.subr.bf16.mxu0 0
      %5506 = vmatpush2.bf16.msra.mxu0 0
      %5507 = vmatprep.subr.bf16.mxu0 0
      %5508 = vmatpush2.bf16.msra.mxu0 0
      %5509 = vmatprep.subr.bf16.mxu0 0
      %5510 = vmatpush2.bf16.msra.mxu0 0
      %5511 = vmatprep.subr.bf16.mxu0 0
      %5512 = vmatpush2.bf16.msra.mxu0 0
      %5513 = vmatprep.subr.bf16.mxu0 0
      %5514 = vmatpush2.bf16.msra.mxu0 0
      %5515 = vmatprep.subr.bf16.mxu0 0
      %5516 = vmatpush2.bf16.msra.mxu0 0
      %5517 = vmatprep.mubr.bf16.mxu0 0
      %5518 = vmatmul.mubr.bf16.gmra.mxu0 %v5483
      %v5519 = vpop.f32.mrf.mxu0
      %v5520 = vadd.f32 0.0, %v5519
      %v5521 = vpop.f32.mrf.mxu0
      %v5522 = vpop.f32.mrf.mxu0
      %v5523 = vadd.f32 0.0, %v5522
      %v5524 = vpop.f32.mrf.mxu0
      %5525 = vdwg.mxu0
      %v5530 = vunpack.c.l.b16 %v5458
      %v5531 = vunpack.c.l.b16 %v5459
      %v5532 = vunpack.c.l.b16 %v5460
      %v5533 = vunpack.c.l.b16 %v5461
      %v5534 = vpack.c.b16 %v5531, %v5530
      %v5535 = vpack.c.b16 %v5533, %v5532
      %v5539 = vsel %vm5043, %v5456, 0
      %5541 = vmatprep.subr.bf16.mxu0 0
      %5542 = vmatpush1.bf16.msra.mxu0 0
      %5543 = vmatprep.subr.bf16.mxu0 0
      %5544 = vmatpush1.bf16.msra.mxu0 0
      %5545 = vmatprep.subr.bf16.mxu0 0
      %5546 = vmatpush1.bf16.msra.mxu0 0
      %5547 = vmatprep.subr.bf16.mxu0 0
      %5548 = vmatpush1.bf16.msra.mxu0 0
      %5549 = vmatprep.subr.bf16.mxu0 0
      %5550 = vmatpush1.bf16.msra.mxu0 0
      %5551 = vmatprep.subr.bf16.mxu0 0
      %5552 = vmatpush1.bf16.msra.mxu0 0
      %5553 = vmatprep.subr.bf16.mxu0 0
      %5554 = vmatpush1.bf16.msra.mxu0 %v5535
      %5555 = vmatprep.subr.bf16.mxu0 0
      %5556 = vmatpush1.bf16.msra.mxu0 %v5534
      %5557 = vmatprep.subr.bf16.mxu0 0
      %5558 = vmatpush2.bf16.msra.mxu0 0
      %5559 = vmatprep.subr.bf16.mxu0 0
      %5560 = vmatpush2.bf16.msra.mxu0 0
      %5561 = vmatprep.subr.bf16.mxu0 0
      %5562 = vmatpush2.bf16.msra.mxu0 0
      %5563 = vmatprep.subr.bf16.mxu0 0
      %5564 = vmatpush2.bf16.msra.mxu0 0
      %5565 = vmatprep.subr.bf16.mxu0 0
      %5566 = vmatpush2.bf16.msra.mxu0 0
      %5567 = vmatprep.subr.bf16.mxu0 0
      %5568 = vmatpush2.bf16.msra.mxu0 0
      %5569 = vmatprep.subr.bf16.mxu0 0
      %5570 = vmatpush2.bf16.msra.mxu0 0
      %5571 = vmatprep.subr.bf16.mxu0 0
      %5572 = vmatpush2.bf16.msra.mxu0 0
      %5573 = vmatprep.mubr.bf16.mxu0 0
      %5574 = vmatmul.mubr.bf16.gmra.mxu0 %v5539
      %v5575 = vpop.f32.mrf.mxu0
      %v5576 = vadd.f32 %v5520, %v5575
      %v5577 = vpop.f32.mrf.mxu0
      %v5578 = vpop.f32.mrf.mxu0
      %v5579 = vadd.f32 %v5523, %v5578
      %v5580 = vpop.f32.mrf.mxu0
      %5581 = vdwg.mxu0
      %v5582 = vld [vmem:[#allocation4 + $0xd] sm:$0xff]
      %v5583 = vld [vmem:[#allocation4 + $0x15] sm:$0xff]
      %v5584 = vpack.c.bf16 %v5583, %v5582
      %s5585 = scalar_lea.vmem %s7, 128
      %v5586 = vld [vmem:[%s5585] sm:$0xf]
      %v5587 = vld [vmem:[%s5585 + $0x4] sm:$0xf]
      %v5588 = vld [vmem:[%s5585 + $0x8] sm:$0xf]
      %v5589 = vld [vmem:[%s5585 + $0xc] sm:$0xf]
      %v5594 = vunpack.c.l.b16 %v5586
      %v5595 = vunpack.c.l.b16 %v5587
      %v5596 = vunpack.c.l.b16 %v5588
      %v5597 = vunpack.c.l.b16 %v5589
      %v5598 = vpack.c.b16 %v5595, %v5594
      %v5599 = vpack.c.b16 %v5597, %v5596
      %v5603 = vsel %vm5043, %v5584, 0
      %5605 = vmatprep.subr.bf16.mxu0 0
      %5606 = vmatpush1.bf16.msra.mxu0 0
      %5607 = vmatprep.subr.bf16.mxu0 0
      %5608 = vmatpush1.bf16.msra.mxu0 0
      %5609 = vmatprep.subr.bf16.mxu0 0
      %5610 = vmatpush1.bf16.msra.mxu0 0
      %5611 = vmatprep.subr.bf16.mxu0 0
      %5612 = vmatpush1.bf16.msra.mxu0 0
      %5613 = vmatprep.subr.bf16.mxu0 0
      %5614 = vmatpush1.bf16.msra.mxu0 0
      %5615 = vmatprep.subr.bf16.mxu0 0
      %5616 = vmatpush1.bf16.msra.mxu0 0
      %5617 = vmatprep.subr.bf16.mxu0 0
      %5618 = vmatpush1.bf16.msra.mxu0 %v5599
      %5619 = vmatprep.subr.bf16.mxu0 0
      %5620 = vmatpush1.bf16.msra.mxu0 %v5598
      %5621 = vmatprep.subr.bf16.mxu0 0
      %5622 = vmatpush2.bf16.msra.mxu0 0
      %5623 = vmatprep.subr.bf16.mxu0 0
      %5624 = vmatpush2.bf16.msra.mxu0 0
      %5625 = vmatprep.subr.bf16.mxu0 0
      %5626 = vmatpush2.bf16.msra.mxu0 0
      %5627 = vmatprep.subr.bf16.mxu0 0
      %5628 = vmatpush2.bf16.msra.mxu0 0
      %5629 = vmatprep.subr.bf16.mxu0 0
      %5630 = vmatpush2.bf16.msra.mxu0 0
      %5631 = vmatprep.subr.bf16.mxu0 0
      %5632 = vmatpush2.bf16.msra.mxu0 0
      %5633 = vmatprep.subr.bf16.mxu0 0
      %5634 = vmatpush2.bf16.msra.mxu0 0
      %5635 = vmatprep.subr.bf16.mxu0 0
      %5636 = vmatpush2.bf16.msra.mxu0 0
      %5637 = vmatprep.mubr.bf16.mxu0 0
      %5638 = vmatmul.mubr.bf16.gmra.mxu0 %v5603
      %v5639 = vpop.f32.mrf.mxu0
      %v5640 = vadd.f32 0.0, %v5639
      %v5641 = vpop.f32.mrf.mxu0
      %v5642 = vpop.f32.mrf.mxu0
      %v5643 = vadd.f32 0.0, %v5642
      %v5644 = vpop.f32.mrf.mxu0
      %5645 = vdwg.mxu0
      %v5646 = vadd.f32 %v5576, %v5640
      %v5647 = vadd.f32 %v5579, %v5643
      %v5648 = vmul.f32 %v5646, %v5061
      %v5649 = vmul.f32 %v5647, %v5062
      %v5650 = vadd.f32 %v5452, %v5648
      %v5651 = vadd.f32 %v5453, %v5649
      %v5652 = vld [vmem:[%s8] sm:$0x1]
      %v5654 = vlaneseq
      %v5655 = vshrl.u32 %v5654, 7
      %v5656 = vsub.s32 0, %v5655
      %v5657 = vrot.slane %v5652, %v5656
      %v5659 = vadd.f32 %v5650, %v5657
      %v5660 = vadd.f32 %v5651, %v5657
      %v5661 = vmax.f32 %v5659, 0.0
      %v5662 = vmax.f32 %v5660, 0.0
      %v5663 = vpack.c.bf16 %v5662, %v5661
      %v5664 = vld [vmem:[%s9] sm:$0x3]
      %v5666 = vsel %vm3815, %v5664, 0
      %5668 = vmatprep.subr.bf16.mxu0 0
      %5669 = vmatpush1.bf16.msra.mxu0 0
      %5670 = vmatprep.subr.bf16.mxu0 0
      %5671 = vmatpush1.bf16.msra.mxu0 0
      %5672 = vmatprep.subr.bf16.mxu0 0
      %5673 = vmatpush1.bf16.msra.mxu0 0
      %5674 = vmatprep.subr.bf16.mxu0 0
      %5675 = vmatpush1.bf16.msra.mxu0 0
      %5676 = vmatprep.subr.bf16.mxu0 0
      %5677 = vmatpush1.bf16.msra.mxu0 0
      %5678 = vmatprep.subr.bf16.mxu0 0
      %5679 = vmatpush1.bf16.msra.mxu0 0
      %5680 = vmatprep.subr.bf16.mxu0 0
      %5681 = vmatpush1.bf16.msra.mxu0 0
      %5682 = vmatprep.subr.bf16.mxu0 0
      %5683 = vmatpush1.bf16.msra.mxu0 %v5663
      %5684 = vmatprep.subr.bf16.mxu0 0
      %5685 = vmatpush2.bf16.msra.mxu0 0
      %5686 = vmatprep.subr.bf16.mxu0 0
      %5687 = vmatpush2.bf16.msra.mxu0 0
      %5688 = vmatprep.subr.bf16.mxu0 0
      %5689 = vmatpush2.bf16.msra.mxu0 0
      %5690 = vmatprep.subr.bf16.mxu0 0
      %5691 = vmatpush2.bf16.msra.mxu0 0
      %5692 = vmatprep.subr.bf16.mxu0 0
      %5693 = vmatpush2.bf16.msra.mxu0 0
      %5694 = vmatprep.subr.bf16.mxu0 0
      %5695 = vmatpush2.bf16.msra.mxu0 0
      %5696 = vmatprep.subr.bf16.mxu0 0
      %5697 = vmatpush2.bf16.msra.mxu0 0
      %5698 = vmatprep.subr.bf16.mxu0 0
      %5699 = vmatpush2.bf16.msra.mxu0 0
      %5700 = vmatprep.mubr.bf16.mxu0 0
      %5701 = vmatmul.mubr.bf16.gmra.mxu0 %v5666
      %v5702 = vpop.f32.mrf.mxu0
      %v5703 = vadd.f32 0.0, %v5702
      %v5704 = vpop.f32.mrf.mxu0
      %v5705 = vpop.f32.mrf.mxu0
      %v5706 = vpop.f32.mrf.mxu0
      %5707 = vdwg.mxu0
      %s5708 = scalar_lea.vmem %s9, 2
      %v5709 = vld [vmem:[%s5708] sm:$0x3]
      %v5711 = vsel %vm3815, %v5709, 0
      %5713 = vmatprep.subr.bf16.mxu0 0
      %5714 = vmatpush1.bf16.msra.mxu0 0
      %5715 = vmatprep.subr.bf16.mxu0 0
      %5716 = vmatpush1.bf16.msra.mxu0 0
      %5717 = vmatprep.subr.bf16.mxu0 0
      %5718 = vmatpush1.bf16.msra.mxu0 0
      %5719 = vmatprep.subr.bf16.mxu0 0
      %5720 = vmatpush1.bf16.msra.mxu0 0
      %5721 = vmatprep.subr.bf16.mxu0 0
      %5722 = vmatpush1.bf16.msra.mxu0 0
      %5723 = vmatprep.subr.bf16.mxu0 0
      %5724 = vmatpush1.bf16.msra.mxu0 0
      %5725 = vmatprep.subr.bf16.mxu0 0
      %5726 = vmatpush1.bf16.msra.mxu0 0
      %5727 = vmatprep.subr.bf16.mxu0 0
      %5728 = vmatpush1.bf16.msra.mxu0 %v5663
      %5729 = vmatprep.subr.bf16.mxu0 0
      %5730 = vmatpush2.bf16.msra.mxu0 0
      %5731 = vmatprep.subr.bf16.mxu0 0
      %5732 = vmatpush2.bf16.msra.mxu0 0
      %5733 = vmatprep.subr.bf16.mxu0 0
      %5734 = vmatpush2.bf16.msra.mxu0 0
      %5735 = vmatprep.subr.bf16.mxu0 0
      %5736 = vmatpush2.bf16.msra.mxu0 0
      %5737 = vmatprep.subr.bf16.mxu0 0
      %5738 = vmatpush2.bf16.msra.mxu0 0
      %5739 = vmatprep.subr.bf16.mxu0 0
      %5740 = vmatpush2.bf16.msra.mxu0 0
      %5741 = vmatprep.subr.bf16.mxu0 0
      %5742 = vmatpush2.bf16.msra.mxu0 0
      %5743 = vmatprep.subr.bf16.mxu0 0
      %5744 = vmatpush2.bf16.msra.mxu0 0
      %5745 = vmatprep.mubr.bf16.mxu0 0
      %5746 = vmatmul.mubr.bf16.gmra.mxu0 %v5711
      %v5747 = vpop.f32.mrf.mxu0
      %v5748 = vadd.f32 0.0, %v5747
      %v5749 = vpop.f32.mrf.mxu0
      %v5750 = vpop.f32.mrf.mxu0
      %v5751 = vpop.f32.mrf.mxu0
      %5752 = vdwg.mxu0
      %v5753 = vmax.f32 %v5703, %v5748
      %s5754 = scalar_lea.vmem %s9, 4
      %v5755 = vld [vmem:[%s5754] sm:$0x3]
      %v5757 = vsel %vm3815, %v5755, 0
      %5759 = vmatprep.subr.bf16.mxu0 0
      %5760 = vmatpush1.bf16.msra.mxu0 0
      %5761 = vmatprep.subr.bf16.mxu0 0
      %5762 = vmatpush1.bf16.msra.mxu0 0
      %5763 = vmatprep.subr.bf16.mxu0 0
      %5764 = vmatpush1.bf16.msra.mxu0 0
      %5765 = vmatprep.subr.bf16.mxu0 0
      %5766 = vmatpush1.bf16.msra.mxu0 0
      %5767 = vmatprep.subr.bf16.mxu0 0
      %5768 = vmatpush1.bf16.msra.mxu0 0
      %5769 = vmatprep.subr.bf16.mxu0 0
      %5770 = vmatpush1.bf16.msra.mxu0 0
      %5771 = vmatprep.subr.bf16.mxu0 0
      %5772 = vmatpush1.bf16.msra.mxu0 0
      %5773 = vmatprep.subr.bf16.mxu0 0
      %5774 = vmatpush1.bf16.msra.mxu0 %v5663
      %5775 = vmatprep.subr.bf16.mxu0 0
      %5776 = vmatpush2.bf16.msra.mxu0 0
      %5777 = vmatprep.subr.bf16.mxu0 0
      %5778 = vmatpush2.bf16.msra.mxu0 0
      %5779 = vmatprep.subr.bf16.mxu0 0
      %5780 = vmatpush2.bf16.msra.mxu0 0
      %5781 = vmatprep.subr.bf16.mxu0 0
      %5782 = vmatpush2.bf16.msra.mxu0 0
      %5783 = vmatprep.subr.bf16.mxu0 0
      %5784 = vmatpush2.bf16.msra.mxu0 0
      %5785 = vmatprep.subr.bf16.mxu0 0
      %5786 = vmatpush2.bf16.msra.mxu0 0
      %5787 = vmatprep.subr.bf16.mxu0 0
      %5788 = vmatpush2.bf16.msra.mxu0 0
      %5789 = vmatprep.subr.bf16.mxu0 0
      %5790 = vmatpush2.bf16.msra.mxu0 0
      %5791 = vmatprep.mubr.bf16.mxu0 0
      %5792 = vmatmul.mubr.bf16.gmra.mxu0 %v5757
      %v5793 = vpop.f32.mrf.mxu0
      %v5794 = vadd.f32 0.0, %v5793
      %v5795 = vpop.f32.mrf.mxu0
      %v5796 = vpop.f32.mrf.mxu0
      %v5797 = vpop.f32.mrf.mxu0
      %5798 = vdwg.mxu0
      %v5799 = vmax.f32 %v5753, %v5794
      %s5800 = scalar_lea.vmem %s9, 6
      %v5801 = vld [vmem:[%s5800] sm:$0x3]
      %v5803 = vsel %vm3815, %v5801, 0
      %5805 = vmatprep.subr.bf16.mxu0 0
      %5806 = vmatpush1.bf16.msra.mxu0 0
      %5807 = vmatprep.subr.bf16.mxu0 0
      %5808 = vmatpush1.bf16.msra.mxu0 0
      %5809 = vmatprep.subr.bf16.mxu0 0
      %5810 = vmatpush1.bf16.msra.mxu0 0
      %5811 = vmatprep.subr.bf16.mxu0 0
      %5812 = vmatpush1.bf16.msra.mxu0 0
      %5813 = vmatprep.subr.bf16.mxu0 0
      %5814 = vmatpush1.bf16.msra.mxu0 0
      %5815 = vmatprep.subr.bf16.mxu0 0
      %5816 = vmatpush1.bf16.msra.mxu0 0
      %5817 = vmatprep.subr.bf16.mxu0 0
      %5818 = vmatpush1.bf16.msra.mxu0 0
      %5819 = vmatprep.subr.bf16.mxu0 0
      %5820 = vmatpush1.bf16.msra.mxu0 %v5663
      %5821 = vmatprep.subr.bf16.mxu0 0
      %5822 = vmatpush2.bf16.msra.mxu0 0
      %5823 = vmatprep.subr.bf16.mxu0 0
      %5824 = vmatpush2.bf16.msra.mxu0 0
      %5825 = vmatprep.subr.bf16.mxu0 0
      %5826 = vmatpush2.bf16.msra.mxu0 0
      %5827 = vmatprep.subr.bf16.mxu0 0
      %5828 = vmatpush2.bf16.msra.mxu0 0
      %5829 = vmatprep.subr.bf16.mxu0 0
      %5830 = vmatpush2.bf16.msra.mxu0 0
      %5831 = vmatprep.subr.bf16.mxu0 0
      %5832 = vmatpush2.bf16.msra.mxu0 0
      %5833 = vmatprep.subr.bf16.mxu0 0
      %5834 = vmatpush2.bf16.msra.mxu0 0
      %5835 = vmatprep.subr.bf16.mxu0 0
      %5836 = vmatpush2.bf16.msra.mxu0 0
      %5837 = vmatprep.mubr.bf16.mxu0 0
      %5838 = vmatmul.mubr.bf16.gmra.mxu0 %v5803
      %v5839 = vpop.f32.mrf.mxu0
      %v5840 = vadd.f32 0.0, %v5839
      %v5841 = vpop.f32.mrf.mxu0
      %v5842 = vpop.f32.mrf.mxu0
      %v5843 = vpop.f32.mrf.mxu0
      %5844 = vdwg.mxu0
      %v5845 = vmax.f32 %v5799, %v5840
      %v5846 = vpack.c.bf16 %v5845, %v5845
      %vm5847 = vcmask 522240
      %5848 = vst.msk [vmem:[#allocation5] sm:$0x7f] %vm5847, 0.0
      %v5849 = vunpack.c.l.bf16 %v5846
      %vm5850 = vcmask 519168
      %5851 = vst.msk [vmem:[#allocation5] sm:$0xf] %vm5850, %v5849
      %v5852 = vand.u32 %v741, 1
      %vm5853 = vcmp.ne.s32.totalorder %v5852, 1
      %v5854 = vsel %vm5853, 1.0, 0.0
      %v5855 = vpack.c.bf16 %v5854, %v5854
      %v5856 = vld [vmem:[#allocation5 + $0x1] sm:$0xf]
      %v5857 = vpack.c.bf16 %v5856, %v5856
      %v5858 = vmul.bf16 %v5857, %v5855
      %v5859 = vld [vmem:[#allocation5 + $0x2] sm:$0xf]
      %v5860 = vpack.c.bf16 %v5859, %v5859
      %v5861 = vld [vmem:[#allocation5 + $0x3] sm:$0xf]
      %v5862 = vpack.c.bf16 %v5861, %v5861
      %v5863 = vmul.bf16 %v5862, %v5855
      %v5864 = vld [vmem:[%s11] sm:$0x1]
      %s5865 = scalar_lea.vmem %s10, 128
      %v5866 = vld [vmem:[%s5865] sm:$0xf]
      %v5867 = vld [vmem:[%s5865 + $0x4] sm:$0xf]
      %v5868 = vld [vmem:[%s5865 + $0x8] sm:$0xf]
      %v5869 = vld [vmem:[%s5865 + $0xc] sm:$0xf]
      %v5870 = vld [vmem:[%s5865 + $0x10] sm:$0xf]
      %v5871 = vld [vmem:[%s5865 + $0x14] sm:$0xf]
      %v5872 = vld [vmem:[%s5865 + $0x18] sm:$0xf]
      %v5873 = vld [vmem:[%s5865 + $0x1c] sm:$0xf]
      %v5882 = vunpack.c.l.b16 %v5866
      %v5883 = vunpack.c.l.b16 %v5867
      %v5884 = vunpack.c.l.b16 %v5868
      %v5885 = vunpack.c.l.b16 %v5869
      %v5886 = vunpack.c.l.b16 %v5870
      %v5887 = vunpack.c.l.b16 %v5871
      %v5888 = vunpack.c.l.b16 %v5872
      %v5889 = vunpack.c.l.b16 %v5873
      %v5890 = vpack.c.b16 %v5883, %v5882
      %v5891 = vpack.c.b16 %v5885, %v5884
      %v5892 = vpack.c.b16 %v5887, %v5886
      %v5893 = vpack.c.b16 %v5889, %v5888
      %v5899 = vsel %vm4835, %v5846, 0
      %5901 = vmatprep.subr.bf16.mxu0 0
      %5902 = vmatpush1.bf16.msra.mxu0 0
      %5903 = vmatprep.subr.bf16.mxu0 0
      %5904 = vmatpush1.bf16.msra.mxu0 0
      %5905 = vmatprep.subr.bf16.mxu0 0
      %5906 = vmatpush1.bf16.msra.mxu0 0
      %5907 = vmatprep.subr.bf16.mxu0 0
      %5908 = vmatpush1.bf16.msra.mxu0 0
      %5909 = vmatprep.subr.bf16.mxu0 0
      %5910 = vmatpush1.bf16.msra.mxu0 %v5893
      %5911 = vmatprep.subr.bf16.mxu0 0
      %5912 = vmatpush1.bf16.msra.mxu0 %v5892
      %5913 = vmatprep.subr.bf16.mxu0 0
      %5914 = vmatpush1.bf16.msra.mxu0 %v5891
      %5915 = vmatprep.subr.bf16.mxu0 0
      %5916 = vmatpush1.bf16.msra.mxu0 %v5890
      %5917 = vmatprep.subr.bf16.mxu0 0
      %5918 = vmatpush2.bf16.msra.mxu0 0
      %5919 = vmatprep.subr.bf16.mxu0 0
      %5920 = vmatpush2.bf16.msra.mxu0 0
      %5921 = vmatprep.subr.bf16.mxu0 0
      %5922 = vmatpush2.bf16.msra.mxu0 0
      %5923 = vmatprep.subr.bf16.mxu0 0
      %5924 = vmatpush2.bf16.msra.mxu0 0
      %5925 = vmatprep.subr.bf16.mxu0 0
      %5926 = vmatpush2.bf16.msra.mxu0 0
      %5927 = vmatprep.subr.bf16.mxu0 0
      %5928 = vmatpush2.bf16.msra.mxu0 0
      %5929 = vmatprep.subr.bf16.mxu0 0
      %5930 = vmatpush2.bf16.msra.mxu0 0
      %5931 = vmatprep.subr.bf16.mxu0 0
      %5932 = vmatpush2.bf16.msra.mxu0 0
      %5933 = vmatprep.mubr.bf16.mxu0 0
      %5934 = vmatmul.mubr.bf16.gmra.mxu0 %v5899
      %v5935 = vpop.f32.mrf.mxu0
      %v5936 = vadd.f32 0.0, %v5935
      %v5937 = vpop.f32.mrf.mxu0
      %v5938 = vpop.f32.mrf.mxu0
      %v5939 = vpop.f32.mrf.mxu0
      %5940 = vdwg.mxu0
      %v5942 = vlaneseq
      %v5943 = vshrl.u32 %v5942, 7
      %v5944 = vsub.s32 0, %v5943
      %v5945 = vrot.slane %v5864, %v5944
      %v5947 = vadd.f32 %v5945, %v5936
      %s5948 = scalar_lea.vmem %s10, 160
      %v5949 = vld [vmem:[%s5948] sm:$0xf]
      %v5950 = vld [vmem:[%s5948 + $0x4] sm:$0xf]
      %v5951 = vld [vmem:[%s5948 + $0x8] sm:$0xf]
      %v5952 = vld [vmem:[%s5948 + $0xc] sm:$0xf]
      %v5953 = vld [vmem:[%s5948 + $0x10] sm:$0xf]
      %v5954 = vld [vmem:[%s5948 + $0x14] sm:$0xf]
      %v5955 = vld [vmem:[%s5948 + $0x18] sm:$0xf]
      %v5956 = vld [vmem:[%s5948 + $0x1c] sm:$0xf]
      %v5965 = vunpack.c.l.b16 %v5949
      %v5966 = vunpack.c.l.b16 %v5950
      %v5967 = vunpack.c.l.b16 %v5951
      %v5968 = vunpack.c.l.b16 %v5952
      %v5969 = vunpack.c.l.b16 %v5953
      %v5970 = vunpack.c.l.b16 %v5954
      %v5971 = vunpack.c.l.b16 %v5955
      %v5972 = vunpack.c.l.b16 %v5956
      %v5973 = vpack.c.b16 %v5966, %v5965
      %v5974 = vpack.c.b16 %v5968, %v5967
      %v5975 = vpack.c.b16 %v5970, %v5969
      %v5976 = vpack.c.b16 %v5972, %v5971
      %5981 = vmatprep.subr.bf16.mxu0 0
      %5982 = vmatpush1.bf16.msra.mxu0 0
      %5983 = vmatprep.subr.bf16.mxu0 0
      %5984 = vmatpush1.bf16.msra.mxu0 0
      %5985 = vmatprep.subr.bf16.mxu0 0
      %5986 = vmatpush1.bf16.msra.mxu0 0
      %5987 = vmatprep.subr.bf16.mxu0 0
      %5988 = vmatpush1.bf16.msra.mxu0 0
      %5989 = vmatprep.subr.bf16.mxu0 0
      %5990 = vmatpush1.bf16.msra.mxu0 %v5976
      %5991 = vmatprep.subr.bf16.mxu0 0
      %5992 = vmatpush1.bf16.msra.mxu0 %v5975
      %5993 = vmatprep.subr.bf16.mxu0 0
      %5994 = vmatpush1.bf16.msra.mxu0 %v5974
      %5995 = vmatprep.subr.bf16.mxu0 0
      %5996 = vmatpush1.bf16.msra.mxu0 %v5973
      %5997 = vmatprep.subr.bf16.mxu0 0
      %5998 = vmatpush2.bf16.msra.mxu0 0
      %5999 = vmatprep.subr.bf16.mxu0 0
      %6000 = vmatpush2.bf16.msra.mxu0 0
      %6001 = vmatprep.subr.bf16.mxu0 0
      %6002 = vmatpush2.bf16.msra.mxu0 0
      %6003 = vmatprep.subr.bf16.mxu0 0
      %6004 = vmatpush2.bf16.msra.mxu0 0
      %6005 = vmatprep.subr.bf16.mxu0 0
      %6006 = vmatpush2.bf16.msra.mxu0 0
      %6007 = vmatprep.subr.bf16.mxu0 0
      %6008 = vmatpush2.bf16.msra.mxu0 0
      %6009 = vmatprep.subr.bf16.mxu0 0
      %6010 = vmatpush2.bf16.msra.mxu0 0
      %6011 = vmatprep.subr.bf16.mxu0 0
      %6012 = vmatpush2.bf16.msra.mxu0 0
      %6013 = vmatprep.mubr.bf16.mxu0 0
      %6014 = vmatmul.mubr.bf16.gmra.mxu0 %v5899
      %v6015 = vpop.f32.mrf.mxu0
      %v6016 = vadd.f32 0.0, %v6015
      %v6017 = vpop.f32.mrf.mxu0
      %v6018 = vpop.f32.mrf.mxu0
      %v6019 = vpop.f32.mrf.mxu0
      %6020 = vdwg.mxu0
      %v6021 = vadd.f32 %v5945, %v6016
      %s6022 = scalar_lea.vmem %s10, 96
      %v6023 = vld [vmem:[%s6022] sm:$0xf]
      %v6024 = vld [vmem:[%s6022 + $0x4] sm:$0xf]
      %v6025 = vld [vmem:[%s6022 + $0x8] sm:$0xf]
      %v6026 = vld [vmem:[%s6022 + $0xc] sm:$0xf]
      %v6027 = vld [vmem:[%s6022 + $0x10] sm:$0xf]
      %v6028 = vld [vmem:[%s6022 + $0x14] sm:$0xf]
      %v6029 = vld [vmem:[%s6022 + $0x18] sm:$0xf]
      %v6030 = vld [vmem:[%s6022 + $0x1c] sm:$0xf]
      %v6039 = vunpack.c.l.b16 %v6023
      %v6040 = vunpack.c.l.b16 %v6024
      %v6041 = vunpack.c.l.b16 %v6025
      %v6042 = vunpack.c.l.b16 %v6026
      %v6043 = vunpack.c.l.b16 %v6027
      %v6044 = vunpack.c.l.b16 %v6028
      %v6045 = vunpack.c.l.b16 %v6029
      %v6046 = vunpack.c.l.b16 %v6030
      %v6047 = vpack.c.b16 %v6040, %v6039
      %v6048 = vpack.c.b16 %v6042, %v6041
      %v6049 = vpack.c.b16 %v6044, %v6043
      %v6050 = vpack.c.b16 %v6046, %v6045
      %v6056 = vsel %vm4835, %v5858, 0
      %6058 = vmatprep.subr.bf16.mxu0 0
      %6059 = vmatpush1.bf16.msra.mxu0 0
      %6060 = vmatprep.subr.bf16.mxu0 0
      %6061 = vmatpush1.bf16.msra.mxu0 0
      %6062 = vmatprep.subr.bf16.mxu0 0
      %6063 = vmatpush1.bf16.msra.mxu0 0
      %6064 = vmatprep.subr.bf16.mxu0 0
      %6065 = vmatpush1.bf16.msra.mxu0 0
      %6066 = vmatprep.subr.bf16.mxu0 0
      %6067 = vmatpush1.bf16.msra.mxu0 %v6050
      %6068 = vmatprep.subr.bf16.mxu0 0
      %6069 = vmatpush1.bf16.msra.mxu0 %v6049
      %6070 = vmatprep.subr.bf16.mxu0 0
      %6071 = vmatpush1.bf16.msra.mxu0 %v6048
      %6072 = vmatprep.subr.bf16.mxu0 0
      %6073 = vmatpush1.bf16.msra.mxu0 %v6047
      %6074 = vmatprep.subr.bf16.mxu0 0
      %6075 = vmatpush2.bf16.msra.mxu0 0
      %6076 = vmatprep.subr.bf16.mxu0 0
      %6077 = vmatpush2.bf16.msra.mxu0 0
      %6078 = vmatprep.subr.bf16.mxu0 0
      %6079 = vmatpush2.bf16.msra.mxu0 0
      %6080 = vmatprep.subr.bf16.mxu0 0
      %6081 = vmatpush2.bf16.msra.mxu0 0
      %6082 = vmatprep.subr.bf16.mxu0 0
      %6083 = vmatpush2.bf16.msra.mxu0 0
      %6084 = vmatprep.subr.bf16.mxu0 0
      %6085 = vmatpush2.bf16.msra.mxu0 0
      %6086 = vmatprep.subr.bf16.mxu0 0
      %6087 = vmatpush2.bf16.msra.mxu0 0
      %6088 = vmatprep.subr.bf16.mxu0 0
      %6089 = vmatpush2.bf16.msra.mxu0 0
      %6090 = vmatprep.mubr.bf16.mxu0 0
      %6091 = vmatmul.mubr.bf16.gmra.mxu0 %v6056
      %v6092 = vpop.f32.mrf.mxu0
      %v6093 = vadd.f32 0.0, %v6092
      %v6094 = vpop.f32.mrf.mxu0
      %v6095 = vpop.f32.mrf.mxu0
      %v6096 = vpop.f32.mrf.mxu0
      %6097 = vdwg.mxu0
      %v6098 = vadd.f32 %v6021, %v6093
      %s6099 = scalar_lea.vmem %s10, 224
      %v6100 = vld [vmem:[%s6099] sm:$0xf]
      %v6101 = vld [vmem:[%s6099 + $0x4] sm:$0xf]
      %v6102 = vld [vmem:[%s6099 + $0x8] sm:$0xf]
      %v6103 = vld [vmem:[%s6099 + $0xc] sm:$0xf]
      %v6104 = vld [vmem:[%s6099 + $0x10] sm:$0xf]
      %v6105 = vld [vmem:[%s6099 + $0x14] sm:$0xf]
      %v6106 = vld [vmem:[%s6099 + $0x18] sm:$0xf]
      %v6107 = vld [vmem:[%s6099 + $0x1c] sm:$0xf]
      %v6116 = vunpack.c.l.b16 %v6100
      %v6117 = vunpack.c.l.b16 %v6101
      %v6118 = vunpack.c.l.b16 %v6102
      %v6119 = vunpack.c.l.b16 %v6103
      %v6120 = vunpack.c.l.b16 %v6104
      %v6121 = vunpack.c.l.b16 %v6105
      %v6122 = vunpack.c.l.b16 %v6106
      %v6123 = vunpack.c.l.b16 %v6107
      %v6124 = vpack.c.b16 %v6117, %v6116
      %v6125 = vpack.c.b16 %v6119, %v6118
      %v6126 = vpack.c.b16 %v6121, %v6120
      %v6127 = vpack.c.b16 %v6123, %v6122
      %6132 = vmatprep.subr.bf16.mxu0 0
      %6133 = vmatpush1.bf16.msra.mxu0 0
      %6134 = vmatprep.subr.bf16.mxu0 0
      %6135 = vmatpush1.bf16.msra.mxu0 0
      %6136 = vmatprep.subr.bf16.mxu0 0
      %6137 = vmatpush1.bf16.msra.mxu0 0
      %6138 = vmatprep.subr.bf16.mxu0 0
      %6139 = vmatpush1.bf16.msra.mxu0 0
      %6140 = vmatprep.subr.bf16.mxu0 0
      %6141 = vmatpush1.bf16.msra.mxu0 %v6127
      %6142 = vmatprep.subr.bf16.mxu0 0
      %6143 = vmatpush1.bf16.msra.mxu0 %v6126
      %6144 = vmatprep.subr.bf16.mxu0 0
      %6145 = vmatpush1.bf16.msra.mxu0 %v6125
      %6146 = vmatprep.subr.bf16.mxu0 0
      %6147 = vmatpush1.bf16.msra.mxu0 %v6124
      %6148 = vmatprep.subr.bf16.mxu0 0
      %6149 = vmatpush2.bf16.msra.mxu0 0
      %6150 = vmatprep.subr.bf16.mxu0 0
      %6151 = vmatpush2.bf16.msra.mxu0 0
      %6152 = vmatprep.subr.bf16.mxu0 0
      %6153 = vmatpush2.bf16.msra.mxu0 0
      %6154 = vmatprep.subr.bf16.mxu0 0
      %6155 = vmatpush2.bf16.msra.mxu0 0
      %6156 = vmatprep.subr.bf16.mxu0 0
      %6157 = vmatpush2.bf16.msra.mxu0 0
      %6158 = vmatprep.subr.bf16.mxu0 0
      %6159 = vmatpush2.bf16.msra.mxu0 0
      %6160 = vmatprep.subr.bf16.mxu0 0
      %6161 = vmatpush2.bf16.msra.mxu0 0
      %6162 = vmatprep.subr.bf16.mxu0 0
      %6163 = vmatpush2.bf16.msra.mxu0 0
      %6164 = vmatprep.mubr.bf16.mxu0 0
      %6165 = vmatmul.mubr.bf16.gmra.mxu0 %v5899
      %v6166 = vpop.f32.mrf.mxu0
      %v6167 = vadd.f32 0.0, %v6166
      %v6168 = vpop.f32.mrf.mxu0
      %v6169 = vpop.f32.mrf.mxu0
      %v6170 = vpop.f32.mrf.mxu0
      %6171 = vdwg.mxu0
      %v6172 = vadd.f32 %v5945, %v6167
      %s6173 = scalar_lea.vmem %s10, 32
      %v6174 = vld [vmem:[%s6173] sm:$0xf]
      %v6175 = vld [vmem:[%s6173 + $0x4] sm:$0xf]
      %v6176 = vld [vmem:[%s6173 + $0x8] sm:$0xf]
      %v6177 = vld [vmem:[%s6173 + $0xc] sm:$0xf]
      %v6178 = vld [vmem:[%s6173 + $0x10] sm:$0xf]
      %v6179 = vld [vmem:[%s6173 + $0x14] sm:$0xf]
      %v6180 = vld [vmem:[%s6173 + $0x18] sm:$0xf]
      %v6181 = vld [vmem:[%s6173 + $0x1c] sm:$0xf]
      %v6190 = vunpack.c.l.b16 %v6174
      %v6191 = vunpack.c.l.b16 %v6175
      %v6192 = vunpack.c.l.b16 %v6176
      %v6193 = vunpack.c.l.b16 %v6177
      %v6194 = vunpack.c.l.b16 %v6178
      %v6195 = vunpack.c.l.b16 %v6179
      %v6196 = vunpack.c.l.b16 %v6180
      %v6197 = vunpack.c.l.b16 %v6181
      %v6198 = vpack.c.b16 %v6191, %v6190
      %v6199 = vpack.c.b16 %v6193, %v6192
      %v6200 = vpack.c.b16 %v6195, %v6194
      %v6201 = vpack.c.b16 %v6197, %v6196
      %v6207 = vsel %vm4835, %v5860, 0
      %6209 = vmatprep.subr.bf16.mxu0 0
      %6210 = vmatpush1.bf16.msra.mxu0 0
      %6211 = vmatprep.subr.bf16.mxu0 0
      %6212 = vmatpush1.bf16.msra.mxu0 0
      %6213 = vmatprep.subr.bf16.mxu0 0
      %6214 = vmatpush1.bf16.msra.mxu0 0
      %6215 = vmatprep.subr.bf16.mxu0 0
      %6216 = vmatpush1.bf16.msra.mxu0 0
      %6217 = vmatprep.subr.bf16.mxu0 0
      %6218 = vmatpush1.bf16.msra.mxu0 %v6201
      %6219 = vmatprep.subr.bf16.mxu0 0
      %6220 = vmatpush1.bf16.msra.mxu0 %v6200
      %6221 = vmatprep.subr.bf16.mxu0 0
      %6222 = vmatpush1.bf16.msra.mxu0 %v6199
      %6223 = vmatprep.subr.bf16.mxu0 0
      %6224 = vmatpush1.bf16.msra.mxu0 %v6198
      %6225 = vmatprep.subr.bf16.mxu0 0
      %6226 = vmatpush2.bf16.msra.mxu0 0
      %6227 = vmatprep.subr.bf16.mxu0 0
      %6228 = vmatpush2.bf16.msra.mxu0 0
      %6229 = vmatprep.subr.bf16.mxu0 0
      %6230 = vmatpush2.bf16.msra.mxu0 0
      %6231 = vmatprep.subr.bf16.mxu0 0
      %6232 = vmatpush2.bf16.msra.mxu0 0
      %6233 = vmatprep.subr.bf16.mxu0 0
      %6234 = vmatpush2.bf16.msra.mxu0 0
      %6235 = vmatprep.subr.bf16.mxu0 0
      %6236 = vmatpush2.bf16.msra.mxu0 0
      %6237 = vmatprep.subr.bf16.mxu0 0
      %6238 = vmatpush2.bf16.msra.mxu0 0
      %6239 = vmatprep.subr.bf16.mxu0 0
      %6240 = vmatpush2.bf16.msra.mxu0 0
      %6241 = vmatprep.mubr.bf16.mxu0 0
      %6242 = vmatmul.mubr.bf16.gmra.mxu0 %v6207
      %v6243 = vpop.f32.mrf.mxu0
      %v6244 = vadd.f32 0.0, %v6243
      %v6245 = vpop.f32.mrf.mxu0
      %v6246 = vpop.f32.mrf.mxu0
      %v6247 = vpop.f32.mrf.mxu0
      %6248 = vdwg.mxu0
      %v6249 = vadd.f32 %v6172, %v6244
      %s6250 = scalar_lea.vmem %s10, 256
      %v6251 = vld [vmem:[%s6250] sm:$0xf]
      %v6252 = vld [vmem:[%s6250 + $0x4] sm:$0xf]
      %v6253 = vld [vmem:[%s6250 + $0x8] sm:$0xf]
      %v6254 = vld [vmem:[%s6250 + $0xc] sm:$0xf]
      %v6255 = vld [vmem:[%s6250 + $0x10] sm:$0xf]
      %v6256 = vld [vmem:[%s6250 + $0x14] sm:$0xf]
      %v6257 = vld [vmem:[%s6250 + $0x18] sm:$0xf]
      %v6258 = vld [vmem:[%s6250 + $0x1c] sm:$0xf]
      %v6267 = vunpack.c.l.b16 %v6251
      %v6268 = vunpack.c.l.b16 %v6252
      %v6269 = vunpack.c.l.b16 %v6253
      %v6270 = vunpack.c.l.b16 %v6254
      %v6271 = vunpack.c.l.b16 %v6255
      %v6272 = vunpack.c.l.b16 %v6256
      %v6273 = vunpack.c.l.b16 %v6257
      %v6274 = vunpack.c.l.b16 %v6258
      %v6275 = vpack.c.b16 %v6268, %v6267
      %v6276 = vpack.c.b16 %v6270, %v6269
      %v6277 = vpack.c.b16 %v6272, %v6271
      %v6278 = vpack.c.b16 %v6274, %v6273
      %6283 = vmatprep.subr.bf16.mxu0 0
      %6284 = vmatpush1.bf16.msra.mxu0 0
      %6285 = vmatprep.subr.bf16.mxu0 0
      %6286 = vmatpush1.bf16.msra.mxu0 0
      %6287 = vmatprep.subr.bf16.mxu0 0
      %6288 = vmatpush1.bf16.msra.mxu0 0
      %6289 = vmatprep.subr.bf16.mxu0 0
      %6290 = vmatpush1.bf16.msra.mxu0 0
      %6291 = vmatprep.subr.bf16.mxu0 0
      %6292 = vmatpush1.bf16.msra.mxu0 %v6278
      %6293 = vmatprep.subr.bf16.mxu0 0
      %6294 = vmatpush1.bf16.msra.mxu0 %v6277
      %6295 = vmatprep.subr.bf16.mxu0 0
      %6296 = vmatpush1.bf16.msra.mxu0 %v6276
      %6297 = vmatprep.subr.bf16.mxu0 0
      %6298 = vmatpush1.bf16.msra.mxu0 %v6275
      %6299 = vmatprep.subr.bf16.mxu0 0
      %6300 = vmatpush2.bf16.msra.mxu0 0
      %6301 = vmatprep.subr.bf16.mxu0 0
      %6302 = vmatpush2.bf16.msra.mxu0 0
      %6303 = vmatprep.subr.bf16.mxu0 0
      %6304 = vmatpush2.bf16.msra.mxu0 0
      %6305 = vmatprep.subr.bf16.mxu0 0
      %6306 = vmatpush2.bf16.msra.mxu0 0
      %6307 = vmatprep.subr.bf16.mxu0 0
      %6308 = vmatpush2.bf16.msra.mxu0 0
      %6309 = vmatprep.subr.bf16.mxu0 0
      %6310 = vmatpush2.bf16.msra.mxu0 0
      %6311 = vmatprep.subr.bf16.mxu0 0
      %6312 = vmatpush2.bf16.msra.mxu0 0
      %6313 = vmatprep.subr.bf16.mxu0 0
      %6314 = vmatpush2.bf16.msra.mxu0 0
      %6315 = vmatprep.mubr.bf16.mxu0 0
      %6316 = vmatmul.mubr.bf16.gmra.mxu0 %v5899
      %v6317 = vpop.f32.mrf.mxu0
      %v6318 = vadd.f32 0.0, %v6317
      %v6319 = vpop.f32.mrf.mxu0
      %v6320 = vpop.f32.mrf.mxu0
      %v6321 = vpop.f32.mrf.mxu0
      %6322 = vdwg.mxu0
      %v6323 = vadd.f32 %v5945, %v6318
      %s6324 = scalar_lea.vmem %s10, 192
      %v6325 = vld [vmem:[%s6324] sm:$0xf]
      %v6326 = vld [vmem:[%s6324 + $0x4] sm:$0xf]
      %v6327 = vld [vmem:[%s6324 + $0x8] sm:$0xf]
      %v6328 = vld [vmem:[%s6324 + $0xc] sm:$0xf]
      %v6329 = vld [vmem:[%s6324 + $0x10] sm:$0xf]
      %v6330 = vld [vmem:[%s6324 + $0x14] sm:$0xf]
      %v6331 = vld [vmem:[%s6324 + $0x18] sm:$0xf]
      %v6332 = vld [vmem:[%s6324 + $0x1c] sm:$0xf]
      %v6341 = vunpack.c.l.b16 %v6325
      %v6342 = vunpack.c.l.b16 %v6326
      %v6343 = vunpack.c.l.b16 %v6327
      %v6344 = vunpack.c.l.b16 %v6328
      %v6345 = vunpack.c.l.b16 %v6329
      %v6346 = vunpack.c.l.b16 %v6330
      %v6347 = vunpack.c.l.b16 %v6331
      %v6348 = vunpack.c.l.b16 %v6332
      %v6349 = vpack.c.b16 %v6342, %v6341
      %v6350 = vpack.c.b16 %v6344, %v6343
      %v6351 = vpack.c.b16 %v6346, %v6345
      %v6352 = vpack.c.b16 %v6348, %v6347
      %6357 = vmatprep.subr.bf16.mxu0 0
      %6358 = vmatpush1.bf16.msra.mxu0 0
      %6359 = vmatprep.subr.bf16.mxu0 0
      %6360 = vmatpush1.bf16.msra.mxu0 0
      %6361 = vmatprep.subr.bf16.mxu0 0
      %6362 = vmatpush1.bf16.msra.mxu0 0
      %6363 = vmatprep.subr.bf16.mxu0 0
      %6364 = vmatpush1.bf16.msra.mxu0 0
      %6365 = vmatprep.subr.bf16.mxu0 0
      %6366 = vmatpush1.bf16.msra.mxu0 %v6352
      %6367 = vmatprep.subr.bf16.mxu0 0
      %6368 = vmatpush1.bf16.msra.mxu0 %v6351
      %6369 = vmatprep.subr.bf16.mxu0 0
      %6370 = vmatpush1.bf16.msra.mxu0 %v6350
      %6371 = vmatprep.subr.bf16.mxu0 0
      %6372 = vmatpush1.bf16.msra.mxu0 %v6349
      %6373 = vmatprep.subr.bf16.mxu0 0
      %6374 = vmatpush2.bf16.msra.mxu0 0
      %6375 = vmatprep.subr.bf16.mxu0 0
      %6376 = vmatpush2.bf16.msra.mxu0 0
      %6377 = vmatprep.subr.bf16.mxu0 0
      %6378 = vmatpush2.bf16.msra.mxu0 0
      %6379 = vmatprep.subr.bf16.mxu0 0
      %6380 = vmatpush2.bf16.msra.mxu0 0
      %6381 = vmatprep.subr.bf16.mxu0 0
      %6382 = vmatpush2.bf16.msra.mxu0 0
      %6383 = vmatprep.subr.bf16.mxu0 0
      %6384 = vmatpush2.bf16.msra.mxu0 0
      %6385 = vmatprep.subr.bf16.mxu0 0
      %6386 = vmatpush2.bf16.msra.mxu0 0
      %6387 = vmatprep.subr.bf16.mxu0 0
      %6388 = vmatpush2.bf16.msra.mxu0 0
      %6389 = vmatprep.mubr.bf16.mxu0 0
      %6390 = vmatmul.mubr.bf16.gmra.mxu0 %v6056
      %v6391 = vpop.f32.mrf.mxu0
      %v6392 = vadd.f32 0.0, %v6391
      %v6393 = vpop.f32.mrf.mxu0
      %v6394 = vpop.f32.mrf.mxu0
      %v6395 = vpop.f32.mrf.mxu0
      %6396 = vdwg.mxu0
      %v6397 = vadd.f32 %v6323, %v6392
      %s6398 = scalar_lea.vmem %s10, 64
      %v6399 = vld [vmem:[%s6398] sm:$0xf]
      %v6400 = vld [vmem:[%s6398 + $0x4] sm:$0xf]
      %v6401 = vld [vmem:[%s6398 + $0x8] sm:$0xf]
      %v6402 = vld [vmem:[%s6398 + $0xc] sm:$0xf]
      %v6403 = vld [vmem:[%s6398 + $0x10] sm:$0xf]
      %v6404 = vld [vmem:[%s6398 + $0x14] sm:$0xf]
      %v6405 = vld [vmem:[%s6398 + $0x18] sm:$0xf]
      %v6406 = vld [vmem:[%s6398 + $0x1c] sm:$0xf]
      %v6415 = vunpack.c.l.b16 %v6399
      %v6416 = vunpack.c.l.b16 %v6400
      %v6417 = vunpack.c.l.b16 %v6401
      %v6418 = vunpack.c.l.b16 %v6402
      %v6419 = vunpack.c.l.b16 %v6403
      %v6420 = vunpack.c.l.b16 %v6404
      %v6421 = vunpack.c.l.b16 %v6405
      %v6422 = vunpack.c.l.b16 %v6406
      %v6423 = vpack.c.b16 %v6416, %v6415
      %v6424 = vpack.c.b16 %v6418, %v6417
      %v6425 = vpack.c.b16 %v6420, %v6419
      %v6426 = vpack.c.b16 %v6422, %v6421
      %6431 = vmatprep.subr.bf16.mxu0 0
      %6432 = vmatpush1.bf16.msra.mxu0 0
      %6433 = vmatprep.subr.bf16.mxu0 0
      %6434 = vmatpush1.bf16.msra.mxu0 0
      %6435 = vmatprep.subr.bf16.mxu0 0
      %6436 = vmatpush1.bf16.msra.mxu0 0
      %6437 = vmatprep.subr.bf16.mxu0 0
      %6438 = vmatpush1.bf16.msra.mxu0 0
      %6439 = vmatprep.subr.bf16.mxu0 0
      %6440 = vmatpush1.bf16.msra.mxu0 %v6426
      %6441 = vmatprep.subr.bf16.mxu0 0
      %6442 = vmatpush1.bf16.msra.mxu0 %v6425
      %6443 = vmatprep.subr.bf16.mxu0 0
      %6444 = vmatpush1.bf16.msra.mxu0 %v6424
      %6445 = vmatprep.subr.bf16.mxu0 0
      %6446 = vmatpush1.bf16.msra.mxu0 %v6423
      %6447 = vmatprep.subr.bf16.mxu0 0
      %6448 = vmatpush2.bf16.msra.mxu0 0
      %6449 = vmatprep.subr.bf16.mxu0 0
      %6450 = vmatpush2.bf16.msra.mxu0 0
      %6451 = vmatprep.subr.bf16.mxu0 0
      %6452 = vmatpush2.bf16.msra.mxu0 0
      %6453 = vmatprep.subr.bf16.mxu0 0
      %6454 = vmatpush2.bf16.msra.mxu0 0
      %6455 = vmatprep.subr.bf16.mxu0 0
      %6456 = vmatpush2.bf16.msra.mxu0 0
      %6457 = vmatprep.subr.bf16.mxu0 0
      %6458 = vmatpush2.bf16.msra.mxu0 0
      %6459 = vmatprep.subr.bf16.mxu0 0
      %6460 = vmatpush2.bf16.msra.mxu0 0
      %6461 = vmatprep.subr.bf16.mxu0 0
      %6462 = vmatpush2.bf16.msra.mxu0 0
      %6463 = vmatprep.mubr.bf16.mxu0 0
      %6464 = vmatmul.mubr.bf16.gmra.mxu0 %v6207
      %v6465 = vpop.f32.mrf.mxu0
      %v6466 = vadd.f32 0.0, %v6465
      %v6467 = vpop.f32.mrf.mxu0
      %v6468 = vpop.f32.mrf.mxu0
      %v6469 = vpop.f32.mrf.mxu0
      %6470 = vdwg.mxu0
      %v6471 = vadd.f32 %v6397, %v6466
      %v6472 = vld [vmem:[%s10] sm:$0xf]
      %v6473 = vld [vmem:[%s10 + $0x4] sm:$0xf]
      %v6474 = vld [vmem:[%s10 + $0x8] sm:$0xf]
      %v6475 = vld [vmem:[%s10 + $0xc] sm:$0xf]
      %v6476 = vld [vmem:[%s10 + $0x10] sm:$0xf]
      %v6477 = vld [vmem:[%s10 + $0x14] sm:$0xf]
      %v6478 = vld [vmem:[%s10 + $0x18] sm:$0xf]
      %v6479 = vld [vmem:[%s10 + $0x1c] sm:$0xf]
      %v6488 = vunpack.c.l.b16 %v6472
      %v6489 = vunpack.c.l.b16 %v6473
      %v6490 = vunpack.c.l.b16 %v6474
      %v6491 = vunpack.c.l.b16 %v6475
      %v6492 = vunpack.c.l.b16 %v6476
      %v6493 = vunpack.c.l.b16 %v6477
      %v6494 = vunpack.c.l.b16 %v6478
      %v6495 = vunpack.c.l.b16 %v6479
      %v6496 = vpack.c.b16 %v6489, %v6488
      %v6497 = vpack.c.b16 %v6491, %v6490
      %v6498 = vpack.c.b16 %v6493, %v6492
      %v6499 = vpack.c.b16 %v6495, %v6494
      %v6505 = vsel %vm4835, %v5863, 0
      %6507 = vmatprep.subr.bf16.mxu0 0
      %6508 = vmatpush1.bf16.msra.mxu0 0
      %6509 = vmatprep.subr.bf16.mxu0 0
      %6510 = vmatpush1.bf16.msra.mxu0 0
      %6511 = vmatprep.subr.bf16.mxu0 0
      %6512 = vmatpush1.bf16.msra.mxu0 0
      %6513 = vmatprep.subr.bf16.mxu0 0
      %6514 = vmatpush1.bf16.msra.mxu0 0
      %6515 = vmatprep.subr.bf16.mxu0 0
      %6516 = vmatpush1.bf16.msra.mxu0 %v6499
      %6517 = vmatprep.subr.bf16.mxu0 0
      %6518 = vmatpush1.bf16.msra.mxu0 %v6498
      %6519 = vmatprep.subr.bf16.mxu0 0
      %6520 = vmatpush1.bf16.msra.mxu0 %v6497
      %6521 = vmatprep.subr.bf16.mxu0 0
      %6522 = vmatpush1.bf16.msra.mxu0 %v6496
      %6523 = vmatprep.subr.bf16.mxu0 0
      %6524 = vmatpush2.bf16.msra.mxu0 0
      %6525 = vmatprep.subr.bf16.mxu0 0
      %6526 = vmatpush2.bf16.msra.mxu0 0
      %6527 = vmatprep.subr.bf16.mxu0 0
      %6528 = vmatpush2.bf16.msra.mxu0 0
      %6529 = vmatprep.subr.bf16.mxu0 0
      %6530 = vmatpush2.bf16.msra.mxu0 0
      %6531 = vmatprep.subr.bf16.mxu0 0
      %6532 = vmatpush2.bf16.msra.mxu0 0
      %6533 = vmatprep.subr.bf16.mxu0 0
      %6534 = vmatpush2.bf16.msra.mxu0 0
      %6535 = vmatprep.subr.bf16.mxu0 0
      %6536 = vmatpush2.bf16.msra.mxu0 0
      %6537 = vmatprep.subr.bf16.mxu0 0
      %6538 = vmatpush2.bf16.msra.mxu0 0
      %6539 = vmatprep.mubr.bf16.mxu0 0
      %6540 = vmatmul.mubr.bf16.gmra.mxu0 %v6505
      %v6541 = vpop.f32.mrf.mxu0
      %v6542 = vadd.f32 0.0, %v6541
      %v6543 = vpop.f32.mrf.mxu0
      %v6544 = vpop.f32.mrf.mxu0
      %v6545 = vpop.f32.mrf.mxu0
      %6546 = vdwg.mxu0
      %v6547 = vadd.f32 %v6471, %v6542
      %v6548 = vmax.f32 %v5947, 0.0
      %v6549 = vmax.f32 %v6098, 0.0
      %v6550 = vmax.f32 %v6249, 0.0
      %v6551 = vmax.f32 %v6547, 0.0
      %v6552 = vld [vmem:[%s12] sm:$0xf]
      %v6553 = vld [vmem:[%s12 + $0x4] sm:$0xf]
      %v6554 = vpack.c.bf16 %v6548, %v6548
      %s6555 = scalar_lea.vmem %s12, 8
      %v6556 = vld [vmem:[%s6555] sm:$0xf]
      %v6557 = vld [vmem:[%s6555 + $0x4] sm:$0xf]
      %v6558 = vpack.c.bf16 %v6549, %v6549
      %v6561 = vunpack.c.l.b16 %v6556
      %v6562 = vunpack.c.l.b16 %v6557
      %v6563 = vpack.c.b16 %v6562, %v6561
      %vm6564 = vcmask 31744
      %v6566 = vsel %vm6564, %v6563, 0
      %vm6568 = vcmask 1041408
      %v6570 = vsel %vm6568, %v6558, 0
      %6572 = vmatprep.subr.bf16.mxu0 0
      %6573 = vmatpush1.bf16.msra.mxu0 0
      %6574 = vmatprep.subr.bf16.mxu0 0
      %6575 = vmatpush1.bf16.msra.mxu0 0
      %6576 = vmatprep.subr.bf16.mxu0 0
      %6577 = vmatpush1.bf16.msra.mxu0 0
      %6578 = vmatprep.subr.bf16.mxu0 0
      %6579 = vmatpush1.bf16.msra.mxu0 0
      %6580 = vmatprep.subr.bf16.mxu0 0
      %6581 = vmatpush1.bf16.msra.mxu0 0
      %6582 = vmatprep.subr.bf16.mxu0 0
      %6583 = vmatpush1.bf16.msra.mxu0 0
      %6584 = vmatprep.subr.bf16.mxu0 0
      %6585 = vmatpush1.bf16.msra.mxu0 0
      %6586 = vmatprep.subr.bf16.mxu0 0
      %6587 = vmatpush1.bf16.msra.mxu0 %v6570
      %6588 = vmatprep.subr.bf16.mxu0 0
      %6589 = vmatpush2.bf16.msra.mxu0 0
      %6590 = vmatprep.subr.bf16.mxu0 0
      %6591 = vmatpush2.bf16.msra.mxu0 0
      %6592 = vmatprep.subr.bf16.mxu0 0
      %6593 = vmatpush2.bf16.msra.mxu0 0
      %6594 = vmatprep.subr.bf16.mxu0 0
      %6595 = vmatpush2.bf16.msra.mxu0 0
      %6596 = vmatprep.subr.bf16.mxu0 0
      %6597 = vmatpush2.bf16.msra.mxu0 0
      %6598 = vmatprep.subr.bf16.mxu0 0
      %6599 = vmatpush2.bf16.msra.mxu0 0
      %6600 = vmatprep.subr.bf16.mxu0 0
      %6601 = vmatpush2.bf16.msra.mxu0 0
      %6602 = vmatprep.subr.bf16.mxu0 0
      %6603 = vmatpush2.bf16.msra.mxu0 0
      %6604 = vmatprep.mubr.bf16.mxu0 0
      %6605 = vmatmul.mubr.bf16.gmra.mxu0 %v6566
      %v6606 = vpop.f32.mrf.mxu0
      %v6607 = vadd.f32 0.0, %v6606
      %v6608 = vpop.f32.mrf.mxu0
      %v6609 = vpop.f32.mrf.mxu0
      %v6610 = vadd.f32 0.0, %v6609
      %v6611 = vpop.f32.mrf.mxu0
      %6612 = vdwg.mxu0
      %v6615 = vunpack.c.l.b16 %v6552
      %v6616 = vunpack.c.l.b16 %v6553
      %v6617 = vpack.c.b16 %v6616, %v6615
      %v6619 = vsel %vm6564, %v6617, 0
      %v6622 = vsel %vm6568, %v6554, 0
      %6624 = vmatprep.subr.bf16.mxu0 0
      %6625 = vmatpush1.bf16.msra.mxu0 0
      %6626 = vmatprep.subr.bf16.mxu0 0
      %6627 = vmatpush1.bf16.msra.mxu0 0
      %6628 = vmatprep.subr.bf16.mxu0 0
      %6629 = vmatpush1.bf16.msra.mxu0 0
      %6630 = vmatprep.subr.bf16.mxu0 0
      %6631 = vmatpush1.bf16.msra.mxu0 0
      %6632 = vmatprep.subr.bf16.mxu0 0
      %6633 = vmatpush1.bf16.msra.mxu0 0
      %6634 = vmatprep.subr.bf16.mxu0 0
      %6635 = vmatpush1.bf16.msra.mxu0 0
      %6636 = vmatprep.subr.bf16.mxu0 0
      %6637 = vmatpush1.bf16.msra.mxu0 0
      %6638 = vmatprep.subr.bf16.mxu0 0
      %6639 = vmatpush1.bf16.msra.mxu0 %v6622
      %6640 = vmatprep.subr.bf16.mxu0 0
      %6641 = vmatpush2.bf16.msra.mxu0 0
      %6642 = vmatprep.subr.bf16.mxu0 0
      %6643 = vmatpush2.bf16.msra.mxu0 0
      %6644 = vmatprep.subr.bf16.mxu0 0
      %6645 = vmatpush2.bf16.msra.mxu0 0
      %6646 = vmatprep.subr.bf16.mxu0 0
      %6647 = vmatpush2.bf16.msra.mxu0 0
      %6648 = vmatprep.subr.bf16.mxu0 0
      %6649 = vmatpush2.bf16.msra.mxu0 0
      %6650 = vmatprep.subr.bf16.mxu0 0
      %6651 = vmatpush2.bf16.msra.mxu0 0
      %6652 = vmatprep.subr.bf16.mxu0 0
      %6653 = vmatpush2.bf16.msra.mxu0 0
      %6654 = vmatprep.subr.bf16.mxu0 0
      %6655 = vmatpush2.bf16.msra.mxu0 0
      %6656 = vmatprep.mubr.bf16.mxu0 0
      %6657 = vmatmul.mubr.bf16.gmra.mxu0 %v6619
      %v6658 = vpop.f32.mrf.mxu0
      %v6659 = vadd.f32 %v6607, %v6658
      %v6660 = vpop.f32.mrf.mxu0
      %v6661 = vpop.f32.mrf.mxu0
      %v6662 = vadd.f32 %v6610, %v6661
      %v6663 = vpop.f32.mrf.mxu0
      %6664 = vdwg.mxu0
      %s6665 = scalar_lea.vmem %s12, 16
      %v6666 = vld [vmem:[%s6665] sm:$0xf]
      %v6667 = vld [vmem:[%s6665 + $0x4] sm:$0xf]
      %v6668 = vpack.c.bf16 %v6550, %v6550
      %v6671 = vunpack.c.l.b16 %v6666
      %v6672 = vunpack.c.l.b16 %v6667
      %v6673 = vpack.c.b16 %v6672, %v6671
      %v6675 = vsel %vm6564, %v6673, 0
      %v6678 = vsel %vm6568, %v6668, 0
      %6680 = vmatprep.subr.bf16.mxu0 0
      %6681 = vmatpush1.bf16.msra.mxu0 0
      %6682 = vmatprep.subr.bf16.mxu0 0
      %6683 = vmatpush1.bf16.msra.mxu0 0
      %6684 = vmatprep.subr.bf16.mxu0 0
      %6685 = vmatpush1.bf16.msra.mxu0 0
      %6686 = vmatprep.subr.bf16.mxu0 0
      %6687 = vmatpush1.bf16.msra.mxu0 0
      %6688 = vmatprep.subr.bf16.mxu0 0
      %6689 = vmatpush1.bf16.msra.mxu0 0
      %6690 = vmatprep.subr.bf16.mxu0 0
      %6691 = vmatpush1.bf16.msra.mxu0 0
      %6692 = vmatprep.subr.bf16.mxu0 0
      %6693 = vmatpush1.bf16.msra.mxu0 0
      %6694 = vmatprep.subr.bf16.mxu0 0
      %6695 = vmatpush1.bf16.msra.mxu0 %v6678
      %6696 = vmatprep.subr.bf16.mxu0 0
      %6697 = vmatpush2.bf16.msra.mxu0 0
      %6698 = vmatprep.subr.bf16.mxu0 0
      %6699 = vmatpush2.bf16.msra.mxu0 0
      %6700 = vmatprep.subr.bf16.mxu0 0
      %6701 = vmatpush2.bf16.msra.mxu0 0
      %6702 = vmatprep.subr.bf16.mxu0 0
      %6703 = vmatpush2.bf16.msra.mxu0 0
      %6704 = vmatprep.subr.bf16.mxu0 0
      %6705 = vmatpush2.bf16.msra.mxu0 0
      %6706 = vmatprep.subr.bf16.mxu0 0
      %6707 = vmatpush2.bf16.msra.mxu0 0
      %6708 = vmatprep.subr.bf16.mxu0 0
      %6709 = vmatpush2.bf16.msra.mxu0 0
      %6710 = vmatprep.subr.bf16.mxu0 0
      %6711 = vmatpush2.bf16.msra.mxu0 0
      %6712 = vmatprep.mubr.bf16.mxu0 0
      %6713 = vmatmul.mubr.bf16.gmra.mxu0 %v6675
      %v6714 = vpop.f32.mrf.mxu0
      %v6715 = vadd.f32 0.0, %v6714
      %v6716 = vpop.f32.mrf.mxu0
      %v6717 = vpop.f32.mrf.mxu0
      %v6718 = vadd.f32 0.0, %v6717
      %v6719 = vpop.f32.mrf.mxu0
      %6720 = vdwg.mxu0
      %v6721 = vadd.f32 %v6659, %v6715
      %v6722 = vadd.f32 %v6662, %v6718
      %s6723 = scalar_lea.vmem %s12, 24
      %v6724 = vld [vmem:[%s6723] sm:$0xf]
      %v6725 = vld [vmem:[%s6723 + $0x4] sm:$0xf]
      %v6726 = vpack.c.bf16 %v6551, %v6551
      %v6729 = vunpack.c.l.b16 %v6724
      %v6730 = vunpack.c.l.b16 %v6725
      %v6731 = vpack.c.b16 %v6730, %v6729
      %v6733 = vsel %vm6564, %v6731, 0
      %v6736 = vsel %vm6568, %v6726, 0
      %6738 = vmatprep.subr.bf16.mxu0 0
      %6739 = vmatpush1.bf16.msra.mxu0 0
      %6740 = vmatprep.subr.bf16.mxu0 0
      %6741 = vmatpush1.bf16.msra.mxu0 0
      %6742 = vmatprep.subr.bf16.mxu0 0
      %6743 = vmatpush1.bf16.msra.mxu0 0
      %6744 = vmatprep.subr.bf16.mxu0 0
      %6745 = vmatpush1.bf16.msra.mxu0 0
      %6746 = vmatprep.subr.bf16.mxu0 0
      %6747 = vmatpush1.bf16.msra.mxu0 0
      %6748 = vmatprep.subr.bf16.mxu0 0
      %6749 = vmatpush1.bf16.msra.mxu0 0
      %6750 = vmatprep.subr.bf16.mxu0 0
      %6751 = vmatpush1.bf16.msra.mxu0 0
      %6752 = vmatprep.subr.bf16.mxu0 0
      %6753 = vmatpush1.bf16.msra.mxu0 %v6736
      %6754 = vmatprep.subr.bf16.mxu0 0
      %6755 = vmatpush2.bf16.msra.mxu0 0
      %6756 = vmatprep.subr.bf16.mxu0 0
      %6757 = vmatpush2.bf16.msra.mxu0 0
      %6758 = vmatprep.subr.bf16.mxu0 0
      %6759 = vmatpush2.bf16.msra.mxu0 0
      %6760 = vmatprep.subr.bf16.mxu0 0
      %6761 = vmatpush2.bf16.msra.mxu0 0
      %6762 = vmatprep.subr.bf16.mxu0 0
      %6763 = vmatpush2.bf16.msra.mxu0 0
      %6764 = vmatprep.subr.bf16.mxu0 0
      %6765 = vmatpush2.bf16.msra.mxu0 0
      %6766 = vmatprep.subr.bf16.mxu0 0
      %6767 = vmatpush2.bf16.msra.mxu0 0
      %6768 = vmatprep.subr.bf16.mxu0 0
      %6769 = vmatpush2.bf16.msra.mxu0 0
      %6770 = vmatprep.mubr.bf16.mxu0 0
      %6771 = vmatmul.mubr.bf16.gmra.mxu0 %v6733
      %v6772 = vpop.f32.mrf.mxu0
      %v6773 = vadd.f32 0.0, %v6772
      %v6774 = vpop.f32.mrf.mxu0
      %v6775 = vpop.f32.mrf.mxu0
      %v6776 = vadd.f32 0.0, %v6775
      %v6777 = vpop.f32.mrf.mxu0
      %6778 = vdwg.mxu0
      %v6779 = vadd.f32 %v6721, %v6773
      %v6780 = vadd.f32 %v6722, %v6776
      %v6781 = vpack.c.bf16 %v6780, %v6779
      %6782 = vst.msk [vmem:[#allocation6] sm:$0xff] %vm5043, 0.0
      %6783 = vst.msk [vmem:[#allocation6 + $0x8] sm:$0xff] %vm5043, 0.0
      %6784 = vst.msk [vmem:[#allocation6 + $0x10] sm:$0x1f] %vm5047, 0.0
      %v6785 = vunpack.c.l.bf16 %v6781
      %v6786 = vunpack.c.h.bf16 %v6781
      %6787 = vst.msk [vmem:[#allocation6] sm:$0xff] %vm5043, %v6785
      %6788 = vst.msk [vmem:[#allocation6 + $0x8] sm:$0xff] %vm5043, %v6786
      %v6789 = vpack.c.bf16 %v5062, %v5061
      %v6790 = vld [vmem:[#allocation6 + $0x1] sm:$0xff]
      %v6791 = vld [vmem:[#allocation6 + $0x9] sm:$0xff]
      %v6792 = vpack.c.bf16 %v6791, %v6790
      %v6793 = vmul.bf16 %v6792, %v6789
      %v6794 = vld [vmem:[#allocation6 + $0x4] sm:$0xff]
      %v6795 = vld [vmem:[#allocation6 + $0xc] sm:$0xff]
      %v6796 = vpack.c.bf16 %v6795, %v6794
      %v6797 = vld [vmem:[#allocation6 + $0x5] sm:$0xff]
      %v6798 = vld [vmem:[#allocation6 + $0xd] sm:$0xff]
      %v6799 = vpack.c.bf16 %v6798, %v6797
      %v6800 = vmul.bf16 %v6799, %v6789
      %v6801 = vld [vmem:[%s14] sm:$0x1]
      %s6802 = scalar_lea.vmem %s13, 64
      %v6803 = vld [vmem:[%s6802] sm:$0xf]
      %v6804 = vld [vmem:[%s6802 + $0x4] sm:$0xf]
      %v6805 = vld [vmem:[%s6802 + $0x8] sm:$0xf]
      %v6806 = vld [vmem:[%s6802 + $0xc] sm:$0xf]
      %v6811 = vunpack.c.l.b16 %v6803
      %v6812 = vunpack.c.l.b16 %v6804
      %v6813 = vunpack.c.l.b16 %v6805
      %v6814 = vunpack.c.l.b16 %v6806
      %v6815 = vpack.c.b16 %v6812, %v6811
      %v6816 = vpack.c.b16 %v6814, %v6813
      %v6820 = vsel %vm5043, %v6781, 0
      %6822 = vmatprep.subr.bf16.mxu0 0
      %6823 = vmatpush1.bf16.msra.mxu0 0
      %6824 = vmatprep.subr.bf16.mxu0 0
      %6825 = vmatpush1.bf16.msra.mxu0 0
      %6826 = vmatprep.subr.bf16.mxu0 0
      %6827 = vmatpush1.bf16.msra.mxu0 0
      %6828 = vmatprep.subr.bf16.mxu0 0
      %6829 = vmatpush1.bf16.msra.mxu0 0
      %6830 = vmatprep.subr.bf16.mxu0 0
      %6831 = vmatpush1.bf16.msra.mxu0 0
      %6832 = vmatprep.subr.bf16.mxu0 0
      %6833 = vmatpush1.bf16.msra.mxu0 0
      %6834 = vmatprep.subr.bf16.mxu0 0
      %6835 = vmatpush1.bf16.msra.mxu0 %v6816
      %6836 = vmatprep.subr.bf16.mxu0 0
      %6837 = vmatpush1.bf16.msra.mxu0 %v6815
      %6838 = vmatprep.subr.bf16.mxu0 0
      %6839 = vmatpush2.bf16.msra.mxu0 0
      %6840 = vmatprep.subr.bf16.mxu0 0
      %6841 = vmatpush2.bf16.msra.mxu0 0
      %6842 = vmatprep.subr.bf16.mxu0 0
      %6843 = vmatpush2.bf16.msra.mxu0 0
      %6844 = vmatprep.subr.bf16.mxu0 0
      %6845 = vmatpush2.bf16.msra.mxu0 0
      %6846 = vmatprep.subr.bf16.mxu0 0
      %6847 = vmatpush2.bf16.msra.mxu0 0
      %6848 = vmatprep.subr.bf16.mxu0 0
      %6849 = vmatpush2.bf16.msra.mxu0 0
      %6850 = vmatprep.subr.bf16.mxu0 0
      %6851 = vmatpush2.bf16.msra.mxu0 0
      %6852 = vmatprep.subr.bf16.mxu0 0
      %6853 = vmatpush2.bf16.msra.mxu0 0
      %6854 = vmatprep.mubr.bf16.mxu0 0
      %6855 = vmatmul.mubr.bf16.gmra.mxu0 %v6820
      %v6856 = vpop.f32.mrf.mxu0
      %v6857 = vadd.f32 0.0, %v6856
      %v6858 = vpop.f32.mrf.mxu0
      %v6859 = vpop.f32.mrf.mxu0
      %v6860 = vadd.f32 0.0, %v6859
      %v6861 = vpop.f32.mrf.mxu0
      %6862 = vdwg.mxu0
      %v6864 = vlaneseq
      %v6865 = vshrl.u32 %v6864, 7
      %v6866 = vsub.s32 0, %v6865
      %v6867 = vrot.slane %v6801, %v6866
      %v6869 = vadd.f32 %v6867, %v6857
      %v6870 = vadd.f32 %v6867, %v6860
      %s6871 = scalar_lea.vmem %s13, 80
      %v6872 = vld [vmem:[%s6871] sm:$0xf]
      %v6873 = vld [vmem:[%s6871 + $0x4] sm:$0xf]
      %v6874 = vld [vmem:[%s6871 + $0x8] sm:$0xf]
      %v6875 = vld [vmem:[%s6871 + $0xc] sm:$0xf]
      %v6880 = vunpack.c.l.b16 %v6872
      %v6881 = vunpack.c.l.b16 %v6873
      %v6882 = vunpack.c.l.b16 %v6874
      %v6883 = vunpack.c.l.b16 %v6875
      %v6884 = vpack.c.b16 %v6881, %v6880
      %v6885 = vpack.c.b16 %v6883, %v6882
      %6888 = vmatprep.subr.bf16.mxu0 0
      %6889 = vmatpush1.bf16.msra.mxu0 0
      %6890 = vmatprep.subr.bf16.mxu0 0
      %6891 = vmatpush1.bf16.msra.mxu0 0
      %6892 = vmatprep.subr.bf16.mxu0 0
      %6893 = vmatpush1.bf16.msra.mxu0 0
      %6894 = vmatprep.subr.bf16.mxu0 0
      %6895 = vmatpush1.bf16.msra.mxu0 0
      %6896 = vmatprep.subr.bf16.mxu0 0
      %6897 = vmatpush1.bf16.msra.mxu0 0
      %6898 = vmatprep.subr.bf16.mxu0 0
      %6899 = vmatpush1.bf16.msra.mxu0 0
      %6900 = vmatprep.subr.bf16.mxu0 0
      %6901 = vmatpush1.bf16.msra.mxu0 %v6885
      %6902 = vmatprep.subr.bf16.mxu0 0
      %6903 = vmatpush1.bf16.msra.mxu0 %v6884
      %6904 = vmatprep.subr.bf16.mxu0 0
      %6905 = vmatpush2.bf16.msra.mxu0 0
      %6906 = vmatprep.subr.bf16.mxu0 0
      %6907 = vmatpush2.bf16.msra.mxu0 0
      %6908 = vmatprep.subr.bf16.mxu0 0
      %6909 = vmatpush2.bf16.msra.mxu0 0
      %6910 = vmatprep.subr.bf16.mxu0 0
      %6911 = vmatpush2.bf16.msra.mxu0 0
      %6912 = vmatprep.subr.bf16.mxu0 0
      %6913 = vmatpush2.bf16.msra.mxu0 0
      %6914 = vmatprep.subr.bf16.mxu0 0
      %6915 = vmatpush2.bf16.msra.mxu0 0
      %6916 = vmatprep.subr.bf16.mxu0 0
      %6917 = vmatpush2.bf16.msra.mxu0 0
      %6918 = vmatprep.subr.bf16.mxu0 0
      %6919 = vmatpush2.bf16.msra.mxu0 0
      %6920 = vmatprep.mubr.bf16.mxu0 0
      %6921 = vmatmul.mubr.bf16.gmra.mxu0 %v6820
      %v6922 = vpop.f32.mrf.mxu0
      %v6923 = vadd.f32 0.0, %v6922
      %v6924 = vpop.f32.mrf.mxu0
      %v6925 = vpop.f32.mrf.mxu0
      %v6926 = vadd.f32 0.0, %v6925
      %v6927 = vpop.f32.mrf.mxu0
      %6928 = vdwg.mxu0
      %v6929 = vadd.f32 %v6867, %v6923
      %v6930 = vadd.f32 %v6867, %v6926
      %s6931 = scalar_lea.vmem %s13, 48
      %v6932 = vld [vmem:[%s6931] sm:$0xf]
      %v6933 = vld [vmem:[%s6931 + $0x4] sm:$0xf]
      %v6934 = vld [vmem:[%s6931 + $0x8] sm:$0xf]
      %v6935 = vld [vmem:[%s6931 + $0xc] sm:$0xf]
      %v6940 = vunpack.c.l.b16 %v6932
      %v6941 = vunpack.c.l.b16 %v6933
      %v6942 = vunpack.c.l.b16 %v6934
      %v6943 = vunpack.c.l.b16 %v6935
      %v6944 = vpack.c.b16 %v6941, %v6940
      %v6945 = vpack.c.b16 %v6943, %v6942
      %v6949 = vsel %vm5043, %v6793, 0
      %6951 = vmatprep.subr.bf16.mxu0 0
      %6952 = vmatpush1.bf16.msra.mxu0 0
      %6953 = vmatprep.subr.bf16.mxu0 0
      %6954 = vmatpush1.bf16.msra.mxu0 0
      %6955 = vmatprep.subr.bf16.mxu0 0
      %6956 = vmatpush1.bf16.msra.mxu0 0
      %6957 = vmatprep.subr.bf16.mxu0 0
      %6958 = vmatpush1.bf16.msra.mxu0 0
      %6959 = vmatprep.subr.bf16.mxu0 0
      %6960 = vmatpush1.bf16.msra.mxu0 0
      %6961 = vmatprep.subr.bf16.mxu0 0
      %6962 = vmatpush1.bf16.msra.mxu0 0
      %6963 = vmatprep.subr.bf16.mxu0 0
      %6964 = vmatpush1.bf16.msra.mxu0 %v6945
      %6965 = vmatprep.subr.bf16.mxu0 0
      %6966 = vmatpush1.bf16.msra.mxu0 %v6944
      %6967 = vmatprep.subr.bf16.mxu0 0
      %6968 = vmatpush2.bf16.msra.mxu0 0
      %6969 = vmatprep.subr.bf16.mxu0 0
      %6970 = vmatpush2.bf16.msra.mxu0 0
      %6971 = vmatprep.subr.bf16.mxu0 0
      %6972 = vmatpush2.bf16.msra.mxu0 0
      %6973 = vmatprep.subr.bf16.mxu0 0
      %6974 = vmatpush2.bf16.msra.mxu0 0
      %6975 = vmatprep.subr.bf16.mxu0 0
      %6976 = vmatpush2.bf16.msra.mxu0 0
      %6977 = vmatprep.subr.bf16.mxu0 0
      %6978 = vmatpush2.bf16.msra.mxu0 0
      %6979 = vmatprep.subr.bf16.mxu0 0
      %6980 = vmatpush2.bf16.msra.mxu0 0
      %6981 = vmatprep.subr.bf16.mxu0 0
      %6982 = vmatpush2.bf16.msra.mxu0 0
      %6983 = vmatprep.mubr.bf16.mxu0 0
      %6984 = vmatmul.mubr.bf16.gmra.mxu0 %v6949
      %v6985 = vpop.f32.mrf.mxu0
      %v6986 = vadd.f32 0.0, %v6985
      %v6987 = vpop.f32.mrf.mxu0
      %v6988 = vpop.f32.mrf.mxu0
      %v6989 = vadd.f32 0.0, %v6988
      %v6990 = vpop.f32.mrf.mxu0
      %6991 = vdwg.mxu0
      %v6992 = vadd.f32 %v6929, %v6986
      %v6993 = vadd.f32 %v6930, %v6989
      %s6994 = scalar_lea.vmem %s13, 112
      %v6995 = vld [vmem:[%s6994] sm:$0xf]
      %v6996 = vld [vmem:[%s6994 + $0x4] sm:$0xf]
      %v6997 = vld [vmem:[%s6994 + $0x8] sm:$0xf]
      %v6998 = vld [vmem:[%s6994 + $0xc] sm:$0xf]
      %v7003 = vunpack.c.l.b16 %v6995
      %v7004 = vunpack.c.l.b16 %v6996
      %v7005 = vunpack.c.l.b16 %v6997
      %v7006 = vunpack.c.l.b16 %v6998
      %v7007 = vpack.c.b16 %v7004, %v7003
      %v7008 = vpack.c.b16 %v7006, %v7005
      %7011 = vmatprep.subr.bf16.mxu0 0
      %7012 = vmatpush1.bf16.msra.mxu0 0
      %7013 = vmatprep.subr.bf16.mxu0 0
      %7014 = vmatpush1.bf16.msra.mxu0 0
      %7015 = vmatprep.subr.bf16.mxu0 0
      %7016 = vmatpush1.bf16.msra.mxu0 0
      %7017 = vmatprep.subr.bf16.mxu0 0
      %7018 = vmatpush1.bf16.msra.mxu0 0
      %7019 = vmatprep.subr.bf16.mxu0 0
      %7020 = vmatpush1.bf16.msra.mxu0 0
      %7021 = vmatprep.subr.bf16.mxu0 0
      %7022 = vmatpush1.bf16.msra.mxu0 0
      %7023 = vmatprep.subr.bf16.mxu0 0
      %7024 = vmatpush1.bf16.msra.mxu0 %v7008
      %7025 = vmatprep.subr.bf16.mxu0 0
      %7026 = vmatpush1.bf16.msra.mxu0 %v7007
      %7027 = vmatprep.subr.bf16.mxu0 0
      %7028 = vmatpush2.bf16.msra.mxu0 0
      %7029 = vmatprep.subr.bf16.mxu0 0
      %7030 = vmatpush2.bf16.msra.mxu0 0
      %7031 = vmatprep.subr.bf16.mxu0 0
      %7032 = vmatpush2.bf16.msra.mxu0 0
      %7033 = vmatprep.subr.bf16.mxu0 0
      %7034 = vmatpush2.bf16.msra.mxu0 0
      %7035 = vmatprep.subr.bf16.mxu0 0
      %7036 = vmatpush2.bf16.msra.mxu0 0
      %7037 = vmatprep.subr.bf16.mxu0 0
      %7038 = vmatpush2.bf16.msra.mxu0 0
      %7039 = vmatprep.subr.bf16.mxu0 0
      %7040 = vmatpush2.bf16.msra.mxu0 0
      %7041 = vmatprep.subr.bf16.mxu0 0
      %7042 = vmatpush2.bf16.msra.mxu0 0
      %7043 = vmatprep.mubr.bf16.mxu0 0
      %7044 = vmatmul.mubr.bf16.gmra.mxu0 %v6820
      %v7045 = vpop.f32.mrf.mxu0
      %v7046 = vadd.f32 0.0, %v7045
      %v7047 = vpop.f32.mrf.mxu0
      %v7048 = vpop.f32.mrf.mxu0
      %v7049 = vadd.f32 0.0, %v7048
      %v7050 = vpop.f32.mrf.mxu0
      %7051 = vdwg.mxu0
      %v7052 = vadd.f32 %v6867, %v7046
      %v7053 = vadd.f32 %v6867, %v7049
      %s7054 = scalar_lea.vmem %s13, 16
      %v7055 = vld [vmem:[%s7054] sm:$0xf]
      %v7056 = vld [vmem:[%s7054 + $0x4] sm:$0xf]
      %v7057 = vld [vmem:[%s7054 + $0x8] sm:$0xf]
      %v7058 = vld [vmem:[%s7054 + $0xc] sm:$0xf]
      %v7063 = vunpack.c.l.b16 %v7055
      %v7064 = vunpack.c.l.b16 %v7056
      %v7065 = vunpack.c.l.b16 %v7057
      %v7066 = vunpack.c.l.b16 %v7058
      %v7067 = vpack.c.b16 %v7064, %v7063
      %v7068 = vpack.c.b16 %v7066, %v7065
      %v7072 = vsel %vm5043, %v6796, 0
      %7074 = vmatprep.subr.bf16.mxu0 0
      %7075 = vmatpush1.bf16.msra.mxu0 0
      %7076 = vmatprep.subr.bf16.mxu0 0
      %7077 = vmatpush1.bf16.msra.mxu0 0
      %7078 = vmatprep.subr.bf16.mxu0 0
      %7079 = vmatpush1.bf16.msra.mxu0 0
      %7080 = vmatprep.subr.bf16.mxu0 0
      %7081 = vmatpush1.bf16.msra.mxu0 0
      %7082 = vmatprep.subr.bf16.mxu0 0
      %7083 = vmatpush1.bf16.msra.mxu0 0
      %7084 = vmatprep.subr.bf16.mxu0 0
      %7085 = vmatpush1.bf16.msra.mxu0 0
      %7086 = vmatprep.subr.bf16.mxu0 0
      %7087 = vmatpush1.bf16.msra.mxu0 %v7068
      %7088 = vmatprep.subr.bf16.mxu0 0
      %7089 = vmatpush1.bf16.msra.mxu0 %v7067
      %7090 = vmatprep.subr.bf16.mxu0 0
      %7091 = vmatpush2.bf16.msra.mxu0 0
      %7092 = vmatprep.subr.bf16.mxu0 0
      %7093 = vmatpush2.bf16.msra.mxu0 0
      %7094 = vmatprep.subr.bf16.mxu0 0
      %7095 = vmatpush2.bf16.msra.mxu0 0
      %7096 = vmatprep.subr.bf16.mxu0 0
      %7097 = vmatpush2.bf16.msra.mxu0 0
      %7098 = vmatprep.subr.bf16.mxu0 0
      %7099 = vmatpush2.bf16.msra.mxu0 0
      %7100 = vmatprep.subr.bf16.mxu0 0
      %7101 = vmatpush2.bf16.msra.mxu0 0
      %7102 = vmatprep.subr.bf16.mxu0 0
      %7103 = vmatpush2.bf16.msra.mxu0 0
      %7104 = vmatprep.subr.bf16.mxu0 0
      %7105 = vmatpush2.bf16.msra.mxu0 0
      %7106 = vmatprep.mubr.bf16.mxu0 0
      %7107 = vmatmul.mubr.bf16.gmra.mxu0 %v7072
      %v7108 = vpop.f32.mrf.mxu0
      %v7109 = vadd.f32 0.0, %v7108
      %v7110 = vpop.f32.mrf.mxu0
      %v7111 = vpop.f32.mrf.mxu0
      %v7112 = vadd.f32 0.0, %v7111
      %v7113 = vpop.f32.mrf.mxu0
      %7114 = vdwg.mxu0
      %v7115 = vadd.f32 %v7052, %v7109
      %v7116 = vadd.f32 %v7053, %v7112
      %s7117 = scalar_lea.vmem %s13, 128
      %v7118 = vld [vmem:[%s7117] sm:$0xf]
      %v7119 = vld [vmem:[%s7117 + $0x4] sm:$0xf]
      %v7120 = vld [vmem:[%s7117 + $0x8] sm:$0xf]
      %v7121 = vld [vmem:[%s7117 + $0xc] sm:$0xf]
      %v7126 = vunpack.c.l.b16 %v7118
      %v7127 = vunpack.c.l.b16 %v7119
      %v7128 = vunpack.c.l.b16 %v7120
      %v7129 = vunpack.c.l.b16 %v7121
      %v7130 = vpack.c.b16 %v7127, %v7126
      %v7131 = vpack.c.b16 %v7129, %v7128
      %7134 = vmatprep.subr.bf16.mxu0 0
      %7135 = vmatpush1.bf16.msra.mxu0 0
      %7136 = vmatprep.subr.bf16.mxu0 0
      %7137 = vmatpush1.bf16.msra.mxu0 0
      %7138 = vmatprep.subr.bf16.mxu0 0
      %7139 = vmatpush1.bf16.msra.mxu0 0
      %7140 = vmatprep.subr.bf16.mxu0 0
      %7141 = vmatpush1.bf16.msra.mxu0 0
      %7142 = vmatprep.subr.bf16.mxu0 0
      %7143 = vmatpush1.bf16.msra.mxu0 0
      %7144 = vmatprep.subr.bf16.mxu0 0
      %7145 = vmatpush1.bf16.msra.mxu0 0
      %7146 = vmatprep.subr.bf16.mxu0 0
      %7147 = vmatpush1.bf16.msra.mxu0 %v7131
      %7148 = vmatprep.subr.bf16.mxu0 0
      %7149 = vmatpush1.bf16.msra.mxu0 %v7130
      %7150 = vmatprep.subr.bf16.mxu0 0
      %7151 = vmatpush2.bf16.msra.mxu0 0
      %7152 = vmatprep.subr.bf16.mxu0 0
      %7153 = vmatpush2.bf16.msra.mxu0 0
      %7154 = vmatprep.subr.bf16.mxu0 0
      %7155 = vmatpush2.bf16.msra.mxu0 0
      %7156 = vmatprep.subr.bf16.mxu0 0
      %7157 = vmatpush2.bf16.msra.mxu0 0
      %7158 = vmatprep.subr.bf16.mxu0 0
      %7159 = vmatpush2.bf16.msra.mxu0 0
      %7160 = vmatprep.subr.bf16.mxu0 0
      %7161 = vmatpush2.bf16.msra.mxu0 0
      %7162 = vmatprep.subr.bf16.mxu0 0
      %7163 = vmatpush2.bf16.msra.mxu0 0
      %7164 = vmatprep.subr.bf16.mxu0 0
      %7165 = vmatpush2.bf16.msra.mxu0 0
      %7166 = vmatprep.mubr.bf16.mxu0 0
      %7167 = vmatmul.mubr.bf16.gmra.mxu0 %v6820
      %v7168 = vpop.f32.mrf.mxu0
      %v7169 = vadd.f32 0.0, %v7168
      %v7170 = vpop.f32.mrf.mxu0
      %v7171 = vpop.f32.mrf.mxu0
      %v7172 = vadd.f32 0.0, %v7171
      %v7173 = vpop.f32.mrf.mxu0
      %7174 = vdwg.mxu0
      %v7175 = vadd.f32 %v6867, %v7169
      %v7176 = vadd.f32 %v6867, %v7172
      %s7177 = scalar_lea.vmem %s13, 96
      %v7178 = vld [vmem:[%s7177] sm:$0xf]
      %v7179 = vld [vmem:[%s7177 + $0x4] sm:$0xf]
      %v7180 = vld [vmem:[%s7177 + $0x8] sm:$0xf]
      %v7181 = vld [vmem:[%s7177 + $0xc] sm:$0xf]
      %v7186 = vunpack.c.l.b16 %v7178
      %v7187 = vunpack.c.l.b16 %v7179
      %v7188 = vunpack.c.l.b16 %v7180
      %v7189 = vunpack.c.l.b16 %v7181
      %v7190 = vpack.c.b16 %v7187, %v7186
      %v7191 = vpack.c.b16 %v7189, %v7188
      %7194 = vmatprep.subr.bf16.mxu0 0
      %7195 = vmatpush1.bf16.msra.mxu0 0
      %7196 = vmatprep.subr.bf16.mxu0 0
      %7197 = vmatpush1.bf16.msra.mxu0 0
      %7198 = vmatprep.subr.bf16.mxu0 0
      %7199 = vmatpush1.bf16.msra.mxu0 0
      %7200 = vmatprep.subr.bf16.mxu0 0
      %7201 = vmatpush1.bf16.msra.mxu0 0
      %7202 = vmatprep.subr.bf16.mxu0 0
      %7203 = vmatpush1.bf16.msra.mxu0 0
      %7204 = vmatprep.subr.bf16.mxu0 0
      %7205 = vmatpush1.bf16.msra.mxu0 0
      %7206 = vmatprep.subr.bf16.mxu0 0
      %7207 = vmatpush1.bf16.msra.mxu0 %v7191
      %7208 = vmatprep.subr.bf16.mxu0 0
      %7209 = vmatpush1.bf16.msra.mxu0 %v7190
      %7210 = vmatprep.subr.bf16.mxu0 0
      %7211 = vmatpush2.bf16.msra.mxu0 0
      %7212 = vmatprep.subr.bf16.mxu0 0
      %7213 = vmatpush2.bf16.msra.mxu0 0
      %7214 = vmatprep.subr.bf16.mxu0 0
      %7215 = vmatpush2.bf16.msra.mxu0 0
      %7216 = vmatprep.subr.bf16.mxu0 0
      %7217 = vmatpush2.bf16.msra.mxu0 0
      %7218 = vmatprep.subr.bf16.mxu0 0
      %7219 = vmatpush2.bf16.msra.mxu0 0
      %7220 = vmatprep.subr.bf16.mxu0 0
      %7221 = vmatpush2.bf16.msra.mxu0 0
      %7222 = vmatprep.subr.bf16.mxu0 0
      %7223 = vmatpush2.bf16.msra.mxu0 0
      %7224 = vmatprep.subr.bf16.mxu0 0
      %7225 = vmatpush2.bf16.msra.mxu0 0
      %7226 = vmatprep.mubr.bf16.mxu0 0
      %7227 = vmatmul.mubr.bf16.gmra.mxu0 %v6949
      %v7228 = vpop.f32.mrf.mxu0
      %v7229 = vadd.f32 0.0, %v7228
      %v7230 = vpop.f32.mrf.mxu0
      %v7231 = vpop.f32.mrf.mxu0
      %v7232 = vadd.f32 0.0, %v7231
      %v7233 = vpop.f32.mrf.mxu0
      %7234 = vdwg.mxu0
      %v7235 = vadd.f32 %v7175, %v7229
      %v7236 = vadd.f32 %v7176, %v7232
      %s7237 = scalar_lea.vmem %s13, 32
      %v7238 = vld [vmem:[%s7237] sm:$0xf]
      %v7239 = vld [vmem:[%s7237 + $0x4] sm:$0xf]
      %v7240 = vld [vmem:[%s7237 + $0x8] sm:$0xf]
      %v7241 = vld [vmem:[%s7237 + $0xc] sm:$0xf]
      %v7246 = vunpack.c.l.b16 %v7238
      %v7247 = vunpack.c.l.b16 %v7239
      %v7248 = vunpack.c.l.b16 %v7240
      %v7249 = vunpack.c.l.b16 %v7241
      %v7250 = vpack.c.b16 %v7247, %v7246
      %v7251 = vpack.c.b16 %v7249, %v7248
      %7254 = vmatprep.subr.bf16.mxu0 0
      %7255 = vmatpush1.bf16.msra.mxu0 0
      %7256 = vmatprep.subr.bf16.mxu0 0
      %7257 = vmatpush1.bf16.msra.mxu0 0
      %7258 = vmatprep.subr.bf16.mxu0 0
      %7259 = vmatpush1.bf16.msra.mxu0 0
      %7260 = vmatprep.subr.bf16.mxu0 0
      %7261 = vmatpush1.bf16.msra.mxu0 0
      %7262 = vmatprep.subr.bf16.mxu0 0
      %7263 = vmatpush1.bf16.msra.mxu0 0
      %7264 = vmatprep.subr.bf16.mxu0 0
      %7265 = vmatpush1.bf16.msra.mxu0 0
      %7266 = vmatprep.subr.bf16.mxu0 0
      %7267 = vmatpush1.bf16.msra.mxu0 %v7251
      %7268 = vmatprep.subr.bf16.mxu0 0
      %7269 = vmatpush1.bf16.msra.mxu0 %v7250
      %7270 = vmatprep.subr.bf16.mxu0 0
      %7271 = vmatpush2.bf16.msra.mxu0 0
      %7272 = vmatprep.subr.bf16.mxu0 0
      %7273 = vmatpush2.bf16.msra.mxu0 0
      %7274 = vmatprep.subr.bf16.mxu0 0
      %7275 = vmatpush2.bf16.msra.mxu0 0
      %7276 = vmatprep.subr.bf16.mxu0 0
      %7277 = vmatpush2.bf16.msra.mxu0 0
      %7278 = vmatprep.subr.bf16.mxu0 0
      %7279 = vmatpush2.bf16.msra.mxu0 0
      %7280 = vmatprep.subr.bf16.mxu0 0
      %7281 = vmatpush2.bf16.msra.mxu0 0
      %7282 = vmatprep.subr.bf16.mxu0 0
      %7283 = vmatpush2.bf16.msra.mxu0 0
      %7284 = vmatprep.subr.bf16.mxu0 0
      %7285 = vmatpush2.bf16.msra.mxu0 0
      %7286 = vmatprep.mubr.bf16.mxu0 0
      %7287 = vmatmul.mubr.bf16.gmra.mxu0 %v7072
      %v7288 = vpop.f32.mrf.mxu0
      %v7289 = vadd.f32 0.0, %v7288
      %v7290 = vpop.f32.mrf.mxu0
      %v7291 = vpop.f32.mrf.mxu0
      %v7292 = vadd.f32 0.0, %v7291
      %v7293 = vpop.f32.mrf.mxu0
      %7294 = vdwg.mxu0
      %v7295 = vadd.f32 %v7235, %v7289
      %v7296 = vadd.f32 %v7236, %v7292
      %v7297 = vld [vmem:[%s13] sm:$0xf]
      %v7298 = vld [vmem:[%s13 + $0x4] sm:$0xf]
      %v7299 = vld [vmem:[%s13 + $0x8] sm:$0xf]
      %v7300 = vld [vmem:[%s13 + $0xc] sm:$0xf]
      %v7305 = vunpack.c.l.b16 %v7297
      %v7306 = vunpack.c.l.b16 %v7298
      %v7307 = vunpack.c.l.b16 %v7299
      %v7308 = vunpack.c.l.b16 %v7300
      %v7309 = vpack.c.b16 %v7306, %v7305
      %v7310 = vpack.c.b16 %v7308, %v7307
      %v7314 = vsel %vm5043, %v6800, 0
      %7316 = vmatprep.subr.bf16.mxu0 0
      %7317 = vmatpush1.bf16.msra.mxu0 0
      %7318 = vmatprep.subr.bf16.mxu0 0
      %7319 = vmatpush1.bf16.msra.mxu0 0
      %7320 = vmatprep.subr.bf16.mxu0 0
      %7321 = vmatpush1.bf16.msra.mxu0 0
      %7322 = vmatprep.subr.bf16.mxu0 0
      %7323 = vmatpush1.bf16.msra.mxu0 0
      %7324 = vmatprep.subr.bf16.mxu0 0
      %7325 = vmatpush1.bf16.msra.mxu0 0
      %7326 = vmatprep.subr.bf16.mxu0 0
      %7327 = vmatpush1.bf16.msra.mxu0 0
      %7328 = vmatprep.subr.bf16.mxu0 0
      %7329 = vmatpush1.bf16.msra.mxu0 %v7310
      %7330 = vmatprep.subr.bf16.mxu0 0
      %7331 = vmatpush1.bf16.msra.mxu0 %v7309
      %7332 = vmatprep.subr.bf16.mxu0 0
      %7333 = vmatpush2.bf16.msra.mxu0 0
      %7334 = vmatprep.subr.bf16.mxu0 0
      %7335 = vmatpush2.bf16.msra.mxu0 0
      %7336 = vmatprep.subr.bf16.mxu0 0
      %7337 = vmatpush2.bf16.msra.mxu0 0
      %7338 = vmatprep.subr.bf16.mxu0 0
      %7339 = vmatpush2.bf16.msra.mxu0 0
      %7340 = vmatprep.subr.bf16.mxu0 0
      %7341 = vmatpush2.bf16.msra.mxu0 0
      %7342 = vmatprep.subr.bf16.mxu0 0
      %7343 = vmatpush2.bf16.msra.mxu0 0
      %7344 = vmatprep.subr.bf16.mxu0 0
      %7345 = vmatpush2.bf16.msra.mxu0 0
      %7346 = vmatprep.subr.bf16.mxu0 0
      %7347 = vmatpush2.bf16.msra.mxu0 0
      %7348 = vmatprep.mubr.bf16.mxu0 0
      %7349 = vmatmul.mubr.bf16.gmra.mxu0 %v7314
      %v7350 = vpop.f32.mrf.mxu0
      %v7351 = vadd.f32 0.0, %v7350
      %v7352 = vpop.f32.mrf.mxu0
      %v7353 = vpop.f32.mrf.mxu0
      %v7354 = vadd.f32 0.0, %v7353
      %v7355 = vpop.f32.mrf.mxu0
      %7356 = vdwg.mxu0
      %v7357 = vadd.f32 %v7295, %v7351
      %v7358 = vadd.f32 %v7296, %v7354
      %v7359 = vmax.f32 %v6869, 0.0
      %v7360 = vmax.f32 %v6870, 0.0
      %v7361 = vmax.f32 %v6992, 0.0
      %v7362 = vmax.f32 %v6993, 0.0
      %v7363 = vmax.f32 %v7115, 0.0
      %v7364 = vmax.f32 %v7116, 0.0
      %v7365 = vmax.f32 %v7357, 0.0
      %v7366 = vmax.f32 %v7358, 0.0
      %v7367 = vld [vmem:[%s15] sm:$0xf]
      %v7368 = vld [vmem:[%s15 + $0x4] sm:$0xf]
      %v7369 = vld [vmem:[%s15 + $0x8] sm:$0xf]
      %v7370 = vld [vmem:[%s15 + $0xc] sm:$0xf]
      %v7371 = vld [vmem:[%s15 + $0x10] sm:$0xf]
      %v7372 = vld [vmem:[%s15 + $0x14] sm:$0xf]
      %v7373 = vld [vmem:[%s15 + $0x18] sm:$0xf]
      %v7374 = vld [vmem:[%s15 + $0x1c] sm:$0xf]
      %v7375 = vpack.c.bf16 %v7360, %v7359
      %s7376 = scalar_lea.vmem %s15, 32
      %v7377 = vld [vmem:[%s7376] sm:$0xf]
      %v7378 = vld [vmem:[%s7376 + $0x4] sm:$0xf]
      %v7379 = vld [vmem:[%s7376 + $0x8] sm:$0xf]
      %v7380 = vld [vmem:[%s7376 + $0xc] sm:$0xf]
      %v7381 = vld [vmem:[%s7376 + $0x10] sm:$0xf]
      %v7382 = vld [vmem:[%s7376 + $0x14] sm:$0xf]
      %v7383 = vld [vmem:[%s7376 + $0x18] sm:$0xf]
      %v7384 = vld [vmem:[%s7376 + $0x1c] sm:$0xf]
      %v7385 = vpack.c.bf16 %v7362, %v7361
      %v7394 = vunpack.c.l.b16 %v7377
      %v7395 = vunpack.c.l.b16 %v7378
      %v7396 = vunpack.c.l.b16 %v7379
      %v7397 = vunpack.c.l.b16 %v7380
      %v7398 = vunpack.c.l.b16 %v7381
      %v7399 = vunpack.c.l.b16 %v7382
      %v7400 = vunpack.c.l.b16 %v7383
      %v7401 = vunpack.c.l.b16 %v7384
      %v7402 = vpack.c.b16 %v7395, %v7394
      %v7403 = vpack.c.b16 %v7397, %v7396
      %v7404 = vpack.c.b16 %v7399, %v7398
      %v7405 = vpack.c.b16 %v7401, %v7400
      %v7407 = vsel %vm3815, %v7402, 0
      %v7410 = vsel %vm3815, %v7403, 0
      %v7413 = vsel %vm3815, %v7404, 0
      %v7416 = vsel %vm3815, %v7405, 0
      %7418 = vmatprep.subr.bf16.mxu0 0
      %7419 = vmatpush1.bf16.msra.mxu0 0
      %7420 = vmatprep.subr.bf16.mxu0 0
      %7421 = vmatpush1.bf16.msra.mxu0 0
      %7422 = vmatprep.subr.bf16.mxu0 0
      %7423 = vmatpush1.bf16.msra.mxu0 0
      %7424 = vmatprep.subr.bf16.mxu0 0
      %7425 = vmatpush1.bf16.msra.mxu0 0
      %7426 = vmatprep.subr.bf16.mxu0 0
      %7427 = vmatpush1.bf16.msra.mxu0 0
      %7428 = vmatprep.subr.bf16.mxu0 0
      %7429 = vmatpush1.bf16.msra.mxu0 0
      %7430 = vmatprep.subr.bf16.mxu0 0
      %7431 = vmatpush1.bf16.msra.mxu0 0
      %7432 = vmatprep.subr.bf16.mxu0 0
      %7433 = vmatpush1.bf16.msra.mxu0 %v7385
      %7434 = vmatprep.subr.bf16.mxu0 0
      %7435 = vmatpush2.bf16.msra.mxu0 0
      %7436 = vmatprep.subr.bf16.mxu0 0
      %7437 = vmatpush2.bf16.msra.mxu0 0
      %7438 = vmatprep.subr.bf16.mxu0 0
      %7439 = vmatpush2.bf16.msra.mxu0 0
      %7440 = vmatprep.subr.bf16.mxu0 0
      %7441 = vmatpush2.bf16.msra.mxu0 0
      %7442 = vmatprep.subr.bf16.mxu0 0
      %7443 = vmatpush2.bf16.msra.mxu0 0
      %7444 = vmatprep.subr.bf16.mxu0 0
      %7445 = vmatpush2.bf16.msra.mxu0 0
      %7446 = vmatprep.subr.bf16.mxu0 0
      %7447 = vmatpush2.bf16.msra.mxu0 0
      %7448 = vmatprep.subr.bf16.mxu0 0
      %7449 = vmatpush2.bf16.msra.mxu0 0
      %7450 = vmatprep.mubr.bf16.mxu0 0
      %7451 = vmatmul.mubr.bf16.gmra.mxu0 %v7407
      %v7452 = vpop.f32.mrf.mxu0
      %v7453 = vadd.f32 0.0, %v7452
      %v7454 = vpop.f32.mrf.mxu0
      %v7455 = vpop.f32.mrf.mxu0
      %v7456 = vadd.f32 0.0, %v7455
      %v7457 = vpop.f32.mrf.mxu0
      %7458 = vmatprep.mubr.bf16.mxu0 0
      %7459 = vmatmul.mubr.bf16.gmra.mxu0 %v7410
      %v7460 = vpop.f32.mrf.mxu0
      %v7461 = vadd.f32 0.0, %v7460
      %v7462 = vpop.f32.mrf.mxu0
      %v7463 = vpop.f32.mrf.mxu0
      %v7464 = vadd.f32 0.0, %v7463
      %v7465 = vpop.f32.mrf.mxu0
      %7466 = vmatprep.mubr.bf16.mxu0 0
      %7467 = vmatmul.mubr.bf16.gmra.mxu0 %v7413
      %v7468 = vpop.f32.mrf.mxu0
      %v7469 = vadd.f32 0.0, %v7468
      %v7470 = vpop.f32.mrf.mxu0
      %v7471 = vpop.f32.mrf.mxu0
      %v7472 = vadd.f32 0.0, %v7471
      %v7473 = vpop.f32.mrf.mxu0
      %7474 = vmatprep.mubr.bf16.mxu0 0
      %7475 = vmatmul.mubr.bf16.gmra.mxu0 %v7416
      %v7476 = vpop.f32.mrf.mxu0
      %v7477 = vadd.f32 0.0, %v7476
      %v7478 = vpop.f32.mrf.mxu0
      %v7479 = vpop.f32.mrf.mxu0
      %v7480 = vadd.f32 0.0, %v7479
      %v7481 = vpop.f32.mrf.mxu0
      %7482 = vdwg.mxu0
      %v7491 = vunpack.c.l.b16 %v7367
      %v7492 = vunpack.c.l.b16 %v7368
      %v7493 = vunpack.c.l.b16 %v7369
      %v7494 = vunpack.c.l.b16 %v7370
      %v7495 = vunpack.c.l.b16 %v7371
      %v7496 = vunpack.c.l.b16 %v7372
      %v7497 = vunpack.c.l.b16 %v7373
      %v7498 = vunpack.c.l.b16 %v7374
      %v7499 = vpack.c.b16 %v7492, %v7491
      %v7500 = vpack.c.b16 %v7494, %v7493
      %v7501 = vpack.c.b16 %v7496, %v7495
      %v7502 = vpack.c.b16 %v7498, %v7497
      %v7504 = vsel %vm3815, %v7499, 0
      %v7507 = vsel %vm3815, %v7500, 0
      %v7510 = vsel %vm3815, %v7501, 0
      %v7513 = vsel %vm3815, %v7502, 0
      %7515 = vmatprep.subr.bf16.mxu0 0
      %7516 = vmatpush1.bf16.msra.mxu0 0
      %7517 = vmatprep.subr.bf16.mxu0 0
      %7518 = vmatpush1.bf16.msra.mxu0 0
      %7519 = vmatprep.subr.bf16.mxu0 0
      %7520 = vmatpush1.bf16.msra.mxu0 0
      %7521 = vmatprep.subr.bf16.mxu0 0
      %7522 = vmatpush1.bf16.msra.mxu0 0
      %7523 = vmatprep.subr.bf16.mxu0 0
      %7524 = vmatpush1.bf16.msra.mxu0 0
      %7525 = vmatprep.subr.bf16.mxu0 0
      %7526 = vmatpush1.bf16.msra.mxu0 0
      %7527 = vmatprep.subr.bf16.mxu0 0
      %7528 = vmatpush1.bf16.msra.mxu0 0
      %7529 = vmatprep.subr.bf16.mxu0 0
      %7530 = vmatpush1.bf16.msra.mxu0 %v7375
      %7531 = vmatprep.subr.bf16.mxu0 0
      %7532 = vmatpush2.bf16.msra.mxu0 0
      %7533 = vmatprep.subr.bf16.mxu0 0
      %7534 = vmatpush2.bf16.msra.mxu0 0
      %7535 = vmatprep.subr.bf16.mxu0 0
      %7536 = vmatpush2.bf16.msra.mxu0 0
      %7537 = vmatprep.subr.bf16.mxu0 0
      %7538 = vmatpush2.bf16.msra.mxu0 0
      %7539 = vmatprep.subr.bf16.mxu0 0
      %7540 = vmatpush2.bf16.msra.mxu0 0
      %7541 = vmatprep.subr.bf16.mxu0 0
      %7542 = vmatpush2.bf16.msra.mxu0 0
      %7543 = vmatprep.subr.bf16.mxu0 0
      %7544 = vmatpush2.bf16.msra.mxu0 0
      %7545 = vmatprep.subr.bf16.mxu0 0
      %7546 = vmatpush2.bf16.msra.mxu0 0
      %7547 = vmatprep.mubr.bf16.mxu0 0
      %7548 = vmatmul.mubr.bf16.gmra.mxu0 %v7504
      %v7549 = vpop.f32.mrf.mxu0
      %v7550 = vadd.f32 %v7453, %v7549
      %v7551 = vpop.f32.mrf.mxu0
      %v7552 = vpop.f32.mrf.mxu0
      %v7553 = vadd.f32 %v7456, %v7552
      %v7554 = vpop.f32.mrf.mxu0
      %7555 = vmatprep.mubr.bf16.mxu0 0
      %7556 = vmatmul.mubr.bf16.gmra.mxu0 %v7507
      %v7557 = vpop.f32.mrf.mxu0
      %v7558 = vadd.f32 %v7461, %v7557
      %v7559 = vpop.f32.mrf.mxu0
      %v7560 = vpop.f32.mrf.mxu0
      %v7561 = vadd.f32 %v7464, %v7560
      %v7562 = vpop.f32.mrf.mxu0
      %7563 = vmatprep.mubr.bf16.mxu0 0
      %7564 = vmatmul.mubr.bf16.gmra.mxu0 %v7510
      %v7565 = vpop.f32.mrf.mxu0
      %v7566 = vadd.f32 %v7469, %v7565
      %v7567 = vpop.f32.mrf.mxu0
      %v7568 = vpop.f32.mrf.mxu0
      %v7569 = vadd.f32 %v7472, %v7568
      %v7570 = vpop.f32.mrf.mxu0
      %7571 = vmatprep.mubr.bf16.mxu0 0
      %7572 = vmatmul.mubr.bf16.gmra.mxu0 %v7513
      %v7573 = vpop.f32.mrf.mxu0
      %v7574 = vadd.f32 %v7477, %v7573
      %v7575 = vpop.f32.mrf.mxu0
      %v7576 = vpop.f32.mrf.mxu0
      %v7577 = vadd.f32 %v7480, %v7576
      %v7578 = vpop.f32.mrf.mxu0
      %7579 = vdwg.mxu0
      %s7580 = scalar_lea.vmem %s15, 64
      %v7581 = vld [vmem:[%s7580] sm:$0xf]
      %v7582 = vld [vmem:[%s7580 + $0x4] sm:$0xf]
      %v7583 = vld [vmem:[%s7580 + $0x8] sm:$0xf]
      %v7584 = vld [vmem:[%s7580 + $0xc] sm:$0xf]
      %v7585 = vld [vmem:[%s7580 + $0x10] sm:$0xf]
      %v7586 = vld [vmem:[%s7580 + $0x14] sm:$0xf]
      %v7587 = vld [vmem:[%s7580 + $0x18] sm:$0xf]
      %v7588 = vld [vmem:[%s7580 + $0x1c] sm:$0xf]
      %v7589 = vpack.c.bf16 %v7364, %v7363
      %v7598 = vunpack.c.l.b16 %v7581
      %v7599 = vunpack.c.l.b16 %v7582
      %v7600 = vunpack.c.l.b16 %v7583
      %v7601 = vunpack.c.l.b16 %v7584
      %v7602 = vunpack.c.l.b16 %v7585
      %v7603 = vunpack.c.l.b16 %v7586
      %v7604 = vunpack.c.l.b16 %v7587
      %v7605 = vunpack.c.l.b16 %v7588
      %v7606 = vpack.c.b16 %v7599, %v7598
      %v7607 = vpack.c.b16 %v7601, %v7600
      %v7608 = vpack.c.b16 %v7603, %v7602
      %v7609 = vpack.c.b16 %v7605, %v7604
      %v7611 = vsel %vm3815, %v7606, 0
      %v7614 = vsel %vm3815, %v7607, 0
      %v7617 = vsel %vm3815, %v7608, 0
      %v7620 = vsel %vm3815, %v7609, 0
      %7622 = vmatprep.subr.bf16.mxu0 0
      %7623 = vmatpush1.bf16.msra.mxu0 0
      %7624 = vmatprep.subr.bf16.mxu0 0
      %7625 = vmatpush1.bf16.msra.mxu0 0
      %7626 = vmatprep.subr.bf16.mxu0 0
      %7627 = vmatpush1.bf16.msra.mxu0 0
      %7628 = vmatprep.subr.bf16.mxu0 0
      %7629 = vmatpush1.bf16.msra.mxu0 0
      %7630 = vmatprep.subr.bf16.mxu0 0
      %7631 = vmatpush1.bf16.msra.mxu0 0
      %7632 = vmatprep.subr.bf16.mxu0 0
      %7633 = vmatpush1.bf16.msra.mxu0 0
      %7634 = vmatprep.subr.bf16.mxu0 0
      %7635 = vmatpush1.bf16.msra.mxu0 0
      %7636 = vmatprep.subr.bf16.mxu0 0
      %7637 = vmatpush1.bf16.msra.mxu0 %v7589
      %7638 = vmatprep.subr.bf16.mxu0 0
      %7639 = vmatpush2.bf16.msra.mxu0 0
      %7640 = vmatprep.subr.bf16.mxu0 0
      %7641 = vmatpush2.bf16.msra.mxu0 0
      %7642 = vmatprep.subr.bf16.mxu0 0
      %7643 = vmatpush2.bf16.msra.mxu0 0
      %7644 = vmatprep.subr.bf16.mxu0 0
      %7645 = vmatpush2.bf16.msra.mxu0 0
      %7646 = vmatprep.subr.bf16.mxu0 0
      %7647 = vmatpush2.bf16.msra.mxu0 0
      %7648 = vmatprep.subr.bf16.mxu0 0
      %7649 = vmatpush2.bf16.msra.mxu0 0
      %7650 = vmatprep.subr.bf16.mxu0 0
      %7651 = vmatpush2.bf16.msra.mxu0 0
      %7652 = vmatprep.subr.bf16.mxu0 0
      %7653 = vmatpush2.bf16.msra.mxu0 0
      %7654 = vmatprep.mubr.bf16.mxu0 0
      %7655 = vmatmul.mubr.bf16.gmra.mxu0 %v7611
      %v7656 = vpop.f32.mrf.mxu0
      %v7657 = vadd.f32 0.0, %v7656
      %v7658 = vpop.f32.mrf.mxu0
      %v7659 = vpop.f32.mrf.mxu0
      %v7660 = vadd.f32 0.0, %v7659
      %v7661 = vpop.f32.mrf.mxu0
      %7662 = vmatprep.mubr.bf16.mxu0 0
      %7663 = vmatmul.mubr.bf16.gmra.mxu0 %v7614
      %v7664 = vpop.f32.mrf.mxu0
      %v7665 = vadd.f32 0.0, %v7664
      %v7666 = vpop.f32.mrf.mxu0
      %v7667 = vpop.f32.mrf.mxu0
      %v7668 = vadd.f32 0.0, %v7667
      %v7669 = vpop.f32.mrf.mxu0
      %7670 = vmatprep.mubr.bf16.mxu0 0
      %7671 = vmatmul.mubr.bf16.gmra.mxu0 %v7617
      %v7672 = vpop.f32.mrf.mxu0
      %v7673 = vadd.f32 0.0, %v7672
      %v7674 = vpop.f32.mrf.mxu0
      %v7675 = vpop.f32.mrf.mxu0
      %v7676 = vadd.f32 0.0, %v7675
      %v7677 = vpop.f32.mrf.mxu0
      %7678 = vmatprep.mubr.bf16.mxu0 0
      %7679 = vmatmul.mubr.bf16.gmra.mxu0 %v7620
      %v7680 = vpop.f32.mrf.mxu0
      %v7681 = vadd.f32 0.0, %v7680
      %v7682 = vpop.f32.mrf.mxu0
      %v7683 = vpop.f32.mrf.mxu0
      %v7684 = vadd.f32 0.0, %v7683
      %v7685 = vpop.f32.mrf.mxu0
      %7686 = vdwg.mxu0
      %v7687 = vadd.f32 %v7550, %v7657
      %v7688 = vadd.f32 %v7553, %v7660
      %v7689 = vadd.f32 %v7558, %v7665
      %v7690 = vadd.f32 %v7561, %v7668
      %v7691 = vadd.f32 %v7566, %v7673
      %v7692 = vadd.f32 %v7569, %v7676
      %v7693 = vadd.f32 %v7574, %v7681
      %v7694 = vadd.f32 %v7577, %v7684
      %s7695 = scalar_lea.vmem %s15, 96
      %v7696 = vld [vmem:[%s7695] sm:$0xf]
      %v7697 = vld [vmem:[%s7695 + $0x4] sm:$0xf]
      %v7698 = vld [vmem:[%s7695 + $0x8] sm:$0xf]
      %v7699 = vld [vmem:[%s7695 + $0xc] sm:$0xf]
      %v7700 = vld [vmem:[%s7695 + $0x10] sm:$0xf]
      %v7701 = vld [vmem:[%s7695 + $0x14] sm:$0xf]
      %v7702 = vld [vmem:[%s7695 + $0x18] sm:$0xf]
      %v7703 = vld [vmem:[%s7695 + $0x1c] sm:$0xf]
      %v7704 = vpack.c.bf16 %v7366, %v7365
      %v7713 = vunpack.c.l.b16 %v7696
      %v7714 = vunpack.c.l.b16 %v7697
      %v7715 = vunpack.c.l.b16 %v7698
      %v7716 = vunpack.c.l.b16 %v7699
      %v7717 = vunpack.c.l.b16 %v7700
      %v7718 = vunpack.c.l.b16 %v7701
      %v7719 = vunpack.c.l.b16 %v7702
      %v7720 = vunpack.c.l.b16 %v7703
      %v7721 = vpack.c.b16 %v7714, %v7713
      %v7722 = vpack.c.b16 %v7716, %v7715
      %v7723 = vpack.c.b16 %v7718, %v7717
      %v7724 = vpack.c.b16 %v7720, %v7719
      %v7726 = vsel %vm3815, %v7721, 0
      %v7729 = vsel %vm3815, %v7722, 0
      %v7732 = vsel %vm3815, %v7723, 0
      %v7735 = vsel %vm3815, %v7724, 0
      %7737 = vmatprep.subr.bf16.mxu0 0
      %7738 = vmatpush1.bf16.msra.mxu0 0
      %7739 = vmatprep.subr.bf16.mxu0 0
      %7740 = vmatpush1.bf16.msra.mxu0 0
      %7741 = vmatprep.subr.bf16.mxu0 0
      %7742 = vmatpush1.bf16.msra.mxu0 0
      %7743 = vmatprep.subr.bf16.mxu0 0
      %7744 = vmatpush1.bf16.msra.mxu0 0
      %7745 = vmatprep.subr.bf16.mxu0 0
      %7746 = vmatpush1.bf16.msra.mxu0 0
      %7747 = vmatprep.subr.bf16.mxu0 0
      %7748 = vmatpush1.bf16.msra.mxu0 0
      %7749 = vmatprep.subr.bf16.mxu0 0
      %7750 = vmatpush1.bf16.msra.mxu0 0
      %7751 = vmatprep.subr.bf16.mxu0 0
      %7752 = vmatpush1.bf16.msra.mxu0 %v7704
      %7753 = vmatprep.subr.bf16.mxu0 0
      %7754 = vmatpush2.bf16.msra.mxu0 0
      %7755 = vmatprep.subr.bf16.mxu0 0
      %7756 = vmatpush2.bf16.msra.mxu0 0
      %7757 = vmatprep.subr.bf16.mxu0 0
      %7758 = vmatpush2.bf16.msra.mxu0 0
      %7759 = vmatprep.subr.bf16.mxu0 0
      %7760 = vmatpush2.bf16.msra.mxu0 0
      %7761 = vmatprep.subr.bf16.mxu0 0
      %7762 = vmatpush2.bf16.msra.mxu0 0
      %7763 = vmatprep.subr.bf16.mxu0 0
      %7764 = vmatpush2.bf16.msra.mxu0 0
      %7765 = vmatprep.subr.bf16.mxu0 0
      %7766 = vmatpush2.bf16.msra.mxu0 0
      %7767 = vmatprep.subr.bf16.mxu0 0
      %7768 = vmatpush2.bf16.msra.mxu0 0
      %7769 = vmatprep.mubr.bf16.mxu0 0
      %7770 = vmatmul.mubr.bf16.gmra.mxu0 %v7726
      %v7771 = vpop.f32.mrf.mxu0
      %v7772 = vadd.f32 0.0, %v7771
      %v7773 = vpop.f32.mrf.mxu0
      %v7774 = vpop.f32.mrf.mxu0
      %v7775 = vadd.f32 0.0, %v7774
      %v7776 = vpop.f32.mrf.mxu0
      %7777 = vmatprep.mubr.bf16.mxu0 0
      %7778 = vmatmul.mubr.bf16.gmra.mxu0 %v7729
      %v7779 = vpop.f32.mrf.mxu0
      %v7780 = vadd.f32 0.0, %v7779
      %v7781 = vpop.f32.mrf.mxu0
      %v7782 = vpop.f32.mrf.mxu0
      %v7783 = vadd.f32 0.0, %v7782
      %v7784 = vpop.f32.mrf.mxu0
      %7785 = vmatprep.mubr.bf16.mxu0 0
      %7786 = vmatmul.mubr.bf16.gmra.mxu0 %v7732
      %v7787 = vpop.f32.mrf.mxu0
      %v7788 = vadd.f32 0.0, %v7787
      %v7789 = vpop.f32.mrf.mxu0
      %v7790 = vpop.f32.mrf.mxu0
      %v7791 = vadd.f32 0.0, %v7790
      %v7792 = vpop.f32.mrf.mxu0
      %7793 = vmatprep.mubr.bf16.mxu0 0
      %7794 = vmatmul.mubr.bf16.gmra.mxu0 %v7735
      %v7795 = vpop.f32.mrf.mxu0
      %v7796 = vadd.f32 0.0, %v7795
      %v7797 = vpop.f32.mrf.mxu0
      %v7798 = vpop.f32.mrf.mxu0
      %v7799 = vadd.f32 0.0, %v7798
      %v7800 = vpop.f32.mrf.mxu0
      %7801 = vdwg.mxu0
      %v7802 = vadd.f32 %v7687, %v7772
      %v7803 = vadd.f32 %v7688, %v7775
      %v7804 = vadd.f32 %v7689, %v7780
      %v7805 = vadd.f32 %v7690, %v7783
      %v7806 = vadd.f32 %v7691, %v7788
      %v7807 = vadd.f32 %v7692, %v7791
      %v7808 = vadd.f32 %v7693, %v7796
      %v7809 = vadd.f32 %v7694, %v7799
      %v7810 = vpack.c.bf16 %v7803, %v7802
      %v7811 = vpack.c.bf16 %v7805, %v7804
      %v7812 = vpack.c.bf16 %v7807, %v7806
      %v7813 = vpack.c.bf16 %v7809, %v7808
      %7814 = vst.msk [vmem:[#allocation7] sm:$0xff] %vm3815, 0.0
      %7815 = vst.msk [vmem:[#allocation7 + $0x8] sm:$0xff] %vm3815, 0.0
      %7816 = vst.msk [vmem:[#allocation7 + $0x10] sm:$0xff] %vm3815, 0.0
      %7817 = vst.msk [vmem:[#allocation7 + $0x18] sm:$0xff] %vm3815, 0.0
      %7818 = vst.msk [vmem:[#allocation7 + $0x20] sm:$0xff] %vm3815, 0.0
      %7819 = vst.msk [vmem:[#allocation7 + $0x28] sm:$0xff] %vm3815, 0.0
      %7820 = vst.msk [vmem:[#allocation7 + $0x30] sm:$0xff] %vm3815, 0.0
      %7821 = vst.msk [vmem:[#allocation7 + $0x38] sm:$0xff] %vm3815, 0.0
      %7822 = vst.msk [vmem:[#allocation7 + $0x40] sm:$0xff] %vm3815, 0.0
      %7823 = vst.msk [vmem:[#allocation7 + $0x48] sm:$0x1] %vm3827, 0.0
      %v7824 = vunpack.c.l.bf16 %v7810
      %v7825 = vunpack.c.h.bf16 %v7810
      %v7826 = vunpack.c.l.bf16 %v7811
      %v7827 = vunpack.c.h.bf16 %v7811
      %v7828 = vunpack.c.l.bf16 %v7812
      %v7829 = vunpack.c.h.bf16 %v7812
      %v7830 = vunpack.c.l.bf16 %v7813
      %v7831 = vunpack.c.h.bf16 %v7813
      %7832 = vst.msk [vmem:[#allocation7] sm:$0xff] %vm3815, %v7824
      %7833 = vst.msk [vmem:[#allocation7 + $0x8] sm:$0xff] %vm3815, %v7825
      %7834 = vst.msk [vmem:[#allocation7 + $0x10] sm:$0xff] %vm3815, %v7826
      %7835 = vst.msk [vmem:[#allocation7 + $0x18] sm:$0xff] %vm3815, %v7827
      %7836 = vst.msk [vmem:[#allocation7 + $0x20] sm:$0xff] %vm3815, %v7828
      %7837 = vst.msk [vmem:[#allocation7 + $0x28] sm:$0xff] %vm3815, %v7829
      %7838 = vst.msk [vmem:[#allocation7 + $0x30] sm:$0xff] %vm3815, %v7830
      %7839 = vst.msk [vmem:[#allocation7 + $0x38] sm:$0xff] %vm3815, %v7831
      %v7840 = vpack.c.bf16 %v3878, %v3877
      %v7841 = vpack.c.bf16 %v3880, %v3879
      %v7842 = vpack.c.bf16 %v3882, %v3881
      %v7843 = vpack.c.bf16 %v3884, %v3883
      %v7844 = vld [vmem:[#allocation7 + $0x1] sm:$0xff]
      %v7845 = vld [vmem:[#allocation7 + $0x9] sm:$0xff]
      %v7846 = vld [vmem:[#allocation7 + $0x11] sm:$0xff]
      %v7847 = vld [vmem:[#allocation7 + $0x19] sm:$0xff]
      %v7848 = vld [vmem:[#allocation7 + $0x21] sm:$0xff]
      %v7849 = vld [vmem:[#allocation7 + $0x29] sm:$0xff]
      %v7850 = vld [vmem:[#allocation7 + $0x31] sm:$0xff]
      %v7851 = vld [vmem:[#allocation7 + $0x39] sm:$0xff]
      %v7852 = vpack.c.bf16 %v7845, %v7844
      %v7853 = vpack.c.bf16 %v7847, %v7846
      %v7854 = vpack.c.bf16 %v7849, %v7848
      %v7855 = vpack.c.bf16 %v7851, %v7850
      %v7856 = vmul.bf16 %v7852, %v7840
      %v7857 = vmul.bf16 %v7853, %v7841
      %v7858 = vmul.bf16 %v7854, %v7842
      %v7859 = vmul.bf16 %v7855, %v7843
      %v7860 = vld [vmem:[#allocation7 + $0x8] sm:$0xff]
      %v7861 = vld [vmem:[#allocation7 + $0x10] sm:$0xff]
      %v7862 = vld [vmem:[#allocation7 + $0x18] sm:$0xff]
      %v7863 = vld [vmem:[#allocation7 + $0x20] sm:$0xff]
      %v7864 = vld [vmem:[#allocation7 + $0x28] sm:$0xff]
      %v7865 = vld [vmem:[#allocation7 + $0x30] sm:$0xff]
      %v7866 = vld [vmem:[#allocation7 + $0x38] sm:$0xff]
      %v7867 = vld [vmem:[#allocation7 + $0x40] sm:$0xff]
      %v7868 = vpack.c.bf16 %v7861, %v7860
      %v7869 = vpack.c.bf16 %v7863, %v7862
      %v7870 = vpack.c.bf16 %v7865, %v7864
      %v7871 = vpack.c.bf16 %v7867, %v7866
      %v7872 = vld [vmem:[#allocation7 + $0x41] sm:$0xff]
      %v7873 = vpack.c.bf16 %v7846, %v7845
      %v7874 = vpack.c.bf16 %v7848, %v7847
      %v7875 = vpack.c.bf16 %v7850, %v7849
      %v7876 = vpack.c.bf16 %v7872, %v7851
      %v7877 = vmul.bf16 %v7873, %v7840
      %v7878 = vmul.bf16 %v7874, %v7841
      %v7879 = vmul.bf16 %v7875, %v7842
      %v7880 = vmul.bf16 %v7876, %v7843
      %v7881 = vld [vmem:[%s17] sm:$0x1]
      %s7882 = scalar_lea.vmem %s16, 32
      %v7883 = vld [vmem:[%s7882] sm:$0xf]
      %v7884 = vld [vmem:[%s7882 + $0x4] sm:$0xf]
      %v7887 = vunpack.c.l.b16 %v7883
      %v7888 = vunpack.c.l.b16 %v7884
      %v7889 = vpack.c.b16 %v7888, %v7887
      %v7892 = vsel %vm3815, %v7810, 0
      %v7895 = vsel %vm3815, %v7811, 0
      %v7898 = vsel %vm3815, %v7812, 0
      %v7901 = vsel %vm3815, %v7813, 0
      %7903 = vmatprep.subr.bf16.mxu0 0
      %7904 = vmatpush1.bf16.msra.mxu0 0
      %7905 = vmatprep.subr.bf16.mxu0 0
      %7906 = vmatpush1.bf16.msra.mxu0 0
      %7907 = vmatprep.subr.bf16.mxu0 0
      %7908 = vmatpush1.bf16.msra.mxu0 0
      %7909 = vmatprep.subr.bf16.mxu0 0
      %7910 = vmatpush1.bf16.msra.mxu0 0
      %7911 = vmatprep.subr.bf16.mxu0 0
      %7912 = vmatpush1.bf16.msra.mxu0 0
      %7913 = vmatprep.subr.bf16.mxu0 0
      %7914 = vmatpush1.bf16.msra.mxu0 0
      %7915 = vmatprep.subr.bf16.mxu0 0
      %7916 = vmatpush1.bf16.msra.mxu0 0
      %7917 = vmatprep.subr.bf16.mxu0 0
      %7918 = vmatpush1.bf16.msra.mxu0 %v7889
      %7919 = vmatprep.subr.bf16.mxu0 0
      %7920 = vmatpush2.bf16.msra.mxu0 0
      %7921 = vmatprep.subr.bf16.mxu0 0
      %7922 = vmatpush2.bf16.msra.mxu0 0
      %7923 = vmatprep.subr.bf16.mxu0 0
      %7924 = vmatpush2.bf16.msra.mxu0 0
      %7925 = vmatprep.subr.bf16.mxu0 0
      %7926 = vmatpush2.bf16.msra.mxu0 0
      %7927 = vmatprep.subr.bf16.mxu0 0
      %7928 = vmatpush2.bf16.msra.mxu0 0
      %7929 = vmatprep.subr.bf16.mxu0 0
      %7930 = vmatpush2.bf16.msra.mxu0 0
      %7931 = vmatprep.subr.bf16.mxu0 0
      %7932 = vmatpush2.bf16.msra.mxu0 0
      %7933 = vmatprep.subr.bf16.mxu0 0
      %7934 = vmatpush2.bf16.msra.mxu0 0
      %7935 = vmatprep.mubr.bf16.mxu0 0
      %7936 = vmatmul.mubr.bf16.gmra.mxu0 %v7892
      %v7937 = vpop.f32.mrf.mxu0
      %v7938 = vadd.f32 0.0, %v7937
      %v7939 = vpop.f32.mrf.mxu0
      %v7940 = vpop.f32.mrf.mxu0
      %v7941 = vadd.f32 0.0, %v7940
      %v7942 = vpop.f32.mrf.mxu0
      %7943 = vmatprep.mubr.bf16.mxu0 0
      %7944 = vmatmul.mubr.bf16.gmra.mxu0 %v7895
      %v7945 = vpop.f32.mrf.mxu0
      %v7946 = vadd.f32 0.0, %v7945
      %v7947 = vpop.f32.mrf.mxu0
      %v7948 = vpop.f32.mrf.mxu0
      %v7949 = vadd.f32 0.0, %v7948
      %v7950 = vpop.f32.mrf.mxu0
      %7951 = vmatprep.mubr.bf16.mxu0 0
      %7952 = vmatmul.mubr.bf16.gmra.mxu0 %v7898
      %v7953 = vpop.f32.mrf.mxu0
      %v7954 = vadd.f32 0.0, %v7953
      %v7955 = vpop.f32.mrf.mxu0
      %v7956 = vpop.f32.mrf.mxu0
      %v7957 = vadd.f32 0.0, %v7956
      %v7958 = vpop.f32.mrf.mxu0
      %7959 = vmatprep.mubr.bf16.mxu0 0
      %7960 = vmatmul.mubr.bf16.gmra.mxu0 %v7901
      %v7961 = vpop.f32.mrf.mxu0
      %v7962 = vadd.f32 0.0, %v7961
      %v7963 = vpop.f32.mrf.mxu0
      %v7964 = vpop.f32.mrf.mxu0
      %v7965 = vadd.f32 0.0, %v7964
      %v7966 = vpop.f32.mrf.mxu0
      %7967 = vdwg.mxu0
      %v7969 = vlaneseq
      %v7970 = vshrl.u32 %v7969, 7
      %v7971 = vsub.s32 0, %v7970
      %v7972 = vrot.slane %v7881, %v7971
      %v7974 = vadd.f32 %v7972, %v7938
      %v7975 = vadd.f32 %v7972, %v7941
      %v7976 = vadd.f32 %v7972, %v7946
      %v7977 = vadd.f32 %v7972, %v7949
      %v7978 = vadd.f32 %v7972, %v7954
      %v7979 = vadd.f32 %v7972, %v7957
      %v7980 = vadd.f32 %v7972, %v7962
      %v7981 = vadd.f32 %v7972, %v7965
      %s7982 = scalar_lea.vmem %s16, 40
      %v7983 = vld [vmem:[%s7982] sm:$0xf]
      %v7984 = vld [vmem:[%s7982 + $0x4] sm:$0xf]
      %v7987 = vunpack.c.l.b16 %v7983
      %v7988 = vunpack.c.l.b16 %v7984
      %v7989 = vpack.c.b16 %v7988, %v7987
      %7991 = vmatprep.subr.bf16.mxu0 0
      %7992 = vmatpush1.bf16.msra.mxu0 0
      %7993 = vmatprep.subr.bf16.mxu0 0
      %7994 = vmatpush1.bf16.msra.mxu0 0
      %7995 = vmatprep.subr.bf16.mxu0 0
      %7996 = vmatpush1.bf16.msra.mxu0 0
      %7997 = vmatprep.subr.bf16.mxu0 0
      %7998 = vmatpush1.bf16.msra.mxu0 0
      %7999 = vmatprep.subr.bf16.mxu0 0
      %8000 = vmatpush1.bf16.msra.mxu0 0
      %8001 = vmatprep.subr.bf16.mxu0 0
      %8002 = vmatpush1.bf16.msra.mxu0 0
      %8003 = vmatprep.subr.bf16.mxu0 0
      %8004 = vmatpush1.bf16.msra.mxu0 0
      %8005 = vmatprep.subr.bf16.mxu0 0
      %8006 = vmatpush1.bf16.msra.mxu0 %v7989
      %8007 = vmatprep.subr.bf16.mxu0 0
      %8008 = vmatpush2.bf16.msra.mxu0 0
      %8009 = vmatprep.subr.bf16.mxu0 0
      %8010 = vmatpush2.bf16.msra.mxu0 0
      %8011 = vmatprep.subr.bf16.mxu0 0
      %8012 = vmatpush2.bf16.msra.mxu0 0
      %8013 = vmatprep.subr.bf16.mxu0 0
      %8014 = vmatpush2.bf16.msra.mxu0 0
      %8015 = vmatprep.subr.bf16.mxu0 0
      %8016 = vmatpush2.bf16.msra.mxu0 0
      %8017 = vmatprep.subr.bf16.mxu0 0
      %8018 = vmatpush2.bf16.msra.mxu0 0
      %8019 = vmatprep.subr.bf16.mxu0 0
      %8020 = vmatpush2.bf16.msra.mxu0 0
      %8021 = vmatprep.subr.bf16.mxu0 0
      %8022 = vmatpush2.bf16.msra.mxu0 0
      %8023 = vmatprep.mubr.bf16.mxu0 0
      %8024 = vmatmul.mubr.bf16.gmra.mxu0 %v7892
      %v8025 = vpop.f32.mrf.mxu0
      %v8026 = vadd.f32 0.0, %v8025
      %v8027 = vpop.f32.mrf.mxu0
      %v8028 = vpop.f32.mrf.mxu0
      %v8029 = vadd.f32 0.0, %v8028
      %v8030 = vpop.f32.mrf.mxu0
      %8031 = vmatprep.mubr.bf16.mxu0 0
      %8032 = vmatmul.mubr.bf16.gmra.mxu0 %v7895
      %v8033 = vpop.f32.mrf.mxu0
      %v8034 = vadd.f32 0.0, %v8033
      %v8035 = vpop.f32.mrf.mxu0
      %v8036 = vpop.f32.mrf.mxu0
      %v8037 = vadd.f32 0.0, %v8036
      %v8038 = vpop.f32.mrf.mxu0
      %8039 = vmatprep.mubr.bf16.mxu0 0
      %8040 = vmatmul.mubr.bf16.gmra.mxu0 %v7898
      %v8041 = vpop.f32.mrf.mxu0
      %v8042 = vadd.f32 0.0, %v8041
      %v8043 = vpop.f32.mrf.mxu0
      %v8044 = vpop.f32.mrf.mxu0
      %v8045 = vadd.f32 0.0, %v8044
      %v8046 = vpop.f32.mrf.mxu0
      %8047 = vmatprep.mubr.bf16.mxu0 0
      %8048 = vmatmul.mubr.bf16.gmra.mxu0 %v7901
      %v8049 = vpop.f32.mrf.mxu0
      %v8050 = vadd.f32 0.0, %v8049
      %v8051 = vpop.f32.mrf.mxu0
      %v8052 = vpop.f32.mrf.mxu0
      %v8053 = vadd.f32 0.0, %v8052
      %v8054 = vpop.f32.mrf.mxu0
      %8055 = vdwg.mxu0
      %v8056 = vadd.f32 %v7972, %v8026
      %v8057 = vadd.f32 %v7972, %v8029
      %v8058 = vadd.f32 %v7972, %v8034
      %v8059 = vadd.f32 %v7972, %v8037
      %v8060 = vadd.f32 %v7972, %v8042
      %v8061 = vadd.f32 %v7972, %v8045
      %v8062 = vadd.f32 %v7972, %v8050
      %v8063 = vadd.f32 %v7972, %v8053
      %s8064 = scalar_lea.vmem %s16, 24
      %v8065 = vld [vmem:[%s8064] sm:$0xf]
      %v8066 = vld [vmem:[%s8064 + $0x4] sm:$0xf]
      %v8069 = vunpack.c.l.b16 %v8065
      %v8070 = vunpack.c.l.b16 %v8066
      %v8071 = vpack.c.b16 %v8070, %v8069
      %v8074 = vsel %vm3815, %v7856, 0
      %v8077 = vsel %vm3815, %v7857, 0
      %v8080 = vsel %vm3815, %v7858, 0
      %v8083 = vsel %vm3815, %v7859, 0
      %8085 = vmatprep.subr.bf16.mxu0 0
      %8086 = vmatpush1.bf16.msra.mxu0 0
      %8087 = vmatprep.subr.bf16.mxu0 0
      %8088 = vmatpush1.bf16.msra.mxu0 0
      %8089 = vmatprep.subr.bf16.mxu0 0
      %8090 = vmatpush1.bf16.msra.mxu0 0
      %8091 = vmatprep.subr.bf16.mxu0 0
      %8092 = vmatpush1.bf16.msra.mxu0 0
      %8093 = vmatprep.subr.bf16.mxu0 0
      %8094 = vmatpush1.bf16.msra.mxu0 0
      %8095 = vmatprep.subr.bf16.mxu0 0
      %8096 = vmatpush1.bf16.msra.mxu0 0
      %8097 = vmatprep.subr.bf16.mxu0 0
      %8098 = vmatpush1.bf16.msra.mxu0 0
      %8099 = vmatprep.subr.bf16.mxu0 0
      %8100 = vmatpush1.bf16.msra.mxu0 %v8071
      %8101 = vmatprep.subr.bf16.mxu0 0
      %8102 = vmatpush2.bf16.msra.mxu0 0
      %8103 = vmatprep.subr.bf16.mxu0 0
      %8104 = vmatpush2.bf16.msra.mxu0 0
      %8105 = vmatprep.subr.bf16.mxu0 0
      %8106 = vmatpush2.bf16.msra.mxu0 0
      %8107 = vmatprep.subr.bf16.mxu0 0
      %8108 = vmatpush2.bf16.msra.mxu0 0
      %8109 = vmatprep.subr.bf16.mxu0 0
      %8110 = vmatpush2.bf16.msra.mxu0 0
      %8111 = vmatprep.subr.bf16.mxu0 0
      %8112 = vmatpush2.bf16.msra.mxu0 0
      %8113 = vmatprep.subr.bf16.mxu0 0
      %8114 = vmatpush2.bf16.msra.mxu0 0
      %8115 = vmatprep.subr.bf16.mxu0 0
      %8116 = vmatpush2.bf16.msra.mxu0 0
      %8117 = vmatprep.mubr.bf16.mxu0 0
      %8118 = vmatmul.mubr.bf16.gmra.mxu0 %v8074
      %v8119 = vpop.f32.mrf.mxu0
      %v8120 = vadd.f32 0.0, %v8119
      %v8121 = vpop.f32.mrf.mxu0
      %v8122 = vpop.f32.mrf.mxu0
      %v8123 = vadd.f32 0.0, %v8122
      %v8124 = vpop.f32.mrf.mxu0
      %8125 = vmatprep.mubr.bf16.mxu0 0
      %8126 = vmatmul.mubr.bf16.gmra.mxu0 %v8077
      %v8127 = vpop.f32.mrf.mxu0
      %v8128 = vadd.f32 0.0, %v8127
      %v8129 = vpop.f32.mrf.mxu0
      %v8130 = vpop.f32.mrf.mxu0
      %v8131 = vadd.f32 0.0, %v8130
      %v8132 = vpop.f32.mrf.mxu0
      %8133 = vmatprep.mubr.bf16.mxu0 0
      %8134 = vmatmul.mubr.bf16.gmra.mxu0 %v8080
      %v8135 = vpop.f32.mrf.mxu0
      %v8136 = vadd.f32 0.0, %v8135
      %v8137 = vpop.f32.mrf.mxu0
      %v8138 = vpop.f32.mrf.mxu0
      %v8139 = vadd.f32 0.0, %v8138
      %v8140 = vpop.f32.mrf.mxu0
      %8141 = vmatprep.mubr.bf16.mxu0 0
      %8142 = vmatmul.mubr.bf16.gmra.mxu0 %v8083
      %v8143 = vpop.f32.mrf.mxu0
      %v8144 = vadd.f32 0.0, %v8143
      %v8145 = vpop.f32.mrf.mxu0
      %v8146 = vpop.f32.mrf.mxu0
      %v8147 = vadd.f32 0.0, %v8146
      %v8148 = vpop.f32.mrf.mxu0
      %8149 = vdwg.mxu0
      %v8150 = vadd.f32 %v8056, %v8120
      %v8151 = vadd.f32 %v8057, %v8123
      %v8152 = vadd.f32 %v8058, %v8128
      %v8153 = vadd.f32 %v8059, %v8131
      %v8154 = vadd.f32 %v8060, %v8136
      %v8155 = vadd.f32 %v8061, %v8139
      %v8156 = vadd.f32 %v8062, %v8144
      %v8157 = vadd.f32 %v8063, %v8147
      %s8158 = scalar_lea.vmem %s16, 56
      %v8159 = vld [vmem:[%s8158] sm:$0xf]
      %v8160 = vld [vmem:[%s8158 + $0x4] sm:$0xf]
      %v8163 = vunpack.c.l.b16 %v8159
      %v8164 = vunpack.c.l.b16 %v8160
      %v8165 = vpack.c.b16 %v8164, %v8163
      %8167 = vmatprep.subr.bf16.mxu0 0
      %8168 = vmatpush1.bf16.msra.mxu0 0
      %8169 = vmatprep.subr.bf16.mxu0 0
      %8170 = vmatpush1.bf16.msra.mxu0 0
      %8171 = vmatprep.subr.bf16.mxu0 0
      %8172 = vmatpush1.bf16.msra.mxu0 0
      %8173 = vmatprep.subr.bf16.mxu0 0
      %8174 = vmatpush1.bf16.msra.mxu0 0
      %8175 = vmatprep.subr.bf16.mxu0 0
      %8176 = vmatpush1.bf16.msra.mxu0 0
      %8177 = vmatprep.subr.bf16.mxu0 0
      %8178 = vmatpush1.bf16.msra.mxu0 0
      %8179 = vmatprep.subr.bf16.mxu0 0
      %8180 = vmatpush1.bf16.msra.mxu0 0
      %8181 = vmatprep.subr.bf16.mxu0 0
      %8182 = vmatpush1.bf16.msra.mxu0 %v8165
      %8183 = vmatprep.subr.bf16.mxu0 0
      %8184 = vmatpush2.bf16.msra.mxu0 0
      %8185 = vmatprep.subr.bf16.mxu0 0
      %8186 = vmatpush2.bf16.msra.mxu0 0
      %8187 = vmatprep.subr.bf16.mxu0 0
      %8188 = vmatpush2.bf16.msra.mxu0 0
      %8189 = vmatprep.subr.bf16.mxu0 0
      %8190 = vmatpush2.bf16.msra.mxu0 0
      %8191 = vmatprep.subr.bf16.mxu0 0
      %8192 = vmatpush2.bf16.msra.mxu0 0
      %8193 = vmatprep.subr.bf16.mxu0 0
      %8194 = vmatpush2.bf16.msra.mxu0 0
      %8195 = vmatprep.subr.bf16.mxu0 0
      %8196 = vmatpush2.bf16.msra.mxu0 0
      %8197 = vmatprep.subr.bf16.mxu0 0
      %8198 = vmatpush2.bf16.msra.mxu0 0
      %8199 = vmatprep.mubr.bf16.mxu0 0
      %8200 = vmatmul.mubr.bf16.gmra.mxu0 %v7892
      %v8201 = vpop.f32.mrf.mxu0
      %v8202 = vadd.f32 0.0, %v8201
      %v8203 = vpop.f32.mrf.mxu0
      %v8204 = vpop.f32.mrf.mxu0
      %v8205 = vadd.f32 0.0, %v8204
      %v8206 = vpop.f32.mrf.mxu0
      %8207 = vmatprep.mubr.bf16.mxu0 0
      %8208 = vmatmul.mubr.bf16.gmra.mxu0 %v7895
      %v8209 = vpop.f32.mrf.mxu0
      %v8210 = vadd.f32 0.0, %v8209
      %v8211 = vpop.f32.mrf.mxu0
      %v8212 = vpop.f32.mrf.mxu0
      %v8213 = vadd.f32 0.0, %v8212
      %v8214 = vpop.f32.mrf.mxu0
      %8215 = vmatprep.mubr.bf16.mxu0 0
      %8216 = vmatmul.mubr.bf16.gmra.mxu0 %v7898
      %v8217 = vpop.f32.mrf.mxu0
      %v8218 = vadd.f32 0.0, %v8217
      %v8219 = vpop.f32.mrf.mxu0
      %v8220 = vpop.f32.mrf.mxu0
      %v8221 = vadd.f32 0.0, %v8220
      %v8222 = vpop.f32.mrf.mxu0
      %8223 = vmatprep.mubr.bf16.mxu0 0
      %8224 = vmatmul.mubr.bf16.gmra.mxu0 %v7901
      %v8225 = vpop.f32.mrf.mxu0
      %v8226 = vadd.f32 0.0, %v8225
      %v8227 = vpop.f32.mrf.mxu0
      %v8228 = vpop.f32.mrf.mxu0
      %v8229 = vadd.f32 0.0, %v8228
      %v8230 = vpop.f32.mrf.mxu0
      %8231 = vdwg.mxu0
      %v8232 = vadd.f32 %v7972, %v8202
      %v8233 = vadd.f32 %v7972, %v8205
      %v8234 = vadd.f32 %v7972, %v8210
      %v8235 = vadd.f32 %v7972, %v8213
      %v8236 = vadd.f32 %v7972, %v8218
      %v8237 = vadd.f32 %v7972, %v8221
      %v8238 = vadd.f32 %v7972, %v8226
      %v8239 = vadd.f32 %v7972, %v8229
      %s8240 = scalar_lea.vmem %s16, 8
      %v8241 = vld [vmem:[%s8240] sm:$0xf]
      %v8242 = vld [vmem:[%s8240 + $0x4] sm:$0xf]
      %v8245 = vunpack.c.l.b16 %v8241
      %v8246 = vunpack.c.l.b16 %v8242
      %v8247 = vpack.c.b16 %v8246, %v8245
      %v8250 = vsel %vm3815, %v7868, 0
      %v8253 = vsel %vm3815, %v7869, 0
      %v8256 = vsel %vm3815, %v7870, 0
      %v8259 = vsel %vm3815, %v7871, 0
      %8261 = vmatprep.subr.bf16.mxu0 0
      %8262 = vmatpush1.bf16.msra.mxu0 0
      %8263 = vmatprep.subr.bf16.mxu0 0
      %8264 = vmatpush1.bf16.msra.mxu0 0
      %8265 = vmatprep.subr.bf16.mxu0 0
      %8266 = vmatpush1.bf16.msra.mxu0 0
      %8267 = vmatprep.subr.bf16.mxu0 0
      %8268 = vmatpush1.bf16.msra.mxu0 0
      %8269 = vmatprep.subr.bf16.mxu0 0
      %8270 = vmatpush1.bf16.msra.mxu0 0
      %8271 = vmatprep.subr.bf16.mxu0 0
      %8272 = vmatpush1.bf16.msra.mxu0 0
      %8273 = vmatprep.subr.bf16.mxu0 0
      %8274 = vmatpush1.bf16.msra.mxu0 0
      %8275 = vmatprep.subr.bf16.mxu0 0
      %8276 = vmatpush1.bf16.msra.mxu0 %v8247
      %8277 = vmatprep.subr.bf16.mxu0 0
      %8278 = vmatpush2.bf16.msra.mxu0 0
      %8279 = vmatprep.subr.bf16.mxu0 0
      %8280 = vmatpush2.bf16.msra.mxu0 0
      %8281 = vmatprep.subr.bf16.mxu0 0
      %8282 = vmatpush2.bf16.msra.mxu0 0
      %8283 = vmatprep.subr.bf16.mxu0 0
      %8284 = vmatpush2.bf16.msra.mxu0 0
      %8285 = vmatprep.subr.bf16.mxu0 0
      %8286 = vmatpush2.bf16.msra.mxu0 0
      %8287 = vmatprep.subr.bf16.mxu0 0
      %8288 = vmatpush2.bf16.msra.mxu0 0
      %8289 = vmatprep.subr.bf16.mxu0 0
      %8290 = vmatpush2.bf16.msra.mxu0 0
      %8291 = vmatprep.subr.bf16.mxu0 0
      %8292 = vmatpush2.bf16.msra.mxu0 0
      %8293 = vmatprep.mubr.bf16.mxu0 0
      %8294 = vmatmul.mubr.bf16.gmra.mxu0 %v8250
      %v8295 = vpop.f32.mrf.mxu0
      %v8296 = vadd.f32 0.0, %v8295
      %v8297 = vpop.f32.mrf.mxu0
      %v8298 = vpop.f32.mrf.mxu0
      %v8299 = vadd.f32 0.0, %v8298
      %v8300 = vpop.f32.mrf.mxu0
      %8301 = vmatprep.mubr.bf16.mxu0 0
      %8302 = vmatmul.mubr.bf16.gmra.mxu0 %v8253
      %v8303 = vpop.f32.mrf.mxu0
      %v8304 = vadd.f32 0.0, %v8303
      %v8305 = vpop.f32.mrf.mxu0
      %v8306 = vpop.f32.mrf.mxu0
      %v8307 = vadd.f32 0.0, %v8306
      %v8308 = vpop.f32.mrf.mxu0
      %8309 = vmatprep.mubr.bf16.mxu0 0
      %8310 = vmatmul.mubr.bf16.gmra.mxu0 %v8256
      %v8311 = vpop.f32.mrf.mxu0
      %v8312 = vadd.f32 0.0, %v8311
      %v8313 = vpop.f32.mrf.mxu0
      %v8314 = vpop.f32.mrf.mxu0
      %v8315 = vadd.f32 0.0, %v8314
      %v8316 = vpop.f32.mrf.mxu0
      %8317 = vmatprep.mubr.bf16.mxu0 0
      %8318 = vmatmul.mubr.bf16.gmra.mxu0 %v8259
      %v8319 = vpop.f32.mrf.mxu0
      %v8320 = vadd.f32 0.0, %v8319
      %v8321 = vpop.f32.mrf.mxu0
      %v8322 = vpop.f32.mrf.mxu0
      %v8323 = vadd.f32 0.0, %v8322
      %v8324 = vpop.f32.mrf.mxu0
      %8325 = vdwg.mxu0
      %v8326 = vadd.f32 %v8232, %v8296
      %v8327 = vadd.f32 %v8233, %v8299
      %v8328 = vadd.f32 %v8234, %v8304
      %v8329 = vadd.f32 %v8235, %v8307
      %v8330 = vadd.f32 %v8236, %v8312
      %v8331 = vadd.f32 %v8237, %v8315
      %v8332 = vadd.f32 %v8238, %v8320
      %v8333 = vadd.f32 %v8239, %v8323
      %s8334 = scalar_lea.vmem %s16, 64
      %v8335 = vld [vmem:[%s8334] sm:$0xf]
      %v8336 = vld [vmem:[%s8334 + $0x4] sm:$0xf]
      %v8339 = vunpack.c.l.b16 %v8335
      %v8340 = vunpack.c.l.b16 %v8336
      %v8341 = vpack.c.b16 %v8340, %v8339
      %8343 = vmatprep.subr.bf16.mxu0 0
      %8344 = vmatpush1.bf16.msra.mxu0 0
      %8345 = vmatprep.subr.bf16.mxu0 0
      %8346 = vmatpush1.bf16.msra.mxu0 0
      %8347 = vmatprep.subr.bf16.mxu0 0
      %8348 = vmatpush1.bf16.msra.mxu0 0
      %8349 = vmatprep.subr.bf16.mxu0 0
      %8350 = vmatpush1.bf16.msra.mxu0 0
      %8351 = vmatprep.subr.bf16.mxu0 0
      %8352 = vmatpush1.bf16.msra.mxu0 0
      %8353 = vmatprep.subr.bf16.mxu0 0
      %8354 = vmatpush1.bf16.msra.mxu0 0
      %8355 = vmatprep.subr.bf16.mxu0 0
      %8356 = vmatpush1.bf16.msra.mxu0 0
      %8357 = vmatprep.subr.bf16.mxu0 0
      %8358 = vmatpush1.bf16.msra.mxu0 %v8341
      %8359 = vmatprep.subr.bf16.mxu0 0
      %8360 = vmatpush2.bf16.msra.mxu0 0
      %8361 = vmatprep.subr.bf16.mxu0 0
      %8362 = vmatpush2.bf16.msra.mxu0 0
      %8363 = vmatprep.subr.bf16.mxu0 0
      %8364 = vmatpush2.bf16.msra.mxu0 0
      %8365 = vmatprep.subr.bf16.mxu0 0
      %8366 = vmatpush2.bf16.msra.mxu0 0
      %8367 = vmatprep.subr.bf16.mxu0 0
      %8368 = vmatpush2.bf16.msra.mxu0 0
      %8369 = vmatprep.subr.bf16.mxu0 0
      %8370 = vmatpush2.bf16.msra.mxu0 0
      %8371 = vmatprep.subr.bf16.mxu0 0
      %8372 = vmatpush2.bf16.msra.mxu0 0
      %8373 = vmatprep.subr.bf16.mxu0 0
      %8374 = vmatpush2.bf16.msra.mxu0 0
      %8375 = vmatprep.mubr.bf16.mxu0 0
      %8376 = vmatmul.mubr.bf16.gmra.mxu0 %v7892
      %v8377 = vpop.f32.mrf.mxu0
      %v8378 = vadd.f32 0.0, %v8377
      %v8379 = vpop.f32.mrf.mxu0
      %v8380 = vpop.f32.mrf.mxu0
      %v8381 = vadd.f32 0.0, %v8380
      %v8382 = vpop.f32.mrf.mxu0
      %8383 = vmatprep.mubr.bf16.mxu0 0
      %8384 = vmatmul.mubr.bf16.gmra.mxu0 %v7895
      %v8385 = vpop.f32.mrf.mxu0
      %v8386 = vadd.f32 0.0, %v8385
      %v8387 = vpop.f32.mrf.mxu0
      %v8388 = vpop.f32.mrf.mxu0
      %v8389 = vadd.f32 0.0, %v8388
      %v8390 = vpop.f32.mrf.mxu0
      %8391 = vmatprep.mubr.bf16.mxu0 0
      %8392 = vmatmul.mubr.bf16.gmra.mxu0 %v7898
      %v8393 = vpop.f32.mrf.mxu0
      %v8394 = vadd.f32 0.0, %v8393
      %v8395 = vpop.f32.mrf.mxu0
      %v8396 = vpop.f32.mrf.mxu0
      %v8397 = vadd.f32 0.0, %v8396
      %v8398 = vpop.f32.mrf.mxu0
      %8399 = vmatprep.mubr.bf16.mxu0 0
      %8400 = vmatmul.mubr.bf16.gmra.mxu0 %v7901
      %v8401 = vpop.f32.mrf.mxu0
      %v8402 = vadd.f32 0.0, %v8401
      %v8403 = vpop.f32.mrf.mxu0
      %v8404 = vpop.f32.mrf.mxu0
      %v8405 = vadd.f32 0.0, %v8404
      %v8406 = vpop.f32.mrf.mxu0
      %8407 = vdwg.mxu0
      %v8408 = vadd.f32 %v7972, %v8378
      %v8409 = vadd.f32 %v7972, %v8381
      %v8410 = vadd.f32 %v7972, %v8386
      %v8411 = vadd.f32 %v7972, %v8389
      %v8412 = vadd.f32 %v7972, %v8394
      %v8413 = vadd.f32 %v7972, %v8397
      %v8414 = vadd.f32 %v7972, %v8402
      %v8415 = vadd.f32 %v7972, %v8405
      %s8416 = scalar_lea.vmem %s16, 48
      %v8417 = vld [vmem:[%s8416] sm:$0xf]
      %v8418 = vld [vmem:[%s8416 + $0x4] sm:$0xf]
      %v8421 = vunpack.c.l.b16 %v8417
      %v8422 = vunpack.c.l.b16 %v8418
      %v8423 = vpack.c.b16 %v8422, %v8421
      %8425 = vmatprep.subr.bf16.mxu0 0
      %8426 = vmatpush1.bf16.msra.mxu0 0
      %8427 = vmatprep.subr.bf16.mxu0 0
      %8428 = vmatpush1.bf16.msra.mxu0 0
      %8429 = vmatprep.subr.bf16.mxu0 0
      %8430 = vmatpush1.bf16.msra.mxu0 0
      %8431 = vmatprep.subr.bf16.mxu0 0
      %8432 = vmatpush1.bf16.msra.mxu0 0
      %8433 = vmatprep.subr.bf16.mxu0 0
      %8434 = vmatpush1.bf16.msra.mxu0 0
      %8435 = vmatprep.subr.bf16.mxu0 0
      %8436 = vmatpush1.bf16.msra.mxu0 0
      %8437 = vmatprep.subr.bf16.mxu0 0
      %8438 = vmatpush1.bf16.msra.mxu0 0
      %8439 = vmatprep.subr.bf16.mxu0 0
      %8440 = vmatpush1.bf16.msra.mxu0 %v8423
      %8441 = vmatprep.subr.bf16.mxu0 0
      %8442 = vmatpush2.bf16.msra.mxu0 0
      %8443 = vmatprep.subr.bf16.mxu0 0
      %8444 = vmatpush2.bf16.msra.mxu0 0
      %8445 = vmatprep.subr.bf16.mxu0 0
      %8446 = vmatpush2.bf16.msra.mxu0 0
      %8447 = vmatprep.subr.bf16.mxu0 0
      %8448 = vmatpush2.bf16.msra.mxu0 0
      %8449 = vmatprep.subr.bf16.mxu0 0
      %8450 = vmatpush2.bf16.msra.mxu0 0
      %8451 = vmatprep.subr.bf16.mxu0 0
      %8452 = vmatpush2.bf16.msra.mxu0 0
      %8453 = vmatprep.subr.bf16.mxu0 0
      %8454 = vmatpush2.bf16.msra.mxu0 0
      %8455 = vmatprep.subr.bf16.mxu0 0
      %8456 = vmatpush2.bf16.msra.mxu0 0
      %8457 = vmatprep.mubr.bf16.mxu0 0
      %8458 = vmatmul.mubr.bf16.gmra.mxu0 %v8074
      %v8459 = vpop.f32.mrf.mxu0
      %v8460 = vadd.f32 0.0, %v8459
      %v8461 = vpop.f32.mrf.mxu0
      %v8462 = vpop.f32.mrf.mxu0
      %v8463 = vadd.f32 0.0, %v8462
      %v8464 = vpop.f32.mrf.mxu0
      %8465 = vmatprep.mubr.bf16.mxu0 0
      %8466 = vmatmul.mubr.bf16.gmra.mxu0 %v8077
      %v8467 = vpop.f32.mrf.mxu0
      %v8468 = vadd.f32 0.0, %v8467
      %v8469 = vpop.f32.mrf.mxu0
      %v8470 = vpop.f32.mrf.mxu0
      %v8471 = vadd.f32 0.0, %v8470
      %v8472 = vpop.f32.mrf.mxu0
      %8473 = vmatprep.mubr.bf16.mxu0 0
      %8474 = vmatmul.mubr.bf16.gmra.mxu0 %v8080
      %v8475 = vpop.f32.mrf.mxu0
      %v8476 = vadd.f32 0.0, %v8475
      %v8477 = vpop.f32.mrf.mxu0
      %v8478 = vpop.f32.mrf.mxu0
      %v8479 = vadd.f32 0.0, %v8478
      %v8480 = vpop.f32.mrf.mxu0
      %8481 = vmatprep.mubr.bf16.mxu0 0
      %8482 = vmatmul.mubr.bf16.gmra.mxu0 %v8083
      %v8483 = vpop.f32.mrf.mxu0
      %v8484 = vadd.f32 0.0, %v8483
      %v8485 = vpop.f32.mrf.mxu0
      %v8486 = vpop.f32.mrf.mxu0
      %v8487 = vadd.f32 0.0, %v8486
      %v8488 = vpop.f32.mrf.mxu0
      %8489 = vdwg.mxu0
      %v8490 = vadd.f32 %v8408, %v8460
      %v8491 = vadd.f32 %v8409, %v8463
      %v8492 = vadd.f32 %v8410, %v8468
      %v8493 = vadd.f32 %v8411, %v8471
      %v8494 = vadd.f32 %v8412, %v8476
      %v8495 = vadd.f32 %v8413, %v8479
      %v8496 = vadd.f32 %v8414, %v8484
      %v8497 = vadd.f32 %v8415, %v8487
      %s8498 = scalar_lea.vmem %s16, 16
      %v8499 = vld [vmem:[%s8498] sm:$0xf]
      %v8500 = vld [vmem:[%s8498 + $0x4] sm:$0xf]
      %v8503 = vunpack.c.l.b16 %v8499
      %v8504 = vunpack.c.l.b16 %v8500
      %v8505 = vpack.c.b16 %v8504, %v8503
      %8507 = vmatprep.subr.bf16.mxu0 0
      %8508 = vmatpush1.bf16.msra.mxu0 0
      %8509 = vmatprep.subr.bf16.mxu0 0
      %8510 = vmatpush1.bf16.msra.mxu0 0
      %8511 = vmatprep.subr.bf16.mxu0 0
      %8512 = vmatpush1.bf16.msra.mxu0 0
      %8513 = vmatprep.subr.bf16.mxu0 0
      %8514 = vmatpush1.bf16.msra.mxu0 0
      %8515 = vmatprep.subr.bf16.mxu0 0
      %8516 = vmatpush1.bf16.msra.mxu0 0
      %8517 = vmatprep.subr.bf16.mxu0 0
      %8518 = vmatpush1.bf16.msra.mxu0 0
      %8519 = vmatprep.subr.bf16.mxu0 0
      %8520 = vmatpush1.bf16.msra.mxu0 0
      %8521 = vmatprep.subr.bf16.mxu0 0
      %8522 = vmatpush1.bf16.msra.mxu0 %v8505
      %8523 = vmatprep.subr.bf16.mxu0 0
      %8524 = vmatpush2.bf16.msra.mxu0 0
      %8525 = vmatprep.subr.bf16.mxu0 0
      %8526 = vmatpush2.bf16.msra.mxu0 0
      %8527 = vmatprep.subr.bf16.mxu0 0
      %8528 = vmatpush2.bf16.msra.mxu0 0
      %8529 = vmatprep.subr.bf16.mxu0 0
      %8530 = vmatpush2.bf16.msra.mxu0 0
      %8531 = vmatprep.subr.bf16.mxu0 0
      %8532 = vmatpush2.bf16.msra.mxu0 0
      %8533 = vmatprep.subr.bf16.mxu0 0
      %8534 = vmatpush2.bf16.msra.mxu0 0
      %8535 = vmatprep.subr.bf16.mxu0 0
      %8536 = vmatpush2.bf16.msra.mxu0 0
      %8537 = vmatprep.subr.bf16.mxu0 0
      %8538 = vmatpush2.bf16.msra.mxu0 0
      %8539 = vmatprep.mubr.bf16.mxu0 0
      %8540 = vmatmul.mubr.bf16.gmra.mxu0 %v8250
      %v8541 = vpop.f32.mrf.mxu0
      %v8542 = vadd.f32 0.0, %v8541
      %v8543 = vpop.f32.mrf.mxu0
      %v8544 = vpop.f32.mrf.mxu0
      %v8545 = vadd.f32 0.0, %v8544
      %v8546 = vpop.f32.mrf.mxu0
      %8547 = vmatprep.mubr.bf16.mxu0 0
      %8548 = vmatmul.mubr.bf16.gmra.mxu0 %v8253
      %v8549 = vpop.f32.mrf.mxu0
      %v8550 = vadd.f32 0.0, %v8549
      %v8551 = vpop.f32.mrf.mxu0
      %v8552 = vpop.f32.mrf.mxu0
      %v8553 = vadd.f32 0.0, %v8552
      %v8554 = vpop.f32.mrf.mxu0
      %8555 = vmatprep.mubr.bf16.mxu0 0
      %8556 = vmatmul.mubr.bf16.gmra.mxu0 %v8256
      %v8557 = vpop.f32.mrf.mxu0
      %v8558 = vadd.f32 0.0, %v8557
      %v8559 = vpop.f32.mrf.mxu0
      %v8560 = vpop.f32.mrf.mxu0
      %v8561 = vadd.f32 0.0, %v8560
      %v8562 = vpop.f32.mrf.mxu0
      %8563 = vmatprep.mubr.bf16.mxu0 0
      %8564 = vmatmul.mubr.bf16.gmra.mxu0 %v8259
      %v8565 = vpop.f32.mrf.mxu0
      %v8566 = vadd.f32 0.0, %v8565
      %v8567 = vpop.f32.mrf.mxu0
      %v8568 = vpop.f32.mrf.mxu0
      %v8569 = vadd.f32 0.0, %v8568
      %v8570 = vpop.f32.mrf.mxu0
      %8571 = vdwg.mxu0
      %v8572 = vadd.f32 %v8490, %v8542
      %v8573 = vadd.f32 %v8491, %v8545
      %v8574 = vadd.f32 %v8492, %v8550
      %v8575 = vadd.f32 %v8493, %v8553
      %v8576 = vadd.f32 %v8494, %v8558
      %v8577 = vadd.f32 %v8495, %v8561
      %v8578 = vadd.f32 %v8496, %v8566
      %v8579 = vadd.f32 %v8497, %v8569
      %v8580 = vld [vmem:[%s16] sm:$0xf]
      %v8581 = vld [vmem:[%s16 + $0x4] sm:$0xf]
      %v8584 = vunpack.c.l.b16 %v8580
      %v8585 = vunpack.c.l.b16 %v8581
      %v8586 = vpack.c.b16 %v8585, %v8584
      %v8589 = vsel %vm3815, %v7877, 0
      %v8592 = vsel %vm3815, %v7878, 0
      %v8595 = vsel %vm3815, %v7879, 0
      %v8598 = vsel %vm3815, %v7880, 0
      %8600 = vmatprep.subr.bf16.mxu0 0
      %8601 = vmatpush1.bf16.msra.mxu0 0
      %8602 = vmatprep.subr.bf16.mxu0 0
      %8603 = vmatpush1.bf16.msra.mxu0 0
      %8604 = vmatprep.subr.bf16.mxu0 0
      %8605 = vmatpush1.bf16.msra.mxu0 0
      %8606 = vmatprep.subr.bf16.mxu0 0
      %8607 = vmatpush1.bf16.msra.mxu0 0
      %8608 = vmatprep.subr.bf16.mxu0 0
      %8609 = vmatpush1.bf16.msra.mxu0 0
      %8610 = vmatprep.subr.bf16.mxu0 0
      %8611 = vmatpush1.bf16.msra.mxu0 0
      %8612 = vmatprep.subr.bf16.mxu0 0
      %8613 = vmatpush1.bf16.msra.mxu0 0
      %8614 = vmatprep.subr.bf16.mxu0 0
      %8615 = vmatpush1.bf16.msra.mxu0 %v8586
      %8616 = vmatprep.subr.bf16.mxu0 0
      %8617 = vmatpush2.bf16.msra.mxu0 0
      %8618 = vmatprep.subr.bf16.mxu0 0
      %8619 = vmatpush2.bf16.msra.mxu0 0
      %8620 = vmatprep.subr.bf16.mxu0 0
      %8621 = vmatpush2.bf16.msra.mxu0 0
      %8622 = vmatprep.subr.bf16.mxu0 0
      %8623 = vmatpush2.bf16.msra.mxu0 0
      %8624 = vmatprep.subr.bf16.mxu0 0
      %8625 = vmatpush2.bf16.msra.mxu0 0
      %8626 = vmatprep.subr.bf16.mxu0 0
      %8627 = vmatpush2.bf16.msra.mxu0 0
      %8628 = vmatprep.subr.bf16.mxu0 0
      %8629 = vmatpush2.bf16.msra.mxu0 0
      %8630 = vmatprep.subr.bf16.mxu0 0
      %8631 = vmatpush2.bf16.msra.mxu0 0
      %8632 = vmatprep.mubr.bf16.mxu0 0
      %8633 = vmatmul.mubr.bf16.gmra.mxu0 %v8589
      %v8634 = vpop.f32.mrf.mxu0
      %v8635 = vadd.f32 0.0, %v8634
      %v8636 = vpop.f32.mrf.mxu0
      %v8637 = vpop.f32.mrf.mxu0
      %v8638 = vadd.f32 0.0, %v8637
      %v8639 = vpop.f32.mrf.mxu0
      %8640 = vmatprep.mubr.bf16.mxu0 0
      %8641 = vmatmul.mubr.bf16.gmra.mxu0 %v8592
      %v8642 = vpop.f32.mrf.mxu0
      %v8643 = vadd.f32 0.0, %v8642
      %v8644 = vpop.f32.mrf.mxu0
      %v8645 = vpop.f32.mrf.mxu0
      %v8646 = vadd.f32 0.0, %v8645
      %v8647 = vpop.f32.mrf.mxu0
      %8648 = vmatprep.mubr.bf16.mxu0 0
      %8649 = vmatmul.mubr.bf16.gmra.mxu0 %v8595
      %v8650 = vpop.f32.mrf.mxu0
      %v8651 = vadd.f32 0.0, %v8650
      %v8652 = vpop.f32.mrf.mxu0
      %v8653 = vpop.f32.mrf.mxu0
      %v8654 = vadd.f32 0.0, %v8653
      %v8655 = vpop.f32.mrf.mxu0
      %8656 = vmatprep.mubr.bf16.mxu0 0
      %8657 = vmatmul.mubr.bf16.gmra.mxu0 %v8598
      %v8658 = vpop.f32.mrf.mxu0
      %v8659 = vadd.f32 0.0, %v8658
      %v8660 = vpop.f32.mrf.mxu0
      %v8661 = vpop.f32.mrf.mxu0
      %v8662 = vadd.f32 0.0, %v8661
      %v8663 = vpop.f32.mrf.mxu0
      %8664 = vdwg.mxu0
      %v8665 = vadd.f32 %v8572, %v8635
      %v8666 = vadd.f32 %v8573, %v8638
      %v8667 = vadd.f32 %v8574, %v8643
      %v8668 = vadd.f32 %v8575, %v8646
      %v8669 = vadd.f32 %v8576, %v8651
      %v8670 = vadd.f32 %v8577, %v8654
      %v8671 = vadd.f32 %v8578, %v8659
      %v8672 = vadd.f32 %v8579, %v8662
      %v8673 = vsub.f32 0.0, %v7974
      %v8674 = vsub.f32 0.0, %v7975
      %v8675 = vsub.f32 0.0, %v7976
      %v8676 = vsub.f32 0.0, %v7977
      %v8677 = vsub.f32 0.0, %v7978
      %v8678 = vsub.f32 0.0, %v7979
      %v8679 = vsub.f32 0.0, %v7980
      %v8680 = vsub.f32 0.0, %v7981
      %v8681 = vmul.f32 %v8673, 1.442695
      %v8682 = vpow.pop %v8681
      %v8683 = vmul.f32 %v8674, 1.442695
      %v8684 = vpow.pop %v8683
      %v8685 = vmul.f32 %v8675, 1.442695
      %v8686 = vpow.pop %v8685
      %v8687 = vmul.f32 %v8676, 1.442695
      %v8688 = vpow.pop %v8687
      %v8689 = vmul.f32 %v8677, 1.442695
      %v8690 = vpow.pop %v8689
      %v8691 = vmul.f32 %v8678, 1.442695
      %v8692 = vpow.pop %v8691
      %v8693 = vmul.f32 %v8679, 1.442695
      %v8694 = vpow.pop %v8693
      %v8695 = vmul.f32 %v8680, 1.442695
      %v8696 = vpow.pop %v8695
      %v8697 = vadd.f32 %v8682, 1.0
      %v8698 = vadd.f32 %v8684, 1.0
      %v8699 = vadd.f32 %v8686, 1.0
      %v8700 = vadd.f32 %v8688, 1.0
      %v8701 = vadd.f32 %v8690, 1.0
      %v8702 = vadd.f32 %v8692, 1.0
      %v8703 = vadd.f32 %v8694, 1.0
      %v8704 = vadd.f32 %v8696, 1.0
      %v8705 = vrcp.pop %v8697
      %v8706 = vrcp.pop %v8698
      %v8707 = vrcp.pop %v8699
      %v8708 = vrcp.pop %v8700
      %v8709 = vrcp.pop %v8701
      %v8710 = vrcp.pop %v8702
      %v8711 = vrcp.pop %v8703
      %v8712 = vrcp.pop %v8704
      %v8713 = vmin.f32 %v8705, 1.0
      %v8714 = vmin.f32 %v8706, 1.0
      %v8715 = vmin.f32 %v8707, 1.0
      %v8716 = vmin.f32 %v8708, 1.0
      %v8717 = vmin.f32 %v8709, 1.0
      %v8718 = vmin.f32 %v8710, 1.0
      %v8719 = vmin.f32 %v8711, 1.0
      %v8720 = vmin.f32 %v8712, 1.0
      %v8721 = vsub.f32 0.0, %v8150
      %v8722 = vsub.f32 0.0, %v8151
      %v8723 = vsub.f32 0.0, %v8152
      %v8724 = vsub.f32 0.0, %v8153
      %v8725 = vsub.f32 0.0, %v8154
      %v8726 = vsub.f32 0.0, %v8155
      %v8727 = vsub.f32 0.0, %v8156
      %v8728 = vsub.f32 0.0, %v8157
      %v8729 = vmul.f32 %v8721, 1.442695
      %v8730 = vpow.pop %v8729
      %v8731 = vmul.f32 %v8722, 1.442695
      %v8732 = vpow.pop %v8731
      %v8733 = vmul.f32 %v8723, 1.442695
      %v8734 = vpow.pop %v8733
      %v8735 = vmul.f32 %v8724, 1.442695
      %v8736 = vpow.pop %v8735
      %v8737 = vmul.f32 %v8725, 1.442695
      %v8738 = vpow.pop %v8737
      %v8739 = vmul.f32 %v8726, 1.442695
      %v8740 = vpow.pop %v8739
      %v8741 = vmul.f32 %v8727, 1.442695
      %v8742 = vpow.pop %v8741
      %v8743 = vmul.f32 %v8728, 1.442695
      %v8744 = vpow.pop %v8743
      %v8745 = vadd.f32 %v8730, 1.0
      %v8746 = vadd.f32 %v8732, 1.0
      %v8747 = vadd.f32 %v8734, 1.0
      %v8748 = vadd.f32 %v8736, 1.0
      %v8749 = vadd.f32 %v8738, 1.0
      %v8750 = vadd.f32 %v8740, 1.0
      %v8751 = vadd.f32 %v8742, 1.0
      %v8752 = vadd.f32 %v8744, 1.0
      %v8753 = vrcp.pop %v8745
      %v8754 = vrcp.pop %v8746
      %v8755 = vrcp.pop %v8747
      %v8756 = vrcp.pop %v8748
      %v8757 = vrcp.pop %v8749
      %v8758 = vrcp.pop %v8750
      %v8759 = vrcp.pop %v8751
      %v8760 = vrcp.pop %v8752
      %v8761 = vmin.f32 %v8753, 1.0
      %v8762 = vmin.f32 %v8754, 1.0
      %v8763 = vmin.f32 %v8755, 1.0
      %v8764 = vmin.f32 %v8756, 1.0
      %v8765 = vmin.f32 %v8757, 1.0
      %v8766 = vmin.f32 %v8758, 1.0
      %v8767 = vmin.f32 %v8759, 1.0
      %v8768 = vmin.f32 %v8760, 1.0
      %v8769 = vsub.f32 0.0, %v8326
      %v8770 = vsub.f32 0.0, %v8327
      %v8771 = vsub.f32 0.0, %v8328
      %v8772 = vsub.f32 0.0, %v8329
      %v8773 = vsub.f32 0.0, %v8330
      %v8774 = vsub.f32 0.0, %v8331
      %v8775 = vsub.f32 0.0, %v8332
      %v8776 = vsub.f32 0.0, %v8333
      %v8777 = vmul.f32 %v8769, 1.442695
      %v8778 = vpow.pop %v8777
      %v8779 = vmul.f32 %v8770, 1.442695
      %v8780 = vpow.pop %v8779
      %v8781 = vmul.f32 %v8771, 1.442695
      %v8782 = vpow.pop %v8781
      %v8783 = vmul.f32 %v8772, 1.442695
      %v8784 = vpow.pop %v8783
      %v8785 = vmul.f32 %v8773, 1.442695
      %v8786 = vpow.pop %v8785
      %v8787 = vmul.f32 %v8774, 1.442695
      %v8788 = vpow.pop %v8787
      %v8789 = vmul.f32 %v8775, 1.442695
      %v8790 = vpow.pop %v8789
      %v8791 = vmul.f32 %v8776, 1.442695
      %v8792 = vpow.pop %v8791
      %v8793 = vadd.f32 %v8778, 1.0
      %v8794 = vadd.f32 %v8780, 1.0
      %v8795 = vadd.f32 %v8782, 1.0
      %v8796 = vadd.f32 %v8784, 1.0
      %v8797 = vadd.f32 %v8786, 1.0
      %v8798 = vadd.f32 %v8788, 1.0
      %v8799 = vadd.f32 %v8790, 1.0
      %v8800 = vadd.f32 %v8792, 1.0
      %v8801 = vrcp.pop %v8793
      %v8802 = vrcp.pop %v8794
      %v8803 = vrcp.pop %v8795
      %v8804 = vrcp.pop %v8796
      %v8805 = vrcp.pop %v8797
      %v8806 = vrcp.pop %v8798
      %v8807 = vrcp.pop %v8799
      %v8808 = vrcp.pop %v8800
      %v8809 = vmin.f32 %v8801, 1.0
      %v8810 = vmin.f32 %v8802, 1.0
      %v8811 = vmin.f32 %v8803, 1.0
      %v8812 = vmin.f32 %v8804, 1.0
      %v8813 = vmin.f32 %v8805, 1.0
      %v8814 = vmin.f32 %v8806, 1.0
      %v8815 = vmin.f32 %v8807, 1.0
      %v8816 = vmin.f32 %v8808, 1.0
      %v8817 = vsub.f32 0.0, %v8665
      %v8818 = vsub.f32 0.0, %v8666
      %v8819 = vsub.f32 0.0, %v8667
      %v8820 = vsub.f32 0.0, %v8668
      %v8821 = vsub.f32 0.0, %v8669
      %v8822 = vsub.f32 0.0, %v8670
      %v8823 = vsub.f32 0.0, %v8671
      %v8824 = vsub.f32 0.0, %v8672
      %v8825 = vmul.f32 %v8817, 1.442695
      %v8826 = vpow.pop %v8825
      %v8827 = vmul.f32 %v8818, 1.442695
      %v8828 = vpow.pop %v8827
      %v8829 = vmul.f32 %v8819, 1.442695
      %v8830 = vpow.pop %v8829
      %v8831 = vmul.f32 %v8820, 1.442695
      %v8832 = vpow.pop %v8831
      %v8833 = vmul.f32 %v8821, 1.442695
      %v8834 = vpow.pop %v8833
      %v8835 = vmul.f32 %v8822, 1.442695
      %v8836 = vpow.pop %v8835
      %v8837 = vmul.f32 %v8823, 1.442695
      %v8838 = vpow.pop %v8837
      %v8839 = vmul.f32 %v8824, 1.442695
      %v8840 = vpow.pop %v8839
      %v8841 = vadd.f32 %v8826, 1.0
      %v8842 = vadd.f32 %v8828, 1.0
      %v8843 = vadd.f32 %v8830, 1.0
      %v8844 = vadd.f32 %v8832, 1.0
      %v8845 = vadd.f32 %v8834, 1.0
      %v8846 = vadd.f32 %v8836, 1.0
      %v8847 = vadd.f32 %v8838, 1.0
      %v8848 = vadd.f32 %v8840, 1.0
      %v8849 = vrcp.pop %v8841
      %v8850 = vrcp.pop %v8842
      %v8851 = vrcp.pop %v8843
      %v8852 = vrcp.pop %v8844
      %v8853 = vrcp.pop %v8845
      %v8854 = vrcp.pop %v8846
      %v8855 = vrcp.pop %v8847
      %v8856 = vrcp.pop %v8848
      %v8857 = vmin.f32 %v8849, 1.0
      %v8858 = vmin.f32 %v8850, 1.0
      %v8859 = vmin.f32 %v8851, 1.0
      %v8860 = vmin.f32 %v8852, 1.0
      %v8861 = vmin.f32 %v8853, 1.0
      %v8862 = vmin.f32 %v8854, 1.0
      %v8863 = vmin.f32 %v8855, 1.0
      %v8864 = vmin.f32 %v8856, 1.0
      %v8865 = vld [vmem:[%s18] sm:$0xf]
      %v8866 = vld [vmem:[%s18 + $0x4] sm:$0xf]
      %v8867 = vld [vmem:[%s18 + $0x8] sm:$0xf]
      %v8868 = vld [vmem:[%s18 + $0xc] sm:$0xf]
      %v8869 = vld [vmem:[%s18 + $0x10] sm:$0xf]
      %v8870 = vld [vmem:[%s18 + $0x14] sm:$0xf]
      %v8871 = vld [vmem:[%s18 + $0x18] sm:$0xf]
      %v8872 = vld [vmem:[%s18 + $0x1c] sm:$0xf]
      %v8873 = vld [vmem:[%s18 + $0x20] sm:$0xf]
      %v8874 = vld [vmem:[%s18 + $0x24] sm:$0xf]
      %v8875 = vld [vmem:[%s18 + $0x28] sm:$0xf]
      %v8876 = vld [vmem:[%s18 + $0x2c] sm:$0xf]
      %v8877 = vld [vmem:[%s18 + $0x30] sm:$0xf]
      %v8878 = vld [vmem:[%s18 + $0x34] sm:$0xf]
      %v8879 = vld [vmem:[%s18 + $0x38] sm:$0xf]
      %v8880 = vld [vmem:[%s18 + $0x3c] sm:$0xf]
      %v8881 = vld [vmem:[%s18 + $0x40] sm:$0xf]
      %v8882 = vld [vmem:[%s18 + $0x44] sm:$0xf]
      %v8883 = vld [vmem:[%s18 + $0x48] sm:$0xf]
      %v8884 = vld [vmem:[%s18 + $0x4c] sm:$0xf]
      %v8885 = vld [vmem:[%s18 + $0x50] sm:$0xf]
      %v8886 = vld [vmem:[%s18 + $0x54] sm:$0xf]
      %v8887 = vld [vmem:[%s18 + $0x58] sm:$0xf]
      %v8888 = vld [vmem:[%s18 + $0x5c] sm:$0xf]
      %v8889 = vld [vmem:[%s18 + $0x60] sm:$0xf]
      %v8890 = vld [vmem:[%s18 + $0x64] sm:$0xf]
      %v8891 = vld [vmem:[%s18 + $0x68] sm:$0xf]
      %v8892 = vld [vmem:[%s18 + $0x6c] sm:$0xf]
      %v8893 = vld [vmem:[%s18 + $0x70] sm:$0xf]
      %v8894 = vld [vmem:[%s18 + $0x74] sm:$0xf]
      %v8895 = vld [vmem:[%s18 + $0x78] sm:$0xf]
      %v8896 = vld [vmem:[%s18 + $0x7c] sm:$0xf]
      %v8897 = vpack.c.bf16 %v8714, %v8713
      %v8898 = vpack.c.bf16 %v8716, %v8715
      %v8899 = vpack.c.bf16 %v8718, %v8717
      %v8900 = vpack.c.bf16 %v8720, %v8719
      %s8901 = scalar_lea.vmem %s18, 128
      %v8902 = vld [vmem:[%s8901] sm:$0xf]
      %v8903 = vld [vmem:[%s8901 + $0x4] sm:$0xf]
      %v8904 = vld [vmem:[%s8901 + $0x8] sm:$0xf]
      %v8905 = vld [vmem:[%s8901 + $0xc] sm:$0xf]
      %v8906 = vld [vmem:[%s8901 + $0x10] sm:$0xf]
      %v8907 = vld [vmem:[%s8901 + $0x14] sm:$0xf]
      %v8908 = vld [vmem:[%s8901 + $0x18] sm:$0xf]
      %v8909 = vld [vmem:[%s8901 + $0x1c] sm:$0xf]
      %v8910 = vld [vmem:[%s8901 + $0x20] sm:$0xf]
      %v8911 = vld [vmem:[%s8901 + $0x24] sm:$0xf]
      %v8912 = vld [vmem:[%s8901 + $0x28] sm:$0xf]
      %v8913 = vld [vmem:[%s8901 + $0x2c] sm:$0xf]
      %v8914 = vld [vmem:[%s8901 + $0x30] sm:$0xf]
      %v8915 = vld [vmem:[%s8901 + $0x34] sm:$0xf]
      %v8916 = vld [vmem:[%s8901 + $0x38] sm:$0xf]
      %v8917 = vld [vmem:[%s8901 + $0x3c] sm:$0xf]
      %v8918 = vld [vmem:[%s8901 + $0x40] sm:$0xf]
      %v8919 = vld [vmem:[%s8901 + $0x44] sm:$0xf]
      %v8920 = vld [vmem:[%s8901 + $0x48] sm:$0xf]
      %v8921 = vld [vmem:[%s8901 + $0x4c] sm:$0xf]
      %v8922 = vld [vmem:[%s8901 + $0x50] sm:$0xf]
      %v8923 = vld [vmem:[%s8901 + $0x54] sm:$0xf]
      %v8924 = vld [vmem:[%s8901 + $0x58] sm:$0xf]
      %v8925 = vld [vmem:[%s8901 + $0x5c] sm:$0xf]
      %v8926 = vld [vmem:[%s8901 + $0x60] sm:$0xf]
      %v8927 = vld [vmem:[%s8901 + $0x64] sm:$0xf]
      %v8928 = vld [vmem:[%s8901 + $0x68] sm:$0xf]
      %v8929 = vld [vmem:[%s8901 + $0x6c] sm:$0xf]
      %v8930 = vld [vmem:[%s8901 + $0x70] sm:$0xf]
      %v8931 = vld [vmem:[%s8901 + $0x74] sm:$0xf]
      %v8932 = vld [vmem:[%s8901 + $0x78] sm:$0xf]
      %v8933 = vld [vmem:[%s8901 + $0x7c] sm:$0xf]
      %v8934 = vpack.c.bf16 %v8762, %v8761
      %v8935 = vpack.c.bf16 %v8764, %v8763
      %v8936 = vpack.c.bf16 %v8766, %v8765
      %v8937 = vpack.c.bf16 %v8768, %v8767
      %v8970 = vunpack.c.l.b16 %v8902
      %v8971 = vunpack.c.l.b16 %v8903
      %v8972 = vunpack.c.l.b16 %v8904
      %v8973 = vunpack.c.l.b16 %v8905
      %v8974 = vunpack.c.l.b16 %v8906
      %v8975 = vunpack.c.l.b16 %v8907
      %v8976 = vunpack.c.l.b16 %v8908
      %v8977 = vunpack.c.l.b16 %v8909
      %v8978 = vunpack.c.l.b16 %v8910
      %v8979 = vunpack.c.l.b16 %v8911
      %v8980 = vunpack.c.l.b16 %v8912
      %v8981 = vunpack.c.l.b16 %v8913
      %v8982 = vunpack.c.l.b16 %v8914
      %v8983 = vunpack.c.l.b16 %v8915
      %v8984 = vunpack.c.l.b16 %v8916
      %v8985 = vunpack.c.l.b16 %v8917
      %v8986 = vunpack.c.l.b16 %v8918
      %v8987 = vunpack.c.l.b16 %v8919
      %v8988 = vunpack.c.l.b16 %v8920
      %v8989 = vunpack.c.l.b16 %v8921
      %v8990 = vunpack.c.l.b16 %v8922
      %v8991 = vunpack.c.l.b16 %v8923
      %v8992 = vunpack.c.l.b16 %v8924
      %v8993 = vunpack.c.l.b16 %v8925
      %v8994 = vunpack.c.l.b16 %v8926
      %v8995 = vunpack.c.l.b16 %v8927
      %v8996 = vunpack.c.l.b16 %v8928
      %v8997 = vunpack.c.l.b16 %v8929
      %v8998 = vunpack.c.l.b16 %v8930
      %v8999 = vunpack.c.l.b16 %v8931
      %v9000 = vunpack.c.l.b16 %v8932
      %v9001 = vunpack.c.l.b16 %v8933
      %v9002 = vpack.c.b16 %v8971, %v8970
      %v9003 = vpack.c.b16 %v8973, %v8972
      %v9004 = vpack.c.b16 %v8975, %v8974
      %v9005 = vpack.c.b16 %v8977, %v8976
      %v9006 = vpack.c.b16 %v8979, %v8978
      %v9007 = vpack.c.b16 %v8981, %v8980
      %v9008 = vpack.c.b16 %v8983, %v8982
      %v9009 = vpack.c.b16 %v8985, %v8984
      %v9010 = vpack.c.b16 %v8987, %v8986
      %v9011 = vpack.c.b16 %v8989, %v8988
      %v9012 = vpack.c.b16 %v8991, %v8990
      %v9013 = vpack.c.b16 %v8993, %v8992
      %v9014 = vpack.c.b16 %v8995, %v8994
      %v9015 = vpack.c.b16 %v8997, %v8996
      %v9016 = vpack.c.b16 %v8999, %v8998
      %v9017 = vpack.c.b16 %v9001, %v9000
      %v9019 = vsel %vm4835, %v9002, 0
      %v9022 = vsel %vm4835, %v9003, 0
      %v9025 = vsel %vm4835, %v9004, 0
      %v9028 = vsel %vm4835, %v9005, 0
      %v9031 = vsel %vm4835, %v9006, 0
      %v9034 = vsel %vm4835, %v9007, 0
      %v9037 = vsel %vm4835, %v9008, 0
      %v9040 = vsel %vm4835, %v9009, 0
      %v9043 = vsel %vm4835, %v9010, 0
      %v9046 = vsel %vm4835, %v9011, 0
      %v9049 = vsel %vm4835, %v9012, 0
      %v9052 = vsel %vm4835, %v9013, 0
      %v9055 = vsel %vm4835, %v9014, 0
      %v9058 = vsel %vm4835, %v9015, 0
      %v9061 = vsel %vm4835, %v9016, 0
      %v9064 = vsel %vm4835, %v9017, 0
      %9066 = vmatprep.subr.bf16.mxu0 0
      %9067 = vmatpush1.bf16.msra.mxu0 0
      %9068 = vmatprep.subr.bf16.mxu0 0
      %9069 = vmatpush1.bf16.msra.mxu0 0
      %9070 = vmatprep.subr.bf16.mxu0 0
      %9071 = vmatpush1.bf16.msra.mxu0 0
      %9072 = vmatprep.subr.bf16.mxu0 0
      %9073 = vmatpush1.bf16.msra.mxu0 0
      %9074 = vmatprep.subr.bf16.mxu0 0
      %9075 = vmatpush1.bf16.msra.mxu0 %v8937
      %9076 = vmatprep.subr.bf16.mxu0 0
      %9077 = vmatpush1.bf16.msra.mxu0 %v8936
      %9078 = vmatprep.subr.bf16.mxu0 0
      %9079 = vmatpush1.bf16.msra.mxu0 %v8935
      %9080 = vmatprep.subr.bf16.mxu0 0
      %9081 = vmatpush1.bf16.msra.mxu0 %v8934
      %9082 = vmatprep.subr.bf16.mxu0 0
      %9083 = vmatpush2.bf16.msra.mxu0 0
      %9084 = vmatprep.subr.bf16.mxu0 0
      %9085 = vmatpush2.bf16.msra.mxu0 0
      %9086 = vmatprep.subr.bf16.mxu0 0
      %9087 = vmatpush2.bf16.msra.mxu0 0
      %9088 = vmatprep.subr.bf16.mxu0 0
      %9089 = vmatpush2.bf16.msra.mxu0 0
      %9090 = vmatprep.subr.bf16.mxu0 0
      %9091 = vmatpush2.bf16.msra.mxu0 0
      %9092 = vmatprep.subr.bf16.mxu0 0
      %9093 = vmatpush2.bf16.msra.mxu0 0
      %9094 = vmatprep.subr.bf16.mxu0 0
      %9095 = vmatpush2.bf16.msra.mxu0 0
      %9096 = vmatprep.subr.bf16.mxu0 0
      %9097 = vmatpush2.bf16.msra.mxu0 0
      %9098 = vmatprep.mubr.bf16.mxu0 0
      %9099 = vmatmul.mubr.bf16.gmra.mxu0 %v9019
      %v9100 = vpop.f32.mrf.mxu0
      %v9101 = vadd.f32 0.0, %v9100
      %v9102 = vpop.f32.mrf.mxu0
      %v9103 = vpop.f32.mrf.mxu0
      %v9104 = vadd.f32 0.0, %v9103
      %v9105 = vpop.f32.mrf.mxu0
      %9106 = vmatprep.mubr.bf16.mxu0 0
      %9107 = vmatmul.mubr.bf16.gmra.mxu0 %v9022
      %v9108 = vpop.f32.mrf.mxu0
      %v9109 = vadd.f32 0.0, %v9108
      %v9110 = vpop.f32.mrf.mxu0
      %v9111 = vpop.f32.mrf.mxu0
      %v9112 = vadd.f32 0.0, %v9111
      %v9113 = vpop.f32.mrf.mxu0
      %9114 = vmatprep.mubr.bf16.mxu0 0
      %9115 = vmatmul.mubr.bf16.gmra.mxu0 %v9025
      %v9116 = vpop.f32.mrf.mxu0
      %v9117 = vadd.f32 0.0, %v9116
      %v9118 = vpop.f32.mrf.mxu0
      %v9119 = vpop.f32.mrf.mxu0
      %v9120 = vadd.f32 0.0, %v9119
      %v9121 = vpop.f32.mrf.mxu0
      %9122 = vmatprep.mubr.bf16.mxu0 0
      %9123 = vmatmul.mubr.bf16.gmra.mxu0 %v9028
      %v9124 = vpop.f32.mrf.mxu0
      %v9125 = vadd.f32 0.0, %v9124
      %v9126 = vpop.f32.mrf.mxu0
      %v9127 = vpop.f32.mrf.mxu0
      %v9128 = vadd.f32 0.0, %v9127
      %v9129 = vpop.f32.mrf.mxu0
      %9130 = vmatprep.mubr.bf16.mxu0 0
      %9131 = vmatmul.mubr.bf16.gmra.mxu0 %v9031
      %v9132 = vpop.f32.mrf.mxu0
      %v9133 = vadd.f32 0.0, %v9132
      %v9134 = vpop.f32.mrf.mxu0
      %v9135 = vpop.f32.mrf.mxu0
      %v9136 = vadd.f32 0.0, %v9135
      %v9137 = vpop.f32.mrf.mxu0
      %9138 = vmatprep.mubr.bf16.mxu0 0
      %9139 = vmatmul.mubr.bf16.gmra.mxu0 %v9034
      %v9140 = vpop.f32.mrf.mxu0
      %v9141 = vadd.f32 0.0, %v9140
      %v9142 = vpop.f32.mrf.mxu0
      %v9143 = vpop.f32.mrf.mxu0
      %v9144 = vadd.f32 0.0, %v9143
      %v9145 = vpop.f32.mrf.mxu0
      %9146 = vmatprep.mubr.bf16.mxu0 0
      %9147 = vmatmul.mubr.bf16.gmra.mxu0 %v9037
      %v9148 = vpop.f32.mrf.mxu0
      %v9149 = vadd.f32 0.0, %v9148
      %v9150 = vpop.f32.mrf.mxu0
      %v9151 = vpop.f32.mrf.mxu0
      %v9152 = vadd.f32 0.0, %v9151
      %v9153 = vpop.f32.mrf.mxu0
      %9154 = vmatprep.mubr.bf16.mxu0 0
      %9155 = vmatmul.mubr.bf16.gmra.mxu0 %v9040
      %v9156 = vpop.f32.mrf.mxu0
      %v9157 = vadd.f32 0.0, %v9156
      %v9158 = vpop.f32.mrf.mxu0
      %v9159 = vpop.f32.mrf.mxu0
      %v9160 = vadd.f32 0.0, %v9159
      %v9161 = vpop.f32.mrf.mxu0
      %9162 = vmatprep.mubr.bf16.mxu0 0
      %9163 = vmatmul.mubr.bf16.gmra.mxu0 %v9043
      %v9164 = vpop.f32.mrf.mxu0
      %v9165 = vadd.f32 0.0, %v9164
      %v9166 = vpop.f32.mrf.mxu0
      %v9167 = vpop.f32.mrf.mxu0
      %v9168 = vadd.f32 0.0, %v9167
      %v9169 = vpop.f32.mrf.mxu0
      %9170 = vmatprep.mubr.bf16.mxu0 0
      %9171 = vmatmul.mubr.bf16.gmra.mxu0 %v9046
      %v9172 = vpop.f32.mrf.mxu0
      %v9173 = vadd.f32 0.0, %v9172
      %v9174 = vpop.f32.mrf.mxu0
      %v9175 = vpop.f32.mrf.mxu0
      %v9176 = vadd.f32 0.0, %v9175
      %v9177 = vpop.f32.mrf.mxu0
      %9178 = vmatprep.mubr.bf16.mxu0 0
      %9179 = vmatmul.mubr.bf16.gmra.mxu0 %v9049
      %v9180 = vpop.f32.mrf.mxu0
      %v9181 = vadd.f32 0.0, %v9180
      %v9182 = vpop.f32.mrf.mxu0
      %v9183 = vpop.f32.mrf.mxu0
      %v9184 = vadd.f32 0.0, %v9183
      %v9185 = vpop.f32.mrf.mxu0
      %9186 = vmatprep.mubr.bf16.mxu0 0
      %9187 = vmatmul.mubr.bf16.gmra.mxu0 %v9052
      %v9188 = vpop.f32.mrf.mxu0
      %v9189 = vadd.f32 0.0, %v9188
      %v9190 = vpop.f32.mrf.mxu0
      %v9191 = vpop.f32.mrf.mxu0
      %v9192 = vadd.f32 0.0, %v9191
      %v9193 = vpop.f32.mrf.mxu0
      %9194 = vmatprep.mubr.bf16.mxu0 0
      %9195 = vmatmul.mubr.bf16.gmra.mxu0 %v9055
      %v9196 = vpop.f32.mrf.mxu0
      %v9197 = vadd.f32 0.0, %v9196
      %v9198 = vpop.f32.mrf.mxu0
      %v9199 = vpop.f32.mrf.mxu0
      %v9200 = vadd.f32 0.0, %v9199
      %v9201 = vpop.f32.mrf.mxu0
      %9202 = vmatprep.mubr.bf16.mxu0 0
      %9203 = vmatmul.mubr.bf16.gmra.mxu0 %v9058
      %v9204 = vpop.f32.mrf.mxu0
      %v9205 = vadd.f32 0.0, %v9204
      %v9206 = vpop.f32.mrf.mxu0
      %v9207 = vpop.f32.mrf.mxu0
      %v9208 = vadd.f32 0.0, %v9207
      %v9209 = vpop.f32.mrf.mxu0
      %9210 = vmatprep.mubr.bf16.mxu0 0
      %9211 = vmatmul.mubr.bf16.gmra.mxu0 %v9061
      %v9212 = vpop.f32.mrf.mxu0
      %v9213 = vadd.f32 0.0, %v9212
      %v9214 = vpop.f32.mrf.mxu0
      %v9215 = vpop.f32.mrf.mxu0
      %v9216 = vadd.f32 0.0, %v9215
      %v9217 = vpop.f32.mrf.mxu0
      %9218 = vmatprep.mubr.bf16.mxu0 0
      %9219 = vmatmul.mubr.bf16.gmra.mxu0 %v9064
      %v9220 = vpop.f32.mrf.mxu0
      %v9221 = vadd.f32 0.0, %v9220
      %v9222 = vpop.f32.mrf.mxu0
      %v9223 = vpop.f32.mrf.mxu0
      %v9224 = vadd.f32 0.0, %v9223
      %v9225 = vpop.f32.mrf.mxu0
      %9226 = vdwg.mxu0
      %v9259 = vunpack.c.l.b16 %v8865
      %v9260 = vunpack.c.l.b16 %v8866
      %v9261 = vunpack.c.l.b16 %v8867
      %v9262 = vunpack.c.l.b16 %v8868
      %v9263 = vunpack.c.l.b16 %v8869
      %v9264 = vunpack.c.l.b16 %v8870
      %v9265 = vunpack.c.l.b16 %v8871
      %v9266 = vunpack.c.l.b16 %v8872
      %v9267 = vunpack.c.l.b16 %v8873
      %v9268 = vunpack.c.l.b16 %v8874
      %v9269 = vunpack.c.l.b16 %v8875
      %v9270 = vunpack.c.l.b16 %v8876
      %v9271 = vunpack.c.l.b16 %v8877
      %v9272 = vunpack.c.l.b16 %v8878
      %v9273 = vunpack.c.l.b16 %v8879
      %v9274 = vunpack.c.l.b16 %v8880
      %v9275 = vunpack.c.l.b16 %v8881
      %v9276 = vunpack.c.l.b16 %v8882
      %v9277 = vunpack.c.l.b16 %v8883
      %v9278 = vunpack.c.l.b16 %v8884
      %v9279 = vunpack.c.l.b16 %v8885
      %v9280 = vunpack.c.l.b16 %v8886
      %v9281 = vunpack.c.l.b16 %v8887
      %v9282 = vunpack.c.l.b16 %v8888
      %v9283 = vunpack.c.l.b16 %v8889
      %v9284 = vunpack.c.l.b16 %v8890
      %v9285 = vunpack.c.l.b16 %v8891
      %v9286 = vunpack.c.l.b16 %v8892
      %v9287 = vunpack.c.l.b16 %v8893
      %v9288 = vunpack.c.l.b16 %v8894
      %v9289 = vunpack.c.l.b16 %v8895
      %v9290 = vunpack.c.l.b16 %v8896
      %v9291 = vpack.c.b16 %v9260, %v9259
      %v9292 = vpack.c.b16 %v9262, %v9261
      %v9293 = vpack.c.b16 %v9264, %v9263
      %v9294 = vpack.c.b16 %v9266, %v9265
      %v9295 = vpack.c.b16 %v9268, %v9267
      %v9296 = vpack.c.b16 %v9270, %v9269
      %v9297 = vpack.c.b16 %v9272, %v9271
      %v9298 = vpack.c.b16 %v9274, %v9273
      %v9299 = vpack.c.b16 %v9276, %v9275
      %v9300 = vpack.c.b16 %v9278, %v9277
      %v9301 = vpack.c.b16 %v9280, %v9279
      %v9302 = vpack.c.b16 %v9282, %v9281
      %v9303 = vpack.c.b16 %v9284, %v9283
      %v9304 = vpack.c.b16 %v9286, %v9285
      %v9305 = vpack.c.b16 %v9288, %v9287
      %v9306 = vpack.c.b16 %v9290, %v9289
      %v9308 = vsel %vm4835, %v9291, 0
      %v9311 = vsel %vm4835, %v9292, 0
      %v9314 = vsel %vm4835, %v9293, 0
      %v9317 = vsel %vm4835, %v9294, 0
      %v9320 = vsel %vm4835, %v9295, 0
      %v9323 = vsel %vm4835, %v9296, 0
      %v9326 = vsel %vm4835, %v9297, 0
      %v9329 = vsel %vm4835, %v9298, 0
      %v9332 = vsel %vm4835, %v9299, 0
      %v9335 = vsel %vm4835, %v9300, 0
      %v9338 = vsel %vm4835, %v9301, 0
      %v9341 = vsel %vm4835, %v9302, 0
      %v9344 = vsel %vm4835, %v9303, 0
      %v9347 = vsel %vm4835, %v9304, 0
      %v9350 = vsel %vm4835, %v9305, 0
      %v9353 = vsel %vm4835, %v9306, 0
      %9355 = vmatprep.subr.bf16.mxu0 0
      %9356 = vmatpush1.bf16.msra.mxu0 0
      %9357 = vmatprep.subr.bf16.mxu0 0
      %9358 = vmatpush1.bf16.msra.mxu0 0
      %9359 = vmatprep.subr.bf16.mxu0 0
      %9360 = vmatpush1.bf16.msra.mxu0 0
      %9361 = vmatprep.subr.bf16.mxu0 0
      %9362 = vmatpush1.bf16.msra.mxu0 0
      %9363 = vmatprep.subr.bf16.mxu0 0
      %9364 = vmatpush1.bf16.msra.mxu0 %v8900
      %9365 = vmatprep.subr.bf16.mxu0 0
      %9366 = vmatpush1.bf16.msra.mxu0 %v8899
      %9367 = vmatprep.subr.bf16.mxu0 0
      %9368 = vmatpush1.bf16.msra.mxu0 %v8898
      %9369 = vmatprep.subr.bf16.mxu0 0
      %9370 = vmatpush1.bf16.msra.mxu0 %v8897
      %9371 = vmatprep.subr.bf16.mxu0 0
      %9372 = vmatpush2.bf16.msra.mxu0 0
      %9373 = vmatprep.subr.bf16.mxu0 0
      %9374 = vmatpush2.bf16.msra.mxu0 0
      %9375 = vmatprep.subr.bf16.mxu0 0
      %9376 = vmatpush2.bf16.msra.mxu0 0
      %9377 = vmatprep.subr.bf16.mxu0 0
      %9378 = vmatpush2.bf16.msra.mxu0 0
      %9379 = vmatprep.subr.bf16.mxu0 0
      %9380 = vmatpush2.bf16.msra.mxu0 0
      %9381 = vmatprep.subr.bf16.mxu0 0
      %9382 = vmatpush2.bf16.msra.mxu0 0
      %9383 = vmatprep.subr.bf16.mxu0 0
      %9384 = vmatpush2.bf16.msra.mxu0 0
      %9385 = vmatprep.subr.bf16.mxu0 0
      %9386 = vmatpush2.bf16.msra.mxu0 0
      %9387 = vmatprep.mubr.bf16.mxu0 0
      %9388 = vmatmul.mubr.bf16.gmra.mxu0 %v9308
      %v9389 = vpop.f32.mrf.mxu0
      %v9390 = vadd.f32 %v9101, %v9389
      %v9391 = vpop.f32.mrf.mxu0
      %v9392 = vpop.f32.mrf.mxu0
      %v9393 = vadd.f32 %v9104, %v9392
      %v9394 = vpop.f32.mrf.mxu0
      %9395 = vmatprep.mubr.bf16.mxu0 0
      %9396 = vmatmul.mubr.bf16.gmra.mxu0 %v9311
      %v9397 = vpop.f32.mrf.mxu0
      %v9398 = vadd.f32 %v9109, %v9397
      %v9399 = vpop.f32.mrf.mxu0
      %v9400 = vpop.f32.mrf.mxu0
      %v9401 = vadd.f32 %v9112, %v9400
      %v9402 = vpop.f32.mrf.mxu0
      %9403 = vmatprep.mubr.bf16.mxu0 0
      %9404 = vmatmul.mubr.bf16.gmra.mxu0 %v9314
      %v9405 = vpop.f32.mrf.mxu0
      %v9406 = vadd.f32 %v9117, %v9405
      %v9407 = vpop.f32.mrf.mxu0
      %v9408 = vpop.f32.mrf.mxu0
      %v9409 = vadd.f32 %v9120, %v9408
      %v9410 = vpop.f32.mrf.mxu0
      %9411 = vmatprep.mubr.bf16.mxu0 0
      %9412 = vmatmul.mubr.bf16.gmra.mxu0 %v9317
      %v9413 = vpop.f32.mrf.mxu0
      %v9414 = vadd.f32 %v9125, %v9413
      %v9415 = vpop.f32.mrf.mxu0
      %v9416 = vpop.f32.mrf.mxu0
      %v9417 = vadd.f32 %v9128, %v9416
      %v9418 = vpop.f32.mrf.mxu0
      %9419 = vmatprep.mubr.bf16.mxu0 0
      %9420 = vmatmul.mubr.bf16.gmra.mxu0 %v9320
      %v9421 = vpop.f32.mrf.mxu0
      %v9422 = vadd.f32 %v9133, %v9421
      %v9423 = vpop.f32.mrf.mxu0
      %v9424 = vpop.f32.mrf.mxu0
      %v9425 = vadd.f32 %v9136, %v9424
      %v9426 = vpop.f32.mrf.mxu0
      %9427 = vmatprep.mubr.bf16.mxu0 0
      %9428 = vmatmul.mubr.bf16.gmra.mxu0 %v9323
      %v9429 = vpop.f32.mrf.mxu0
      %v9430 = vadd.f32 %v9141, %v9429
      %v9431 = vpop.f32.mrf.mxu0
      %v9432 = vpop.f32.mrf.mxu0
      %v9433 = vadd.f32 %v9144, %v9432
      %v9434 = vpop.f32.mrf.mxu0
      %9435 = vmatprep.mubr.bf16.mxu0 0
      %9436 = vmatmul.mubr.bf16.gmra.mxu0 %v9326
      %v9437 = vpop.f32.mrf.mxu0
      %v9438 = vadd.f32 %v9149, %v9437
      %v9439 = vpop.f32.mrf.mxu0
      %v9440 = vpop.f32.mrf.mxu0
      %v9441 = vadd.f32 %v9152, %v9440
      %v9442 = vpop.f32.mrf.mxu0
      %9443 = vmatprep.mubr.bf16.mxu0 0
      %9444 = vmatmul.mubr.bf16.gmra.mxu0 %v9329
      %v9445 = vpop.f32.mrf.mxu0
      %v9446 = vadd.f32 %v9157, %v9445
      %v9447 = vpop.f32.mrf.mxu0
      %v9448 = vpop.f32.mrf.mxu0
      %v9449 = vadd.f32 %v9160, %v9448
      %v9450 = vpop.f32.mrf.mxu0
      %9451 = vmatprep.mubr.bf16.mxu0 0
      %9452 = vmatmul.mubr.bf16.gmra.mxu0 %v9332
      %v9453 = vpop.f32.mrf.mxu0
      %v9454 = vadd.f32 %v9165, %v9453
      %v9455 = vpop.f32.mrf.mxu0
      %v9456 = vpop.f32.mrf.mxu0
      %v9457 = vadd.f32 %v9168, %v9456
      %v9458 = vpop.f32.mrf.mxu0
      %9459 = vmatprep.mubr.bf16.mxu0 0
      %9460 = vmatmul.mubr.bf16.gmra.mxu0 %v9335
      %v9461 = vpop.f32.mrf.mxu0
      %v9462 = vadd.f32 %v9173, %v9461
      %v9463 = vpop.f32.mrf.mxu0
      %v9464 = vpop.f32.mrf.mxu0
      %v9465 = vadd.f32 %v9176, %v9464
      %v9466 = vpop.f32.mrf.mxu0
      %9467 = vmatprep.mubr.bf16.mxu0 0
      %9468 = vmatmul.mubr.bf16.gmra.mxu0 %v9338
      %v9469 = vpop.f32.mrf.mxu0
      %v9470 = vadd.f32 %v9181, %v9469
      %v9471 = vpop.f32.mrf.mxu0
      %v9472 = vpop.f32.mrf.mxu0
      %v9473 = vadd.f32 %v9184, %v9472
      %v9474 = vpop.f32.mrf.mxu0
      %9475 = vmatprep.mubr.bf16.mxu0 0
      %9476 = vmatmul.mubr.bf16.gmra.mxu0 %v9341
      %v9477 = vpop.f32.mrf.mxu0
      %v9478 = vadd.f32 %v9189, %v9477
      %v9479 = vpop.f32.mrf.mxu0
      %v9480 = vpop.f32.mrf.mxu0
      %v9481 = vadd.f32 %v9192, %v9480
      %v9482 = vpop.f32.mrf.mxu0
      %9483 = vmatprep.mubr.bf16.mxu0 0
      %9484 = vmatmul.mubr.bf16.gmra.mxu0 %v9344
      %v9485 = vpop.f32.mrf.mxu0
      %v9486 = vadd.f32 %v9197, %v9485
      %v9487 = vpop.f32.mrf.mxu0
      %v9488 = vpop.f32.mrf.mxu0
      %v9489 = vadd.f32 %v9200, %v9488
      %v9490 = vpop.f32.mrf.mxu0
      %9491 = vmatprep.mubr.bf16.mxu0 0
      %9492 = vmatmul.mubr.bf16.gmra.mxu0 %v9347
      %v9493 = vpop.f32.mrf.mxu0
      %v9494 = vadd.f32 %v9205, %v9493
      %v9495 = vpop.f32.mrf.mxu0
      %v9496 = vpop.f32.mrf.mxu0
      %v9497 = vadd.f32 %v9208, %v9496
      %v9498 = vpop.f32.mrf.mxu0
      %9499 = vmatprep.mubr.bf16.mxu0 0
      %9500 = vmatmul.mubr.bf16.gmra.mxu0 %v9350
      %v9501 = vpop.f32.mrf.mxu0
      %v9502 = vadd.f32 %v9213, %v9501
      %v9503 = vpop.f32.mrf.mxu0
      %v9504 = vpop.f32.mrf.mxu0
      %v9505 = vadd.f32 %v9216, %v9504
      %v9506 = vpop.f32.mrf.mxu0
      %9507 = vmatprep.mubr.bf16.mxu0 0
      %9508 = vmatmul.mubr.bf16.gmra.mxu0 %v9353
      %v9509 = vpop.f32.mrf.mxu0
      %v9510 = vadd.f32 %v9221, %v9509
      %v9511 = vpop.f32.mrf.mxu0
      %v9512 = vpop.f32.mrf.mxu0
      %v9513 = vadd.f32 %v9224, %v9512
      %v9514 = vpop.f32.mrf.mxu0
      %9515 = vdwg.mxu0
      %s9516 = scalar_lea.vmem %s18, 256
      %v9517 = vld [vmem:[%s9516] sm:$0xf]
      %v9518 = vld [vmem:[%s9516 + $0x4] sm:$0xf]
      %v9519 = vld [vmem:[%s9516 + $0x8] sm:$0xf]
      %v9520 = vld [vmem:[%s9516 + $0xc] sm:$0xf]
      %v9521 = vld [vmem:[%s9516 + $0x10] sm:$0xf]
      %v9522 = vld [vmem:[%s9516 + $0x14] sm:$0xf]
      %v9523 = vld [vmem:[%s9516 + $0x18] sm:$0xf]
      %v9524 = vld [vmem:[%s9516 + $0x1c] sm:$0xf]
      %v9525 = vld [vmem:[%s9516 + $0x20] sm:$0xf]
      %v9526 = vld [vmem:[%s9516 + $0x24] sm:$0xf]
      %v9527 = vld [vmem:[%s9516 + $0x28] sm:$0xf]
      %v9528 = vld [vmem:[%s9516 + $0x2c] sm:$0xf]
      %v9529 = vld [vmem:[%s9516 + $0x30] sm:$0xf]
      %v9530 = vld [vmem:[%s9516 + $0x34] sm:$0xf]
      %v9531 = vld [vmem:[%s9516 + $0x38] sm:$0xf]
      %v9532 = vld [vmem:[%s9516 + $0x3c] sm:$0xf]
      %v9533 = vld [vmem:[%s9516 + $0x40] sm:$0xf]
      %v9534 = vld [vmem:[%s9516 + $0x44] sm:$0xf]
      %v9535 = vld [vmem:[%s9516 + $0x48] sm:$0xf]
      %v9536 = vld [vmem:[%s9516 + $0x4c] sm:$0xf]
      %v9537 = vld [vmem:[%s9516 + $0x50] sm:$0xf]
      %v9538 = vld [vmem:[%s9516 + $0x54] sm:$0xf]
      %v9539 = vld [vmem:[%s9516 + $0x58] sm:$0xf]
      %v9540 = vld [vmem:[%s9516 + $0x5c] sm:$0xf]
      %v9541 = vld [vmem:[%s9516 + $0x60] sm:$0xf]
      %v9542 = vld [vmem:[%s9516 + $0x64] sm:$0xf]
      %v9543 = vld [vmem:[%s9516 + $0x68] sm:$0xf]
      %v9544 = vld [vmem:[%s9516 + $0x6c] sm:$0xf]
      %v9545 = vld [vmem:[%s9516 + $0x70] sm:$0xf]
      %v9546 = vld [vmem:[%s9516 + $0x74] sm:$0xf]
      %v9547 = vld [vmem:[%s9516 + $0x78] sm:$0xf]
      %v9548 = vld [vmem:[%s9516 + $0x7c] sm:$0xf]
      %v9549 = vpack.c.bf16 %v8810, %v8809
      %v9550 = vpack.c.bf16 %v8812, %v8811
      %v9551 = vpack.c.bf16 %v8814, %v8813
      %v9552 = vpack.c.bf16 %v8816, %v8815
      %v9585 = vunpack.c.l.b16 %v9517
      %v9586 = vunpack.c.l.b16 %v9518
      %v9587 = vunpack.c.l.b16 %v9519
      %v9588 = vunpack.c.l.b16 %v9520
      %v9589 = vunpack.c.l.b16 %v9521
      %v9590 = vunpack.c.l.b16 %v9522
      %v9591 = vunpack.c.l.b16 %v9523
      %v9592 = vunpack.c.l.b16 %v9524
      %v9593 = vunpack.c.l.b16 %v9525
      %v9594 = vunpack.c.l.b16 %v9526
      %v9595 = vunpack.c.l.b16 %v9527
      %v9596 = vunpack.c.l.b16 %v9528
      %v9597 = vunpack.c.l.b16 %v9529
      %v9598 = vunpack.c.l.b16 %v9530
      %v9599 = vunpack.c.l.b16 %v9531
      %v9600 = vunpack.c.l.b16 %v9532
      %v9601 = vunpack.c.l.b16 %v9533
      %v9602 = vunpack.c.l.b16 %v9534
      %v9603 = vunpack.c.l.b16 %v9535
      %v9604 = vunpack.c.l.b16 %v9536
      %v9605 = vunpack.c.l.b16 %v9537
      %v9606 = vunpack.c.l.b16 %v9538
      %v9607 = vunpack.c.l.b16 %v9539
      %v9608 = vunpack.c.l.b16 %v9540
      %v9609 = vunpack.c.l.b16 %v9541
      %v9610 = vunpack.c.l.b16 %v9542
      %v9611 = vunpack.c.l.b16 %v9543
      %v9612 = vunpack.c.l.b16 %v9544
      %v9613 = vunpack.c.l.b16 %v9545
      %v9614 = vunpack.c.l.b16 %v9546
      %v9615 = vunpack.c.l.b16 %v9547
      %v9616 = vunpack.c.l.b16 %v9548
      %v9617 = vpack.c.b16 %v9586, %v9585
      %v9618 = vpack.c.b16 %v9588, %v9587
      %v9619 = vpack.c.b16 %v9590, %v9589
      %v9620 = vpack.c.b16 %v9592, %v9591
      %v9621 = vpack.c.b16 %v9594, %v9593
      %v9622 = vpack.c.b16 %v9596, %v9595
      %v9623 = vpack.c.b16 %v9598, %v9597
      %v9624 = vpack.c.b16 %v9600, %v9599
      %v9625 = vpack.c.b16 %v9602, %v9601
      %v9626 = vpack.c.b16 %v9604, %v9603
      %v9627 = vpack.c.b16 %v9606, %v9605
      %v9628 = vpack.c.b16 %v9608, %v9607
      %v9629 = vpack.c.b16 %v9610, %v9609
      %v9630 = vpack.c.b16 %v9612, %v9611
      %v9631 = vpack.c.b16 %v9614, %v9613
      %v9632 = vpack.c.b16 %v9616, %v9615
      %v9634 = vsel %vm4835, %v9617, 0
      %v9637 = vsel %vm4835, %v9618, 0
      %v9640 = vsel %vm4835, %v9619, 0
      %v9643 = vsel %vm4835, %v9620, 0
      %v9646 = vsel %vm4835, %v9621, 0
      %v9649 = vsel %vm4835, %v9622, 0
      %v9652 = vsel %vm4835, %v9623, 0
      %v9655 = vsel %vm4835, %v9624, 0
      %v9658 = vsel %vm4835, %v9625, 0
      %v9661 = vsel %vm4835, %v9626, 0
      %v9664 = vsel %vm4835, %v9627, 0
      %v9667 = vsel %vm4835, %v9628, 0
      %v9670 = vsel %vm4835, %v9629, 0
      %v9673 = vsel %vm4835, %v9630, 0
      %v9676 = vsel %vm4835, %v9631, 0
      %v9679 = vsel %vm4835, %v9632, 0
      %9681 = vmatprep.subr.bf16.mxu0 0
      %9682 = vmatpush1.bf16.msra.mxu0 0
      %9683 = vmatprep.subr.bf16.mxu0 0
      %9684 = vmatpush1.bf16.msra.mxu0 0
      %9685 = vmatprep.subr.bf16.mxu0 0
      %9686 = vmatpush1.bf16.msra.mxu0 0
      %9687 = vmatprep.subr.bf16.mxu0 0
      %9688 = vmatpush1.bf16.msra.mxu0 0
      %9689 = vmatprep.subr.bf16.mxu0 0
      %9690 = vmatpush1.bf16.msra.mxu0 %v9552
      %9691 = vmatprep.subr.bf16.mxu0 0
      %9692 = vmatpush1.bf16.msra.mxu0 %v9551
      %9693 = vmatprep.subr.bf16.mxu0 0
      %9694 = vmatpush1.bf16.msra.mxu0 %v9550
      %9695 = vmatprep.subr.bf16.mxu0 0
      %9696 = vmatpush1.bf16.msra.mxu0 %v9549
      %9697 = vmatprep.subr.bf16.mxu0 0
      %9698 = vmatpush2.bf16.msra.mxu0 0
      %9699 = vmatprep.subr.bf16.mxu0 0
      %9700 = vmatpush2.bf16.msra.mxu0 0
      %9701 = vmatprep.subr.bf16.mxu0 0
      %9702 = vmatpush2.bf16.msra.mxu0 0
      %9703 = vmatprep.subr.bf16.mxu0 0
      %9704 = vmatpush2.bf16.msra.mxu0 0
      %9705 = vmatprep.subr.bf16.mxu0 0
      %9706 = vmatpush2.bf16.msra.mxu0 0
      %9707 = vmatprep.subr.bf16.mxu0 0
      %9708 = vmatpush2.bf16.msra.mxu0 0
      %9709 = vmatprep.subr.bf16.mxu0 0
      %9710 = vmatpush2.bf16.msra.mxu0 0
      %9711 = vmatprep.subr.bf16.mxu0 0
      %9712 = vmatpush2.bf16.msra.mxu0 0
      %9713 = vmatprep.mubr.bf16.mxu0 0
      %9714 = vmatmul.mubr.bf16.gmra.mxu0 %v9634
      %v9715 = vpop.f32.mrf.mxu0
      %v9716 = vadd.f32 0.0, %v9715
      %v9717 = vpop.f32.mrf.mxu0
      %v9718 = vpop.f32.mrf.mxu0
      %v9719 = vadd.f32 0.0, %v9718
      %v9720 = vpop.f32.mrf.mxu0
      %9721 = vmatprep.mubr.bf16.mxu0 0
      %9722 = vmatmul.mubr.bf16.gmra.mxu0 %v9637
      %v9723 = vpop.f32.mrf.mxu0
      %v9724 = vadd.f32 0.0, %v9723
      %v9725 = vpop.f32.mrf.mxu0
      %v9726 = vpop.f32.mrf.mxu0
      %v9727 = vadd.f32 0.0, %v9726
      %v9728 = vpop.f32.mrf.mxu0
      %9729 = vmatprep.mubr.bf16.mxu0 0
      %9730 = vmatmul.mubr.bf16.gmra.mxu0 %v9640
      %v9731 = vpop.f32.mrf.mxu0
      %v9732 = vadd.f32 0.0, %v9731
      %v9733 = vpop.f32.mrf.mxu0
      %v9734 = vpop.f32.mrf.mxu0
      %v9735 = vadd.f32 0.0, %v9734
      %v9736 = vpop.f32.mrf.mxu0
      %9737 = vmatprep.mubr.bf16.mxu0 0
      %9738 = vmatmul.mubr.bf16.gmra.mxu0 %v9643
      %v9739 = vpop.f32.mrf.mxu0
      %v9740 = vadd.f32 0.0, %v9739
      %v9741 = vpop.f32.mrf.mxu0
      %v9742 = vpop.f32.mrf.mxu0
      %v9743 = vadd.f32 0.0, %v9742
      %v9744 = vpop.f32.mrf.mxu0
      %9745 = vmatprep.mubr.bf16.mxu0 0
      %9746 = vmatmul.mubr.bf16.gmra.mxu0 %v9646
      %v9747 = vpop.f32.mrf.mxu0
      %v9748 = vadd.f32 0.0, %v9747
      %v9749 = vpop.f32.mrf.mxu0
      %v9750 = vpop.f32.mrf.mxu0
      %v9751 = vadd.f32 0.0, %v9750
      %v9752 = vpop.f32.mrf.mxu0
      %9753 = vmatprep.mubr.bf16.mxu0 0
      %9754 = vmatmul.mubr.bf16.gmra.mxu0 %v9649
      %v9755 = vpop.f32.mrf.mxu0
      %v9756 = vadd.f32 0.0, %v9755
      %v9757 = vpop.f32.mrf.mxu0
      %v9758 = vpop.f32.mrf.mxu0
      %v9759 = vadd.f32 0.0, %v9758
      %v9760 = vpop.f32.mrf.mxu0
      %9761 = vmatprep.mubr.bf16.mxu0 0
      %9762 = vmatmul.mubr.bf16.gmra.mxu0 %v9652
      %v9763 = vpop.f32.mrf.mxu0
      %v9764 = vadd.f32 0.0, %v9763
      %v9765 = vpop.f32.mrf.mxu0
      %v9766 = vpop.f32.mrf.mxu0
      %v9767 = vadd.f32 0.0, %v9766
      %v9768 = vpop.f32.mrf.mxu0
      %9769 = vmatprep.mubr.bf16.mxu0 0
      %9770 = vmatmul.mubr.bf16.gmra.mxu0 %v9655
      %v9771 = vpop.f32.mrf.mxu0
      %v9772 = vadd.f32 0.0, %v9771
      %v9773 = vpop.f32.mrf.mxu0
      %v9774 = vpop.f32.mrf.mxu0
      %v9775 = vadd.f32 0.0, %v9774
      %v9776 = vpop.f32.mrf.mxu0
      %9777 = vmatprep.mubr.bf16.mxu0 0
      %9778 = vmatmul.mubr.bf16.gmra.mxu0 %v9658
      %v9779 = vpop.f32.mrf.mxu0
      %v9780 = vadd.f32 0.0, %v9779
      %v9781 = vpop.f32.mrf.mxu0
      %v9782 = vpop.f32.mrf.mxu0
      %v9783 = vadd.f32 0.0, %v9782
      %v9784 = vpop.f32.mrf.mxu0
      %9785 = vmatprep.mubr.bf16.mxu0 0
      %9786 = vmatmul.mubr.bf16.gmra.mxu0 %v9661
      %v9787 = vpop.f32.mrf.mxu0
      %v9788 = vadd.f32 0.0, %v9787
      %v9789 = vpop.f32.mrf.mxu0
      %v9790 = vpop.f32.mrf.mxu0
      %v9791 = vadd.f32 0.0, %v9790
      %v9792 = vpop.f32.mrf.mxu0
      %9793 = vmatprep.mubr.bf16.mxu0 0
      %9794 = vmatmul.mubr.bf16.gmra.mxu0 %v9664
      %v9795 = vpop.f32.mrf.mxu0
      %v9796 = vadd.f32 0.0, %v9795
      %v9797 = vpop.f32.mrf.mxu0
      %v9798 = vpop.f32.mrf.mxu0
      %v9799 = vadd.f32 0.0, %v9798
      %v9800 = vpop.f32.mrf.mxu0
      %9801 = vmatprep.mubr.bf16.mxu0 0
      %9802 = vmatmul.mubr.bf16.gmra.mxu0 %v9667
      %v9803 = vpop.f32.mrf.mxu0
      %v9804 = vadd.f32 0.0, %v9803
      %v9805 = vpop.f32.mrf.mxu0
      %v9806 = vpop.f32.mrf.mxu0
      %v9807 = vadd.f32 0.0, %v9806
      %v9808 = vpop.f32.mrf.mxu0
      %9809 = vmatprep.mubr.bf16.mxu0 0
      %9810 = vmatmul.mubr.bf16.gmra.mxu0 %v9670
      %v9811 = vpop.f32.mrf.mxu0
      %v9812 = vadd.f32 0.0, %v9811
      %v9813 = vpop.f32.mrf.mxu0
      %v9814 = vpop.f32.mrf.mxu0
      %v9815 = vadd.f32 0.0, %v9814
      %v9816 = vpop.f32.mrf.mxu0
      %9817 = vmatprep.mubr.bf16.mxu0 0
      %9818 = vmatmul.mubr.bf16.gmra.mxu0 %v9673
      %v9819 = vpop.f32.mrf.mxu0
      %v9820 = vadd.f32 0.0, %v9819
      %v9821 = vpop.f32.mrf.mxu0
      %v9822 = vpop.f32.mrf.mxu0
      %v9823 = vadd.f32 0.0, %v9822
      %v9824 = vpop.f32.mrf.mxu0
      %9825 = vmatprep.mubr.bf16.mxu0 0
      %9826 = vmatmul.mubr.bf16.gmra.mxu0 %v9676
      %v9827 = vpop.f32.mrf.mxu0
      %v9828 = vadd.f32 0.0, %v9827
      %v9829 = vpop.f32.mrf.mxu0
      %v9830 = vpop.f32.mrf.mxu0
      %v9831 = vadd.f32 0.0, %v9830
      %v9832 = vpop.f32.mrf.mxu0
      %9833 = vmatprep.mubr.bf16.mxu0 0
      %9834 = vmatmul.mubr.bf16.gmra.mxu0 %v9679
      %v9835 = vpop.f32.mrf.mxu0
      %v9836 = vadd.f32 0.0, %v9835
      %v9837 = vpop.f32.mrf.mxu0
      %v9838 = vpop.f32.mrf.mxu0
      %v9839 = vadd.f32 0.0, %v9838
      %v9840 = vpop.f32.mrf.mxu0
      %9841 = vdwg.mxu0
      %v9842 = vadd.f32 %v9390, %v9716
      %v9843 = vadd.f32 %v9393, %v9719
      %v9844 = vadd.f32 %v9398, %v9724
      %v9845 = vadd.f32 %v9401, %v9727
      %v9846 = vadd.f32 %v9406, %v9732
      %v9847 = vadd.f32 %v9409, %v9735
      %v9848 = vadd.f32 %v9414, %v9740
      %v9849 = vadd.f32 %v9417, %v9743
      %v9850 = vadd.f32 %v9422, %v9748
      %v9851 = vadd.f32 %v9425, %v9751
      %v9852 = vadd.f32 %v9430, %v9756
      %v9853 = vadd.f32 %v9433, %v9759
      %v9854 = vadd.f32 %v9438, %v9764
      %v9855 = vadd.f32 %v9441, %v9767
      %v9856 = vadd.f32 %v9446, %v9772
      %v9857 = vadd.f32 %v9449, %v9775
      %v9858 = vadd.f32 %v9454, %v9780
      %v9859 = vadd.f32 %v9457, %v9783
      %v9860 = vadd.f32 %v9462, %v9788
      %v9861 = vadd.f32 %v9465, %v9791
      %v9862 = vadd.f32 %v9470, %v9796
      %v9863 = vadd.f32 %v9473, %v9799
      %v9864 = vadd.f32 %v9478, %v9804
      %v9865 = vadd.f32 %v9481, %v9807
      %v9866 = vadd.f32 %v9486, %v9812
      %v9867 = vadd.f32 %v9489, %v9815
      %v9868 = vadd.f32 %v9494, %v9820
      %v9869 = vadd.f32 %v9497, %v9823
      %v9870 = vadd.f32 %v9502, %v9828
      %v9871 = vadd.f32 %v9505, %v9831
      %v9872 = vadd.f32 %v9510, %v9836
      %v9873 = vadd.f32 %v9513, %v9839
      %s9874 = scalar_lea.vmem %s18, 384
      %v9875 = vld [vmem:[%s9874] sm:$0xf]
      %v9876 = vld [vmem:[%s9874 + $0x4] sm:$0xf]
      %v9877 = vld [vmem:[%s9874 + $0x8] sm:$0xf]
      %v9878 = vld [vmem:[%s9874 + $0xc] sm:$0xf]
      %v9879 = vld [vmem:[%s9874 + $0x10] sm:$0xf]
      %v9880 = vld [vmem:[%s9874 + $0x14] sm:$0xf]
      %v9881 = vld [vmem:[%s9874 + $0x18] sm:$0xf]
      %v9882 = vld [vmem:[%s9874 + $0x1c] sm:$0xf]
      %v9883 = vld [vmem:[%s9874 + $0x20] sm:$0xf]
      %v9884 = vld [vmem:[%s9874 + $0x24] sm:$0xf]
      %v9885 = vld [vmem:[%s9874 + $0x28] sm:$0xf]
      %v9886 = vld [vmem:[%s9874 + $0x2c] sm:$0xf]
      %v9887 = vld [vmem:[%s9874 + $0x30] sm:$0xf]
      %v9888 = vld [vmem:[%s9874 + $0x34] sm:$0xf]
      %v9889 = vld [vmem:[%s9874 + $0x38] sm:$0xf]
      %v9890 = vld [vmem:[%s9874 + $0x3c] sm:$0xf]
      %v9891 = vld [vmem:[%s9874 + $0x40] sm:$0xf]
      %v9892 = vld [vmem:[%s9874 + $0x44] sm:$0xf]
      %v9893 = vld [vmem:[%s9874 + $0x48] sm:$0xf]
      %v9894 = vld [vmem:[%s9874 + $0x4c] sm:$0xf]
      %v9895 = vld [vmem:[%s9874 + $0x50] sm:$0xf]
      %v9896 = vld [vmem:[%s9874 + $0x54] sm:$0xf]
      %v9897 = vld [vmem:[%s9874 + $0x58] sm:$0xf]
      %v9898 = vld [vmem:[%s9874 + $0x5c] sm:$0xf]
      %v9899 = vld [vmem:[%s9874 + $0x60] sm:$0xf]
      %v9900 = vld [vmem:[%s9874 + $0x64] sm:$0xf]
      %v9901 = vld [vmem:[%s9874 + $0x68] sm:$0xf]
      %v9902 = vld [vmem:[%s9874 + $0x6c] sm:$0xf]
      %v9903 = vld [vmem:[%s9874 + $0x70] sm:$0xf]
      %v9904 = vld [vmem:[%s9874 + $0x74] sm:$0xf]
      %v9905 = vld [vmem:[%s9874 + $0x78] sm:$0xf]
      %v9906 = vld [vmem:[%s9874 + $0x7c] sm:$0xf]
      %v9907 = vpack.c.bf16 %v8858, %v8857
      %v9908 = vpack.c.bf16 %v8860, %v8859
      %v9909 = vpack.c.bf16 %v8862, %v8861
      %v9910 = vpack.c.bf16 %v8864, %v8863
      %v9943 = vunpack.c.l.b16 %v9875
      %v9944 = vunpack.c.l.b16 %v9876
      %v9945 = vunpack.c.l.b16 %v9877
      %v9946 = vunpack.c.l.b16 %v9878
      %v9947 = vunpack.c.l.b16 %v9879
      %v9948 = vunpack.c.l.b16 %v9880
      %v9949 = vunpack.c.l.b16 %v9881
      %v9950 = vunpack.c.l.b16 %v9882
      %v9951 = vunpack.c.l.b16 %v9883
      %v9952 = vunpack.c.l.b16 %v9884
      %v9953 = vunpack.c.l.b16 %v9885
      %v9954 = vunpack.c.l.b16 %v9886
      %v9955 = vunpack.c.l.b16 %v9887
      %v9956 = vunpack.c.l.b16 %v9888
      %v9957 = vunpack.c.l.b16 %v9889
      %v9958 = vunpack.c.l.b16 %v9890
      %v9959 = vunpack.c.l.b16 %v9891
      %v9960 = vunpack.c.l.b16 %v9892
      %v9961 = vunpack.c.l.b16 %v9893
      %v9962 = vunpack.c.l.b16 %v9894
      %v9963 = vunpack.c.l.b16 %v9895
      %v9964 = vunpack.c.l.b16 %v9896
      %v9965 = vunpack.c.l.b16 %v9897
      %v9966 = vunpack.c.l.b16 %v9898
      %v9967 = vunpack.c.l.b16 %v9899
      %v9968 = vunpack.c.l.b16 %v9900
      %v9969 = vunpack.c.l.b16 %v9901
      %v9970 = vunpack.c.l.b16 %v9902
      %v9971 = vunpack.c.l.b16 %v9903
      %v9972 = vunpack.c.l.b16 %v9904
      %v9973 = vunpack.c.l.b16 %v9905
      %v9974 = vunpack.c.l.b16 %v9906
      %v9975 = vpack.c.b16 %v9944, %v9943
      %v9976 = vpack.c.b16 %v9946, %v9945
      %v9977 = vpack.c.b16 %v9948, %v9947
      %v9978 = vpack.c.b16 %v9950, %v9949
      %v9979 = vpack.c.b16 %v9952, %v9951
      %v9980 = vpack.c.b16 %v9954, %v9953
      %v9981 = vpack.c.b16 %v9956, %v9955
      %v9982 = vpack.c.b16 %v9958, %v9957
      %v9983 = vpack.c.b16 %v9960, %v9959
      %v9984 = vpack.c.b16 %v9962, %v9961
      %v9985 = vpack.c.b16 %v9964, %v9963
      %v9986 = vpack.c.b16 %v9966, %v9965
      %v9987 = vpack.c.b16 %v9968, %v9967
      %v9988 = vpack.c.b16 %v9970, %v9969
      %v9989 = vpack.c.b16 %v9972, %v9971
      %v9990 = vpack.c.b16 %v9974, %v9973
      %v9992 = vsel %vm4835, %v9975, 0
      %v9995 = vsel %vm4835, %v9976, 0
      %v9998 = vsel %vm4835, %v9977, 0
      %v10001 = vsel %vm4835, %v9978, 0
      %v10004 = vsel %vm4835, %v9979, 0
      %v10007 = vsel %vm4835, %v9980, 0
      %v10010 = vsel %vm4835, %v9981, 0
      %v10013 = vsel %vm4835, %v9982, 0
      %v10016 = vsel %vm4835, %v9983, 0
      %v10019 = vsel %vm4835, %v9984, 0
      %v10022 = vsel %vm4835, %v9985, 0
      %v10025 = vsel %vm4835, %v9986, 0
      %v10028 = vsel %vm4835, %v9987, 0
      %v10031 = vsel %vm4835, %v9988, 0
      %v10034 = vsel %vm4835, %v9989, 0
      %v10037 = vsel %vm4835, %v9990, 0
      %10039 = vmatprep.subr.bf16.mxu0 0
      %10040 = vmatpush1.bf16.msra.mxu0 0
      %10041 = vmatprep.subr.bf16.mxu0 0
      %10042 = vmatpush1.bf16.msra.mxu0 0
      %10043 = vmatprep.subr.bf16.mxu0 0
      %10044 = vmatpush1.bf16.msra.mxu0 0
      %10045 = vmatprep.subr.bf16.mxu0 0
      %10046 = vmatpush1.bf16.msra.mxu0 0
      %10047 = vmatprep.subr.bf16.mxu0 0
      %10048 = vmatpush1.bf16.msra.mxu0 %v9910
      %10049 = vmatprep.subr.bf16.mxu0 0
      %10050 = vmatpush1.bf16.msra.mxu0 %v9909
      %10051 = vmatprep.subr.bf16.mxu0 0
      %10052 = vmatpush1.bf16.msra.mxu0 %v9908
      %10053 = vmatprep.subr.bf16.mxu0 0
      %10054 = vmatpush1.bf16.msra.mxu0 %v9907
      %10055 = vmatprep.subr.bf16.mxu0 0
      %10056 = vmatpush2.bf16.msra.mxu0 0
      %10057 = vmatprep.subr.bf16.mxu0 0
      %10058 = vmatpush2.bf16.msra.mxu0 0
      %10059 = vmatprep.subr.bf16.mxu0 0
      %10060 = vmatpush2.bf16.msra.mxu0 0
      %10061 = vmatprep.subr.bf16.mxu0 0
      %10062 = vmatpush2.bf16.msra.mxu0 0
      %10063 = vmatprep.subr.bf16.mxu0 0
      %10064 = vmatpush2.bf16.msra.mxu0 0
      %10065 = vmatprep.subr.bf16.mxu0 0
      %10066 = vmatpush2.bf16.msra.mxu0 0
      %10067 = vmatprep.subr.bf16.mxu0 0
      %10068 = vmatpush2.bf16.msra.mxu0 0
      %10069 = vmatprep.subr.bf16.mxu0 0
      %10070 = vmatpush2.bf16.msra.mxu0 0
      %10071 = vmatprep.mubr.bf16.mxu0 0
      %10072 = vmatmul.mubr.bf16.gmra.mxu0 %v9992
      %v10073 = vpop.f32.mrf.mxu0
      %v10074 = vadd.f32 0.0, %v10073
      %v10075 = vpop.f32.mrf.mxu0
      %v10076 = vpop.f32.mrf.mxu0
      %v10077 = vadd.f32 0.0, %v10076
      %v10078 = vpop.f32.mrf.mxu0
      %10079 = vmatprep.mubr.bf16.mxu0 0
      %10080 = vmatmul.mubr.bf16.gmra.mxu0 %v9995
      %v10081 = vpop.f32.mrf.mxu0
      %v10082 = vadd.f32 0.0, %v10081
      %v10083 = vpop.f32.mrf.mxu0
      %v10084 = vpop.f32.mrf.mxu0
      %v10085 = vadd.f32 0.0, %v10084
      %v10086 = vpop.f32.mrf.mxu0
      %10087 = vmatprep.mubr.bf16.mxu0 0
      %10088 = vmatmul.mubr.bf16.gmra.mxu0 %v9998
      %v10089 = vpop.f32.mrf.mxu0
      %v10090 = vadd.f32 0.0, %v10089
      %v10091 = vpop.f32.mrf.mxu0
      %v10092 = vpop.f32.mrf.mxu0
      %v10093 = vadd.f32 0.0, %v10092
      %v10094 = vpop.f32.mrf.mxu0
      %10095 = vmatprep.mubr.bf16.mxu0 0
      %10096 = vmatmul.mubr.bf16.gmra.mxu0 %v10001
      %v10097 = vpop.f32.mrf.mxu0
      %v10098 = vadd.f32 0.0, %v10097
      %v10099 = vpop.f32.mrf.mxu0
      %v10100 = vpop.f32.mrf.mxu0
      %v10101 = vadd.f32 0.0, %v10100
      %v10102 = vpop.f32.mrf.mxu0
      %10103 = vmatprep.mubr.bf16.mxu0 0
      %10104 = vmatmul.mubr.bf16.gmra.mxu0 %v10004
      %v10105 = vpop.f32.mrf.mxu0
      %v10106 = vadd.f32 0.0, %v10105
      %v10107 = vpop.f32.mrf.mxu0
      %v10108 = vpop.f32.mrf.mxu0
      %v10109 = vadd.f32 0.0, %v10108
      %v10110 = vpop.f32.mrf.mxu0
      %10111 = vmatprep.mubr.bf16.mxu0 0
      %10112 = vmatmul.mubr.bf16.gmra.mxu0 %v10007
      %v10113 = vpop.f32.mrf.mxu0
      %v10114 = vadd.f32 0.0, %v10113
      %v10115 = vpop.f32.mrf.mxu0
      %v10116 = vpop.f32.mrf.mxu0
      %v10117 = vadd.f32 0.0, %v10116
      %v10118 = vpop.f32.mrf.mxu0
      %10119 = vmatprep.mubr.bf16.mxu0 0
      %10120 = vmatmul.mubr.bf16.gmra.mxu0 %v10010
      %v10121 = vpop.f32.mrf.mxu0
      %v10122 = vadd.f32 0.0, %v10121
      %v10123 = vpop.f32.mrf.mxu0
      %v10124 = vpop.f32.mrf.mxu0
      %v10125 = vadd.f32 0.0, %v10124
      %v10126 = vpop.f32.mrf.mxu0
      %10127 = vmatprep.mubr.bf16.mxu0 0
      %10128 = vmatmul.mubr.bf16.gmra.mxu0 %v10013
      %v10129 = vpop.f32.mrf.mxu0
      %v10130 = vadd.f32 0.0, %v10129
      %v10131 = vpop.f32.mrf.mxu0
      %v10132 = vpop.f32.mrf.mxu0
      %v10133 = vadd.f32 0.0, %v10132
      %v10134 = vpop.f32.mrf.mxu0
      %10135 = vmatprep.mubr.bf16.mxu0 0
      %10136 = vmatmul.mubr.bf16.gmra.mxu0 %v10016
      %v10137 = vpop.f32.mrf.mxu0
      %v10138 = vadd.f32 0.0, %v10137
      %v10139 = vpop.f32.mrf.mxu0
      %v10140 = vpop.f32.mrf.mxu0
      %v10141 = vadd.f32 0.0, %v10140
      %v10142 = vpop.f32.mrf.mxu0
      %10143 = vmatprep.mubr.bf16.mxu0 0
      %10144 = vmatmul.mubr.bf16.gmra.mxu0 %v10019
      %v10145 = vpop.f32.mrf.mxu0
      %v10146 = vadd.f32 0.0, %v10145
      %v10147 = vpop.f32.mrf.mxu0
      %v10148 = vpop.f32.mrf.mxu0
      %v10149 = vadd.f32 0.0, %v10148
      %v10150 = vpop.f32.mrf.mxu0
      %10151 = vmatprep.mubr.bf16.mxu0 0
      %10152 = vmatmul.mubr.bf16.gmra.mxu0 %v10022
      %v10153 = vpop.f32.mrf.mxu0
      %v10154 = vadd.f32 0.0, %v10153
      %v10155 = vpop.f32.mrf.mxu0
      %v10156 = vpop.f32.mrf.mxu0
      %v10157 = vadd.f32 0.0, %v10156
      %v10158 = vpop.f32.mrf.mxu0
      %10159 = vmatprep.mubr.bf16.mxu0 0
      %10160 = vmatmul.mubr.bf16.gmra.mxu0 %v10025
      %v10161 = vpop.f32.mrf.mxu0
      %v10162 = vadd.f32 0.0, %v10161
      %v10163 = vpop.f32.mrf.mxu0
      %v10164 = vpop.f32.mrf.mxu0
      %v10165 = vadd.f32 0.0, %v10164
      %v10166 = vpop.f32.mrf.mxu0
      %10167 = vmatprep.mubr.bf16.mxu0 0
      %10168 = vmatmul.mubr.bf16.gmra.mxu0 %v10028
      %v10169 = vpop.f32.mrf.mxu0
      %v10170 = vadd.f32 0.0, %v10169
      %v10171 = vpop.f32.mrf.mxu0
      %v10172 = vpop.f32.mrf.mxu0
      %v10173 = vadd.f32 0.0, %v10172
      %v10174 = vpop.f32.mrf.mxu0
      %10175 = vmatprep.mubr.bf16.mxu0 0
      %10176 = vmatmul.mubr.bf16.gmra.mxu0 %v10031
      %v10177 = vpop.f32.mrf.mxu0
      %v10178 = vadd.f32 0.0, %v10177
      %v10179 = vpop.f32.mrf.mxu0
      %v10180 = vpop.f32.mrf.mxu0
      %v10181 = vadd.f32 0.0, %v10180
      %v10182 = vpop.f32.mrf.mxu0
      %10183 = vmatprep.mubr.bf16.mxu0 0
      %10184 = vmatmul.mubr.bf16.gmra.mxu0 %v10034
      %v10185 = vpop.f32.mrf.mxu0
      %v10186 = vadd.f32 0.0, %v10185
      %v10187 = vpop.f32.mrf.mxu0
      %v10188 = vpop.f32.mrf.mxu0
      %v10189 = vadd.f32 0.0, %v10188
      %v10190 = vpop.f32.mrf.mxu0
      %10191 = vmatprep.mubr.bf16.mxu0 0
      %10192 = vmatmul.mubr.bf16.gmra.mxu0 %v10037
      %v10193 = vpop.f32.mrf.mxu0
      %v10194 = vadd.f32 0.0, %v10193
      %v10195 = vpop.f32.mrf.mxu0
      %v10196 = vpop.f32.mrf.mxu0
      %v10197 = vadd.f32 0.0, %v10196
      %v10198 = vpop.f32.mrf.mxu0
      %10199 = vdwg.mxu0
      %v10200 = vadd.f32 %v9842, %v10074
      %v10201 = vadd.f32 %v9843, %v10077
      %v10202 = vadd.f32 %v9844, %v10082
      %v10203 = vadd.f32 %v9845, %v10085
      %v10204 = vadd.f32 %v9846, %v10090
      %v10205 = vadd.f32 %v9847, %v10093
      %v10206 = vadd.f32 %v9848, %v10098
      %v10207 = vadd.f32 %v9849, %v10101
      %v10208 = vadd.f32 %v9850, %v10106
      %v10209 = vadd.f32 %v9851, %v10109
      %v10210 = vadd.f32 %v9852, %v10114
      %v10211 = vadd.f32 %v9853, %v10117
      %v10212 = vadd.f32 %v9854, %v10122
      %v10213 = vadd.f32 %v9855, %v10125
      %v10214 = vadd.f32 %v9856, %v10130
      %v10215 = vadd.f32 %v9857, %v10133
      %v10216 = vadd.f32 %v9858, %v10138
      %v10217 = vadd.f32 %v9859, %v10141
      %v10218 = vadd.f32 %v9860, %v10146
      %v10219 = vadd.f32 %v9861, %v10149
      %v10220 = vadd.f32 %v9862, %v10154
      %v10221 = vadd.f32 %v9863, %v10157
      %v10222 = vadd.f32 %v9864, %v10162
      %v10223 = vadd.f32 %v9865, %v10165
      %v10224 = vadd.f32 %v9866, %v10170
      %v10225 = vadd.f32 %v9867, %v10173
      %v10226 = vadd.f32 %v9868, %v10178
      %v10227 = vadd.f32 %v9869, %v10181
      %v10228 = vadd.f32 %v9870, %v10186
      %v10229 = vadd.f32 %v9871, %v10189
      %v10230 = vadd.f32 %v9872, %v10194
      %v10231 = vadd.f32 %v9873, %v10197
      %10232 = vst.msk [vmem:[%s602] sm:$0xff] %vm636, %v10200
      %10233 = vst.msk [vmem:[%s602 + $0x8] sm:$0xff] %vm636, %v10201
      %10234 = vst.msk [vmem:[%s602 + $0x10] sm:$0xff] %vm636, %v10202
      %10235 = vst.msk [vmem:[%s602 + $0x18] sm:$0xff] %vm636, %v10203
      %10236 = vst.msk [vmem:[%s602 + $0x20] sm:$0xff] %vm636, %v10204
      %10237 = vst.msk [vmem:[%s602 + $0x28] sm:$0xff] %vm636, %v10205
      %10238 = vst.msk [vmem:[%s602 + $0x30] sm:$0xff] %vm636, %v10206
      %10239 = vst.msk [vmem:[%s602 + $0x38] sm:$0xff] %vm636, %v10207
      %10240 = vst.msk [vmem:[%s602 + $0x40] sm:$0xff] %vm636, %v10208
      %10241 = vst.msk [vmem:[%s602 + $0x48] sm:$0xff] %vm636, %v10209
      %10242 = vst.msk [vmem:[%s602 + $0x50] sm:$0xff] %vm636, %v10210
      %10243 = vst.msk [vmem:[%s602 + $0x58] sm:$0xff] %vm636, %v10211
      %10244 = vst.msk [vmem:[%s602 + $0x60] sm:$0xff] %vm636, %v10212
      %10245 = vst.msk [vmem:[%s602 + $0x68] sm:$0xff] %vm636, %v10213
      %10246 = vst.msk [vmem:[%s602 + $0x70] sm:$0xff] %vm636, %v10214
      %10247 = vst.msk [vmem:[%s602 + $0x78] sm:$0xff] %vm636, %v10215
      %10248 = vst.msk [vmem:[%s602 + $0x80] sm:$0xff] %vm636, %v10216
      %10249 = vst.msk [vmem:[%s602 + $0x88] sm:$0xff] %vm636, %v10217
      %10250 = vst.msk [vmem:[%s602 + $0x90] sm:$0xff] %vm636, %v10218
      %10251 = vst.msk [vmem:[%s602 + $0x98] sm:$0xff] %vm636, %v10219
      %10252 = vst.msk [vmem:[%s602 + $0xa0] sm:$0xff] %vm636, %v10220
      %10253 = vst.msk [vmem:[%s602 + $0xa8] sm:$0xff] %vm636, %v10221
      %10254 = vst.msk [vmem:[%s602 + $0xb0] sm:$0xff] %vm636, %v10222
      %10255 = vst.msk [vmem:[%s602 + $0xb8] sm:$0xff] %vm636, %v10223
      %10256 = vst.msk [vmem:[%s602 + $0xc0] sm:$0xff] %vm636, %v10224
      %10257 = vst.msk [vmem:[%s602 + $0xc8] sm:$0xff] %vm636, %v10225
      %10258 = vst.msk [vmem:[%s602 + $0xd0] sm:$0xff] %vm636, %v10226
      %10259 = vst.msk [vmem:[%s602 + $0xd8] sm:$0xff] %vm636, %v10227
      %10260 = vst.msk [vmem:[%s602 + $0xe0] sm:$0xff] %vm636, %v10228
      %10261 = vst.msk [vmem:[%s602 + $0xe8] sm:$0xff] %vm636, %v10229
      %10262 = vst.msk [vmem:[%s602 + $0xf0] sm:$0xff] %vm636, %v10230
      %10263 = vst.msk [vmem:[%s602 + $0xf8] sm:$0xff] %vm636, %v10231
      %p10264 = scmp.lt.s32.totalorder %s30, 1
      %s10265 = scalar_select %p10264, %s30, 1
      %s10266 = smul.addr %s10265, 32
      %s10267 = smul.addr %s10266, 8
      %s10268 = scalar_lea.vmem %s19, %s10267
      // Predicated region
      $region97: #{denoising_autoencoder_forward.1} parent=95 // pred_check
        %p10269 = pneg %p452
      $region98: #{denoising_autoencoder_forward.1} parent=95 // pred_check_branch
        %10271 = sbr.rel (%p10269) target = $region100
      $region99: #{denoising_autoencoder_forward.1} parent=95 // pred_region
        _
      $region100: #{denoising_autoencoder_forward.1} parent=95 // pred_fallthru
        _
    $region96: #{denoising_autoencoder_forward.1} parent=5 // pred_fallthru
      _
    %p10272 = scmp.le.s32.totalorder 2, %s25
    // Predicated region
    $region101: #{denoising_autoencoder_forward.1} parent=5 // pred_check
      %p10273 = pneg %p10272
    $region102: #{denoising_autoencoder_forward.1} parent=5 // pred_check_branch
      %10275 = sbr.rel (%p10273) target = $region104
    $region103: #{denoising_autoencoder_forward.1} parent=5 // pred_region
      %s10276 = ssub.s32 %s25, 2
      // Predicated region
      $region105: #{denoising_autoencoder_forward.1} parent=103 // pred_check
        %p10277 = pneg %p458
      $region106: #{denoising_autoencoder_forward.1} parent=103 // pred_check_branch
        %10279 = sbr.rel (%p10277) target = $region108
      $region107: #{denoising_autoencoder_forward.1} parent=103 // pred_region
        %p10280 = scmp.lt.s32.totalorder %s31, 1
        %s10281 = scalar_select %p10280, %s31, 1
        %s10282 = smul.addr %s10281, 32
        %s10283 = smul.addr %s10282, 8
        %s10284 = scalar_lea.vmem %s19, %s10283
      $region108: #{denoising_autoencoder_forward.1} parent=103 // pred_fallthru
        _
    $region104: #{denoising_autoencoder_forward.1} parent=5 // pred_fallthru
      _
  $region6: #{denoising_autoencoder_forward.1} parent=0 // loop_footer
    %s29 = sadd.s32 1, %s25
  $region7: #{denoising_autoencoder_forward.1} parent=0 // loop_footer_branch
    %24 = sbr.rel target = $region3
  $region8: #{denoising_autoencoder_forward.1} parent=0 // loop_exit
    _

</llo_original>
